<compile_context>
chip_gen: v6e
topology: v6e:2x2x1
jax: 0.10.0
libtpu: 0.0.40
codegen_flags: <defaults>
</compile_context>

<pallas_src>
import jax
import jax.numpy as jnp
from jax.experimental import pallas as pl
from jax.experimental.pallas import tpu as pltpu

OUT_W = 22      # extend_w: Linear(width  -> 22)
OUT_L = 1024    # extend_l: Linear(length -> 1024)
TL = 128        # output-row tile of the second matmul (keeps live vregs < 64)


def extend_kernel(x_ref, wwT_ref, wl_ref, bw_ref, bl_ref, o_ref):
    # x_ref  : (C, H, W)          input slab for this batch index (native dtype)
    # wwT_ref: (W, OUT_W)   bf16  extend_w weight, transposed
    # wl_ref : (OUT_L, H)   bf16  extend_l weight (natural layout, streamed as LHS)
    # bw_ref : (1, OUT_W)   f32   extend_w bias (row)
    # bl_ref : (OUT_L, 1)   f32   extend_l bias (column)
    # o_ref  : (C, OUT_L, OUT_W)  output, already in the module's final layout
    C, H, W = x_ref.shape
    out_w = wwT_ref.shape[1]
    out_l = wl_ref.shape[0]
    n_tiles = out_l // TL

    # ---- first linear (along W), batched over all channels on one MXU call ----
    x2 = x_ref[...].reshape(C * H, W).astype(wwT_ref.dtype)        # (C*H, W) bf16
    y1 = jnp.dot(x2, wwT_ref[...], preferred_element_type=jnp.float32)
    y1 = (y1 + bw_ref[...]).astype(wl_ref.dtype).reshape(C, H, out_w)

    # ---- second linear (along H), emitted directly as (OUT_L, OUT_W) ----
    for c in range(C):                      # small static loop over channels
        y1c = y1[c]                         # (H, 22) bf16 — stationary MXU operand
        for t in range(n_tiles):            # row-tiles of 128 -> short live ranges
            r0 = t * TL
            wl_t = wl_ref[r0:r0 + TL, :]    # (TL, H) bf16, streamed LHS
            y2 = jnp.dot(wl_t, y1c, preferred_element_type=jnp.float32)  # (TL, 22)
            o_ref[c, r0:r0 + TL, :] = (
                y2 + bl_ref[r0:r0 + TL, :]).astype(o_ref.dtype)


def prepare_extend_params(ww, bw, wl, bl):
    """One-time weight preprocessing (hoisted out of the per-call forward path).

    ww: (22, W)  bw: (22,)  wl: (1024, H)  bl: (1024,)
    """
    wwT = jnp.asarray(ww).T.astype(jnp.bfloat16)                 # (W, 22)
    wl_bf = jnp.asarray(wl).astype(jnp.bfloat16)                 # (1024, H)
    bw2 = jnp.asarray(bw, dtype=jnp.float32).reshape(1, -1)      # (1, 22)
    bl2 = jnp.asarray(bl, dtype=jnp.float32).reshape(-1, 1)      # (1024, 1)
    return wwT, wl_bf, bw2, bl2


def extend_forward(x, params):
    """x: (B, C, H, W); returns (B, C, 1024, 22) — same as the PyTorch module."""
    wwT, wl_bf, bw2, bl2 = params
    B, C, H, W = x.shape
    out_w = wwT.shape[1]
    out_l = wl_bf.shape[0]
    assert out_l % TL == 0

    grid_spec = pltpu.PrefetchScalarGridSpec(
        num_scalar_prefetch=0,
        grid=(B,),   # >=2 parallel steps keeps both v7x TCs busy; cheap on v5e/v6e
        in_specs=[
            pl.BlockSpec((None, C, H, W), lambda b: (b, 0, 0, 0)),
            pl.BlockSpec((W, out_w), lambda b: (0, 0)),       # constant index maps:
            pl.BlockSpec((out_l, H), lambda b: (0, 0)),       # weights/bias DMA'd once
            pl.BlockSpec((1, out_w), lambda b: (0, 0)),
            pl.BlockSpec((out_l, 1), lambda b: (0, 0)),
        ],
        out_specs=pl.BlockSpec((None, C, out_l, out_w), lambda b: (b, 0, 0, 0)),
    )

    return pl.pallas_call(
        extend_kernel,
        out_shape=jax.ShapeDtypeStruct((B, C, out_l, out_w), x.dtype),
        grid_spec=grid_spec,
        compiler_params=pltpu.CompilerParams(
            dimension_semantics=("parallel",)),
    )(x, wwT, wl_bf, bw2, bl2)


def extend_reference(x, ww, bw, wl, bl):
    y = jnp.einsum("bchw,ow->bcho", x, ww) + bw            # extend_w
    y = jnp.swapaxes(y, -1, -2)                            # b c h w -> b c w h
    y = jnp.einsum("bcwh,oh->bcwo", y, wl) + bl            # extend_l
    y = jnp.swapaxes(y, -1, -2)                            # b c w h -> b c h w
    return y


if __name__ == "__main__":
    # Small shapes consistent with the module: Extend(length=32, width=16)
    B, C, H, W = 2, 4, 32, 16

    key = jax.random.PRNGKey(0)
    kx, kw1, kb1, kw2, kb2 = jax.random.split(key, 5)

    x = jax.random.normal(kx, (B, C, H, W), dtype=jnp.float32)

    # Deterministic PyTorch-style Linear init: U(-1/sqrt(fan_in), 1/sqrt(fan_in))
    bound_w = 1.0 / jnp.sqrt(W)
    ww = jax.random.uniform(kw1, (OUT_W, W), jnp.float32, -bound_w, bound_w)
    bw = jax.random.uniform(kb1, (OUT_W,), jnp.float32, -bound_w, bound_w)
    bound_l = 1.0 / jnp.sqrt(H)
    wl = jax.random.uniform(kw2, (OUT_L, H), jnp.float32, -bound_l, bound_l)
    bl = jax.random.uniform(kb2, (OUT_L,), jnp.float32, -bound_l, bound_l)

    params = prepare_extend_params(ww, bw, wl, bl)   # one-time, outside forward
    fwd = jax.jit(extend_forward)

    out = jax.block_until_ready(fwd(x, params))

    ref = extend_reference(x, ww, bw, wl, bl)
    assert out.shape == (B, C, OUT_L, OUT_W), out.shape
    # bf16 matmul operands with f32 accumulation -> loosened tolerance vs f32 ref.
    assert jnp.allclose(out, ref, atol=3e-2, rtol=3e-2), \
        float(jnp.max(jnp.abs(out - ref)))

    print("KERNEL_OK")
</pallas_src>

<mosaic_0001>
module attributes {stable_mosaic.version = 11 : i64} {
  func.func @extend_kernel(%arg0: i32, %arg1: memref<1x4x32x16xf32, #tpu.memory_space<vmem>>, %arg2: memref<16x22xbf16, #tpu.memory_space<vmem>>, %arg3: memref<1024x32xbf16, #tpu.memory_space<vmem>>, %arg4: memref<1x22xf32, #tpu.memory_space<vmem>>, %arg5: memref<1024x1xf32, #tpu.memory_space<vmem>>, %arg6: memref<1x4x1024x22xf32, #tpu.memory_space<vmem>>) attributes {dimension_semantics = [#tpu.dimension_semantics<parallel>], iteration_bounds = array<i64: 2>, scalar_prefetch = 0 : i64, scratch_operands = 0 : i64, tpu.core_type = #tpu.core_type<tc>, window_params = [{transform_indices = @transform_0, window_bounds = array<i64: 1, 4, 32, 16>}, {pipeline_mode = #tpu.pipeline_mode<synchronous>, transform_indices = @transform_1, window_bounds = array<i64: 16, 22>}, {pipeline_mode = #tpu.pipeline_mode<synchronous>, transform_indices = @transform_2, window_bounds = array<i64: 1024, 32>}, {pipeline_mode = #tpu.pipeline_mode<synchronous>, transform_indices = @transform_3, window_bounds = array<i64: 1, 22>}, {pipeline_mode = #tpu.pipeline_mode<synchronous>, transform_indices = @transform_4, window_bounds = array<i64: 1024, 1>}, {transform_indices = @transform_5, window_bounds = array<i64: 1, 4, 1024, 22>}]} {
    %c0 = arith.constant 0 : index
    %c0_0 = arith.constant 0 : index
    %c0_1 = arith.constant 0 : index
    %c0_2 = arith.constant 0 : index
    %0 = vector.load %arg1[%c0, %c0_0, %c0_1, %c0_2] : memref<1x4x32x16xf32, #tpu.memory_space<vmem>>, vector<1x4x32x16xf32>
    %1 = vector.shape_cast %0 : vector<1x4x32x16xf32> to vector<4x32x16xf32>
    %2 = vector.shape_cast %1 : vector<4x32x16xf32> to vector<128x16xf32>
    %3 = arith.truncf %2 : vector<128x16xf32> to vector<128x16xbf16>
    %c0_3 = arith.constant 0 : index
    %c0_4 = arith.constant 0 : index
    %4 = vector.load %arg2[%c0_3, %c0_4] : memref<16x22xbf16, #tpu.memory_space<vmem>>, vector<16x22xbf16>
    %cst = arith.constant dense<0.000000e+00> : vector<128x22xf32>
    %5 = tpu.matmul %3, %4, %cst {dimension_numbers = #tpu.dot_dimension_numbers<[1], [0], [0], [1], [0, 0, 1, 1], [], []>} : vector<128x16xbf16>, vector<16x22xbf16>, vector<128x22xf32> -> vector<128x22xf32>
    %c0_5 = arith.constant 0 : index
    %c0_6 = arith.constant 0 : index
    %6 = vector.load %arg4[%c0_5, %c0_6] : memref<1x22xf32, #tpu.memory_space<vmem>>, vector<1x22xf32>
    %7 = vector.broadcast %6 : vector<1x22xf32> to vector<128x22xf32>
    %8 = arith.addf %5, %7 : vector<128x22xf32>
    %9 = arith.truncf %8 : vector<128x22xf32> to vector<128x22xbf16>
    %10 = vector.shape_cast %9 : vector<128x22xbf16> to vector<4x32x22xbf16>
    %11 = vector.extract_strided_slice %10 {offsets = [0, 0, 0], sizes = [1, 32, 22], strides = [1, 1, 1]} : vector<4x32x22xbf16> to vector<1x32x22xbf16>
    %12 = vector.shape_cast %11 : vector<1x32x22xbf16> to vector<32x22xbf16>
    %c0_7 = arith.constant 0 : index
    %c0_8 = arith.constant 0 : index
    %13 = vector.load %arg3[%c0_7, %c0_8] : memref<1024x32xbf16, #tpu.memory_space<vmem>>, vector<128x32xbf16>
    %cst_9 = arith.constant dense<0.000000e+00> : vector<128x22xf32>
    %14 = tpu.matmul %13, %12, %cst_9 {dimension_numbers = #tpu.dot_dimension_numbers<[1], [0], [0], [1], [0, 0, 1, 1], [], []>} : vector<128x32xbf16>, vector<32x22xbf16>, vector<128x22xf32> -> vector<128x22xf32>
    %c0_10 = arith.constant 0 : index
    %c0_11 = arith.constant 0 : index
    %15 = vector.load %arg5[%c0_10, %c0_11] : memref<1024x1xf32, #tpu.memory_space<vmem>>, vector<128x1xf32>
    %16 = vector.broadcast %15 : vector<128x1xf32> to vector<128x22xf32>
    %17 = arith.addf %14, %16 : vector<128x22xf32>
    %c0_12 = arith.constant 0 : index
    %c0_13 = arith.constant 0 : index
    %c0_14 = arith.constant 0 : index
    %c0_15 = arith.constant 0 : index
    %18 = vector.load %arg6[%c0_12, %c0_13, %c0_14, %c0_15] : memref<1x4x1024x22xf32, #tpu.memory_space<vmem>>, vector<1x1x128x22xf32>
    %19 = vector.shape_cast %18 : vector<1x1x128x22xf32> to vector<128x22xf32>
    %20 = vector.shape_cast %17 : vector<128x22xf32> to vector<1x1x128x22xf32>
    tpu.vector_store %arg6[%c0_12, %c0_13, %c0_14, %c0_15], %20 {strides = array<i32>} : memref<1x4x1024x22xf32, #tpu.memory_space<vmem>>, vector<1x1x128x22xf32>,
    %c128 = arith.constant 128 : index
    %c0_16 = arith.constant 0 : index
    %21 = vector.load %arg3[%c128, %c0_16] : memref<1024x32xbf16, #tpu.memory_space<vmem>>, vector<128x32xbf16>
    %cst_17 = arith.constant dense<0.000000e+00> : vector<128x22xf32>
    %22 = tpu.matmul %21, %12, %cst_17 {dimension_numbers = #tpu.dot_dimension_numbers<[1], [0], [0], [1], [0, 0, 1, 1], [], []>} : vector<128x32xbf16>, vector<32x22xbf16>, vector<128x22xf32> -> vector<128x22xf32>
    %c128_18 = arith.constant 128 : index
    %c0_19 = arith.constant 0 : index
    %23 = vector.load %arg5[%c128_18, %c0_19] : memref<1024x1xf32, #tpu.memory_space<vmem>>, vector<128x1xf32>
    %24 = vector.broadcast %23 : vector<128x1xf32> to vector<128x22xf32>
    %25 = arith.addf %22, %24 : vector<128x22xf32>
    %c0_20 = arith.constant 0 : index
    %c0_21 = arith.constant 0 : index
    %c128_22 = arith.constant 128 : index
    %c0_23 = arith.constant 0 : index
    %26 = vector.load %arg6[%c0_20, %c0_21, %c128_22, %c0_23] : memref<1x4x1024x22xf32, #tpu.memory_space<vmem>>, vector<1x1x128x22xf32>
    %27 = vector.shape_cast %26 : vector<1x1x128x22xf32> to vector<128x22xf32>
    %28 = vector.shape_cast %25 : vector<128x22xf32> to vector<1x1x128x22xf32>
    tpu.vector_store %arg6[%c0_20, %c0_21, %c128_22, %c0_23], %28 {strides = array<i32>} : memref<1x4x1024x22xf32, #tpu.memory_space<vmem>>, vector<1x1x128x22xf32>,
    %c256 = arith.constant 256 : index
    %c0_24 = arith.constant 0 : index
    %29 = vector.load %arg3[%c256, %c0_24] : memref<1024x32xbf16, #tpu.memory_space<vmem>>, vector<128x32xbf16>
    %cst_25 = arith.constant dense<0.000000e+00> : vector<128x22xf32>
    %30 = tpu.matmul %29, %12, %cst_25 {dimension_numbers = #tpu.dot_dimension_numbers<[1], [0], [0], [1], [0, 0, 1, 1], [], []>} : vector<128x32xbf16>, vector<32x22xbf16>, vector<128x22xf32> -> vector<128x22xf32>
    %c256_26 = arith.constant 256 : index
    %c0_27 = arith.constant 0 : index
    %31 = vector.load %arg5[%c256_26, %c0_27] : memref<1024x1xf32, #tpu.memory_space<vmem>>, vector<128x1xf32>
    %32 = vector.broadcast %31 : vector<128x1xf32> to vector<128x22xf32>
    %33 = arith.addf %30, %32 : vector<128x22xf32>
    %c0_28 = arith.constant 0 : index
    %c0_29 = arith.constant 0 : index
    %c256_30 = arith.constant 256 : index
    %c0_31 = arith.constant 0 : index
    %34 = vector.load %arg6[%c0_28, %c0_29, %c256_30, %c0_31] : memref<1x4x1024x22xf32, #tpu.memory_space<vmem>>, vector<1x1x128x22xf32>
    %35 = vector.shape_cast %34 : vector<1x1x128x22xf32> to vector<128x22xf32>
    %36 = vector.shape_cast %33 : vector<128x22xf32> to vector<1x1x128x22xf32>
    tpu.vector_store %arg6[%c0_28, %c0_29, %c256_30, %c0_31], %36 {strides = array<i32>} : memref<1x4x1024x22xf32, #tpu.memory_space<vmem>>, vector<1x1x128x22xf32>,
    %c384 = arith.constant 384 : index
    %c0_32 = arith.constant 0 : index
    %37 = vector.load %arg3[%c384, %c0_32] : memref<1024x32xbf16, #tpu.memory_space<vmem>>, vector<128x32xbf16>
    %cst_33 = arith.constant dense<0.000000e+00> : vector<128x22xf32>
    %38 = tpu.matmul %37, %12, %cst_33 {dimension_numbers = #tpu.dot_dimension_numbers<[1], [0], [0], [1], [0, 0, 1, 1], [], []>} : vector<128x32xbf16>, vector<32x22xbf16>, vector<128x22xf32> -> vector<128x22xf32>
    %c384_34 = arith.constant 384 : index
    %c0_35 = arith.constant 0 : index
    %39 = vector.load %arg5[%c384_34, %c0_35] : memref<1024x1xf32, #tpu.memory_space<vmem>>, vector<128x1xf32>
    %40 = vector.broadcast %39 : vector<128x1xf32> to vector<128x22xf32>
    %41 = arith.addf %38, %40 : vector<128x22xf32>
    %c0_36 = arith.constant 0 : index
    %c0_37 = arith.constant 0 : index
    %c384_38 = arith.constant 384 : index
    %c0_39 = arith.constant 0 : index
    %42 = vector.load %arg6[%c0_36, %c0_37, %c384_38, %c0_39] : memref<1x4x1024x22xf32, #tpu.memory_space<vmem>>, vector<1x1x128x22xf32>
    %43 = vector.shape_cast %42 : vector<1x1x128x22xf32> to vector<128x22xf32>
    %44 = vector.shape_cast %41 : vector<128x22xf32> to vector<1x1x128x22xf32>
    tpu.vector_store %arg6[%c0_36, %c0_37, %c384_38, %c0_39], %44 {strides = array<i32>} : memref<1x4x1024x22xf32, #tpu.memory_space<vmem>>, vector<1x1x128x22xf32>,
    %c512 = arith.constant 512 : index
    %c0_40 = arith.constant 0 : index
    %45 = vector.load %arg3[%c512, %c0_40] : memref<1024x32xbf16, #tpu.memory_space<vmem>>, vector<128x32xbf16>
    %cst_41 = arith.constant dense<0.000000e+00> : vector<128x22xf32>
    %46 = tpu.matmul %45, %12, %cst_41 {dimension_numbers = #tpu.dot_dimension_numbers<[1], [0], [0], [1], [0, 0, 1, 1], [], []>} : vector<128x32xbf16>, vector<32x22xbf16>, vector<128x22xf32> -> vector<128x22xf32>
    %c512_42 = arith.constant 512 : index
    %c0_43 = arith.constant 0 : index
    %47 = vector.load %arg5[%c512_42, %c0_43] : memref<1024x1xf32, #tpu.memory_space<vmem>>, vector<128x1xf32>
    %48 = vector.broadcast %47 : vector<128x1xf32> to vector<128x22xf32>
    %49 = arith.addf %46, %48 : vector<128x22xf32>
    %c0_44 = arith.constant 0 : index
    %c0_45 = arith.constant 0 : index
    %c512_46 = arith.constant 512 : index
    %c0_47 = arith.constant 0 : index
    %50 = vector.load %arg6[%c0_44, %c0_45, %c512_46, %c0_47] : memref<1x4x1024x22xf32, #tpu.memory_space<vmem>>, vector<1x1x128x22xf32>
    %51 = vector.shape_cast %50 : vector<1x1x128x22xf32> to vector<128x22xf32>
    %52 = vector.shape_cast %49 : vector<128x22xf32> to vector<1x1x128x22xf32>
    tpu.vector_store %arg6[%c0_44, %c0_45, %c512_46, %c0_47], %52 {strides = array<i32>} : memref<1x4x1024x22xf32, #tpu.memory_space<vmem>>, vector<1x1x128x22xf32>,
    %c640 = arith.constant 640 : index
    %c0_48 = arith.constant 0 : index
    %53 = vector.load %arg3[%c640, %c0_48] : memref<1024x32xbf16, #tpu.memory_space<vmem>>, vector<128x32xbf16>
    %cst_49 = arith.constant dense<0.000000e+00> : vector<128x22xf32>
    %54 = tpu.matmul %53, %12, %cst_49 {dimension_numbers = #tpu.dot_dimension_numbers<[1], [0], [0], [1], [0, 0, 1, 1], [], []>} : vector<128x32xbf16>, vector<32x22xbf16>, vector<128x22xf32> -> vector<128x22xf32>
    %c640_50 = arith.constant 640 : index
    %c0_51 = arith.constant 0 : index
    %55 = vector.load %arg5[%c640_50, %c0_51] : memref<1024x1xf32, #tpu.memory_space<vmem>>, vector<128x1xf32>
    %56 = vector.broadcast %55 : vector<128x1xf32> to vector<128x22xf32>
    %57 = arith.addf %54, %56 : vector<128x22xf32>
    %c0_52 = arith.constant 0 : index
    %c0_53 = arith.constant 0 : index
    %c640_54 = arith.constant 640 : index
    %c0_55 = arith.constant 0 : index
    %58 = vector.load %arg6[%c0_52, %c0_53, %c640_54, %c0_55] : memref<1x4x1024x22xf32, #tpu.memory_space<vmem>>, vector<1x1x128x22xf32>
    %59 = vector.shape_cast %58 : vector<1x1x128x22xf32> to vector<128x22xf32>
    %60 = vector.shape_cast %57 : vector<128x22xf32> to vector<1x1x128x22xf32>
    tpu.vector_store %arg6[%c0_52, %c0_53, %c640_54, %c0_55], %60 {strides = array<i32>} : memref<1x4x1024x22xf32, #tpu.memory_space<vmem>>, vector<1x1x128x22xf32>,
    %c768 = arith.constant 768 : index
    %c0_56 = arith.constant 0 : index
    %61 = vector.load %arg3[%c768, %c0_56] : memref<1024x32xbf16, #tpu.memory_space<vmem>>, vector<128x32xbf16>
    %cst_57 = arith.constant dense<0.000000e+00> : vector<128x22xf32>
    %62 = tpu.matmul %61, %12, %cst_57 {dimension_numbers = #tpu.dot_dimension_numbers<[1], [0], [0], [1], [0, 0, 1, 1], [], []>} : vector<128x32xbf16>, vector<32x22xbf16>, vector<128x22xf32> -> vector<128x22xf32>
    %c768_58 = arith.constant 768 : index
    %c0_59 = arith.constant 0 : index
    %63 = vector.load %arg5[%c768_58, %c0_59] : memref<1024x1xf32, #tpu.memory_space<vmem>>, vector<128x1xf32>
    %64 = vector.broadcast %63 : vector<128x1xf32> to vector<128x22xf32>
    %65 = arith.addf %62, %64 : vector<128x22xf32>
    %c0_60 = arith.constant 0 : index
    %c0_61 = arith.constant 0 : index
    %c768_62 = arith.constant 768 : index
    %c0_63 = arith.constant 0 : index
    %66 = vector.load %arg6[%c0_60, %c0_61, %c768_62, %c0_63] : memref<1x4x1024x22xf32, #tpu.memory_space<vmem>>, vector<1x1x128x22xf32>
    %67 = vector.shape_cast %66 : vector<1x1x128x22xf32> to vector<128x22xf32>
    %68 = vector.shape_cast %65 : vector<128x22xf32> to vector<1x1x128x22xf32>
    tpu.vector_store %arg6[%c0_60, %c0_61, %c768_62, %c0_63], %68 {strides = array<i32>} : memref<1x4x1024x22xf32, #tpu.memory_space<vmem>>, vector<1x1x128x22xf32>,
    %c896 = arith.constant 896 : index
    %c0_64 = arith.constant 0 : index
    %69 = vector.load %arg3[%c896, %c0_64] : memref<1024x32xbf16, #tpu.memory_space<vmem>>, vector<128x32xbf16>
    %cst_65 = arith.constant dense<0.000000e+00> : vector<128x22xf32>
    %70 = tpu.matmul %69, %12, %cst_65 {dimension_numbers = #tpu.dot_dimension_numbers<[1], [0], [0], [1], [0, 0, 1, 1], [], []>} : vector<128x32xbf16>, vector<32x22xbf16>, vector<128x22xf32> -> vector<128x22xf32>
    %c896_66 = arith.constant 896 : index
    %c0_67 = arith.constant 0 : index
    %71 = vector.load %arg5[%c896_66, %c0_67] : memref<1024x1xf32, #tpu.memory_space<vmem>>, vector<128x1xf32>
    %72 = vector.broadcast %71 : vector<128x1xf32> to vector<128x22xf32>
    %73 = arith.addf %70, %72 : vector<128x22xf32>
    %c0_68 = arith.constant 0 : index
    %c0_69 = arith.constant 0 : index
    %c896_70 = arith.constant 896 : index
    %c0_71 = arith.constant 0 : index
    %74 = vector.load %arg6[%c0_68, %c0_69, %c896_70, %c0_71] : memref<1x4x1024x22xf32, #tpu.memory_space<vmem>>, vector<1x1x128x22xf32>
    %75 = vector.shape_cast %74 : vector<1x1x128x22xf32> to vector<128x22xf32>
    %76 = vector.shape_cast %73 : vector<128x22xf32> to vector<1x1x128x22xf32>
    tpu.vector_store %arg6[%c0_68, %c0_69, %c896_70, %c0_71], %76 {strides = array<i32>} : memref<1x4x1024x22xf32, #tpu.memory_space<vmem>>, vector<1x1x128x22xf32>,
    %77 = vector.extract_strided_slice %10 {offsets = [1, 0, 0], sizes = [1, 32, 22], strides = [1, 1, 1]} : vector<4x32x22xbf16> to vector<1x32x22xbf16>
    %78 = vector.shape_cast %77 : vector<1x32x22xbf16> to vector<32x22xbf16>
    %c0_72 = arith.constant 0 : index
    %c0_73 = arith.constant 0 : index
    %79 = vector.load %arg3[%c0_72, %c0_73] : memref<1024x32xbf16, #tpu.memory_space<vmem>>, vector<128x32xbf16>
    %cst_74 = arith.constant dense<0.000000e+00> : vector<128x22xf32>
    %80 = tpu.matmul %79, %78, %cst_74 {dimension_numbers = #tpu.dot_dimension_numbers<[1], [0], [0], [1], [0, 0, 1, 1], [], []>} : vector<128x32xbf16>, vector<32x22xbf16>, vector<128x22xf32> -> vector<128x22xf32>
    %c0_75 = arith.constant 0 : index
    %c0_76 = arith.constant 0 : index
    %81 = vector.load %arg5[%c0_75, %c0_76] : memref<1024x1xf32, #tpu.memory_space<vmem>>, vector<128x1xf32>
    %82 = vector.broadcast %81 : vector<128x1xf32> to vector<128x22xf32>
    %83 = arith.addf %80, %82 : vector<128x22xf32>
    %c0_77 = arith.constant 0 : index
    %c1 = arith.constant 1 : index
    %c0_78 = arith.constant 0 : index
    %c0_79 = arith.constant 0 : index
    %84 = vector.load %arg6[%c0_77, %c1, %c0_78, %c0_79] : memref<1x4x1024x22xf32, #tpu.memory_space<vmem>>, vector<1x1x128x22xf32>
    %85 = vector.shape_cast %84 : vector<1x1x128x22xf32> to vector<128x22xf32>
    %86 = vector.shape_cast %83 : vector<128x22xf32> to vector<1x1x128x22xf32>
    tpu.vector_store %arg6[%c0_77, %c1, %c0_78, %c0_79], %86 {strides = array<i32>} : memref<1x4x1024x22xf32, #tpu.memory_space<vmem>>, vector<1x1x128x22xf32>,
    %c128_80 = arith.constant 128 : index
    %c0_81 = arith.constant 0 : index
    %87 = vector.load %arg3[%c128_80, %c0_81] : memref<1024x32xbf16, #tpu.memory_space<vmem>>, vector<128x32xbf16>
    %cst_82 = arith.constant dense<0.000000e+00> : vector<128x22xf32>
    %88 = tpu.matmul %87, %78, %cst_82 {dimension_numbers = #tpu.dot_dimension_numbers<[1], [0], [0], [1], [0, 0, 1, 1], [], []>} : vector<128x32xbf16>, vector<32x22xbf16>, vector<128x22xf32> -> vector<128x22xf32>
    %c128_83 = arith.constant 128 : index
    %c0_84 = arith.constant 0 : index
    %89 = vector.load %arg5[%c128_83, %c0_84] : memref<1024x1xf32, #tpu.memory_space<vmem>>, vector<128x1xf32>
    %90 = vector.broadcast %89 : vector<128x1xf32> to vector<128x22xf32>
    %91 = arith.addf %88, %90 : vector<128x22xf32>
    %c0_85 = arith.constant 0 : index
    %c1_86 = arith.constant 1 : index
    %c128_87 = arith.constant 128 : index
    %c0_88 = arith.constant 0 : index
    %92 = vector.load %arg6[%c0_85, %c1_86, %c128_87, %c0_88] : memref<1x4x1024x22xf32, #tpu.memory_space<vmem>>, vector<1x1x128x22xf32>
    %93 = vector.shape_cast %92 : vector<1x1x128x22xf32> to vector<128x22xf32>
    %94 = vector.shape_cast %91 : vector<128x22xf32> to vector<1x1x128x22xf32>
    tpu.vector_store %arg6[%c0_85, %c1_86, %c128_87, %c0_88], %94 {strides = array<i32>} : memref<1x4x1024x22xf32, #tpu.memory_space<vmem>>, vector<1x1x128x22xf32>,
    %c256_89 = arith.constant 256 : index
    %c0_90 = arith.constant 0 : index
    %95 = vector.load %arg3[%c256_89, %c0_90] : memref<1024x32xbf16, #tpu.memory_space<vmem>>, vector<128x32xbf16>
    %cst_91 = arith.constant dense<0.000000e+00> : vector<128x22xf32>
    %96 = tpu.matmul %95, %78, %cst_91 {dimension_numbers = #tpu.dot_dimension_numbers<[1], [0], [0], [1], [0, 0, 1, 1], [], []>} : vector<128x32xbf16>, vector<32x22xbf16>, vector<128x22xf32> -> vector<128x22xf32>
    %c256_92 = arith.constant 256 : index
    %c0_93 = arith.constant 0 : index
    %97 = vector.load %arg5[%c256_92, %c0_93] : memref<1024x1xf32, #tpu.memory_space<vmem>>, vector<128x1xf32>
    %98 = vector.broadcast %97 : vector<128x1xf32> to vector<128x22xf32>
    %99 = arith.addf %96, %98 : vector<128x22xf32>
    %c0_94 = arith.constant 0 : index
    %c1_95 = arith.constant 1 : index
    %c256_96 = arith.constant 256 : index
    %c0_97 = arith.constant 0 : index
    %100 = vector.load %arg6[%c0_94, %c1_95, %c256_96, %c0_97] : memref<1x4x1024x22xf32, #tpu.memory_space<vmem>>, vector<1x1x128x22xf32>
    %101 = vector.shape_cast %100 : vector<1x1x128x22xf32> to vector<128x22xf32>
    %102 = vector.shape_cast %99 : vector<128x22xf32> to vector<1x1x128x22xf32>
    tpu.vector_store %arg6[%c0_94, %c1_95, %c256_96, %c0_97], %102 {strides = array<i32>} : memref<1x4x1024x22xf32, #tpu.memory_space<vmem>>, vector<1x1x128x22xf32>,
    %c384_98 = arith.constant 384 : index
    %c0_99 = arith.constant 0 : index
    %103 = vector.load %arg3[%c384_98, %c0_99] : memref<1024x32xbf16, #tpu.memory_space<vmem>>, vector<128x32xbf16>
    %cst_100 = arith.constant dense<0.000000e+00> : vector<128x22xf32>
    %104 = tpu.matmul %103, %78, %cst_100 {dimension_numbers = #tpu.dot_dimension_numbers<[1], [0], [0], [1], [0, 0, 1, 1], [], []>} : vector<128x32xbf16>, vector<32x22xbf16>, vector<128x22xf32> -> vector<128x22xf32>
    %c384_101 = arith.constant 384 : index
    %c0_102 = arith.constant 0 : index
    %105 = vector.load %arg5[%c384_101, %c0_102] : memref<1024x1xf32, #tpu.memory_space<vmem>>, vector<128x1xf32>
    %106 = vector.broadcast %105 : vector<128x1xf32> to vector<128x22xf32>
    %107 = arith.addf %104, %106 : vector<128x22xf32>
    %c0_103 = arith.constant 0 : index
    %c1_104 = arith.constant 1 : index
    %c384_105 = arith.constant 384 : index
    %c0_106 = arith.constant 0 : index
    %108 = vector.load %arg6[%c0_103, %c1_104, %c384_105, %c0_106] : memref<1x4x1024x22xf32, #tpu.memory_space<vmem>>, vector<1x1x128x22xf32>
    %109 = vector.shape_cast %108 : vector<1x1x128x22xf32> to vector<128x22xf32>
    %110 = vector.shape_cast %107 : vector<128x22xf32> to vector<1x1x128x22xf32>
    tpu.vector_store %arg6[%c0_103, %c1_104, %c384_105, %c0_106], %110 {strides = array<i32>} : memref<1x4x1024x22xf32, #tpu.memory_space<vmem>>, vector<1x1x128x22xf32>,
    %c512_107 = arith.constant 512 : index
    %c0_108 = arith.constant 0 : index
    %111 = vector.load %arg3[%c512_107, %c0_108] : memref<1024x32xbf16, #tpu.memory_space<vmem>>, vector<128x32xbf16>
    %cst_109 = arith.constant dense<0.000000e+00> : vector<128x22xf32>
    %112 = tpu.matmul %111, %78, %cst_109 {dimension_numbers = #tpu.dot_dimension_numbers<[1], [0], [0], [1], [0, 0, 1, 1], [], []>} : vector<128x32xbf16>, vector<32x22xbf16>, vector<128x22xf32> -> vector<128x22xf32>
    %c512_110 = arith.constant 512 : index
    %c0_111 = arith.constant 0 : index
    %113 = vector.load %arg5[%c512_110, %c0_111] : memref<1024x1xf32, #tpu.memory_space<vmem>>, vector<128x1xf32>
    %114 = vector.broadcast %113 : vector<128x1xf32> to vector<128x22xf32>
    %115 = arith.addf %112, %114 : vector<128x22xf32>
    %c0_112 = arith.constant 0 : index
    %c1_113 = arith.constant 1 : index
    %c512_114 = arith.constant 512 : index
    %c0_115 = arith.constant 0 : index
    %116 = vector.load %arg6[%c0_112, %c1_113, %c512_114, %c0_115] : memref<1x4x1024x22xf32, #tpu.memory_space<vmem>>, vector<1x1x128x22xf32>
    %117 = vector.shape_cast %116 : vector<1x1x128x22xf32> to vector<128x22xf32>
    %118 = vector.shape_cast %115 : vector<128x22xf32> to vector<1x1x128x22xf32>
    tpu.vector_store %arg6[%c0_112, %c1_113, %c512_114, %c0_115], %118 {strides = array<i32>} : memref<1x4x1024x22xf32, #tpu.memory_space<vmem>>, vector<1x1x128x22xf32>,
    %c640_116 = arith.constant 640 : index
    %c0_117 = arith.constant 0 : index
    %119 = vector.load %arg3[%c640_116, %c0_117] : memref<1024x32xbf16, #tpu.memory_space<vmem>>, vector<128x32xbf16>
    %cst_118 = arith.constant dense<0.000000e+00> : vector<128x22xf32>
    %120 = tpu.matmul %119, %78, %cst_118 {dimension_numbers = #tpu.dot_dimension_numbers<[1], [0], [0], [1], [0, 0, 1, 1], [], []>} : vector<128x32xbf16>, vector<32x22xbf16>, vector<128x22xf32> -> vector<128x22xf32>
    %c640_119 = arith.constant 640 : index
    %c0_120 = arith.constant 0 : index
    %121 = vector.load %arg5[%c640_119, %c0_120] : memref<1024x1xf32, #tpu.memory_space<vmem>>, vector<128x1xf32>
    %122 = vector.broadcast %121 : vector<128x1xf32> to vector<128x22xf32>
    %123 = arith.addf %120, %122 : vector<128x22xf32>
    %c0_121 = arith.constant 0 : index
    %c1_122 = arith.constant 1 : index
    %c640_123 = arith.constant 640 : index
    %c0_124 = arith.constant 0 : index
    %124 = vector.load %arg6[%c0_121, %c1_122, %c640_123, %c0_124] : memref<1x4x1024x22xf32, #tpu.memory_space<vmem>>, vector<1x1x128x22xf32>
    %125 = vector.shape_cast %124 : vector<1x1x128x22xf32> to vector<128x22xf32>
    %126 = vector.shape_cast %123 : vector<128x22xf32> to vector<1x1x128x22xf32>
    tpu.vector_store %arg6[%c0_121, %c1_122, %c640_123, %c0_124], %126 {strides = array<i32>} : memref<1x4x1024x22xf32, #tpu.memory_space<vmem>>, vector<1x1x128x22xf32>,
    %c768_125 = arith.constant 768 : index
    %c0_126 = arith.constant 0 : index
    %127 = vector.load %arg3[%c768_125, %c0_126] : memref<1024x32xbf16, #tpu.memory_space<vmem>>, vector<128x32xbf16>
    %cst_127 = arith.constant dense<0.000000e+00> : vector<128x22xf32>
    %128 = tpu.matmul %127, %78, %cst_127 {dimension_numbers = #tpu.dot_dimension_numbers<[1], [0], [0], [1], [0, 0, 1, 1], [], []>} : vector<128x32xbf16>, vector<32x22xbf16>, vector<128x22xf32> -> vector<128x22xf32>
    %c768_128 = arith.constant 768 : index
    %c0_129 = arith.constant 0 : index
    %129 = vector.load %arg5[%c768_128, %c0_129] : memref<1024x1xf32, #tpu.memory_space<vmem>>, vector<128x1xf32>
    %130 = vector.broadcast %129 : vector<128x1xf32> to vector<128x22xf32>
    %131 = arith.addf %128, %130 : vector<128x22xf32>
    %c0_130 = arith.constant 0 : index
    %c1_131 = arith.constant 1 : index
    %c768_132 = arith.constant 768 : index
    %c0_133 = arith.constant 0 : index
    %132 = vector.load %arg6[%c0_130, %c1_131, %c768_132, %c0_133] : memref<1x4x1024x22xf32, #tpu.memory_space<vmem>>, vector<1x1x128x22xf32>
    %133 = vector.shape_cast %132 : vector<1x1x128x22xf32> to vector<128x22xf32>
    %134 = vector.shape_cast %131 : vector<128x22xf32> to vector<1x1x128x22xf32>
    tpu.vector_store %arg6[%c0_130, %c1_131, %c768_132, %c0_133], %134 {strides = array<i32>} : memref<1x4x1024x22xf32, #tpu.memory_space<vmem>>, vector<1x1x128x22xf32>,
    %c896_134 = arith.constant 896 : index
    %c0_135 = arith.constant 0 : index
    %135 = vector.load %arg3[%c896_134, %c0_135] : memref<1024x32xbf16, #tpu.memory_space<vmem>>, vector<128x32xbf16>
    %cst_136 = arith.constant dense<0.000000e+00> : vector<128x22xf32>
    %136 = tpu.matmul %135, %78, %cst_136 {dimension_numbers = #tpu.dot_dimension_numbers<[1], [0], [0], [1], [0, 0, 1, 1], [], []>} : vector<128x32xbf16>, vector<32x22xbf16>, vector<128x22xf32> -> vector<128x22xf32>
    %c896_137 = arith.constant 896 : index
    %c0_138 = arith.constant 0 : index
    %137 = vector.load %arg5[%c896_137, %c0_138] : memref<1024x1xf32, #tpu.memory_space<vmem>>, vector<128x1xf32>
    %138 = vector.broadcast %137 : vector<128x1xf32> to vector<128x22xf32>
    %139 = arith.addf %136, %138 : vector<128x22xf32>
    %c0_139 = arith.constant 0 : index
    %c1_140 = arith.constant 1 : index
    %c896_141 = arith.constant 896 : index
    %c0_142 = arith.constant 0 : index
    %140 = vector.load %arg6[%c0_139, %c1_140, %c896_141, %c0_142] : memref<1x4x1024x22xf32, #tpu.memory_space<vmem>>, vector<1x1x128x22xf32>
    %141 = vector.shape_cast %140 : vector<1x1x128x22xf32> to vector<128x22xf32>
    %142 = vector.shape_cast %139 : vector<128x22xf32> to vector<1x1x128x22xf32>
    tpu.vector_store %arg6[%c0_139, %c1_140, %c896_141, %c0_142], %142 {strides = array<i32>} : memref<1x4x1024x22xf32, #tpu.memory_space<vmem>>, vector<1x1x128x22xf32>,
    %143 = vector.extract_strided_slice %10 {offsets = [2, 0, 0], sizes = [1, 32, 22], strides = [1, 1, 1]} : vector<4x32x22xbf16> to vector<1x32x22xbf16>
    %144 = vector.shape_cast %143 : vector<1x32x22xbf16> to vector<32x22xbf16>
    %c0_143 = arith.constant 0 : index
    %c0_144 = arith.constant 0 : index
    %145 = vector.load %arg3[%c0_143, %c0_144] : memref<1024x32xbf16, #tpu.memory_space<vmem>>, vector<128x32xbf16>
    %cst_145 = arith.constant dense<0.000000e+00> : vector<128x22xf32>
    %146 = tpu.matmul %145, %144, %cst_145 {dimension_numbers = #tpu.dot_dimension_numbers<[1], [0], [0], [1], [0, 0, 1, 1], [], []>} : vector<128x32xbf16>, vector<32x22xbf16>, vector<128x22xf32> -> vector<128x22xf32>
    %c0_146 = arith.constant 0 : index
    %c0_147 = arith.constant 0 : index
    %147 = vector.load %arg5[%c0_146, %c0_147] : memref<1024x1xf32, #tpu.memory_space<vmem>>, vector<128x1xf32>
    %148 = vector.broadcast %147 : vector<128x1xf32> to vector<128x22xf32>
    %149 = arith.addf %146, %148 : vector<128x22xf32>
    %c0_148 = arith.constant 0 : index
    %c2 = arith.constant 2 : index
    %c0_149 = arith.constant 0 : index
    %c0_150 = arith.constant 0 : index
    %150 = vector.load %arg6[%c0_148, %c2, %c0_149, %c0_150] : memref<1x4x1024x22xf32, #tpu.memory_space<vmem>>, vector<1x1x128x22xf32>
    %151 = vector.shape_cast %150 : vector<1x1x128x22xf32> to vector<128x22xf32>
    %152 = vector.shape_cast %149 : vector<128x22xf32> to vector<1x1x128x22xf32>
    tpu.vector_store %arg6[%c0_148, %c2, %c0_149, %c0_150], %152 {strides = array<i32>} : memref<1x4x1024x22xf32, #tpu.memory_space<vmem>>, vector<1x1x128x22xf32>,
    %c128_151 = arith.constant 128 : index
    %c0_152 = arith.constant 0 : index
    %153 = vector.load %arg3[%c128_151, %c0_152] : memref<1024x32xbf16, #tpu.memory_space<vmem>>, vector<128x32xbf16>
    %cst_153 = arith.constant dense<0.000000e+00> : vector<128x22xf32>
    %154 = tpu.matmul %153, %144, %cst_153 {dimension_numbers = #tpu.dot_dimension_numbers<[1], [0], [0], [1], [0, 0, 1, 1], [], []>} : vector<128x32xbf16>, vector<32x22xbf16>, vector<128x22xf32> -> vector<128x22xf32>
    %c128_154 = arith.constant 128 : index
    %c0_155 = arith.constant 0 : index
    %155 = vector.load %arg5[%c128_154, %c0_155] : memref<1024x1xf32, #tpu.memory_space<vmem>>, vector<128x1xf32>
    %156 = vector.broadcast %155 : vector<128x1xf32> to vector<128x22xf32>
    %157 = arith.addf %154, %156 : vector<128x22xf32>
    %c0_156 = arith.constant 0 : index
    %c2_157 = arith.constant 2 : index
    %c128_158 = arith.constant 128 : index
    %c0_159 = arith.constant 0 : index
    %158 = vector.load %arg6[%c0_156, %c2_157, %c128_158, %c0_159] : memref<1x4x1024x22xf32, #tpu.memory_space<vmem>>, vector<1x1x128x22xf32>
    %159 = vector.shape_cast %158 : vector<1x1x128x22xf32> to vector<128x22xf32>
    %160 = vector.shape_cast %157 : vector<128x22xf32> to vector<1x1x128x22xf32>
    tpu.vector_store %arg6[%c0_156, %c2_157, %c128_158, %c0_159], %160 {strides = array<i32>} : memref<1x4x1024x22xf32, #tpu.memory_space<vmem>>, vector<1x1x128x22xf32>,
    %c256_160 = arith.constant 256 : index
    %c0_161 = arith.constant 0 : index
    %161 = vector.load %arg3[%c256_160, %c0_161] : memref<1024x32xbf16, #tpu.memory_space<vmem>>, vector<128x32xbf16>
    %cst_162 = arith.constant dense<0.000000e+00> : vector<128x22xf32>
    %162 = tpu.matmul %161, %144, %cst_162 {dimension_numbers = #tpu.dot_dimension_numbers<[1], [0], [0], [1], [0, 0, 1, 1], [], []>} : vector<128x32xbf16>, vector<32x22xbf16>, vector<128x22xf32> -> vector<128x22xf32>
    %c256_163 = arith.constant 256 : index
    %c0_164 = arith.constant 0 : index
    %163 = vector.load %arg5[%c256_163, %c0_164] : memref<1024x1xf32, #tpu.memory_space<vmem>>, vector<128x1xf32>
    %164 = vector.broadcast %163 : vector<128x1xf32> to vector<128x22xf32>
    %165 = arith.addf %162, %164 : vector<128x22xf32>
    %c0_165 = arith.constant 0 : index
    %c2_166 = arith.constant 2 : index
    %c256_167 = arith.constant 256 : index
    %c0_168 = arith.constant 0 : index
    %166 = vector.load %arg6[%c0_165, %c2_166, %c256_167, %c0_168] : memref<1x4x1024x22xf32, #tpu.memory_space<vmem>>, vector<1x1x128x22xf32>
    %167 = vector.shape_cast %166 : vector<1x1x128x22xf32> to vector<128x22xf32>
    %168 = vector.shape_cast %165 : vector<128x22xf32> to vector<1x1x128x22xf32>
    tpu.vector_store %arg6[%c0_165, %c2_166, %c256_167, %c0_168], %168 {strides = array<i32>} : memref<1x4x1024x22xf32, #tpu.memory_space<vmem>>, vector<1x1x128x22xf32>,
    %c384_169 = arith.constant 384 : index
    %c0_170 = arith.constant 0 : index
    %169 = vector.load %arg3[%c384_169, %c0_170] : memref<1024x32xbf16, #tpu.memory_space<vmem>>, vector<128x32xbf16>
    %cst_171 = arith.constant dense<0.000000e+00> : vector<128x22xf32>
    %170 = tpu.matmul %169, %144, %cst_171 {dimension_numbers = #tpu.dot_dimension_numbers<[1], [0], [0], [1], [0, 0, 1, 1], [], []>} : vector<128x32xbf16>, vector<32x22xbf16>, vector<128x22xf32> -> vector<128x22xf32>
    %c384_172 = arith.constant 384 : index
    %c0_173 = arith.constant 0 : index
    %171 = vector.load %arg5[%c384_172, %c0_173] : memref<1024x1xf32, #tpu.memory_space<vmem>>, vector<128x1xf32>
    %172 = vector.broadcast %171 : vector<128x1xf32> to vector<128x22xf32>
    %173 = arith.addf %170, %172 : vector<128x22xf32>
    %c0_174 = arith.constant 0 : index
    %c2_175 = arith.constant 2 : index
    %c384_176 = arith.constant 384 : index
    %c0_177 = arith.constant 0 : index
    %174 = vector.load %arg6[%c0_174, %c2_175, %c384_176, %c0_177] : memref<1x4x1024x22xf32, #tpu.memory_space<vmem>>, vector<1x1x128x22xf32>
    %175 = vector.shape_cast %174 : vector<1x1x128x22xf32> to vector<128x22xf32>
    %176 = vector.shape_cast %173 : vector<128x22xf32> to vector<1x1x128x22xf32>
    tpu.vector_store %arg6[%c0_174, %c2_175, %c384_176, %c0_177], %176 {strides = array<i32>} : memref<1x4x1024x22xf32, #tpu.memory_space<vmem>>, vector<1x1x128x22xf32>,
    %c512_178 = arith.constant 512 : index
    %c0_179 = arith.constant 0 : index
    %177 = vector.load %arg3[%c512_178, %c0_179] : memref<1024x32xbf16, #tpu.memory_space<vmem>>, vector<128x32xbf16>
    %cst_180 = arith.constant dense<0.000000e+00> : vector<128x22xf32>
    %178 = tpu.matmul %177, %144, %cst_180 {dimension_numbers = #tpu.dot_dimension_numbers<[1], [0], [0], [1], [0, 0, 1, 1], [], []>} : vector<128x32xbf16>, vector<32x22xbf16>, vector<128x22xf32> -> vector<128x22xf32>
    %c512_181 = arith.constant 512 : index
    %c0_182 = arith.constant 0 : index
    %179 = vector.load %arg5[%c512_181, %c0_182] : memref<1024x1xf32, #tpu.memory_space<vmem>>, vector<128x1xf32>
    %180 = vector.broadcast %179 : vector<128x1xf32> to vector<128x22xf32>
    %181 = arith.addf %178, %180 : vector<128x22xf32>
    %c0_183 = arith.constant 0 : index
    %c2_184 = arith.constant 2 : index
    %c512_185 = arith.constant 512 : index
    %c0_186 = arith.constant 0 : index
    %182 = vector.load %arg6[%c0_183, %c2_184, %c512_185, %c0_186] : memref<1x4x1024x22xf32, #tpu.memory_space<vmem>>, vector<1x1x128x22xf32>
    %183 = vector.shape_cast %182 : vector<1x1x128x22xf32> to vector<128x22xf32>
    %184 = vector.shape_cast %181 : vector<128x22xf32> to vector<1x1x128x22xf32>
    tpu.vector_store %arg6[%c0_183, %c2_184, %c512_185, %c0_186], %184 {strides = array<i32>} : memref<1x4x1024x22xf32, #tpu.memory_space<vmem>>, vector<1x1x128x22xf32>,
    %c640_187 = arith.constant 640 : index
    %c0_188 = arith.constant 0 : index
    %185 = vector.load %arg3[%c640_187, %c0_188] : memref<1024x32xbf16, #tpu.memory_space<vmem>>, vector<128x32xbf16>
    %cst_189 = arith.constant dense<0.000000e+00> : vector<128x22xf32>
    %186 = tpu.matmul %185, %144, %cst_189 {dimension_numbers = #tpu.dot_dimension_numbers<[1], [0], [0], [1], [0, 0, 1, 1], [], []>} : vector<128x32xbf16>, vector<32x22xbf16>, vector<128x22xf32> -> vector<128x22xf32>
    %c640_190 = arith.constant 640 : index
    %c0_191 = arith.constant 0 : index
    %187 = vector.load %arg5[%c640_190, %c0_191] : memref<1024x1xf32, #tpu.memory_space<vmem>>, vector<128x1xf32>
    %188 = vector.broadcast %187 : vector<128x1xf32> to vector<128x22xf32>
    %189 = arith.addf %186, %188 : vector<128x22xf32>
    %c0_192 = arith.constant 0 : index
    %c2_193 = arith.constant 2 : index
    %c640_194 = arith.constant 640 : index
    %c0_195 = arith.constant 0 : index
    %190 = vector.load %arg6[%c0_192, %c2_193, %c640_194, %c0_195] : memref<1x4x1024x22xf32, #tpu.memory_space<vmem>>, vector<1x1x128x22xf32>
    %191 = vector.shape_cast %190 : vector<1x1x128x22xf32> to vector<128x22xf32>
    %192 = vector.shape_cast %189 : vector<128x22xf32> to vector<1x1x128x22xf32>
    tpu.vector_store %arg6[%c0_192, %c2_193, %c640_194, %c0_195], %192 {strides = array<i32>} : memref<1x4x1024x22xf32, #tpu.memory_space<vmem>>, vector<1x1x128x22xf32>,
    %c768_196 = arith.constant 768 : index
    %c0_197 = arith.constant 0 : index
    %193 = vector.load %arg3[%c768_196, %c0_197] : memref<1024x32xbf16, #tpu.memory_space<vmem>>, vector<128x32xbf16>
    %cst_198 = arith.constant dense<0.000000e+00> : vector<128x22xf32>
    %194 = tpu.matmul %193, %144, %cst_198 {dimension_numbers = #tpu.dot_dimension_numbers<[1], [0], [0], [1], [0, 0, 1, 1], [], []>} : vector<128x32xbf16>, vector<32x22xbf16>, vector<128x22xf32> -> vector<128x22xf32>
    %c768_199 = arith.constant 768 : index
    %c0_200 = arith.constant 0 : index
    %195 = vector.load %arg5[%c768_199, %c0_200] : memref<1024x1xf32, #tpu.memory_space<vmem>>, vector<128x1xf32>
    %196 = vector.broadcast %195 : vector<128x1xf32> to vector<128x22xf32>
    %197 = arith.addf %194, %196 : vector<128x22xf32>
    %c0_201 = arith.constant 0 : index
    %c2_202 = arith.constant 2 : index
    %c768_203 = arith.constant 768 : index
    %c0_204 = arith.constant 0 : index
    %198 = vector.load %arg6[%c0_201, %c2_202, %c768_203, %c0_204] : memref<1x4x1024x22xf32, #tpu.memory_space<vmem>>, vector<1x1x128x22xf32>
    %199 = vector.shape_cast %198 : vector<1x1x128x22xf32> to vector<128x22xf32>
    %200 = vector.shape_cast %197 : vector<128x22xf32> to vector<1x1x128x22xf32>
    tpu.vector_store %arg6[%c0_201, %c2_202, %c768_203, %c0_204], %200 {strides = array<i32>} : memref<1x4x1024x22xf32, #tpu.memory_space<vmem>>, vector<1x1x128x22xf32>,
    %c896_205 = arith.constant 896 : index
    %c0_206 = arith.constant 0 : index
    %201 = vector.load %arg3[%c896_205, %c0_206] : memref<1024x32xbf16, #tpu.memory_space<vmem>>, vector<128x32xbf16>
    %cst_207 = arith.constant dense<0.000000e+00> : vector<128x22xf32>
    %202 = tpu.matmul %201, %144, %cst_207 {dimension_numbers = #tpu.dot_dimension_numbers<[1], [0], [0], [1], [0, 0, 1, 1], [], []>} : vector<128x32xbf16>, vector<32x22xbf16>, vector<128x22xf32> -> vector<128x22xf32>
    %c896_208 = arith.constant 896 : index
    %c0_209 = arith.constant 0 : index
    %203 = vector.load %arg5[%c896_208, %c0_209] : memref<1024x1xf32, #tpu.memory_space<vmem>>, vector<128x1xf32>
    %204 = vector.broadcast %203 : vector<128x1xf32> to vector<128x22xf32>
    %205 = arith.addf %202, %204 : vector<128x22xf32>
    %c0_210 = arith.constant 0 : index
    %c2_211 = arith.constant 2 : index
    %c896_212 = arith.constant 896 : index
    %c0_213 = arith.constant 0 : index
    %206 = vector.load %arg6[%c0_210, %c2_211, %c896_212, %c0_213] : memref<1x4x1024x22xf32, #tpu.memory_space<vmem>>, vector<1x1x128x22xf32>
    %207 = vector.shape_cast %206 : vector<1x1x128x22xf32> to vector<128x22xf32>
    %208 = vector.shape_cast %205 : vector<128x22xf32> to vector<1x1x128x22xf32>
    tpu.vector_store %arg6[%c0_210, %c2_211, %c896_212, %c0_213], %208 {strides = array<i32>} : memref<1x4x1024x22xf32, #tpu.memory_space<vmem>>, vector<1x1x128x22xf32>,
    %209 = vector.extract_strided_slice %10 {offsets = [3, 0, 0], sizes = [1, 32, 22], strides = [1, 1, 1]} : vector<4x32x22xbf16> to vector<1x32x22xbf16>
    %210 = vector.shape_cast %209 : vector<1x32x22xbf16> to vector<32x22xbf16>
    %c0_214 = arith.constant 0 : index
    %c0_215 = arith.constant 0 : index
    %211 = vector.load %arg3[%c0_214, %c0_215] : memref<1024x32xbf16, #tpu.memory_space<vmem>>, vector<128x32xbf16>
    %cst_216 = arith.constant dense<0.000000e+00> : vector<128x22xf32>
    %212 = tpu.matmul %211, %210, %cst_216 {dimension_numbers = #tpu.dot_dimension_numbers<[1], [0], [0], [1], [0, 0, 1, 1], [], []>} : vector<128x32xbf16>, vector<32x22xbf16>, vector<128x22xf32> -> vector<128x22xf32>
    %c0_217 = arith.constant 0 : index
    %c0_218 = arith.constant 0 : index
    %213 = vector.load %arg5[%c0_217, %c0_218] : memref<1024x1xf32, #tpu.memory_space<vmem>>, vector<128x1xf32>
    %214 = vector.broadcast %213 : vector<128x1xf32> to vector<128x22xf32>
    %215 = arith.addf %212, %214 : vector<128x22xf32>
    %c0_219 = arith.constant 0 : index
    %c3 = arith.constant 3 : index
    %c0_220 = arith.constant 0 : index
    %c0_221 = arith.constant 0 : index
    %216 = vector.load %arg6[%c0_219, %c3, %c0_220, %c0_221] : memref<1x4x1024x22xf32, #tpu.memory_space<vmem>>, vector<1x1x128x22xf32>
    %217 = vector.shape_cast %216 : vector<1x1x128x22xf32> to vector<128x22xf32>
    %218 = vector.shape_cast %215 : vector<128x22xf32> to vector<1x1x128x22xf32>
    tpu.vector_store %arg6[%c0_219, %c3, %c0_220, %c0_221], %218 {strides = array<i32>} : memref<1x4x1024x22xf32, #tpu.memory_space<vmem>>, vector<1x1x128x22xf32>,
    %c128_222 = arith.constant 128 : index
    %c0_223 = arith.constant 0 : index
    %219 = vector.load %arg3[%c128_222, %c0_223] : memref<1024x32xbf16, #tpu.memory_space<vmem>>, vector<128x32xbf16>
    %cst_224 = arith.constant dense<0.000000e+00> : vector<128x22xf32>
    %220 = tpu.matmul %219, %210, %cst_224 {dimension_numbers = #tpu.dot_dimension_numbers<[1], [0], [0], [1], [0, 0, 1, 1], [], []>} : vector<128x32xbf16>, vector<32x22xbf16>, vector<128x22xf32> -> vector<128x22xf32>
    %c128_225 = arith.constant 128 : index
    %c0_226 = arith.constant 0 : index
    %221 = vector.load %arg5[%c128_225, %c0_226] : memref<1024x1xf32, #tpu.memory_space<vmem>>, vector<128x1xf32>
    %222 = vector.broadcast %221 : vector<128x1xf32> to vector<128x22xf32>
    %223 = arith.addf %220, %222 : vector<128x22xf32>
    %c0_227 = arith.constant 0 : index
    %c3_228 = arith.constant 3 : index
    %c128_229 = arith.constant 128 : index
    %c0_230 = arith.constant 0 : index
    %224 = vector.load %arg6[%c0_227, %c3_228, %c128_229, %c0_230] : memref<1x4x1024x22xf32, #tpu.memory_space<vmem>>, vector<1x1x128x22xf32>
    %225 = vector.shape_cast %224 : vector<1x1x128x22xf32> to vector<128x22xf32>
    %226 = vector.shape_cast %223 : vector<128x22xf32> to vector<1x1x128x22xf32>
    tpu.vector_store %arg6[%c0_227, %c3_228, %c128_229, %c0_230], %226 {strides = array<i32>} : memref<1x4x1024x22xf32, #tpu.memory_space<vmem>>, vector<1x1x128x22xf32>,
    %c256_231 = arith.constant 256 : index
    %c0_232 = arith.constant 0 : index
    %227 = vector.load %arg3[%c256_231, %c0_232] : memref<1024x32xbf16, #tpu.memory_space<vmem>>, vector<128x32xbf16>
    %cst_233 = arith.constant dense<0.000000e+00> : vector<128x22xf32>
    %228 = tpu.matmul %227, %210, %cst_233 {dimension_numbers = #tpu.dot_dimension_numbers<[1], [0], [0], [1], [0, 0, 1, 1], [], []>} : vector<128x32xbf16>, vector<32x22xbf16>, vector<128x22xf32> -> vector<128x22xf32>
    %c256_234 = arith.constant 256 : index
    %c0_235 = arith.constant 0 : index
    %229 = vector.load %arg5[%c256_234, %c0_235] : memref<1024x1xf32, #tpu.memory_space<vmem>>, vector<128x1xf32>
    %230 = vector.broadcast %229 : vector<128x1xf32> to vector<128x22xf32>
    %231 = arith.addf %228, %230 : vector<128x22xf32>
    %c0_236 = arith.constant 0 : index
    %c3_237 = arith.constant 3 : index
    %c256_238 = arith.constant 256 : index
    %c0_239 = arith.constant 0 : index
    %232 = vector.load %arg6[%c0_236, %c3_237, %c256_238, %c0_239] : memref<1x4x1024x22xf32, #tpu.memory_space<vmem>>, vector<1x1x128x22xf32>
    %233 = vector.shape_cast %232 : vector<1x1x128x22xf32> to vector<128x22xf32>
    %234 = vector.shape_cast %231 : vector<128x22xf32> to vector<1x1x128x22xf32>
    tpu.vector_store %arg6[%c0_236, %c3_237, %c256_238, %c0_239], %234 {strides = array<i32>} : memref<1x4x1024x22xf32, #tpu.memory_space<vmem>>, vector<1x1x128x22xf32>,
    %c384_240 = arith.constant 384 : index
    %c0_241 = arith.constant 0 : index
    %235 = vector.load %arg3[%c384_240, %c0_241] : memref<1024x32xbf16, #tpu.memory_space<vmem>>, vector<128x32xbf16>
    %cst_242 = arith.constant dense<0.000000e+00> : vector<128x22xf32>
    %236 = tpu.matmul %235, %210, %cst_242 {dimension_numbers = #tpu.dot_dimension_numbers<[1], [0], [0], [1], [0, 0, 1, 1], [], []>} : vector<128x32xbf16>, vector<32x22xbf16>, vector<128x22xf32> -> vector<128x22xf32>
    %c384_243 = arith.constant 384 : index
    %c0_244 = arith.constant 0 : index
    %237 = vector.load %arg5[%c384_243, %c0_244] : memref<1024x1xf32, #tpu.memory_space<vmem>>, vector<128x1xf32>
    %238 = vector.broadcast %237 : vector<128x1xf32> to vector<128x22xf32>
    %239 = arith.addf %236, %238 : vector<128x22xf32>
    %c0_245 = arith.constant 0 : index
    %c3_246 = arith.constant 3 : index
    %c384_247 = arith.constant 384 : index
    %c0_248 = arith.constant 0 : index
    %240 = vector.load %arg6[%c0_245, %c3_246, %c384_247, %c0_248] : memref<1x4x1024x22xf32, #tpu.memory_space<vmem>>, vector<1x1x128x22xf32>
    %241 = vector.shape_cast %240 : vector<1x1x128x22xf32> to vector<128x22xf32>
    %242 = vector.shape_cast %239 : vector<128x22xf32> to vector<1x1x128x22xf32>
    tpu.vector_store %arg6[%c0_245, %c3_246, %c384_247, %c0_248], %242 {strides = array<i32>} : memref<1x4x1024x22xf32, #tpu.memory_space<vmem>>, vector<1x1x128x22xf32>,
    %c512_249 = arith.constant 512 : index
    %c0_250 = arith.constant 0 : index
    %243 = vector.load %arg3[%c512_249, %c0_250] : memref<1024x32xbf16, #tpu.memory_space<vmem>>, vector<128x32xbf16>
    %cst_251 = arith.constant dense<0.000000e+00> : vector<128x22xf32>
    %244 = tpu.matmul %243, %210, %cst_251 {dimension_numbers = #tpu.dot_dimension_numbers<[1], [0], [0], [1], [0, 0, 1, 1], [], []>} : vector<128x32xbf16>, vector<32x22xbf16>, vector<128x22xf32> -> vector<128x22xf32>
    %c512_252 = arith.constant 512 : index
    %c0_253 = arith.constant 0 : index
    %245 = vector.load %arg5[%c512_252, %c0_253] : memref<1024x1xf32, #tpu.memory_space<vmem>>, vector<128x1xf32>
    %246 = vector.broadcast %245 : vector<128x1xf32> to vector<128x22xf32>
    %247 = arith.addf %244, %246 : vector<128x22xf32>
    %c0_254 = arith.constant 0 : index
    %c3_255 = arith.constant 3 : index
    %c512_256 = arith.constant 512 : index
    %c0_257 = arith.constant 0 : index
    %248 = vector.load %arg6[%c0_254, %c3_255, %c512_256, %c0_257] : memref<1x4x1024x22xf32, #tpu.memory_space<vmem>>, vector<1x1x128x22xf32>
    %249 = vector.shape_cast %248 : vector<1x1x128x22xf32> to vector<128x22xf32>
    %250 = vector.shape_cast %247 : vector<128x22xf32> to vector<1x1x128x22xf32>
    tpu.vector_store %arg6[%c0_254, %c3_255, %c512_256, %c0_257], %250 {strides = array<i32>} : memref<1x4x1024x22xf32, #tpu.memory_space<vmem>>, vector<1x1x128x22xf32>,
    %c640_258 = arith.constant 640 : index
    %c0_259 = arith.constant 0 : index
    %251 = vector.load %arg3[%c640_258, %c0_259] : memref<1024x32xbf16, #tpu.memory_space<vmem>>, vector<128x32xbf16>
    %cst_260 = arith.constant dense<0.000000e+00> : vector<128x22xf32>
    %252 = tpu.matmul %251, %210, %cst_260 {dimension_numbers = #tpu.dot_dimension_numbers<[1], [0], [0], [1], [0, 0, 1, 1], [], []>} : vector<128x32xbf16>, vector<32x22xbf16>, vector<128x22xf32> -> vector<128x22xf32>
    %c640_261 = arith.constant 640 : index
    %c0_262 = arith.constant 0 : index
    %253 = vector.load %arg5[%c640_261, %c0_262] : memref<1024x1xf32, #tpu.memory_space<vmem>>, vector<128x1xf32>
    %254 = vector.broadcast %253 : vector<128x1xf32> to vector<128x22xf32>
    %255 = arith.addf %252, %254 : vector<128x22xf32>
    %c0_263 = arith.constant 0 : index
    %c3_264 = arith.constant 3 : index
    %c640_265 = arith.constant 640 : index
    %c0_266 = arith.constant 0 : index
    %256 = vector.load %arg6[%c0_263, %c3_264, %c640_265, %c0_266] : memref<1x4x1024x22xf32, #tpu.memory_space<vmem>>, vector<1x1x128x22xf32>
    %257 = vector.shape_cast %256 : vector<1x1x128x22xf32> to vector<128x22xf32>
    %258 = vector.shape_cast %255 : vector<128x22xf32> to vector<1x1x128x22xf32>
    tpu.vector_store %arg6[%c0_263, %c3_264, %c640_265, %c0_266], %258 {strides = array<i32>} : memref<1x4x1024x22xf32, #tpu.memory_space<vmem>>, vector<1x1x128x22xf32>,
    %c768_267 = arith.constant 768 : index
    %c0_268 = arith.constant 0 : index
    %259 = vector.load %arg3[%c768_267, %c0_268] : memref<1024x32xbf16, #tpu.memory_space<vmem>>, vector<128x32xbf16>
    %cst_269 = arith.constant dense<0.000000e+00> : vector<128x22xf32>
    %260 = tpu.matmul %259, %210, %cst_269 {dimension_numbers = #tpu.dot_dimension_numbers<[1], [0], [0], [1], [0, 0, 1, 1], [], []>} : vector<128x32xbf16>, vector<32x22xbf16>, vector<128x22xf32> -> vector<128x22xf32>
    %c768_270 = arith.constant 768 : index
    %c0_271 = arith.constant 0 : index
    %261 = vector.load %arg5[%c768_270, %c0_271] : memref<1024x1xf32, #tpu.memory_space<vmem>>, vector<128x1xf32>
    %262 = vector.broadcast %261 : vector<128x1xf32> to vector<128x22xf32>
    %263 = arith.addf %260, %262 : vector<128x22xf32>
    %c0_272 = arith.constant 0 : index
    %c3_273 = arith.constant 3 : index
    %c768_274 = arith.constant 768 : index
    %c0_275 = arith.constant 0 : index
    %264 = vector.load %arg6[%c0_272, %c3_273, %c768_274, %c0_275] : memref<1x4x1024x22xf32, #tpu.memory_space<vmem>>, vector<1x1x128x22xf32>
    %265 = vector.shape_cast %264 : vector<1x1x128x22xf32> to vector<128x22xf32>
    %266 = vector.shape_cast %263 : vector<128x22xf32> to vector<1x1x128x22xf32>
    tpu.vector_store %arg6[%c0_272, %c3_273, %c768_274, %c0_275], %266 {strides = array<i32>} : memref<1x4x1024x22xf32, #tpu.memory_space<vmem>>, vector<1x1x128x22xf32>,
    %c896_276 = arith.constant 896 : index
    %c0_277 = arith.constant 0 : index
    %267 = vector.load %arg3[%c896_276, %c0_277] : memref<1024x32xbf16, #tpu.memory_space<vmem>>, vector<128x32xbf16>
    %cst_278 = arith.constant dense<0.000000e+00> : vector<128x22xf32>
    %268 = tpu.matmul %267, %210, %cst_278 {dimension_numbers = #tpu.dot_dimension_numbers<[1], [0], [0], [1], [0, 0, 1, 1], [], []>} : vector<128x32xbf16>, vector<32x22xbf16>, vector<128x22xf32> -> vector<128x22xf32>
    %c896_279 = arith.constant 896 : index
    %c0_280 = arith.constant 0 : index
    %269 = vector.load %arg5[%c896_279, %c0_280] : memref<1024x1xf32, #tpu.memory_space<vmem>>, vector<128x1xf32>
    %270 = vector.broadcast %269 : vector<128x1xf32> to vector<128x22xf32>
    %271 = arith.addf %268, %270 : vector<128x22xf32>
    %c0_281 = arith.constant 0 : index
    %c3_282 = arith.constant 3 : index
    %c896_283 = arith.constant 896 : index
    %c0_284 = arith.constant 0 : index
    %272 = vector.load %arg6[%c0_281, %c3_282, %c896_283, %c0_284] : memref<1x4x1024x22xf32, #tpu.memory_space<vmem>>, vector<1x1x128x22xf32>
    %273 = vector.shape_cast %272 : vector<1x1x128x22xf32> to vector<128x22xf32>
    %274 = vector.shape_cast %271 : vector<128x22xf32> to vector<1x1x128x22xf32>
    tpu.vector_store %arg6[%c0_281, %c3_282, %c896_283, %c0_284], %274 {strides = array<i32>} : memref<1x4x1024x22xf32, #tpu.memory_space<vmem>>, vector<1x1x128x22xf32>,
    return
  }
  func.func @transform_0(%arg0: i32) -> (i32, i32, i32, i32) {
    %c0_i32 = arith.constant 0 : i32
    %c0_i32_0 = arith.constant 0 : i32
    %c0_i32_1 = arith.constant 0 : i32
    %c0_i32_2 = arith.constant 0 : i32
    return %arg0, %c0_i32, %c0_i32_0, %c0_i32_1 : i32, i32, i32, i32
  }
  func.func @transform_1(%arg0: i32) -> (i32, i32) {
    %c0_i32 = arith.constant 0 : i32
    %c0_i32_0 = arith.constant 0 : i32
    %c0_i32_1 = arith.constant 0 : i32
    return %c0_i32, %c0_i32_0 : i32, i32
  }
  func.func @transform_2(%arg0: i32) -> (i32, i32) {
    %c0_i32 = arith.constant 0 : i32
    %c0_i32_0 = arith.constant 0 : i32
    %c0_i32_1 = arith.constant 0 : i32
    return %c0_i32, %c0_i32_0 : i32, i32
  }
  func.func @transform_3(%arg0: i32) -> (i32, i32) {
    %c0_i32 = arith.constant 0 : i32
    %c0_i32_0 = arith.constant 0 : i32
    %c0_i32_1 = arith.constant 0 : i32
    return %c0_i32, %c0_i32_0 : i32, i32
  }
  func.func @transform_4(%arg0: i32) -> (i32, i32) {
    %c0_i32 = arith.constant 0 : i32
    %c0_i32_0 = arith.constant 0 : i32
    %c0_i32_1 = arith.constant 0 : i32
    return %c0_i32, %c0_i32_0 : i32, i32
  }
  func.func @transform_5(%arg0: i32) -> (i32, i32, i32, i32) {
    %c0_i32 = arith.constant 0 : i32
    %c0_i32_0 = arith.constant 0 : i32
    %c0_i32_1 = arith.constant 0 : i32
    %c0_i32_2 = arith.constant 0 : i32
    return %arg0, %c0_i32, %c0_i32_0, %c0_i32_1 : i32, i32, i32, i32
  }
}

</mosaic_0001>

<llo_original>
// kernel: extend_forward.1
$region0: #{extend_forward.1}
  #allocation0 [shape = 'u32[]', space=smem, size = 0x4, offset = 0x4, fixed_abs, tag = 'smem constant byte address 0x4 - core index']
  #allocation1 [shape = 'u32[144,128]{1,0:T(1,128)}', space=vmem, size = 0x12000, scoped, tag = 'internal scratch']
  %s0 = inlined_call_operand.vmem [shape: f32[2,4,32,16], index: 0, kind: input, shape index: {}]
  %s1 = inlined_call_operand.hbm [shape: bf16[16,22], index: 1, kind: input, shape index: {}]
  %s2 = inlined_call_operand.vmem [shape: bf16[1024,32], index: 2, kind: input, shape index: {}]
  %s3 = inlined_call_operand.hbm [shape: f32[1,22], index: 3, kind: input, shape index: {}]
  %s4 = inlined_call_operand.vmem [shape: f32[1024,1], index: 4, kind: input, shape index: {}]
  %s5 = inlined_call_operand.vmem [shape: f32[2,4,1024,22], index: 5, kind: output, shape index: {}]
  %s6 = sld [smem:[#allocation0]]
  $region61: #{extend_forward.1} parent=0
    _
  %s8 = ssub.s32 1, %s6
  %s9 = scalar_select 0, %s8, %s6
  $region1: #{extend_forward.1} parent=0
    #allocation2 [shape = 'u8[4096]{0}', space=vmem, size = 0x1000, scoped, tag = 'input window, operand 1, single buffered']
    #allocation3 [shape = 's32[2]{0}', space=sflag, size = 0x8, scoped, tag = 'scoped memory for extend_forward.1']
    #allocation4 [shape = 'u8[512]{0}', space=vmem, size = 0x400, scoped, tag = 'input window, operand 3, single buffered']
    #allocation5 [shape = 's32[1]{0}', space=sflag, size = 0x4, scoped, tag = 'scoped memory for extend_forward.1']
    %10 = vsyncpa [#allocation3], 0
    %11 = vsyncpa [#allocation5], 0
    loop: start=0, step=1, limit=4
    $region2: #{extend_forward.1} parent=1 // loop_pre_header
      _
    $region3: #{extend_forward.1} parent=1 // loop_header
      %s13 = sphi 0, %s17
      %p14 = scmp.ge.s32.totalorder %s13, 4
      %s23 = sphi 0, %s25
      %s26 = sphi 0, %s23
      %s27 = sphi 0, %s26
      %s43 = sphi 0, %s27
      %s47 = sphi 0, %s47
      %s49 = sphi 0, %s47
      %s50 = sphi 0, %s49
      %s64 = sphi 0, %s50
      %s68 = sphi 0, %s68
      %s70 = sphi 0, %s68
      %s71 = sphi 0, %s70
      %s85 = sphi 0, %s71
      %s89 = sphi 0, %s89
      %s91 = sphi 0, %s89
      %s92 = sphi 0, %s91
      %s106 = sphi 0, %s92
      %s110 = sphi 0, %s110
      %s112 = sphi 0, %s110
      %s113 = sphi 0, %s112
      %s127 = sphi 0, %s113
      %s133 = sphi 0, %s135
      %s136 = sphi 0, %s133
      %s137 = sphi 0, %s136
      %s153 = sphi 0, %s137
    $region4: #{extend_forward.1} parent=1 // loop_header_branch
      %16 = sbr.rel (%p14) target = $region8
    $region5: #{extend_forward.1} parent=1 // loop_body
      %s18 = ssub.s32 %s13, 1
      %s19 = ssub.s32 %s13, 2
      %s20 = sadd.s32 %s13, 1
      %s21 = ssub.s32 %s13, %s20
      %p22 = scmp.eq.s32.totalorder %s21, 0
      %s24 = sadd.s32 %s23, 1
      %s25 = scalar_select %p22, %s23, %s24
      %p28 = pneg %p22
      %p29 = scmp.eq.s32.totalorder %s13, 1
      %p30 = por %p28, %p29
      %p31 = scmp.ne.s32.totalorder %s23, %s26
      %p32 = scmp.eq.s32.totalorder %s13, 0
      %p33 = por %p31, %p32
      %p34 = scmp.ne.s32.totalorder %s23, %s26
      %p35 = scmp.eq.s32.totalorder %s18, 1
      %p36 = por %p34, %p35
      %p37 = scmp.ne.s32.totalorder %s26, %s27
      %p38 = scmp.eq.s32.totalorder %s18, 0
      %p39 = por %p37, %p38
      %p40 = scmp.ne.s32.totalorder %s26, %s27
      %p41 = scmp.eq.s32.totalorder %s19, 1
      %p42 = por %p40, %p41
      %p44 = scmp.ne.s32.totalorder %s27, %s43
      %p45 = scmp.eq.s32.totalorder %s19, 0
      %p46 = por %p44, %p45
      %s48 = sadd.s32 %s47, 1
      %p51 = scmp.eq.s32.totalorder %s13, 1
      %p52 = scmp.ne.s32.totalorder %s47, %s49
      %p53 = scmp.eq.s32.totalorder %s13, 0
      %p54 = por %p52, %p53
      %p55 = scmp.ne.s32.totalorder %s47, %s49
      %p56 = scmp.eq.s32.totalorder %s18, 1
      %p57 = por %p55, %p56
      %p58 = scmp.ne.s32.totalorder %s49, %s50
      %p59 = scmp.eq.s32.totalorder %s18, 0
      %p60 = por %p58, %p59
      %p61 = scmp.ne.s32.totalorder %s49, %s50
      %p62 = scmp.eq.s32.totalorder %s19, 1
      %p63 = por %p61, %p62
      %p65 = scmp.ne.s32.totalorder %s50, %s64
      %p66 = scmp.eq.s32.totalorder %s19, 0
      %p67 = por %p65, %p66
      %s69 = sadd.s32 %s68, 1
      %p72 = scmp.eq.s32.totalorder %s13, 1
      %p73 = scmp.ne.s32.totalorder %s68, %s70
      %p74 = scmp.eq.s32.totalorder %s13, 0
      %p75 = por %p73, %p74
      %p76 = scmp.ne.s32.totalorder %s68, %s70
      %p77 = scmp.eq.s32.totalorder %s18, 1
      %p78 = por %p76, %p77
      %p79 = scmp.ne.s32.totalorder %s70, %s71
      %p80 = scmp.eq.s32.totalorder %s18, 0
      %p81 = por %p79, %p80
      %p82 = scmp.ne.s32.totalorder %s70, %s71
      %p83 = scmp.eq.s32.totalorder %s19, 1
      %p84 = por %p82, %p83
      %p86 = scmp.ne.s32.totalorder %s71, %s85
      %p87 = scmp.eq.s32.totalorder %s19, 0
      %p88 = por %p86, %p87
      %s90 = sadd.s32 %s89, 1
      %p93 = scmp.eq.s32.totalorder %s13, 1
      %p94 = scmp.ne.s32.totalorder %s89, %s91
      %p95 = scmp.eq.s32.totalorder %s13, 0
      %p96 = por %p94, %p95
      %p97 = scmp.ne.s32.totalorder %s89, %s91
      %p98 = scmp.eq.s32.totalorder %s18, 1
      %p99 = por %p97, %p98
      %p100 = scmp.ne.s32.totalorder %s91, %s92
      %p101 = scmp.eq.s32.totalorder %s18, 0
      %p102 = por %p100, %p101
      %p103 = scmp.ne.s32.totalorder %s91, %s92
      %p104 = scmp.eq.s32.totalorder %s19, 1
      %p105 = por %p103, %p104
      %p107 = scmp.ne.s32.totalorder %s92, %s106
      %p108 = scmp.eq.s32.totalorder %s19, 0
      %p109 = por %p107, %p108
      %s111 = sadd.s32 %s110, 1
      %p114 = scmp.eq.s32.totalorder %s13, 1
      %p115 = scmp.ne.s32.totalorder %s110, %s112
      %p116 = scmp.eq.s32.totalorder %s13, 0
      %p117 = por %p115, %p116
      %p118 = scmp.ne.s32.totalorder %s110, %s112
      %p119 = scmp.eq.s32.totalorder %s18, 1
      %p120 = por %p118, %p119
      %p121 = scmp.ne.s32.totalorder %s112, %s113
      %p122 = scmp.eq.s32.totalorder %s18, 0
      %p123 = por %p121, %p122
      %p124 = scmp.ne.s32.totalorder %s112, %s113
      %p125 = scmp.eq.s32.totalorder %s19, 1
      %p126 = por %p124, %p125
      %p128 = scmp.ne.s32.totalorder %s113, %s127
      %p129 = scmp.eq.s32.totalorder %s19, 0
      %p130 = por %p128, %p129
      %s131 = ssub.s32 %s13, %s20
      %p132 = scmp.eq.s32.totalorder %s131, 0
      %s134 = sadd.s32 %s133, 1
      %s135 = scalar_select %p132, %s133, %s134
      %p138 = pneg %p132
      %p139 = scmp.eq.s32.totalorder %s13, 1
      %p140 = por %p138, %p139
      %p141 = scmp.ne.s32.totalorder %s133, %s136
      %p142 = scmp.eq.s32.totalorder %s13, 0
      %p143 = por %p141, %p142
      %p144 = scmp.ne.s32.totalorder %s133, %s136
      %p145 = scmp.eq.s32.totalorder %s18, 1
      %p146 = por %p144, %p145
      %p147 = scmp.ne.s32.totalorder %s136, %s137
      %p148 = scmp.eq.s32.totalorder %s18, 0
      %p149 = por %p147, %p148
      %p150 = scmp.ne.s32.totalorder %s136, %s137
      %p151 = scmp.eq.s32.totalorder %s19, 1
      %p152 = por %p150, %p151
      %p154 = scmp.ne.s32.totalorder %s137, %s153
      %p155 = scmp.eq.s32.totalorder %s19, 0
      %p156 = por %p154, %p155
      %p157 = scmp.le.s32.totalorder 1, %s13
      %p158 = scmp.lt.s32.totalorder %s13, 3
      %p159 = pnand %p157, %p158
      %p160 = pneg %p159
      // Predicated region
      $region9: #{extend_forward.1} parent=5 // pred_check
        _
      $region10: #{extend_forward.1} parent=5 // pred_check_branch
        %162 = sbr.rel (%p159) target = $region12
      $region11: #{extend_forward.1} parent=5 // pred_region
        %s163 = ssub.s32 %s13, 1
        // Predicated region
        $region13: #{extend_forward.1} parent=11 // pred_check
          %p164 = pneg %p60
        $region14: #{extend_forward.1} parent=11 // pred_check_branch
          %166 = sbr.rel (%p164) target = $region16
        $region15: #{extend_forward.1} parent=11 // pred_region
          %s168 = ssub.s32 128, 128
          %169 = vsyncadd [#allocation3], %s168
          %s170 = sshll.u32 [#allocation2], 4
          %s171 = int_to_ptr.vmem [resolvable:$true] %s170
          %176 = dma.hbm_to_vmem [thread:$0]  %s1, 128, %s171, [#allocation3], 64, 64, 4
        $region16: #{extend_forward.1} parent=11 // pred_fallthru
          _
        // Predicated region
        $region17: #{extend_forward.1} parent=11 // pred_check
          %p177 = pneg %p81
        $region18: #{extend_forward.1} parent=11 // pred_check_branch
          %179 = sbr.rel (%p177) target = $region20
        $region19: #{extend_forward.1} parent=11 // pred_region
          _
        $region20: #{extend_forward.1} parent=11 // pred_fallthru
          _
        // Predicated region
        $region21: #{extend_forward.1} parent=11 // pred_check
          %p180 = pneg %p102
        $region22: #{extend_forward.1} parent=11 // pred_check_branch
          %182 = sbr.rel (%p180) target = $region24
        $region23: #{extend_forward.1} parent=11 // pred_region
          %s184 = ssub.s32 16, 16
          %185 = vsyncadd [#allocation5], %s184
          %s187 = sshll.u32 [#allocation4], 4
          %s188 = int_to_ptr.vmem [resolvable:$true] %s187
          %190 = dma.hbm_to_vmem [thread:$0]  %s3, 16, %s188, [#allocation5]
        $region24: #{extend_forward.1} parent=11 // pred_fallthru
          _
        // Predicated region
        $region25: #{extend_forward.1} parent=11 // pred_check
          %p191 = pneg %p123
        $region26: #{extend_forward.1} parent=11 // pred_check_branch
          %193 = sbr.rel (%p191) target = $region28
        $region27: #{extend_forward.1} parent=11 // pred_region
          _
        $region28: #{extend_forward.1} parent=11 // pred_fallthru
          _
      $region12: #{extend_forward.1} parent=5 // pred_fallthru
        _
      %p194 = scmp.lt.s32.totalorder %s13, 2
      // Predicated region
      $region29: #{extend_forward.1} parent=5 // pred_check
        %p195 = pneg %p194
      $region30: #{extend_forward.1} parent=5 // pred_check_branch
        %197 = sbr.rel (%p195) target = $region32
      $region31: #{extend_forward.1} parent=5 // pred_region
        // Predicated region
        $region33: #{extend_forward.1} parent=31 // pred_check
          %p198 = pneg %p33
        $region34: #{extend_forward.1} parent=31 // pred_check_branch
          %200 = sbr.rel (%p198) target = $region36
        $region35: #{extend_forward.1} parent=31 // pred_region
          %p201 = scmp.lt.s32.totalorder %s13, 1
          %s202 = scalar_select %p201, %s13, 1
          %s203 = smul.addr %s202, 16
          %s204 = smul.addr %s203, 8
          %s205 = scalar_lea.vmem %s0, %s204
        $region36: #{extend_forward.1} parent=31 // pred_fallthru
          _
      $region32: #{extend_forward.1} parent=5 // pred_fallthru
        _
      %p206 = scmp.le.s32.totalorder 1, %s13
      %p207 = scmp.lt.s32.totalorder %s13, 3
      %p208 = pnand %p206, %p207
      %p209 = pneg %p208
      // Predicated region
      $region37: #{extend_forward.1} parent=5 // pred_check
        _
      $region38: #{extend_forward.1} parent=5 // pred_check_branch
        %211 = sbr.rel (%p208) target = $region40
      $region39: #{extend_forward.1} parent=5 // pred_region
        %s212 = ssub.s32 %s13, 1
        // Predicated region
        $region41: #{extend_forward.1} parent=39 // pred_check
          %p213 = pneg %p60
        $region42: #{extend_forward.1} parent=39 // pred_check_branch
          %215 = sbr.rel (%p213) target = $region44
        $region43: #{extend_forward.1} parent=39 // pred_region
          %216 = dma.done [#allocation3], 128
        $region44: #{extend_forward.1} parent=39 // pred_fallthru
          _
        // Predicated region
        $region45: #{extend_forward.1} parent=39 // pred_check
          %p217 = pneg %p102
        $region46: #{extend_forward.1} parent=39 // pred_check_branch
          %219 = sbr.rel (%p217) target = $region48
        $region47: #{extend_forward.1} parent=39 // pred_region
          %220 = dma.done [#allocation5], 16
        $region48: #{extend_forward.1} parent=39 // pred_fallthru
          _
        %p221 = scmp.lt.s32.totalorder %s18, 1
        %s222 = scalar_select %p221, %s18, 1
        %s223 = smul.addr %s222, 16
        %s224 = smul.addr %s223, 8
        %s225 = scalar_lea.vmem %s0, %s224
        %p226 = pneg %p39
        %p227 = pneg %p36
        %p228 = pneg %p60
        %p229 = pneg %p57
        %p230 = pneg %p81
        %p231 = pneg %p78
        %p232 = pneg %p102
        %p233 = pneg %p99
        %p234 = pneg %p123
        %p235 = pneg %p120
        %p236 = pneg %p149
        %p237 = pneg %p146
        %p238 = scmp.lt.s32.totalorder %s18, 1
        %s239 = scalar_select %p238, %s18, 1
        %s240 = smul.addr %s239, 512
        %s241 = smul.addr %s240, 8
        %s242 = scalar_lea.vmem %s5, %s241
        %p243 = scmp.lt.s32.totalorder %s18, 1
        %s244 = scalar_select %p243, %s18, 1
        %s245 = smul.addr %s244, 16
        %s246 = smul.addr %s245, 8
        %s247 = scalar_lea.vmem %s0, %s246
        %p248 = scmp.lt.s32.totalorder %s18, 1
        %s249 = scalar_select %p248, %s18, 1
        %s250 = smul.addr %s249, 512
        %s251 = smul.addr %s250, 8
        %s252 = scalar_lea.vmem %s5, %s251
        %v254 = vld [vmem:[%s247] sm:$0xff]
        %v255 = vld [vmem:[%s247 + $0x8] sm:$0xff]
        %v256 = vld [vmem:[%s247 + $0x10] sm:$0xff]
        %v257 = vld [vmem:[%s247 + $0x18] sm:$0xff]
        %v258 = vld [vmem:[%s247 + $0x20] sm:$0xff]
        %v259 = vld [vmem:[%s247 + $0x28] sm:$0xff]
        %v260 = vld [vmem:[%s247 + $0x30] sm:$0xff]
        %v261 = vld [vmem:[%s247 + $0x38] sm:$0xff]
        %v262 = vld [vmem:[%s247 + $0x40] sm:$0xff]
        %v263 = vld [vmem:[%s247 + $0x48] sm:$0xff]
        %v264 = vld [vmem:[%s247 + $0x50] sm:$0xff]
        %v265 = vld [vmem:[%s247 + $0x58] sm:$0xff]
        %v266 = vld [vmem:[%s247 + $0x60] sm:$0xff]
        %v267 = vld [vmem:[%s247 + $0x68] sm:$0xff]
        %v268 = vld [vmem:[%s247 + $0x70] sm:$0xff]
        %v269 = vld [vmem:[%s247 + $0x78] sm:$0xff]
        %v270 = vpack.c.bf16 %v255, %v254
        %v271 = vpack.c.bf16 %v257, %v256
        %v272 = vpack.c.bf16 %v259, %v258
        %v273 = vpack.c.bf16 %v261, %v260
        %v274 = vpack.c.bf16 %v263, %v262
        %v275 = vpack.c.bf16 %v265, %v264
        %v276 = vpack.c.bf16 %v267, %v266
        %v277 = vpack.c.bf16 %v269, %v268
        %v278 = vld [vmem:[#allocation2] sm:$0xf]
        %v279 = vld [vmem:[#allocation2 + $0x4] sm:$0xf]
        %v280 = vld [vmem:[#allocation4] sm:$0x1]
        %v282 = vlaneseq
        %v283 = vshrl.u32 %v282, 7
        %v284 = vsub.s32 0, %v283
        %v285 = vrot.slane %v280, %v284
        %v289 = vunpack.c.l.b16 %v278
        %v290 = vunpack.c.l.b16 %v279
        %v291 = vpack.c.b16 %v290, %v289
        %vm293 = vcmask 130048
        %v295 = vsel %vm293, %v270, 0
        %v298 = vsel %vm293, %v271, 0
        %v301 = vsel %vm293, %v272, 0
        %v304 = vsel %vm293, %v273, 0
        %v307 = vsel %vm293, %v274, 0
        %v310 = vsel %vm293, %v275, 0
        %v313 = vsel %vm293, %v276, 0
        %v316 = vsel %vm293, %v277, 0
        %318 = vmatprep.subr.bf16.mxu0 0
        %319 = vmatpush1.bf16.msra.mxu0 0
        %320 = vmatprep.subr.bf16.mxu0 0
        %321 = vmatpush1.bf16.msra.mxu0 0
        %322 = vmatprep.subr.bf16.mxu0 0
        %323 = vmatpush1.bf16.msra.mxu0 0
        %324 = vmatprep.subr.bf16.mxu0 0
        %325 = vmatpush1.bf16.msra.mxu0 0
        %326 = vmatprep.subr.bf16.mxu0 0
        %327 = vmatpush1.bf16.msra.mxu0 0
        %328 = vmatprep.subr.bf16.mxu0 0
        %329 = vmatpush1.bf16.msra.mxu0 0
        %330 = vmatprep.subr.bf16.mxu0 0
        %331 = vmatpush1.bf16.msra.mxu0 0
        %332 = vmatprep.subr.bf16.mxu0 0
        %333 = vmatpush1.bf16.msra.mxu0 %v291
        %334 = vmatprep.subr.bf16.mxu0 0
        %335 = vmatpush2.bf16.msra.mxu0 0
        %336 = vmatprep.subr.bf16.mxu0 0
        %337 = vmatpush2.bf16.msra.mxu0 0
        %338 = vmatprep.subr.bf16.mxu0 0
        %339 = vmatpush2.bf16.msra.mxu0 0
        %340 = vmatprep.subr.bf16.mxu0 0
        %341 = vmatpush2.bf16.msra.mxu0 0
        %342 = vmatprep.subr.bf16.mxu0 0
        %343 = vmatpush2.bf16.msra.mxu0 0
        %344 = vmatprep.subr.bf16.mxu0 0
        %345 = vmatpush2.bf16.msra.mxu0 0
        %346 = vmatprep.subr.bf16.mxu0 0
        %347 = vmatpush2.bf16.msra.mxu0 0
        %348 = vmatprep.subr.bf16.mxu0 0
        %349 = vmatpush2.bf16.msra.mxu0 0
        %350 = vmatprep.mubr.bf16.mxu0 0
        %351 = vmatmul.mubr.bf16.gmra.mxu0 %v295
        %v352 = vpop.f32.mrf.mxu0
        %v353 = vadd.f32 %v285, %v352
        %v354 = vpop.f32.mrf.mxu0
        %v355 = vpop.f32.mrf.mxu0
        %v356 = vadd.f32 %v285, %v355
        %v357 = vpop.f32.mrf.mxu0
        %358 = vmatprep.mubr.bf16.mxu0 0
        %359 = vmatmul.mubr.bf16.gmra.mxu0 %v298
        %v360 = vpop.f32.mrf.mxu0
        %v361 = vadd.f32 %v285, %v360
        %v362 = vpop.f32.mrf.mxu0
        %v363 = vpop.f32.mrf.mxu0
        %v364 = vadd.f32 %v285, %v363
        %v365 = vpop.f32.mrf.mxu0
        %366 = vmatprep.mubr.bf16.mxu0 0
        %367 = vmatmul.mubr.bf16.gmra.mxu0 %v301
        %v368 = vpop.f32.mrf.mxu0
        %v369 = vadd.f32 %v285, %v368
        %v370 = vpop.f32.mrf.mxu0
        %v371 = vpop.f32.mrf.mxu0
        %v372 = vadd.f32 %v285, %v371
        %v373 = vpop.f32.mrf.mxu0
        %374 = vmatprep.mubr.bf16.mxu0 0
        %375 = vmatmul.mubr.bf16.gmra.mxu0 %v304
        %v376 = vpop.f32.mrf.mxu0
        %v377 = vadd.f32 %v285, %v376
        %v378 = vpop.f32.mrf.mxu0
        %v379 = vpop.f32.mrf.mxu0
        %v380 = vadd.f32 %v285, %v379
        %v381 = vpop.f32.mrf.mxu0
        %382 = vmatprep.mubr.bf16.mxu0 0
        %383 = vmatmul.mubr.bf16.gmra.mxu0 %v307
        %v384 = vpop.f32.mrf.mxu0
        %v385 = vadd.f32 %v285, %v384
        %v386 = vpop.f32.mrf.mxu0
        %v387 = vpop.f32.mrf.mxu0
        %v388 = vadd.f32 %v285, %v387
        %v389 = vpop.f32.mrf.mxu0
        %390 = vmatprep.mubr.bf16.mxu0 0
        %391 = vmatmul.mubr.bf16.gmra.mxu0 %v310
        %v392 = vpop.f32.mrf.mxu0
        %v393 = vadd.f32 %v285, %v392
        %v394 = vpop.f32.mrf.mxu0
        %v395 = vpop.f32.mrf.mxu0
        %v396 = vadd.f32 %v285, %v395
        %v397 = vpop.f32.mrf.mxu0
        %398 = vmatprep.mubr.bf16.mxu0 0
        %399 = vmatmul.mubr.bf16.gmra.mxu0 %v313
        %v400 = vpop.f32.mrf.mxu0
        %v401 = vadd.f32 %v285, %v400
        %v402 = vpop.f32.mrf.mxu0
        %v403 = vpop.f32.mrf.mxu0
        %v404 = vadd.f32 %v285, %v403
        %v405 = vpop.f32.mrf.mxu0
        %406 = vmatprep.mubr.bf16.mxu0 0
        %407 = vmatmul.mubr.bf16.gmra.mxu0 %v316
        %v408 = vpop.f32.mrf.mxu0
        %v409 = vadd.f32 %v285, %v408
        %v410 = vpop.f32.mrf.mxu0
        %v411 = vpop.f32.mrf.mxu0
        %v412 = vadd.f32 %v285, %v411
        %v413 = vpop.f32.mrf.mxu0
        %414 = vdwg.mxu0
        %v415 = vpack.c.bf16 %v356, %v353
        %v416 = vpack.c.bf16 %v364, %v361
        %v417 = vpack.c.bf16 %v372, %v369
        %v418 = vpack.c.bf16 %v380, %v377
        %v419 = vpack.c.bf16 %v388, %v385
        %v420 = vpack.c.bf16 %v396, %v393
        %v421 = vpack.c.bf16 %v404, %v401
        %v422 = vpack.c.bf16 %v412, %v409
        %v423 = vld [vmem:[%s2] sm:$0xf]
        %v424 = vld [vmem:[%s2 + $0x4] sm:$0xf]
        %v425 = vld [vmem:[%s2 + $0x8] sm:$0xf]
        %v426 = vld [vmem:[%s2 + $0xc] sm:$0xf]
        %v427 = vld [vmem:[%s2 + $0x10] sm:$0xf]
        %v428 = vld [vmem:[%s2 + $0x14] sm:$0xf]
        %v429 = vld [vmem:[%s2 + $0x18] sm:$0xf]
        %v430 = vld [vmem:[%s2 + $0x1c] sm:$0xf]
        %v431 = vld [vmem:[%s2 + $0x20] sm:$0xf]
        %v432 = vld [vmem:[%s2 + $0x24] sm:$0xf]
        %v433 = vld [vmem:[%s2 + $0x28] sm:$0xf]
        %v434 = vld [vmem:[%s2 + $0x2c] sm:$0xf]
        %v435 = vld [vmem:[%s2 + $0x30] sm:$0xf]
        %v436 = vld [vmem:[%s2 + $0x34] sm:$0xf]
        %v437 = vld [vmem:[%s2 + $0x38] sm:$0xf]
        %v438 = vld [vmem:[%s2 + $0x3c] sm:$0xf]
        %v439 = vld [vmem:[%s4] sm:$0xff]
        %v440 = vld [vmem:[%s4 + $0x8] sm:$0xff]
        %v441 = vld [vmem:[%s4 + $0x10] sm:$0xff]
        %v442 = vld [vmem:[%s4 + $0x18] sm:$0xff]
        %v443 = vld [vmem:[%s4 + $0x20] sm:$0xff]
        %v444 = vld [vmem:[%s4 + $0x28] sm:$0xff]
        %v445 = vld [vmem:[%s4 + $0x30] sm:$0xff]
        %v446 = vld [vmem:[%s4 + $0x38] sm:$0xff]
        %v447 = vld [vmem:[%s4 + $0x40] sm:$0xff]
        %v448 = vld [vmem:[%s4 + $0x48] sm:$0xff]
        %v449 = vld [vmem:[%s4 + $0x50] sm:$0xff]
        %v450 = vld [vmem:[%s4 + $0x58] sm:$0xff]
        %v451 = vld [vmem:[%s4 + $0x60] sm:$0xff]
        %v452 = vld [vmem:[%s4 + $0x68] sm:$0xff]
        %v453 = vld [vmem:[%s4 + $0x70] sm:$0xff]
        %v454 = vld [vmem:[%s4 + $0x78] sm:$0xff]
        %456 = vset.pattern.permute.xlu0 0
        %457 = vperm.xlu0 %456, %v439
        %v458 = vpop.permute.xlu0 %457
        %461 = vset.pattern.permute.xlu0 0
        %462 = vperm.xlu0 %461, %v440
        %v463 = vpop.permute.xlu0 %462
        %466 = vset.pattern.permute.xlu0 0
        %467 = vperm.xlu0 %466, %v441
        %v468 = vpop.permute.xlu0 %467
        %471 = vset.pattern.permute.xlu0 0
        %472 = vperm.xlu0 %471, %v442
        %v473 = vpop.permute.xlu0 %472
        %476 = vset.pattern.permute.xlu0 0
        %477 = vperm.xlu0 %476, %v443
        %v478 = vpop.permute.xlu0 %477
        %481 = vset.pattern.permute.xlu0 0
        %482 = vperm.xlu0 %481, %v444
        %v483 = vpop.permute.xlu0 %482
        %486 = vset.pattern.permute.xlu0 0
        %487 = vperm.xlu0 %486, %v445
        %v488 = vpop.permute.xlu0 %487
        %491 = vset.pattern.permute.xlu0 0
        %492 = vperm.xlu0 %491, %v446
        %v493 = vpop.permute.xlu0 %492
        %496 = vset.pattern.permute.xlu0 0
        %497 = vperm.xlu0 %496, %v447
        %v498 = vpop.permute.xlu0 %497
        %501 = vset.pattern.permute.xlu0 0
        %502 = vperm.xlu0 %501, %v448
        %v503 = vpop.permute.xlu0 %502
        %506 = vset.pattern.permute.xlu0 0
        %507 = vperm.xlu0 %506, %v449
        %v508 = vpop.permute.xlu0 %507
        %511 = vset.pattern.permute.xlu0 0
        %512 = vperm.xlu0 %511, %v450
        %v513 = vpop.permute.xlu0 %512
        %516 = vset.pattern.permute.xlu0 0
        %517 = vperm.xlu0 %516, %v451
        %v518 = vpop.permute.xlu0 %517
        %521 = vset.pattern.permute.xlu0 0
        %522 = vperm.xlu0 %521, %v452
        %v523 = vpop.permute.xlu0 %522
        %526 = vset.pattern.permute.xlu0 0
        %527 = vperm.xlu0 %526, %v453
        %v528 = vpop.permute.xlu0 %527
        %531 = vset.pattern.permute.xlu0 0
        %532 = vperm.xlu0 %531, %v454
        %v533 = vpop.permute.xlu0 %532
        %v551 = vunpack.c.l.b16 %v423
        %v552 = vunpack.c.l.b16 %v424
        %v553 = vunpack.c.l.b16 %v425
        %v554 = vunpack.c.l.b16 %v426
        %v555 = vunpack.c.l.b16 %v427
        %v556 = vunpack.c.l.b16 %v428
        %v557 = vunpack.c.l.b16 %v429
        %v558 = vunpack.c.l.b16 %v430
        %v559 = vunpack.c.l.b16 %v431
        %v560 = vunpack.c.l.b16 %v432
        %v561 = vunpack.c.l.b16 %v433
        %v562 = vunpack.c.l.b16 %v434
        %v563 = vunpack.c.l.b16 %v435
        %v564 = vunpack.c.l.b16 %v436
        %v565 = vunpack.c.l.b16 %v437
        %v566 = vunpack.c.l.b16 %v438
        %v567 = vpack.c.b16 %v552, %v551
        %v568 = vpack.c.b16 %v554, %v553
        %v569 = vpack.c.b16 %v556, %v555
        %v570 = vpack.c.b16 %v558, %v557
        %v571 = vpack.c.b16 %v560, %v559
        %v572 = vpack.c.b16 %v562, %v561
        %v573 = vpack.c.b16 %v564, %v563
        %v574 = vpack.c.b16 %v566, %v565
        %vm575 = vcmask 261120
        %v577 = vsel %vm575, %v567, 0
        %v580 = vsel %vm575, %v568, 0
        %v583 = vsel %vm575, %v569, 0
        %v586 = vsel %vm575, %v570, 0
        %v589 = vsel %vm575, %v571, 0
        %v592 = vsel %vm575, %v572, 0
        %v595 = vsel %vm575, %v573, 0
        %v598 = vsel %vm575, %v574, 0
        %600 = vmatprep.subr.bf16.mxu0 0
        %601 = vmatpush1.bf16.msra.mxu0 0
        %602 = vmatprep.subr.bf16.mxu0 0
        %603 = vmatpush1.bf16.msra.mxu0 0
        %604 = vmatprep.subr.bf16.mxu0 0
        %605 = vmatpush1.bf16.msra.mxu0 0
        %606 = vmatprep.subr.bf16.mxu0 0
        %607 = vmatpush1.bf16.msra.mxu0 0
        %608 = vmatprep.subr.bf16.mxu0 0
        %609 = vmatpush1.bf16.msra.mxu0 0
        %610 = vmatprep.subr.bf16.mxu0 0
        %611 = vmatpush1.bf16.msra.mxu0 0
        %612 = vmatprep.subr.bf16.mxu0 0
        %613 = vmatpush1.bf16.msra.mxu0 %v416
        %614 = vmatprep.subr.bf16.mxu0 0
        %615 = vmatpush1.bf16.msra.mxu0 %v415
        %616 = vmatprep.subr.bf16.mxu0 0
        %617 = vmatpush2.bf16.msra.mxu0 0
        %618 = vmatprep.subr.bf16.mxu0 0
        %619 = vmatpush2.bf16.msra.mxu0 0
        %620 = vmatprep.subr.bf16.mxu0 0
        %621 = vmatpush2.bf16.msra.mxu0 0
        %622 = vmatprep.subr.bf16.mxu0 0
        %623 = vmatpush2.bf16.msra.mxu0 0
        %624 = vmatprep.subr.bf16.mxu0 0
        %625 = vmatpush2.bf16.msra.mxu0 0
        %626 = vmatprep.subr.bf16.mxu0 0
        %627 = vmatpush2.bf16.msra.mxu0 0
        %628 = vmatprep.subr.bf16.mxu0 0
        %629 = vmatpush2.bf16.msra.mxu0 0
        %630 = vmatprep.subr.bf16.mxu0 0
        %631 = vmatpush2.bf16.msra.mxu0 0
        %632 = vmatprep.mubr.bf16.mxu0 0
        %633 = vmatmul.mubr.bf16.gmra.mxu0 %v577
        %v634 = vpop.f32.mrf.mxu0
        %v635 = vadd.f32 %v458, %v634
        %v636 = vpop.f32.mrf.mxu0
        %v637 = vpop.f32.mrf.mxu0
        %v638 = vadd.f32 %v463, %v637
        %v639 = vpop.f32.mrf.mxu0
        %640 = vmatprep.mubr.bf16.mxu0 0
        %641 = vmatmul.mubr.bf16.gmra.mxu0 %v580
        %v642 = vpop.f32.mrf.mxu0
        %v643 = vadd.f32 %v468, %v642
        %v644 = vpop.f32.mrf.mxu0
        %v645 = vpop.f32.mrf.mxu0
        %v646 = vadd.f32 %v473, %v645
        %v647 = vpop.f32.mrf.mxu0
        %648 = vmatprep.mubr.bf16.mxu0 0
        %649 = vmatmul.mubr.bf16.gmra.mxu0 %v583
        %v650 = vpop.f32.mrf.mxu0
        %v651 = vadd.f32 %v478, %v650
        %v652 = vpop.f32.mrf.mxu0
        %v653 = vpop.f32.mrf.mxu0
        %v654 = vadd.f32 %v483, %v653
        %v655 = vpop.f32.mrf.mxu0
        %656 = vmatprep.mubr.bf16.mxu0 0
        %657 = vmatmul.mubr.bf16.gmra.mxu0 %v586
        %v658 = vpop.f32.mrf.mxu0
        %v659 = vadd.f32 %v488, %v658
        %v660 = vpop.f32.mrf.mxu0
        %v661 = vpop.f32.mrf.mxu0
        %v662 = vadd.f32 %v493, %v661
        %v663 = vpop.f32.mrf.mxu0
        %664 = vmatprep.mubr.bf16.mxu0 0
        %665 = vmatmul.mubr.bf16.gmra.mxu0 %v589
        %v666 = vpop.f32.mrf.mxu0
        %v667 = vadd.f32 %v498, %v666
        %v668 = vpop.f32.mrf.mxu0
        %v669 = vpop.f32.mrf.mxu0
        %v670 = vadd.f32 %v503, %v669
        %v671 = vpop.f32.mrf.mxu0
        %672 = vmatprep.mubr.bf16.mxu0 0
        %673 = vmatmul.mubr.bf16.gmra.mxu0 %v592
        %v674 = vpop.f32.mrf.mxu0
        %v675 = vadd.f32 %v508, %v674
        %v676 = vpop.f32.mrf.mxu0
        %v677 = vpop.f32.mrf.mxu0
        %v678 = vadd.f32 %v513, %v677
        %v679 = vpop.f32.mrf.mxu0
        %680 = vmatprep.mubr.bf16.mxu0 0
        %681 = vmatmul.mubr.bf16.gmra.mxu0 %v595
        %v682 = vpop.f32.mrf.mxu0
        %v683 = vadd.f32 %v518, %v682
        %v684 = vpop.f32.mrf.mxu0
        %v685 = vpop.f32.mrf.mxu0
        %v686 = vadd.f32 %v523, %v685
        %v687 = vpop.f32.mrf.mxu0
        %688 = vmatprep.mubr.bf16.mxu0 0
        %689 = vmatmul.mubr.bf16.gmra.mxu0 %v598
        %v690 = vpop.f32.mrf.mxu0
        %v691 = vadd.f32 %v528, %v690
        %v692 = vpop.f32.mrf.mxu0
        %v693 = vpop.f32.mrf.mxu0
        %v694 = vadd.f32 %v533, %v693
        %v695 = vpop.f32.mrf.mxu0
        %696 = vdwg.mxu0
        %vm697 = vcmask 179200
        %698 = vst.msk [vmem:[%s252] sm:$0xff] %vm697, %v635
        %699 = vst.msk [vmem:[%s252 + $0x8] sm:$0xff] %vm697, %v638
        %700 = vst.msk [vmem:[%s252 + $0x10] sm:$0xff] %vm697, %v643
        %701 = vst.msk [vmem:[%s252 + $0x18] sm:$0xff] %vm697, %v646
        %702 = vst.msk [vmem:[%s252 + $0x20] sm:$0xff] %vm697, %v651
        %703 = vst.msk [vmem:[%s252 + $0x28] sm:$0xff] %vm697, %v654
        %704 = vst.msk [vmem:[%s252 + $0x30] sm:$0xff] %vm697, %v659
        %705 = vst.msk [vmem:[%s252 + $0x38] sm:$0xff] %vm697, %v662
        %706 = vst.msk [vmem:[%s252 + $0x40] sm:$0xff] %vm697, %v667
        %707 = vst.msk [vmem:[%s252 + $0x48] sm:$0xff] %vm697, %v670
        %708 = vst.msk [vmem:[%s252 + $0x50] sm:$0xff] %vm697, %v675
        %709 = vst.msk [vmem:[%s252 + $0x58] sm:$0xff] %vm697, %v678
        %710 = vst.msk [vmem:[%s252 + $0x60] sm:$0xff] %vm697, %v683
        %711 = vst.msk [vmem:[%s252 + $0x68] sm:$0xff] %vm697, %v686
        %712 = vst.msk [vmem:[%s252 + $0x70] sm:$0xff] %vm697, %v691
        %713 = vst.msk [vmem:[%s252 + $0x78] sm:$0xff] %vm697, %v694
        %v714 = vld [vmem:[%s2 + $0x40] sm:$0xf]
        %v715 = vld [vmem:[%s2 + $0x44] sm:$0xf]
        %v716 = vld [vmem:[%s2 + $0x48] sm:$0xf]
        %v717 = vld [vmem:[%s2 + $0x4c] sm:$0xf]
        %v718 = vld [vmem:[%s2 + $0x50] sm:$0xf]
        %v719 = vld [vmem:[%s2 + $0x54] sm:$0xf]
        %v720 = vld [vmem:[%s2 + $0x58] sm:$0xf]
        %v721 = vld [vmem:[%s2 + $0x5c] sm:$0xf]
        %v722 = vld [vmem:[%s2 + $0x60] sm:$0xf]
        %v723 = vld [vmem:[%s2 + $0x64] sm:$0xf]
        %v724 = vld [vmem:[%s2 + $0x68] sm:$0xf]
        %v725 = vld [vmem:[%s2 + $0x6c] sm:$0xf]
        %v726 = vld [vmem:[%s2 + $0x70] sm:$0xf]
        %v727 = vld [vmem:[%s2 + $0x74] sm:$0xf]
        %v728 = vld [vmem:[%s2 + $0x78] sm:$0xf]
        %v729 = vld [vmem:[%s2 + $0x7c] sm:$0xf]
        %v730 = vld [vmem:[%s4 + $0x80] sm:$0xff]
        %v731 = vld [vmem:[%s4 + $0x88] sm:$0xff]
        %v732 = vld [vmem:[%s4 + $0x90] sm:$0xff]
        %v733 = vld [vmem:[%s4 + $0x98] sm:$0xff]
        %v734 = vld [vmem:[%s4 + $0xa0] sm:$0xff]
        %v735 = vld [vmem:[%s4 + $0xa8] sm:$0xff]
        %v736 = vld [vmem:[%s4 + $0xb0] sm:$0xff]
        %v737 = vld [vmem:[%s4 + $0xb8] sm:$0xff]
        %v738 = vld [vmem:[%s4 + $0xc0] sm:$0xff]
        %v739 = vld [vmem:[%s4 + $0xc8] sm:$0xff]
        %v740 = vld [vmem:[%s4 + $0xd0] sm:$0xff]
        %v741 = vld [vmem:[%s4 + $0xd8] sm:$0xff]
        %v742 = vld [vmem:[%s4 + $0xe0] sm:$0xff]
        %v743 = vld [vmem:[%s4 + $0xe8] sm:$0xff]
        %v744 = vld [vmem:[%s4 + $0xf0] sm:$0xff]
        %v745 = vld [vmem:[%s4 + $0xf8] sm:$0xff]
        %747 = vset.pattern.permute.xlu0 0
        %748 = vperm.xlu0 %747, %v730
        %v749 = vpop.permute.xlu0 %748
        %752 = vset.pattern.permute.xlu0 0
        %753 = vperm.xlu0 %752, %v731
        %v754 = vpop.permute.xlu0 %753
        %757 = vset.pattern.permute.xlu0 0
        %758 = vperm.xlu0 %757, %v732
        %v759 = vpop.permute.xlu0 %758
        %762 = vset.pattern.permute.xlu0 0
        %763 = vperm.xlu0 %762, %v733
        %v764 = vpop.permute.xlu0 %763
        %767 = vset.pattern.permute.xlu0 0
        %768 = vperm.xlu0 %767, %v734
        %v769 = vpop.permute.xlu0 %768
        %772 = vset.pattern.permute.xlu0 0
        %773 = vperm.xlu0 %772, %v735
        %v774 = vpop.permute.xlu0 %773
        %777 = vset.pattern.permute.xlu0 0
        %778 = vperm.xlu0 %777, %v736
        %v779 = vpop.permute.xlu0 %778
        %782 = vset.pattern.permute.xlu0 0
        %783 = vperm.xlu0 %782, %v737
        %v784 = vpop.permute.xlu0 %783
        %787 = vset.pattern.permute.xlu0 0
        %788 = vperm.xlu0 %787, %v738
        %v789 = vpop.permute.xlu0 %788
        %792 = vset.pattern.permute.xlu0 0
        %793 = vperm.xlu0 %792, %v739
        %v794 = vpop.permute.xlu0 %793
        %797 = vset.pattern.permute.xlu0 0
        %798 = vperm.xlu0 %797, %v740
        %v799 = vpop.permute.xlu0 %798
        %802 = vset.pattern.permute.xlu0 0
        %803 = vperm.xlu0 %802, %v741
        %v804 = vpop.permute.xlu0 %803
        %807 = vset.pattern.permute.xlu0 0
        %808 = vperm.xlu0 %807, %v742
        %v809 = vpop.permute.xlu0 %808
        %812 = vset.pattern.permute.xlu0 0
        %813 = vperm.xlu0 %812, %v743
        %v814 = vpop.permute.xlu0 %813
        %817 = vset.pattern.permute.xlu0 0
        %818 = vperm.xlu0 %817, %v744
        %v819 = vpop.permute.xlu0 %818
        %822 = vset.pattern.permute.xlu0 0
        %823 = vperm.xlu0 %822, %v745
        %v824 = vpop.permute.xlu0 %823
        %v842 = vunpack.c.l.b16 %v714
        %v843 = vunpack.c.l.b16 %v715
        %v844 = vunpack.c.l.b16 %v716
        %v845 = vunpack.c.l.b16 %v717
        %v846 = vunpack.c.l.b16 %v718
        %v847 = vunpack.c.l.b16 %v719
        %v848 = vunpack.c.l.b16 %v720
        %v849 = vunpack.c.l.b16 %v721
        %v850 = vunpack.c.l.b16 %v722
        %v851 = vunpack.c.l.b16 %v723
        %v852 = vunpack.c.l.b16 %v724
        %v853 = vunpack.c.l.b16 %v725
        %v854 = vunpack.c.l.b16 %v726
        %v855 = vunpack.c.l.b16 %v727
        %v856 = vunpack.c.l.b16 %v728
        %v857 = vunpack.c.l.b16 %v729
        %v858 = vpack.c.b16 %v843, %v842
        %v859 = vpack.c.b16 %v845, %v844
        %v860 = vpack.c.b16 %v847, %v846
        %v861 = vpack.c.b16 %v849, %v848
        %v862 = vpack.c.b16 %v851, %v850
        %v863 = vpack.c.b16 %v853, %v852
        %v864 = vpack.c.b16 %v855, %v854
        %v865 = vpack.c.b16 %v857, %v856
        %v867 = vsel %vm575, %v858, 0
        %v870 = vsel %vm575, %v859, 0
        %v873 = vsel %vm575, %v860, 0
        %v876 = vsel %vm575, %v861, 0
        %v879 = vsel %vm575, %v862, 0
        %v882 = vsel %vm575, %v863, 0
        %v885 = vsel %vm575, %v864, 0
        %v888 = vsel %vm575, %v865, 0
        %890 = vmatprep.subr.bf16.mxu0 0
        %891 = vmatpush1.bf16.msra.mxu0 0
        %892 = vmatprep.subr.bf16.mxu0 0
        %893 = vmatpush1.bf16.msra.mxu0 0
        %894 = vmatprep.subr.bf16.mxu0 0
        %895 = vmatpush1.bf16.msra.mxu0 0
        %896 = vmatprep.subr.bf16.mxu0 0
        %897 = vmatpush1.bf16.msra.mxu0 0
        %898 = vmatprep.subr.bf16.mxu0 0
        %899 = vmatpush1.bf16.msra.mxu0 0
        %900 = vmatprep.subr.bf16.mxu0 0
        %901 = vmatpush1.bf16.msra.mxu0 0
        %902 = vmatprep.subr.bf16.mxu0 0
        %903 = vmatpush1.bf16.msra.mxu0 %v416
        %904 = vmatprep.subr.bf16.mxu0 0
        %905 = vmatpush1.bf16.msra.mxu0 %v415
        %906 = vmatprep.subr.bf16.mxu0 0
        %907 = vmatpush2.bf16.msra.mxu0 0
        %908 = vmatprep.subr.bf16.mxu0 0
        %909 = vmatpush2.bf16.msra.mxu0 0
        %910 = vmatprep.subr.bf16.mxu0 0
        %911 = vmatpush2.bf16.msra.mxu0 0
        %912 = vmatprep.subr.bf16.mxu0 0
        %913 = vmatpush2.bf16.msra.mxu0 0
        %914 = vmatprep.subr.bf16.mxu0 0
        %915 = vmatpush2.bf16.msra.mxu0 0
        %916 = vmatprep.subr.bf16.mxu0 0
        %917 = vmatpush2.bf16.msra.mxu0 0
        %918 = vmatprep.subr.bf16.mxu0 0
        %919 = vmatpush2.bf16.msra.mxu0 0
        %920 = vmatprep.subr.bf16.mxu0 0
        %921 = vmatpush2.bf16.msra.mxu0 0
        %922 = vmatprep.mubr.bf16.mxu0 0
        %923 = vmatmul.mubr.bf16.gmra.mxu0 %v867
        %v924 = vpop.f32.mrf.mxu0
        %v925 = vadd.f32 %v749, %v924
        %v926 = vpop.f32.mrf.mxu0
        %v927 = vpop.f32.mrf.mxu0
        %v928 = vadd.f32 %v754, %v927
        %v929 = vpop.f32.mrf.mxu0
        %930 = vmatprep.mubr.bf16.mxu0 0
        %931 = vmatmul.mubr.bf16.gmra.mxu0 %v870
        %v932 = vpop.f32.mrf.mxu0
        %v933 = vadd.f32 %v759, %v932
        %v934 = vpop.f32.mrf.mxu0
        %v935 = vpop.f32.mrf.mxu0
        %v936 = vadd.f32 %v764, %v935
        %v937 = vpop.f32.mrf.mxu0
        %938 = vmatprep.mubr.bf16.mxu0 0
        %939 = vmatmul.mubr.bf16.gmra.mxu0 %v873
        %v940 = vpop.f32.mrf.mxu0
        %v941 = vadd.f32 %v769, %v940
        %v942 = vpop.f32.mrf.mxu0
        %v943 = vpop.f32.mrf.mxu0
        %v944 = vadd.f32 %v774, %v943
        %v945 = vpop.f32.mrf.mxu0
        %946 = vmatprep.mubr.bf16.mxu0 0
        %947 = vmatmul.mubr.bf16.gmra.mxu0 %v876
        %v948 = vpop.f32.mrf.mxu0
        %v949 = vadd.f32 %v779, %v948
        %v950 = vpop.f32.mrf.mxu0
        %v951 = vpop.f32.mrf.mxu0
        %v952 = vadd.f32 %v784, %v951
        %v953 = vpop.f32.mrf.mxu0
        %954 = vmatprep.mubr.bf16.mxu0 0
        %955 = vmatmul.mubr.bf16.gmra.mxu0 %v879
        %v956 = vpop.f32.mrf.mxu0
        %v957 = vadd.f32 %v789, %v956
        %v958 = vpop.f32.mrf.mxu0
        %v959 = vpop.f32.mrf.mxu0
        %v960 = vadd.f32 %v794, %v959
        %v961 = vpop.f32.mrf.mxu0
        %962 = vmatprep.mubr.bf16.mxu0 0
        %963 = vmatmul.mubr.bf16.gmra.mxu0 %v882
        %v964 = vpop.f32.mrf.mxu0
        %v965 = vadd.f32 %v799, %v964
        %v966 = vpop.f32.mrf.mxu0
        %v967 = vpop.f32.mrf.mxu0
        %v968 = vadd.f32 %v804, %v967
        %v969 = vpop.f32.mrf.mxu0
        %970 = vmatprep.mubr.bf16.mxu0 0
        %971 = vmatmul.mubr.bf16.gmra.mxu0 %v885
        %v972 = vpop.f32.mrf.mxu0
        %v973 = vadd.f32 %v809, %v972
        %v974 = vpop.f32.mrf.mxu0
        %v975 = vpop.f32.mrf.mxu0
        %v976 = vadd.f32 %v814, %v975
        %v977 = vpop.f32.mrf.mxu0
        %978 = vmatprep.mubr.bf16.mxu0 0
        %979 = vmatmul.mubr.bf16.gmra.mxu0 %v888
        %v980 = vpop.f32.mrf.mxu0
        %v981 = vadd.f32 %v819, %v980
        %v982 = vpop.f32.mrf.mxu0
        %v983 = vpop.f32.mrf.mxu0
        %v984 = vadd.f32 %v824, %v983
        %v985 = vpop.f32.mrf.mxu0
        %986 = vdwg.mxu0
        %987 = vst.msk [vmem:[%s252 + $0x80] sm:$0xff] %vm697, %v925
        %988 = vst.msk [vmem:[%s252 + $0x88] sm:$0xff] %vm697, %v928
        %989 = vst.msk [vmem:[%s252 + $0x90] sm:$0xff] %vm697, %v933
        %990 = vst.msk [vmem:[%s252 + $0x98] sm:$0xff] %vm697, %v936
        %991 = vst.msk [vmem:[%s252 + $0xa0] sm:$0xff] %vm697, %v941
        %992 = vst.msk [vmem:[%s252 + $0xa8] sm:$0xff] %vm697, %v944
        %993 = vst.msk [vmem:[%s252 + $0xb0] sm:$0xff] %vm697, %v949
        %994 = vst.msk [vmem:[%s252 + $0xb8] sm:$0xff] %vm697, %v952
        %995 = vst.msk [vmem:[%s252 + $0xc0] sm:$0xff] %vm697, %v957
        %996 = vst.msk [vmem:[%s252 + $0xc8] sm:$0xff] %vm697, %v960
        %997 = vst.msk [vmem:[%s252 + $0xd0] sm:$0xff] %vm697, %v965
        %998 = vst.msk [vmem:[%s252 + $0xd8] sm:$0xff] %vm697, %v968
        %999 = vst.msk [vmem:[%s252 + $0xe0] sm:$0xff] %vm697, %v973
        %1000 = vst.msk [vmem:[%s252 + $0xe8] sm:$0xff] %vm697, %v976
        %1001 = vst.msk [vmem:[%s252 + $0xf0] sm:$0xff] %vm697, %v981
        %1002 = vst.msk [vmem:[%s252 + $0xf8] sm:$0xff] %vm697, %v984
        %v1003 = vld [vmem:[%s2 + $0x80] sm:$0xf]
        %v1004 = vld [vmem:[%s2 + $0x84] sm:$0xf]
        %v1005 = vld [vmem:[%s2 + $0x88] sm:$0xf]
        %v1006 = vld [vmem:[%s2 + $0x8c] sm:$0xf]
        %v1007 = vld [vmem:[%s2 + $0x90] sm:$0xf]
        %v1008 = vld [vmem:[%s2 + $0x94] sm:$0xf]
        %v1009 = vld [vmem:[%s2 + $0x98] sm:$0xf]
        %v1010 = vld [vmem:[%s2 + $0x9c] sm:$0xf]
        %v1011 = vld [vmem:[%s2 + $0xa0] sm:$0xf]
        %v1012 = vld [vmem:[%s2 + $0xa4] sm:$0xf]
        %v1013 = vld [vmem:[%s2 + $0xa8] sm:$0xf]
        %v1014 = vld [vmem:[%s2 + $0xac] sm:$0xf]
        %v1015 = vld [vmem:[%s2 + $0xb0] sm:$0xf]
        %v1016 = vld [vmem:[%s2 + $0xb4] sm:$0xf]
        %v1017 = vld [vmem:[%s2 + $0xb8] sm:$0xf]
        %v1018 = vld [vmem:[%s2 + $0xbc] sm:$0xf]
        %v1019 = vld [vmem:[%s4 + $0x100] sm:$0xff]
        %v1020 = vld [vmem:[%s4 + $0x108] sm:$0xff]
        %v1021 = vld [vmem:[%s4 + $0x110] sm:$0xff]
        %v1022 = vld [vmem:[%s4 + $0x118] sm:$0xff]
        %v1023 = vld [vmem:[%s4 + $0x120] sm:$0xff]
        %v1024 = vld [vmem:[%s4 + $0x128] sm:$0xff]
        %v1025 = vld [vmem:[%s4 + $0x130] sm:$0xff]
        %v1026 = vld [vmem:[%s4 + $0x138] sm:$0xff]
        %v1027 = vld [vmem:[%s4 + $0x140] sm:$0xff]
        %v1028 = vld [vmem:[%s4 + $0x148] sm:$0xff]
        %v1029 = vld [vmem:[%s4 + $0x150] sm:$0xff]
        %v1030 = vld [vmem:[%s4 + $0x158] sm:$0xff]
        %v1031 = vld [vmem:[%s4 + $0x160] sm:$0xff]
        %v1032 = vld [vmem:[%s4 + $0x168] sm:$0xff]
        %v1033 = vld [vmem:[%s4 + $0x170] sm:$0xff]
        %v1034 = vld [vmem:[%s4 + $0x178] sm:$0xff]
        %1036 = vset.pattern.permute.xlu0 0
        %1037 = vperm.xlu0 %1036, %v1019
        %v1038 = vpop.permute.xlu0 %1037
        %1041 = vset.pattern.permute.xlu0 0
        %1042 = vperm.xlu0 %1041, %v1020
        %v1043 = vpop.permute.xlu0 %1042
        %1046 = vset.pattern.permute.xlu0 0
        %1047 = vperm.xlu0 %1046, %v1021
        %v1048 = vpop.permute.xlu0 %1047
        %1051 = vset.pattern.permute.xlu0 0
        %1052 = vperm.xlu0 %1051, %v1022
        %v1053 = vpop.permute.xlu0 %1052
        %1056 = vset.pattern.permute.xlu0 0
        %1057 = vperm.xlu0 %1056, %v1023
        %v1058 = vpop.permute.xlu0 %1057
        %1061 = vset.pattern.permute.xlu0 0
        %1062 = vperm.xlu0 %1061, %v1024
        %v1063 = vpop.permute.xlu0 %1062
        %1066 = vset.pattern.permute.xlu0 0
        %1067 = vperm.xlu0 %1066, %v1025
        %v1068 = vpop.permute.xlu0 %1067
        %1071 = vset.pattern.permute.xlu0 0
        %1072 = vperm.xlu0 %1071, %v1026
        %v1073 = vpop.permute.xlu0 %1072
        %1076 = vset.pattern.permute.xlu0 0
        %1077 = vperm.xlu0 %1076, %v1027
        %v1078 = vpop.permute.xlu0 %1077
        %1081 = vset.pattern.permute.xlu0 0
        %1082 = vperm.xlu0 %1081, %v1028
        %v1083 = vpop.permute.xlu0 %1082
        %1086 = vset.pattern.permute.xlu0 0
        %1087 = vperm.xlu0 %1086, %v1029
        %v1088 = vpop.permute.xlu0 %1087
        %1091 = vset.pattern.permute.xlu0 0
        %1092 = vperm.xlu0 %1091, %v1030
        %v1093 = vpop.permute.xlu0 %1092
        %1096 = vset.pattern.permute.xlu0 0
        %1097 = vperm.xlu0 %1096, %v1031
        %v1098 = vpop.permute.xlu0 %1097
        %1101 = vset.pattern.permute.xlu0 0
        %1102 = vperm.xlu0 %1101, %v1032
        %v1103 = vpop.permute.xlu0 %1102
        %1106 = vset.pattern.permute.xlu0 0
        %1107 = vperm.xlu0 %1106, %v1033
        %v1108 = vpop.permute.xlu0 %1107
        %1111 = vset.pattern.permute.xlu0 0
        %1112 = vperm.xlu0 %1111, %v1034
        %v1113 = vpop.permute.xlu0 %1112
        %v1131 = vunpack.c.l.b16 %v1003
        %v1132 = vunpack.c.l.b16 %v1004
        %v1133 = vunpack.c.l.b16 %v1005
        %v1134 = vunpack.c.l.b16 %v1006
        %v1135 = vunpack.c.l.b16 %v1007
        %v1136 = vunpack.c.l.b16 %v1008
        %v1137 = vunpack.c.l.b16 %v1009
        %v1138 = vunpack.c.l.b16 %v1010
        %v1139 = vunpack.c.l.b16 %v1011
        %v1140 = vunpack.c.l.b16 %v1012
        %v1141 = vunpack.c.l.b16 %v1013
        %v1142 = vunpack.c.l.b16 %v1014
        %v1143 = vunpack.c.l.b16 %v1015
        %v1144 = vunpack.c.l.b16 %v1016
        %v1145 = vunpack.c.l.b16 %v1017
        %v1146 = vunpack.c.l.b16 %v1018
        %v1147 = vpack.c.b16 %v1132, %v1131
        %v1148 = vpack.c.b16 %v1134, %v1133
        %v1149 = vpack.c.b16 %v1136, %v1135
        %v1150 = vpack.c.b16 %v1138, %v1137
        %v1151 = vpack.c.b16 %v1140, %v1139
        %v1152 = vpack.c.b16 %v1142, %v1141
        %v1153 = vpack.c.b16 %v1144, %v1143
        %v1154 = vpack.c.b16 %v1146, %v1145
        %v1156 = vsel %vm575, %v1147, 0
        %v1159 = vsel %vm575, %v1148, 0
        %v1162 = vsel %vm575, %v1149, 0
        %v1165 = vsel %vm575, %v1150, 0
        %v1168 = vsel %vm575, %v1151, 0
        %v1171 = vsel %vm575, %v1152, 0
        %v1174 = vsel %vm575, %v1153, 0
        %v1177 = vsel %vm575, %v1154, 0
        %1179 = vmatprep.subr.bf16.mxu0 0
        %1180 = vmatpush1.bf16.msra.mxu0 0
        %1181 = vmatprep.subr.bf16.mxu0 0
        %1182 = vmatpush1.bf16.msra.mxu0 0
        %1183 = vmatprep.subr.bf16.mxu0 0
        %1184 = vmatpush1.bf16.msra.mxu0 0
        %1185 = vmatprep.subr.bf16.mxu0 0
        %1186 = vmatpush1.bf16.msra.mxu0 0
        %1187 = vmatprep.subr.bf16.mxu0 0
        %1188 = vmatpush1.bf16.msra.mxu0 0
        %1189 = vmatprep.subr.bf16.mxu0 0
        %1190 = vmatpush1.bf16.msra.mxu0 0
        %1191 = vmatprep.subr.bf16.mxu0 0
        %1192 = vmatpush1.bf16.msra.mxu0 %v416
        %1193 = vmatprep.subr.bf16.mxu0 0
        %1194 = vmatpush1.bf16.msra.mxu0 %v415
        %1195 = vmatprep.subr.bf16.mxu0 0
        %1196 = vmatpush2.bf16.msra.mxu0 0
        %1197 = vmatprep.subr.bf16.mxu0 0
        %1198 = vmatpush2.bf16.msra.mxu0 0
        %1199 = vmatprep.subr.bf16.mxu0 0
        %1200 = vmatpush2.bf16.msra.mxu0 0
        %1201 = vmatprep.subr.bf16.mxu0 0
        %1202 = vmatpush2.bf16.msra.mxu0 0
        %1203 = vmatprep.subr.bf16.mxu0 0
        %1204 = vmatpush2.bf16.msra.mxu0 0
        %1205 = vmatprep.subr.bf16.mxu0 0
        %1206 = vmatpush2.bf16.msra.mxu0 0
        %1207 = vmatprep.subr.bf16.mxu0 0
        %1208 = vmatpush2.bf16.msra.mxu0 0
        %1209 = vmatprep.subr.bf16.mxu0 0
        %1210 = vmatpush2.bf16.msra.mxu0 0
        %1211 = vmatprep.mubr.bf16.mxu0 0
        %1212 = vmatmul.mubr.bf16.gmra.mxu0 %v1156
        %v1213 = vpop.f32.mrf.mxu0
        %v1214 = vadd.f32 %v1038, %v1213
        %v1215 = vpop.f32.mrf.mxu0
        %v1216 = vpop.f32.mrf.mxu0
        %v1217 = vadd.f32 %v1043, %v1216
        %v1218 = vpop.f32.mrf.mxu0
        %1219 = vmatprep.mubr.bf16.mxu0 0
        %1220 = vmatmul.mubr.bf16.gmra.mxu0 %v1159
        %v1221 = vpop.f32.mrf.mxu0
        %v1222 = vadd.f32 %v1048, %v1221
        %v1223 = vpop.f32.mrf.mxu0
        %v1224 = vpop.f32.mrf.mxu0
        %v1225 = vadd.f32 %v1053, %v1224
        %v1226 = vpop.f32.mrf.mxu0
        %1227 = vmatprep.mubr.bf16.mxu0 0
        %1228 = vmatmul.mubr.bf16.gmra.mxu0 %v1162
        %v1229 = vpop.f32.mrf.mxu0
        %v1230 = vadd.f32 %v1058, %v1229
        %v1231 = vpop.f32.mrf.mxu0
        %v1232 = vpop.f32.mrf.mxu0
        %v1233 = vadd.f32 %v1063, %v1232
        %v1234 = vpop.f32.mrf.mxu0
        %1235 = vmatprep.mubr.bf16.mxu0 0
        %1236 = vmatmul.mubr.bf16.gmra.mxu0 %v1165
        %v1237 = vpop.f32.mrf.mxu0
        %v1238 = vadd.f32 %v1068, %v1237
        %v1239 = vpop.f32.mrf.mxu0
        %v1240 = vpop.f32.mrf.mxu0
        %v1241 = vadd.f32 %v1073, %v1240
        %v1242 = vpop.f32.mrf.mxu0
        %1243 = vmatprep.mubr.bf16.mxu0 0
        %1244 = vmatmul.mubr.bf16.gmra.mxu0 %v1168
        %v1245 = vpop.f32.mrf.mxu0
        %v1246 = vadd.f32 %v1078, %v1245
        %v1247 = vpop.f32.mrf.mxu0
        %v1248 = vpop.f32.mrf.mxu0
        %v1249 = vadd.f32 %v1083, %v1248
        %v1250 = vpop.f32.mrf.mxu0
        %1251 = vmatprep.mubr.bf16.mxu0 0
        %1252 = vmatmul.mubr.bf16.gmra.mxu0 %v1171
        %v1253 = vpop.f32.mrf.mxu0
        %v1254 = vadd.f32 %v1088, %v1253
        %v1255 = vpop.f32.mrf.mxu0
        %v1256 = vpop.f32.mrf.mxu0
        %v1257 = vadd.f32 %v1093, %v1256
        %v1258 = vpop.f32.mrf.mxu0
        %1259 = vmatprep.mubr.bf16.mxu0 0
        %1260 = vmatmul.mubr.bf16.gmra.mxu0 %v1174
        %v1261 = vpop.f32.mrf.mxu0
        %v1262 = vadd.f32 %v1098, %v1261
        %v1263 = vpop.f32.mrf.mxu0
        %v1264 = vpop.f32.mrf.mxu0
        %v1265 = vadd.f32 %v1103, %v1264
        %v1266 = vpop.f32.mrf.mxu0
        %1267 = vmatprep.mubr.bf16.mxu0 0
        %1268 = vmatmul.mubr.bf16.gmra.mxu0 %v1177
        %v1269 = vpop.f32.mrf.mxu0
        %v1270 = vadd.f32 %v1108, %v1269
        %v1271 = vpop.f32.mrf.mxu0
        %v1272 = vpop.f32.mrf.mxu0
        %v1273 = vadd.f32 %v1113, %v1272
        %v1274 = vpop.f32.mrf.mxu0
        %1275 = vdwg.mxu0
        %1276 = vst.msk [vmem:[%s252 + $0x100] sm:$0xff] %vm697, %v1214
        %1277 = vst.msk [vmem:[%s252 + $0x108] sm:$0xff] %vm697, %v1217
        %1278 = vst.msk [vmem:[%s252 + $0x110] sm:$0xff] %vm697, %v1222
        %1279 = vst.msk [vmem:[%s252 + $0x118] sm:$0xff] %vm697, %v1225
        %1280 = vst.msk [vmem:[%s252 + $0x120] sm:$0xff] %vm697, %v1230
        %1281 = vst.msk [vmem:[%s252 + $0x128] sm:$0xff] %vm697, %v1233
        %1282 = vst.msk [vmem:[%s252 + $0x130] sm:$0xff] %vm697, %v1238
        %1283 = vst.msk [vmem:[%s252 + $0x138] sm:$0xff] %vm697, %v1241
        %1284 = vst.msk [vmem:[%s252 + $0x140] sm:$0xff] %vm697, %v1246
        %1285 = vst.msk [vmem:[%s252 + $0x148] sm:$0xff] %vm697, %v1249
        %1286 = vst.msk [vmem:[%s252 + $0x150] sm:$0xff] %vm697, %v1254
        %1287 = vst.msk [vmem:[%s252 + $0x158] sm:$0xff] %vm697, %v1257
        %1288 = vst.msk [vmem:[%s252 + $0x160] sm:$0xff] %vm697, %v1262
        %1289 = vst.msk [vmem:[%s252 + $0x168] sm:$0xff] %vm697, %v1265
        %1290 = vst.msk [vmem:[%s252 + $0x170] sm:$0xff] %vm697, %v1270
        %1291 = vst.msk [vmem:[%s252 + $0x178] sm:$0xff] %vm697, %v1273
        %v1292 = vld [vmem:[%s2 + $0xc0] sm:$0xf]
        %v1293 = vld [vmem:[%s2 + $0xc4] sm:$0xf]
        %v1294 = vld [vmem:[%s2 + $0xc8] sm:$0xf]
        %v1295 = vld [vmem:[%s2 + $0xcc] sm:$0xf]
        %v1296 = vld [vmem:[%s2 + $0xd0] sm:$0xf]
        %v1297 = vld [vmem:[%s2 + $0xd4] sm:$0xf]
        %v1298 = vld [vmem:[%s2 + $0xd8] sm:$0xf]
        %v1299 = vld [vmem:[%s2 + $0xdc] sm:$0xf]
        %v1300 = vld [vmem:[%s2 + $0xe0] sm:$0xf]
        %v1301 = vld [vmem:[%s2 + $0xe4] sm:$0xf]
        %v1302 = vld [vmem:[%s2 + $0xe8] sm:$0xf]
        %v1303 = vld [vmem:[%s2 + $0xec] sm:$0xf]
        %v1304 = vld [vmem:[%s2 + $0xf0] sm:$0xf]
        %v1305 = vld [vmem:[%s2 + $0xf4] sm:$0xf]
        %v1306 = vld [vmem:[%s2 + $0xf8] sm:$0xf]
        %v1307 = vld [vmem:[%s2 + $0xfc] sm:$0xf]
        %v1308 = vld [vmem:[%s4 + $0x180] sm:$0xff]
        %v1309 = vld [vmem:[%s4 + $0x188] sm:$0xff]
        %v1310 = vld [vmem:[%s4 + $0x190] sm:$0xff]
        %v1311 = vld [vmem:[%s4 + $0x198] sm:$0xff]
        %v1312 = vld [vmem:[%s4 + $0x1a0] sm:$0xff]
        %v1313 = vld [vmem:[%s4 + $0x1a8] sm:$0xff]
        %v1314 = vld [vmem:[%s4 + $0x1b0] sm:$0xff]
        %v1315 = vld [vmem:[%s4 + $0x1b8] sm:$0xff]
        %v1316 = vld [vmem:[%s4 + $0x1c0] sm:$0xff]
        %v1317 = vld [vmem:[%s4 + $0x1c8] sm:$0xff]
        %v1318 = vld [vmem:[%s4 + $0x1d0] sm:$0xff]
        %v1319 = vld [vmem:[%s4 + $0x1d8] sm:$0xff]
        %v1320 = vld [vmem:[%s4 + $0x1e0] sm:$0xff]
        %v1321 = vld [vmem:[%s4 + $0x1e8] sm:$0xff]
        %v1322 = vld [vmem:[%s4 + $0x1f0] sm:$0xff]
        %v1323 = vld [vmem:[%s4 + $0x1f8] sm:$0xff]
        %1325 = vset.pattern.permute.xlu0 0
        %1326 = vperm.xlu0 %1325, %v1308
        %v1327 = vpop.permute.xlu0 %1326
        %1330 = vset.pattern.permute.xlu0 0
        %1331 = vperm.xlu0 %1330, %v1309
        %v1332 = vpop.permute.xlu0 %1331
        %1335 = vset.pattern.permute.xlu0 0
        %1336 = vperm.xlu0 %1335, %v1310
        %v1337 = vpop.permute.xlu0 %1336
        %1340 = vset.pattern.permute.xlu0 0
        %1341 = vperm.xlu0 %1340, %v1311
        %v1342 = vpop.permute.xlu0 %1341
        %1345 = vset.pattern.permute.xlu0 0
        %1346 = vperm.xlu0 %1345, %v1312
        %v1347 = vpop.permute.xlu0 %1346
        %1350 = vset.pattern.permute.xlu0 0
        %1351 = vperm.xlu0 %1350, %v1313
        %v1352 = vpop.permute.xlu0 %1351
        %1355 = vset.pattern.permute.xlu0 0
        %1356 = vperm.xlu0 %1355, %v1314
        %v1357 = vpop.permute.xlu0 %1356
        %1360 = vset.pattern.permute.xlu0 0
        %1361 = vperm.xlu0 %1360, %v1315
        %v1362 = vpop.permute.xlu0 %1361
        %1365 = vset.pattern.permute.xlu0 0
        %1366 = vperm.xlu0 %1365, %v1316
        %v1367 = vpop.permute.xlu0 %1366
        %1370 = vset.pattern.permute.xlu0 0
        %1371 = vperm.xlu0 %1370, %v1317
        %v1372 = vpop.permute.xlu0 %1371
        %1375 = vset.pattern.permute.xlu0 0
        %1376 = vperm.xlu0 %1375, %v1318
        %v1377 = vpop.permute.xlu0 %1376
        %1380 = vset.pattern.permute.xlu0 0
        %1381 = vperm.xlu0 %1380, %v1319
        %v1382 = vpop.permute.xlu0 %1381
        %1385 = vset.pattern.permute.xlu0 0
        %1386 = vperm.xlu0 %1385, %v1320
        %v1387 = vpop.permute.xlu0 %1386
        %1390 = vset.pattern.permute.xlu0 0
        %1391 = vperm.xlu0 %1390, %v1321
        %v1392 = vpop.permute.xlu0 %1391
        %1395 = vset.pattern.permute.xlu0 0
        %1396 = vperm.xlu0 %1395, %v1322
        %v1397 = vpop.permute.xlu0 %1396
        %1400 = vset.pattern.permute.xlu0 0
        %1401 = vperm.xlu0 %1400, %v1323
        %v1402 = vpop.permute.xlu0 %1401
        %v1420 = vunpack.c.l.b16 %v1292
        %v1421 = vunpack.c.l.b16 %v1293
        %v1422 = vunpack.c.l.b16 %v1294
        %v1423 = vunpack.c.l.b16 %v1295
        %v1424 = vunpack.c.l.b16 %v1296
        %v1425 = vunpack.c.l.b16 %v1297
        %v1426 = vunpack.c.l.b16 %v1298
        %v1427 = vunpack.c.l.b16 %v1299
        %v1428 = vunpack.c.l.b16 %v1300
        %v1429 = vunpack.c.l.b16 %v1301
        %v1430 = vunpack.c.l.b16 %v1302
        %v1431 = vunpack.c.l.b16 %v1303
        %v1432 = vunpack.c.l.b16 %v1304
        %v1433 = vunpack.c.l.b16 %v1305
        %v1434 = vunpack.c.l.b16 %v1306
        %v1435 = vunpack.c.l.b16 %v1307
        %v1436 = vpack.c.b16 %v1421, %v1420
        %v1437 = vpack.c.b16 %v1423, %v1422
        %v1438 = vpack.c.b16 %v1425, %v1424
        %v1439 = vpack.c.b16 %v1427, %v1426
        %v1440 = vpack.c.b16 %v1429, %v1428
        %v1441 = vpack.c.b16 %v1431, %v1430
        %v1442 = vpack.c.b16 %v1433, %v1432
        %v1443 = vpack.c.b16 %v1435, %v1434
        %v1445 = vsel %vm575, %v1436, 0
        %v1448 = vsel %vm575, %v1437, 0
        %v1451 = vsel %vm575, %v1438, 0
        %v1454 = vsel %vm575, %v1439, 0
        %v1457 = vsel %vm575, %v1440, 0
        %v1460 = vsel %vm575, %v1441, 0
        %v1463 = vsel %vm575, %v1442, 0
        %v1466 = vsel %vm575, %v1443, 0
        %1468 = vmatprep.subr.bf16.mxu0 0
        %1469 = vmatpush1.bf16.msra.mxu0 0
        %1470 = vmatprep.subr.bf16.mxu0 0
        %1471 = vmatpush1.bf16.msra.mxu0 0
        %1472 = vmatprep.subr.bf16.mxu0 0
        %1473 = vmatpush1.bf16.msra.mxu0 0
        %1474 = vmatprep.subr.bf16.mxu0 0
        %1475 = vmatpush1.bf16.msra.mxu0 0
        %1476 = vmatprep.subr.bf16.mxu0 0
        %1477 = vmatpush1.bf16.msra.mxu0 0
        %1478 = vmatprep.subr.bf16.mxu0 0
        %1479 = vmatpush1.bf16.msra.mxu0 0
        %1480 = vmatprep.subr.bf16.mxu0 0
        %1481 = vmatpush1.bf16.msra.mxu0 %v416
        %1482 = vmatprep.subr.bf16.mxu0 0
        %1483 = vmatpush1.bf16.msra.mxu0 %v415
        %1484 = vmatprep.subr.bf16.mxu0 0
        %1485 = vmatpush2.bf16.msra.mxu0 0
        %1486 = vmatprep.subr.bf16.mxu0 0
        %1487 = vmatpush2.bf16.msra.mxu0 0
        %1488 = vmatprep.subr.bf16.mxu0 0
        %1489 = vmatpush2.bf16.msra.mxu0 0
        %1490 = vmatprep.subr.bf16.mxu0 0
        %1491 = vmatpush2.bf16.msra.mxu0 0
        %1492 = vmatprep.subr.bf16.mxu0 0
        %1493 = vmatpush2.bf16.msra.mxu0 0
        %1494 = vmatprep.subr.bf16.mxu0 0
        %1495 = vmatpush2.bf16.msra.mxu0 0
        %1496 = vmatprep.subr.bf16.mxu0 0
        %1497 = vmatpush2.bf16.msra.mxu0 0
        %1498 = vmatprep.subr.bf16.mxu0 0
        %1499 = vmatpush2.bf16.msra.mxu0 0
        %1500 = vmatprep.mubr.bf16.mxu0 0
        %1501 = vmatmul.mubr.bf16.gmra.mxu0 %v1445
        %v1502 = vpop.f32.mrf.mxu0
        %v1503 = vadd.f32 %v1327, %v1502
        %v1504 = vpop.f32.mrf.mxu0
        %v1505 = vpop.f32.mrf.mxu0
        %v1506 = vadd.f32 %v1332, %v1505
        %v1507 = vpop.f32.mrf.mxu0
        %1508 = vmatprep.mubr.bf16.mxu0 0
        %1509 = vmatmul.mubr.bf16.gmra.mxu0 %v1448
        %v1510 = vpop.f32.mrf.mxu0
        %v1511 = vadd.f32 %v1337, %v1510
        %v1512 = vpop.f32.mrf.mxu0
        %v1513 = vpop.f32.mrf.mxu0
        %v1514 = vadd.f32 %v1342, %v1513
        %v1515 = vpop.f32.mrf.mxu0
        %1516 = vmatprep.mubr.bf16.mxu0 0
        %1517 = vmatmul.mubr.bf16.gmra.mxu0 %v1451
        %v1518 = vpop.f32.mrf.mxu0
        %v1519 = vadd.f32 %v1347, %v1518
        %v1520 = vpop.f32.mrf.mxu0
        %v1521 = vpop.f32.mrf.mxu0
        %v1522 = vadd.f32 %v1352, %v1521
        %v1523 = vpop.f32.mrf.mxu0
        %1524 = vmatprep.mubr.bf16.mxu0 0
        %1525 = vmatmul.mubr.bf16.gmra.mxu0 %v1454
        %v1526 = vpop.f32.mrf.mxu0
        %v1527 = vadd.f32 %v1357, %v1526
        %v1528 = vpop.f32.mrf.mxu0
        %v1529 = vpop.f32.mrf.mxu0
        %v1530 = vadd.f32 %v1362, %v1529
        %v1531 = vpop.f32.mrf.mxu0
        %1532 = vmatprep.mubr.bf16.mxu0 0
        %1533 = vmatmul.mubr.bf16.gmra.mxu0 %v1457
        %v1534 = vpop.f32.mrf.mxu0
        %v1535 = vadd.f32 %v1367, %v1534
        %v1536 = vpop.f32.mrf.mxu0
        %v1537 = vpop.f32.mrf.mxu0
        %v1538 = vadd.f32 %v1372, %v1537
        %v1539 = vpop.f32.mrf.mxu0
        %1540 = vmatprep.mubr.bf16.mxu0 0
        %1541 = vmatmul.mubr.bf16.gmra.mxu0 %v1460
        %v1542 = vpop.f32.mrf.mxu0
        %v1543 = vadd.f32 %v1377, %v1542
        %v1544 = vpop.f32.mrf.mxu0
        %v1545 = vpop.f32.mrf.mxu0
        %v1546 = vadd.f32 %v1382, %v1545
        %v1547 = vpop.f32.mrf.mxu0
        %1548 = vmatprep.mubr.bf16.mxu0 0
        %1549 = vmatmul.mubr.bf16.gmra.mxu0 %v1463
        %v1550 = vpop.f32.mrf.mxu0
        %v1551 = vadd.f32 %v1387, %v1550
        %v1552 = vpop.f32.mrf.mxu0
        %v1553 = vpop.f32.mrf.mxu0
        %v1554 = vadd.f32 %v1392, %v1553
        %v1555 = vpop.f32.mrf.mxu0
        %1556 = vmatprep.mubr.bf16.mxu0 0
        %1557 = vmatmul.mubr.bf16.gmra.mxu0 %v1466
        %v1558 = vpop.f32.mrf.mxu0
        %v1559 = vadd.f32 %v1397, %v1558
        %v1560 = vpop.f32.mrf.mxu0
        %v1561 = vpop.f32.mrf.mxu0
        %v1562 = vadd.f32 %v1402, %v1561
        %v1563 = vpop.f32.mrf.mxu0
        %1564 = vdwg.mxu0
        %1565 = vst.msk [vmem:[%s252 + $0x180] sm:$0xff] %vm697, %v1503
        %1566 = vst.msk [vmem:[%s252 + $0x188] sm:$0xff] %vm697, %v1506
        %1567 = vst.msk [vmem:[%s252 + $0x190] sm:$0xff] %vm697, %v1511
        %1568 = vst.msk [vmem:[%s252 + $0x198] sm:$0xff] %vm697, %v1514
        %1569 = vst.msk [vmem:[%s252 + $0x1a0] sm:$0xff] %vm697, %v1519
        %1570 = vst.msk [vmem:[%s252 + $0x1a8] sm:$0xff] %vm697, %v1522
        %1571 = vst.msk [vmem:[%s252 + $0x1b0] sm:$0xff] %vm697, %v1527
        %1572 = vst.msk [vmem:[%s252 + $0x1b8] sm:$0xff] %vm697, %v1530
        %1573 = vst.msk [vmem:[%s252 + $0x1c0] sm:$0xff] %vm697, %v1535
        %1574 = vst.msk [vmem:[%s252 + $0x1c8] sm:$0xff] %vm697, %v1538
        %1575 = vst.msk [vmem:[%s252 + $0x1d0] sm:$0xff] %vm697, %v1543
        %1576 = vst.msk [vmem:[%s252 + $0x1d8] sm:$0xff] %vm697, %v1546
        %1577 = vst.msk [vmem:[%s252 + $0x1e0] sm:$0xff] %vm697, %v1551
        %1578 = vst.msk [vmem:[%s252 + $0x1e8] sm:$0xff] %vm697, %v1554
        %1579 = vst.msk [vmem:[%s252 + $0x1f0] sm:$0xff] %vm697, %v1559
        %1580 = vst.msk [vmem:[%s252 + $0x1f8] sm:$0xff] %vm697, %v1562
        %v1581 = vld [vmem:[%s2 + $0x100] sm:$0xf]
        %v1582 = vld [vmem:[%s2 + $0x104] sm:$0xf]
        %v1583 = vld [vmem:[%s2 + $0x108] sm:$0xf]
        %v1584 = vld [vmem:[%s2 + $0x10c] sm:$0xf]
        %v1585 = vld [vmem:[%s2 + $0x110] sm:$0xf]
        %v1586 = vld [vmem:[%s2 + $0x114] sm:$0xf]
        %v1587 = vld [vmem:[%s2 + $0x118] sm:$0xf]
        %v1588 = vld [vmem:[%s2 + $0x11c] sm:$0xf]
        %v1589 = vld [vmem:[%s2 + $0x120] sm:$0xf]
        %v1590 = vld [vmem:[%s2 + $0x124] sm:$0xf]
        %v1591 = vld [vmem:[%s2 + $0x128] sm:$0xf]
        %v1592 = vld [vmem:[%s2 + $0x12c] sm:$0xf]
        %v1593 = vld [vmem:[%s2 + $0x130] sm:$0xf]
        %v1594 = vld [vmem:[%s2 + $0x134] sm:$0xf]
        %v1595 = vld [vmem:[%s2 + $0x138] sm:$0xf]
        %v1596 = vld [vmem:[%s2 + $0x13c] sm:$0xf]
        %v1597 = vld [vmem:[%s4 + $0x200] sm:$0xff]
        %v1598 = vld [vmem:[%s4 + $0x208] sm:$0xff]
        %v1599 = vld [vmem:[%s4 + $0x210] sm:$0xff]
        %v1600 = vld [vmem:[%s4 + $0x218] sm:$0xff]
        %v1601 = vld [vmem:[%s4 + $0x220] sm:$0xff]
        %v1602 = vld [vmem:[%s4 + $0x228] sm:$0xff]
        %v1603 = vld [vmem:[%s4 + $0x230] sm:$0xff]
        %v1604 = vld [vmem:[%s4 + $0x238] sm:$0xff]
        %v1605 = vld [vmem:[%s4 + $0x240] sm:$0xff]
        %v1606 = vld [vmem:[%s4 + $0x248] sm:$0xff]
        %v1607 = vld [vmem:[%s4 + $0x250] sm:$0xff]
        %v1608 = vld [vmem:[%s4 + $0x258] sm:$0xff]
        %v1609 = vld [vmem:[%s4 + $0x260] sm:$0xff]
        %v1610 = vld [vmem:[%s4 + $0x268] sm:$0xff]
        %v1611 = vld [vmem:[%s4 + $0x270] sm:$0xff]
        %v1612 = vld [vmem:[%s4 + $0x278] sm:$0xff]
        %1614 = vset.pattern.permute.xlu0 0
        %1615 = vperm.xlu0 %1614, %v1597
        %v1616 = vpop.permute.xlu0 %1615
        %1619 = vset.pattern.permute.xlu0 0
        %1620 = vperm.xlu0 %1619, %v1598
        %v1621 = vpop.permute.xlu0 %1620
        %1624 = vset.pattern.permute.xlu0 0
        %1625 = vperm.xlu0 %1624, %v1599
        %v1626 = vpop.permute.xlu0 %1625
        %1629 = vset.pattern.permute.xlu0 0
        %1630 = vperm.xlu0 %1629, %v1600
        %v1631 = vpop.permute.xlu0 %1630
        %1634 = vset.pattern.permute.xlu0 0
        %1635 = vperm.xlu0 %1634, %v1601
        %v1636 = vpop.permute.xlu0 %1635
        %1639 = vset.pattern.permute.xlu0 0
        %1640 = vperm.xlu0 %1639, %v1602
        %v1641 = vpop.permute.xlu0 %1640
        %1644 = vset.pattern.permute.xlu0 0
        %1645 = vperm.xlu0 %1644, %v1603
        %v1646 = vpop.permute.xlu0 %1645
        %1649 = vset.pattern.permute.xlu0 0
        %1650 = vperm.xlu0 %1649, %v1604
        %v1651 = vpop.permute.xlu0 %1650
        %1654 = vset.pattern.permute.xlu0 0
        %1655 = vperm.xlu0 %1654, %v1605
        %v1656 = vpop.permute.xlu0 %1655
        %1659 = vset.pattern.permute.xlu0 0
        %1660 = vperm.xlu0 %1659, %v1606
        %v1661 = vpop.permute.xlu0 %1660
        %1664 = vset.pattern.permute.xlu0 0
        %1665 = vperm.xlu0 %1664, %v1607
        %v1666 = vpop.permute.xlu0 %1665
        %1669 = vset.pattern.permute.xlu0 0
        %1670 = vperm.xlu0 %1669, %v1608
        %v1671 = vpop.permute.xlu0 %1670
        %1674 = vset.pattern.permute.xlu0 0
        %1675 = vperm.xlu0 %1674, %v1609
        %v1676 = vpop.permute.xlu0 %1675
        %1679 = vset.pattern.permute.xlu0 0
        %1680 = vperm.xlu0 %1679, %v1610
        %v1681 = vpop.permute.xlu0 %1680
        %1684 = vset.pattern.permute.xlu0 0
        %1685 = vperm.xlu0 %1684, %v1611
        %v1686 = vpop.permute.xlu0 %1685
        %1689 = vset.pattern.permute.xlu0 0
        %1690 = vperm.xlu0 %1689, %v1612
        %v1691 = vpop.permute.xlu0 %1690
        %v1709 = vunpack.c.l.b16 %v1581
        %v1710 = vunpack.c.l.b16 %v1582
        %v1711 = vunpack.c.l.b16 %v1583
        %v1712 = vunpack.c.l.b16 %v1584
        %v1713 = vunpack.c.l.b16 %v1585
        %v1714 = vunpack.c.l.b16 %v1586
        %v1715 = vunpack.c.l.b16 %v1587
        %v1716 = vunpack.c.l.b16 %v1588
        %v1717 = vunpack.c.l.b16 %v1589
        %v1718 = vunpack.c.l.b16 %v1590
        %v1719 = vunpack.c.l.b16 %v1591
        %v1720 = vunpack.c.l.b16 %v1592
        %v1721 = vunpack.c.l.b16 %v1593
        %v1722 = vunpack.c.l.b16 %v1594
        %v1723 = vunpack.c.l.b16 %v1595
        %v1724 = vunpack.c.l.b16 %v1596
        %v1725 = vpack.c.b16 %v1710, %v1709
        %v1726 = vpack.c.b16 %v1712, %v1711
        %v1727 = vpack.c.b16 %v1714, %v1713
        %v1728 = vpack.c.b16 %v1716, %v1715
        %v1729 = vpack.c.b16 %v1718, %v1717
        %v1730 = vpack.c.b16 %v1720, %v1719
        %v1731 = vpack.c.b16 %v1722, %v1721
        %v1732 = vpack.c.b16 %v1724, %v1723
        %v1734 = vsel %vm575, %v1725, 0
        %v1737 = vsel %vm575, %v1726, 0
        %v1740 = vsel %vm575, %v1727, 0
        %v1743 = vsel %vm575, %v1728, 0
        %v1746 = vsel %vm575, %v1729, 0
        %v1749 = vsel %vm575, %v1730, 0
        %v1752 = vsel %vm575, %v1731, 0
        %v1755 = vsel %vm575, %v1732, 0
        %1757 = vmatprep.subr.bf16.mxu0 0
        %1758 = vmatpush1.bf16.msra.mxu0 0
        %1759 = vmatprep.subr.bf16.mxu0 0
        %1760 = vmatpush1.bf16.msra.mxu0 0
        %1761 = vmatprep.subr.bf16.mxu0 0
        %1762 = vmatpush1.bf16.msra.mxu0 0
        %1763 = vmatprep.subr.bf16.mxu0 0
        %1764 = vmatpush1.bf16.msra.mxu0 0
        %1765 = vmatprep.subr.bf16.mxu0 0
        %1766 = vmatpush1.bf16.msra.mxu0 0
        %1767 = vmatprep.subr.bf16.mxu0 0
        %1768 = vmatpush1.bf16.msra.mxu0 0
        %1769 = vmatprep.subr.bf16.mxu0 0
        %1770 = vmatpush1.bf16.msra.mxu0 %v416
        %1771 = vmatprep.subr.bf16.mxu0 0
        %1772 = vmatpush1.bf16.msra.mxu0 %v415
        %1773 = vmatprep.subr.bf16.mxu0 0
        %1774 = vmatpush2.bf16.msra.mxu0 0
        %1775 = vmatprep.subr.bf16.mxu0 0
        %1776 = vmatpush2.bf16.msra.mxu0 0
        %1777 = vmatprep.subr.bf16.mxu0 0
        %1778 = vmatpush2.bf16.msra.mxu0 0
        %1779 = vmatprep.subr.bf16.mxu0 0
        %1780 = vmatpush2.bf16.msra.mxu0 0
        %1781 = vmatprep.subr.bf16.mxu0 0
        %1782 = vmatpush2.bf16.msra.mxu0 0
        %1783 = vmatprep.subr.bf16.mxu0 0
        %1784 = vmatpush2.bf16.msra.mxu0 0
        %1785 = vmatprep.subr.bf16.mxu0 0
        %1786 = vmatpush2.bf16.msra.mxu0 0
        %1787 = vmatprep.subr.bf16.mxu0 0
        %1788 = vmatpush2.bf16.msra.mxu0 0
        %1789 = vmatprep.mubr.bf16.mxu0 0
        %1790 = vmatmul.mubr.bf16.gmra.mxu0 %v1734
        %v1791 = vpop.f32.mrf.mxu0
        %v1792 = vadd.f32 %v1616, %v1791
        %v1793 = vpop.f32.mrf.mxu0
        %v1794 = vpop.f32.mrf.mxu0
        %v1795 = vadd.f32 %v1621, %v1794
        %v1796 = vpop.f32.mrf.mxu0
        %1797 = vmatprep.mubr.bf16.mxu0 0
        %1798 = vmatmul.mubr.bf16.gmra.mxu0 %v1737
        %v1799 = vpop.f32.mrf.mxu0
        %v1800 = vadd.f32 %v1626, %v1799
        %v1801 = vpop.f32.mrf.mxu0
        %v1802 = vpop.f32.mrf.mxu0
        %v1803 = vadd.f32 %v1631, %v1802
        %v1804 = vpop.f32.mrf.mxu0
        %1805 = vmatprep.mubr.bf16.mxu0 0
        %1806 = vmatmul.mubr.bf16.gmra.mxu0 %v1740
        %v1807 = vpop.f32.mrf.mxu0
        %v1808 = vadd.f32 %v1636, %v1807
        %v1809 = vpop.f32.mrf.mxu0
        %v1810 = vpop.f32.mrf.mxu0
        %v1811 = vadd.f32 %v1641, %v1810
        %v1812 = vpop.f32.mrf.mxu0
        %1813 = vmatprep.mubr.bf16.mxu0 0
        %1814 = vmatmul.mubr.bf16.gmra.mxu0 %v1743
        %v1815 = vpop.f32.mrf.mxu0
        %v1816 = vadd.f32 %v1646, %v1815
        %v1817 = vpop.f32.mrf.mxu0
        %v1818 = vpop.f32.mrf.mxu0
        %v1819 = vadd.f32 %v1651, %v1818
        %v1820 = vpop.f32.mrf.mxu0
        %1821 = vmatprep.mubr.bf16.mxu0 0
        %1822 = vmatmul.mubr.bf16.gmra.mxu0 %v1746
        %v1823 = vpop.f32.mrf.mxu0
        %v1824 = vadd.f32 %v1656, %v1823
        %v1825 = vpop.f32.mrf.mxu0
        %v1826 = vpop.f32.mrf.mxu0
        %v1827 = vadd.f32 %v1661, %v1826
        %v1828 = vpop.f32.mrf.mxu0
        %1829 = vmatprep.mubr.bf16.mxu0 0
        %1830 = vmatmul.mubr.bf16.gmra.mxu0 %v1749
        %v1831 = vpop.f32.mrf.mxu0
        %v1832 = vadd.f32 %v1666, %v1831
        %v1833 = vpop.f32.mrf.mxu0
        %v1834 = vpop.f32.mrf.mxu0
        %v1835 = vadd.f32 %v1671, %v1834
        %v1836 = vpop.f32.mrf.mxu0
        %1837 = vmatprep.mubr.bf16.mxu0 0
        %1838 = vmatmul.mubr.bf16.gmra.mxu0 %v1752
        %v1839 = vpop.f32.mrf.mxu0
        %v1840 = vadd.f32 %v1676, %v1839
        %v1841 = vpop.f32.mrf.mxu0
        %v1842 = vpop.f32.mrf.mxu0
        %v1843 = vadd.f32 %v1681, %v1842
        %v1844 = vpop.f32.mrf.mxu0
        %1845 = vmatprep.mubr.bf16.mxu0 0
        %1846 = vmatmul.mubr.bf16.gmra.mxu0 %v1755
        %v1847 = vpop.f32.mrf.mxu0
        %v1848 = vadd.f32 %v1686, %v1847
        %v1849 = vpop.f32.mrf.mxu0
        %v1850 = vpop.f32.mrf.mxu0
        %v1851 = vadd.f32 %v1691, %v1850
        %v1852 = vpop.f32.mrf.mxu0
        %1853 = vdwg.mxu0
        %1854 = vst.msk [vmem:[%s252 + $0x200] sm:$0xff] %vm697, %v1792
        %1855 = vst.msk [vmem:[%s252 + $0x208] sm:$0xff] %vm697, %v1795
        %1856 = vst.msk [vmem:[%s252 + $0x210] sm:$0xff] %vm697, %v1800
        %1857 = vst.msk [vmem:[%s252 + $0x218] sm:$0xff] %vm697, %v1803
        %1858 = vst.msk [vmem:[%s252 + $0x220] sm:$0xff] %vm697, %v1808
        %1859 = vst.msk [vmem:[%s252 + $0x228] sm:$0xff] %vm697, %v1811
        %1860 = vst.msk [vmem:[%s252 + $0x230] sm:$0xff] %vm697, %v1816
        %1861 = vst.msk [vmem:[%s252 + $0x238] sm:$0xff] %vm697, %v1819
        %1862 = vst.msk [vmem:[%s252 + $0x240] sm:$0xff] %vm697, %v1824
        %1863 = vst.msk [vmem:[%s252 + $0x248] sm:$0xff] %vm697, %v1827
        %1864 = vst.msk [vmem:[%s252 + $0x250] sm:$0xff] %vm697, %v1832
        %1865 = vst.msk [vmem:[%s252 + $0x258] sm:$0xff] %vm697, %v1835
        %1866 = vst.msk [vmem:[%s252 + $0x260] sm:$0xff] %vm697, %v1840
        %1867 = vst.msk [vmem:[%s252 + $0x268] sm:$0xff] %vm697, %v1843
        %1868 = vst.msk [vmem:[%s252 + $0x270] sm:$0xff] %vm697, %v1848
        %1869 = vst.msk [vmem:[%s252 + $0x278] sm:$0xff] %vm697, %v1851
        %v1870 = vld [vmem:[%s2 + $0x140] sm:$0xf]
        %v1871 = vld [vmem:[%s2 + $0x144] sm:$0xf]
        %v1872 = vld [vmem:[%s2 + $0x148] sm:$0xf]
        %v1873 = vld [vmem:[%s2 + $0x14c] sm:$0xf]
        %v1874 = vld [vmem:[%s2 + $0x150] sm:$0xf]
        %v1875 = vld [vmem:[%s2 + $0x154] sm:$0xf]
        %v1876 = vld [vmem:[%s2 + $0x158] sm:$0xf]
        %v1877 = vld [vmem:[%s2 + $0x15c] sm:$0xf]
        %v1878 = vld [vmem:[%s2 + $0x160] sm:$0xf]
        %v1879 = vld [vmem:[%s2 + $0x164] sm:$0xf]
        %v1880 = vld [vmem:[%s2 + $0x168] sm:$0xf]
        %v1881 = vld [vmem:[%s2 + $0x16c] sm:$0xf]
        %v1882 = vld [vmem:[%s2 + $0x170] sm:$0xf]
        %v1883 = vld [vmem:[%s2 + $0x174] sm:$0xf]
        %v1884 = vld [vmem:[%s2 + $0x178] sm:$0xf]
        %v1885 = vld [vmem:[%s2 + $0x17c] sm:$0xf]
        %v1886 = vld [vmem:[%s4 + $0x280] sm:$0xff]
        %v1887 = vld [vmem:[%s4 + $0x288] sm:$0xff]
        %v1888 = vld [vmem:[%s4 + $0x290] sm:$0xff]
        %v1889 = vld [vmem:[%s4 + $0x298] sm:$0xff]
        %v1890 = vld [vmem:[%s4 + $0x2a0] sm:$0xff]
        %v1891 = vld [vmem:[%s4 + $0x2a8] sm:$0xff]
        %v1892 = vld [vmem:[%s4 + $0x2b0] sm:$0xff]
        %v1893 = vld [vmem:[%s4 + $0x2b8] sm:$0xff]
        %v1894 = vld [vmem:[%s4 + $0x2c0] sm:$0xff]
        %v1895 = vld [vmem:[%s4 + $0x2c8] sm:$0xff]
        %v1896 = vld [vmem:[%s4 + $0x2d0] sm:$0xff]
        %v1897 = vld [vmem:[%s4 + $0x2d8] sm:$0xff]
        %v1898 = vld [vmem:[%s4 + $0x2e0] sm:$0xff]
        %v1899 = vld [vmem:[%s4 + $0x2e8] sm:$0xff]
        %v1900 = vld [vmem:[%s4 + $0x2f0] sm:$0xff]
        %v1901 = vld [vmem:[%s4 + $0x2f8] sm:$0xff]
        %1903 = vset.pattern.permute.xlu0 0
        %1904 = vperm.xlu0 %1903, %v1886
        %v1905 = vpop.permute.xlu0 %1904
        %1908 = vset.pattern.permute.xlu0 0
        %1909 = vperm.xlu0 %1908, %v1887
        %v1910 = vpop.permute.xlu0 %1909
        %1913 = vset.pattern.permute.xlu0 0
        %1914 = vperm.xlu0 %1913, %v1888
        %v1915 = vpop.permute.xlu0 %1914
        %1918 = vset.pattern.permute.xlu0 0
        %1919 = vperm.xlu0 %1918, %v1889
        %v1920 = vpop.permute.xlu0 %1919
        %1923 = vset.pattern.permute.xlu0 0
        %1924 = vperm.xlu0 %1923, %v1890
        %v1925 = vpop.permute.xlu0 %1924
        %1928 = vset.pattern.permute.xlu0 0
        %1929 = vperm.xlu0 %1928, %v1891
        %v1930 = vpop.permute.xlu0 %1929
        %1933 = vset.pattern.permute.xlu0 0
        %1934 = vperm.xlu0 %1933, %v1892
        %v1935 = vpop.permute.xlu0 %1934
        %1938 = vset.pattern.permute.xlu0 0
        %1939 = vperm.xlu0 %1938, %v1893
        %v1940 = vpop.permute.xlu0 %1939
        %1943 = vset.pattern.permute.xlu0 0
        %1944 = vperm.xlu0 %1943, %v1894
        %v1945 = vpop.permute.xlu0 %1944
        %1948 = vset.pattern.permute.xlu0 0
        %1949 = vperm.xlu0 %1948, %v1895
        %v1950 = vpop.permute.xlu0 %1949
        %1953 = vset.pattern.permute.xlu0 0
        %1954 = vperm.xlu0 %1953, %v1896
        %v1955 = vpop.permute.xlu0 %1954
        %1958 = vset.pattern.permute.xlu0 0
        %1959 = vperm.xlu0 %1958, %v1897
        %v1960 = vpop.permute.xlu0 %1959
        %1963 = vset.pattern.permute.xlu0 0
        %1964 = vperm.xlu0 %1963, %v1898
        %v1965 = vpop.permute.xlu0 %1964
        %1968 = vset.pattern.permute.xlu0 0
        %1969 = vperm.xlu0 %1968, %v1899
        %v1970 = vpop.permute.xlu0 %1969
        %1973 = vset.pattern.permute.xlu0 0
        %1974 = vperm.xlu0 %1973, %v1900
        %v1975 = vpop.permute.xlu0 %1974
        %1978 = vset.pattern.permute.xlu0 0
        %1979 = vperm.xlu0 %1978, %v1901
        %v1980 = vpop.permute.xlu0 %1979
        %v1998 = vunpack.c.l.b16 %v1870
        %v1999 = vunpack.c.l.b16 %v1871
        %v2000 = vunpack.c.l.b16 %v1872
        %v2001 = vunpack.c.l.b16 %v1873
        %v2002 = vunpack.c.l.b16 %v1874
        %v2003 = vunpack.c.l.b16 %v1875
        %v2004 = vunpack.c.l.b16 %v1876
        %v2005 = vunpack.c.l.b16 %v1877
        %v2006 = vunpack.c.l.b16 %v1878
        %v2007 = vunpack.c.l.b16 %v1879
        %v2008 = vunpack.c.l.b16 %v1880
        %v2009 = vunpack.c.l.b16 %v1881
        %v2010 = vunpack.c.l.b16 %v1882
        %v2011 = vunpack.c.l.b16 %v1883
        %v2012 = vunpack.c.l.b16 %v1884
        %v2013 = vunpack.c.l.b16 %v1885
        %v2014 = vpack.c.b16 %v1999, %v1998
        %v2015 = vpack.c.b16 %v2001, %v2000
        %v2016 = vpack.c.b16 %v2003, %v2002
        %v2017 = vpack.c.b16 %v2005, %v2004
        %v2018 = vpack.c.b16 %v2007, %v2006
        %v2019 = vpack.c.b16 %v2009, %v2008
        %v2020 = vpack.c.b16 %v2011, %v2010
        %v2021 = vpack.c.b16 %v2013, %v2012
        %v2023 = vsel %vm575, %v2014, 0
        %v2026 = vsel %vm575, %v2015, 0
        %v2029 = vsel %vm575, %v2016, 0
        %v2032 = vsel %vm575, %v2017, 0
        %v2035 = vsel %vm575, %v2018, 0
        %v2038 = vsel %vm575, %v2019, 0
        %v2041 = vsel %vm575, %v2020, 0
        %v2044 = vsel %vm575, %v2021, 0
        %2046 = vmatprep.subr.bf16.mxu0 0
        %2047 = vmatpush1.bf16.msra.mxu0 0
        %2048 = vmatprep.subr.bf16.mxu0 0
        %2049 = vmatpush1.bf16.msra.mxu0 0
        %2050 = vmatprep.subr.bf16.mxu0 0
        %2051 = vmatpush1.bf16.msra.mxu0 0
        %2052 = vmatprep.subr.bf16.mxu0 0
        %2053 = vmatpush1.bf16.msra.mxu0 0
        %2054 = vmatprep.subr.bf16.mxu0 0
        %2055 = vmatpush1.bf16.msra.mxu0 0
        %2056 = vmatprep.subr.bf16.mxu0 0
        %2057 = vmatpush1.bf16.msra.mxu0 0
        %2058 = vmatprep.subr.bf16.mxu0 0
        %2059 = vmatpush1.bf16.msra.mxu0 %v416
        %2060 = vmatprep.subr.bf16.mxu0 0
        %2061 = vmatpush1.bf16.msra.mxu0 %v415
        %2062 = vmatprep.subr.bf16.mxu0 0
        %2063 = vmatpush2.bf16.msra.mxu0 0
        %2064 = vmatprep.subr.bf16.mxu0 0
        %2065 = vmatpush2.bf16.msra.mxu0 0
        %2066 = vmatprep.subr.bf16.mxu0 0
        %2067 = vmatpush2.bf16.msra.mxu0 0
        %2068 = vmatprep.subr.bf16.mxu0 0
        %2069 = vmatpush2.bf16.msra.mxu0 0
        %2070 = vmatprep.subr.bf16.mxu0 0
        %2071 = vmatpush2.bf16.msra.mxu0 0
        %2072 = vmatprep.subr.bf16.mxu0 0
        %2073 = vmatpush2.bf16.msra.mxu0 0
        %2074 = vmatprep.subr.bf16.mxu0 0
        %2075 = vmatpush2.bf16.msra.mxu0 0
        %2076 = vmatprep.subr.bf16.mxu0 0
        %2077 = vmatpush2.bf16.msra.mxu0 0
        %2078 = vmatprep.mubr.bf16.mxu0 0
        %2079 = vmatmul.mubr.bf16.gmra.mxu0 %v2023
        %v2080 = vpop.f32.mrf.mxu0
        %v2081 = vadd.f32 %v1905, %v2080
        %v2082 = vpop.f32.mrf.mxu0
        %v2083 = vpop.f32.mrf.mxu0
        %v2084 = vadd.f32 %v1910, %v2083
        %v2085 = vpop.f32.mrf.mxu0
        %2086 = vmatprep.mubr.bf16.mxu0 0
        %2087 = vmatmul.mubr.bf16.gmra.mxu0 %v2026
        %v2088 = vpop.f32.mrf.mxu0
        %v2089 = vadd.f32 %v1915, %v2088
        %v2090 = vpop.f32.mrf.mxu0
        %v2091 = vpop.f32.mrf.mxu0
        %v2092 = vadd.f32 %v1920, %v2091
        %v2093 = vpop.f32.mrf.mxu0
        %2094 = vmatprep.mubr.bf16.mxu0 0
        %2095 = vmatmul.mubr.bf16.gmra.mxu0 %v2029
        %v2096 = vpop.f32.mrf.mxu0
        %v2097 = vadd.f32 %v1925, %v2096
        %v2098 = vpop.f32.mrf.mxu0
        %v2099 = vpop.f32.mrf.mxu0
        %v2100 = vadd.f32 %v1930, %v2099
        %v2101 = vpop.f32.mrf.mxu0
        %2102 = vmatprep.mubr.bf16.mxu0 0
        %2103 = vmatmul.mubr.bf16.gmra.mxu0 %v2032
        %v2104 = vpop.f32.mrf.mxu0
        %v2105 = vadd.f32 %v1935, %v2104
        %v2106 = vpop.f32.mrf.mxu0
        %v2107 = vpop.f32.mrf.mxu0
        %v2108 = vadd.f32 %v1940, %v2107
        %v2109 = vpop.f32.mrf.mxu0
        %2110 = vmatprep.mubr.bf16.mxu0 0
        %2111 = vmatmul.mubr.bf16.gmra.mxu0 %v2035
        %v2112 = vpop.f32.mrf.mxu0
        %v2113 = vadd.f32 %v1945, %v2112
        %v2114 = vpop.f32.mrf.mxu0
        %v2115 = vpop.f32.mrf.mxu0
        %v2116 = vadd.f32 %v1950, %v2115
        %v2117 = vpop.f32.mrf.mxu0
        %2118 = vmatprep.mubr.bf16.mxu0 0
        %2119 = vmatmul.mubr.bf16.gmra.mxu0 %v2038
        %v2120 = vpop.f32.mrf.mxu0
        %v2121 = vadd.f32 %v1955, %v2120
        %v2122 = vpop.f32.mrf.mxu0
        %v2123 = vpop.f32.mrf.mxu0
        %v2124 = vadd.f32 %v1960, %v2123
        %v2125 = vpop.f32.mrf.mxu0
        %2126 = vmatprep.mubr.bf16.mxu0 0
        %2127 = vmatmul.mubr.bf16.gmra.mxu0 %v2041
        %v2128 = vpop.f32.mrf.mxu0
        %v2129 = vadd.f32 %v1965, %v2128
        %v2130 = vpop.f32.mrf.mxu0
        %v2131 = vpop.f32.mrf.mxu0
        %v2132 = vadd.f32 %v1970, %v2131
        %v2133 = vpop.f32.mrf.mxu0
        %2134 = vmatprep.mubr.bf16.mxu0 0
        %2135 = vmatmul.mubr.bf16.gmra.mxu0 %v2044
        %v2136 = vpop.f32.mrf.mxu0
        %v2137 = vadd.f32 %v1975, %v2136
        %v2138 = vpop.f32.mrf.mxu0
        %v2139 = vpop.f32.mrf.mxu0
        %v2140 = vadd.f32 %v1980, %v2139
        %v2141 = vpop.f32.mrf.mxu0
        %2142 = vdwg.mxu0
        %2143 = vst.msk [vmem:[%s252 + $0x280] sm:$0xff] %vm697, %v2081
        %2144 = vst.msk [vmem:[%s252 + $0x288] sm:$0xff] %vm697, %v2084
        %2145 = vst.msk [vmem:[%s252 + $0x290] sm:$0xff] %vm697, %v2089
        %2146 = vst.msk [vmem:[%s252 + $0x298] sm:$0xff] %vm697, %v2092
        %2147 = vst.msk [vmem:[%s252 + $0x2a0] sm:$0xff] %vm697, %v2097
        %2148 = vst.msk [vmem:[%s252 + $0x2a8] sm:$0xff] %vm697, %v2100
        %2149 = vst.msk [vmem:[%s252 + $0x2b0] sm:$0xff] %vm697, %v2105
        %2150 = vst.msk [vmem:[%s252 + $0x2b8] sm:$0xff] %vm697, %v2108
        %2151 = vst.msk [vmem:[%s252 + $0x2c0] sm:$0xff] %vm697, %v2113
        %2152 = vst.msk [vmem:[%s252 + $0x2c8] sm:$0xff] %vm697, %v2116
        %2153 = vst.msk [vmem:[%s252 + $0x2d0] sm:$0xff] %vm697, %v2121
        %2154 = vst.msk [vmem:[%s252 + $0x2d8] sm:$0xff] %vm697, %v2124
        %2155 = vst.msk [vmem:[%s252 + $0x2e0] sm:$0xff] %vm697, %v2129
        %2156 = vst.msk [vmem:[%s252 + $0x2e8] sm:$0xff] %vm697, %v2132
        %2157 = vst.msk [vmem:[%s252 + $0x2f0] sm:$0xff] %vm697, %v2137
        %2158 = vst.msk [vmem:[%s252 + $0x2f8] sm:$0xff] %vm697, %v2140
        %v2159 = vld [vmem:[%s2 + $0x180] sm:$0xf]
        %v2160 = vld [vmem:[%s2 + $0x184] sm:$0xf]
        %v2161 = vld [vmem:[%s2 + $0x188] sm:$0xf]
        %v2162 = vld [vmem:[%s2 + $0x18c] sm:$0xf]
        %v2163 = vld [vmem:[%s2 + $0x190] sm:$0xf]
        %v2164 = vld [vmem:[%s2 + $0x194] sm:$0xf]
        %v2165 = vld [vmem:[%s2 + $0x198] sm:$0xf]
        %v2166 = vld [vmem:[%s2 + $0x19c] sm:$0xf]
        %v2167 = vld [vmem:[%s2 + $0x1a0] sm:$0xf]
        %v2168 = vld [vmem:[%s2 + $0x1a4] sm:$0xf]
        %v2169 = vld [vmem:[%s2 + $0x1a8] sm:$0xf]
        %v2170 = vld [vmem:[%s2 + $0x1ac] sm:$0xf]
        %v2171 = vld [vmem:[%s2 + $0x1b0] sm:$0xf]
        %v2172 = vld [vmem:[%s2 + $0x1b4] sm:$0xf]
        %v2173 = vld [vmem:[%s2 + $0x1b8] sm:$0xf]
        %v2174 = vld [vmem:[%s2 + $0x1bc] sm:$0xf]
        %v2175 = vld [vmem:[%s4 + $0x300] sm:$0xff]
        %v2176 = vld [vmem:[%s4 + $0x308] sm:$0xff]
        %v2177 = vld [vmem:[%s4 + $0x310] sm:$0xff]
        %v2178 = vld [vmem:[%s4 + $0x318] sm:$0xff]
        %v2179 = vld [vmem:[%s4 + $0x320] sm:$0xff]
        %v2180 = vld [vmem:[%s4 + $0x328] sm:$0xff]
        %v2181 = vld [vmem:[%s4 + $0x330] sm:$0xff]
        %v2182 = vld [vmem:[%s4 + $0x338] sm:$0xff]
        %v2183 = vld [vmem:[%s4 + $0x340] sm:$0xff]
        %v2184 = vld [vmem:[%s4 + $0x348] sm:$0xff]
        %v2185 = vld [vmem:[%s4 + $0x350] sm:$0xff]
        %v2186 = vld [vmem:[%s4 + $0x358] sm:$0xff]
        %v2187 = vld [vmem:[%s4 + $0x360] sm:$0xff]
        %v2188 = vld [vmem:[%s4 + $0x368] sm:$0xff]
        %v2189 = vld [vmem:[%s4 + $0x370] sm:$0xff]
        %v2190 = vld [vmem:[%s4 + $0x378] sm:$0xff]
        %2192 = vset.pattern.permute.xlu0 0
        %2193 = vperm.xlu0 %2192, %v2175
        %v2194 = vpop.permute.xlu0 %2193
        %2197 = vset.pattern.permute.xlu0 0
        %2198 = vperm.xlu0 %2197, %v2176
        %v2199 = vpop.permute.xlu0 %2198
        %2202 = vset.pattern.permute.xlu0 0
        %2203 = vperm.xlu0 %2202, %v2177
        %v2204 = vpop.permute.xlu0 %2203
        %2207 = vset.pattern.permute.xlu0 0
        %2208 = vperm.xlu0 %2207, %v2178
        %v2209 = vpop.permute.xlu0 %2208
        %2212 = vset.pattern.permute.xlu0 0
        %2213 = vperm.xlu0 %2212, %v2179
        %v2214 = vpop.permute.xlu0 %2213
        %2217 = vset.pattern.permute.xlu0 0
        %2218 = vperm.xlu0 %2217, %v2180
        %v2219 = vpop.permute.xlu0 %2218
        %2222 = vset.pattern.permute.xlu0 0
        %2223 = vperm.xlu0 %2222, %v2181
        %v2224 = vpop.permute.xlu0 %2223
        %2227 = vset.pattern.permute.xlu0 0
        %2228 = vperm.xlu0 %2227, %v2182
        %v2229 = vpop.permute.xlu0 %2228
        %2232 = vset.pattern.permute.xlu0 0
        %2233 = vperm.xlu0 %2232, %v2183
        %v2234 = vpop.permute.xlu0 %2233
        %2237 = vset.pattern.permute.xlu0 0
        %2238 = vperm.xlu0 %2237, %v2184
        %v2239 = vpop.permute.xlu0 %2238
        %2242 = vset.pattern.permute.xlu0 0
        %2243 = vperm.xlu0 %2242, %v2185
        %v2244 = vpop.permute.xlu0 %2243
        %2247 = vset.pattern.permute.xlu0 0
        %2248 = vperm.xlu0 %2247, %v2186
        %v2249 = vpop.permute.xlu0 %2248
        %2252 = vset.pattern.permute.xlu0 0
        %2253 = vperm.xlu0 %2252, %v2187
        %v2254 = vpop.permute.xlu0 %2253
        %2257 = vset.pattern.permute.xlu0 0
        %2258 = vperm.xlu0 %2257, %v2188
        %v2259 = vpop.permute.xlu0 %2258
        %2262 = vset.pattern.permute.xlu0 0
        %2263 = vperm.xlu0 %2262, %v2189
        %v2264 = vpop.permute.xlu0 %2263
        %2267 = vset.pattern.permute.xlu0 0
        %2268 = vperm.xlu0 %2267, %v2190
        %v2269 = vpop.permute.xlu0 %2268
        %v2287 = vunpack.c.l.b16 %v2159
        %v2288 = vunpack.c.l.b16 %v2160
        %v2289 = vunpack.c.l.b16 %v2161
        %v2290 = vunpack.c.l.b16 %v2162
        %v2291 = vunpack.c.l.b16 %v2163
        %v2292 = vunpack.c.l.b16 %v2164
        %v2293 = vunpack.c.l.b16 %v2165
        %v2294 = vunpack.c.l.b16 %v2166
        %v2295 = vunpack.c.l.b16 %v2167
        %v2296 = vunpack.c.l.b16 %v2168
        %v2297 = vunpack.c.l.b16 %v2169
        %v2298 = vunpack.c.l.b16 %v2170
        %v2299 = vunpack.c.l.b16 %v2171
        %v2300 = vunpack.c.l.b16 %v2172
        %v2301 = vunpack.c.l.b16 %v2173
        %v2302 = vunpack.c.l.b16 %v2174
        %v2303 = vpack.c.b16 %v2288, %v2287
        %v2304 = vpack.c.b16 %v2290, %v2289
        %v2305 = vpack.c.b16 %v2292, %v2291
        %v2306 = vpack.c.b16 %v2294, %v2293
        %v2307 = vpack.c.b16 %v2296, %v2295
        %v2308 = vpack.c.b16 %v2298, %v2297
        %v2309 = vpack.c.b16 %v2300, %v2299
        %v2310 = vpack.c.b16 %v2302, %v2301
        %v2312 = vsel %vm575, %v2303, 0
        %v2315 = vsel %vm575, %v2304, 0
        %v2318 = vsel %vm575, %v2305, 0
        %v2321 = vsel %vm575, %v2306, 0
        %v2324 = vsel %vm575, %v2307, 0
        %v2327 = vsel %vm575, %v2308, 0
        %v2330 = vsel %vm575, %v2309, 0
        %v2333 = vsel %vm575, %v2310, 0
        %2335 = vmatprep.subr.bf16.mxu0 0
        %2336 = vmatpush1.bf16.msra.mxu0 0
        %2337 = vmatprep.subr.bf16.mxu0 0
        %2338 = vmatpush1.bf16.msra.mxu0 0
        %2339 = vmatprep.subr.bf16.mxu0 0
        %2340 = vmatpush1.bf16.msra.mxu0 0
        %2341 = vmatprep.subr.bf16.mxu0 0
        %2342 = vmatpush1.bf16.msra.mxu0 0
        %2343 = vmatprep.subr.bf16.mxu0 0
        %2344 = vmatpush1.bf16.msra.mxu0 0
        %2345 = vmatprep.subr.bf16.mxu0 0
        %2346 = vmatpush1.bf16.msra.mxu0 0
        %2347 = vmatprep.subr.bf16.mxu0 0
        %2348 = vmatpush1.bf16.msra.mxu0 %v416
        %2349 = vmatprep.subr.bf16.mxu0 0
        %2350 = vmatpush1.bf16.msra.mxu0 %v415
        %2351 = vmatprep.subr.bf16.mxu0 0
        %2352 = vmatpush2.bf16.msra.mxu0 0
        %2353 = vmatprep.subr.bf16.mxu0 0
        %2354 = vmatpush2.bf16.msra.mxu0 0
        %2355 = vmatprep.subr.bf16.mxu0 0
        %2356 = vmatpush2.bf16.msra.mxu0 0
        %2357 = vmatprep.subr.bf16.mxu0 0
        %2358 = vmatpush2.bf16.msra.mxu0 0
        %2359 = vmatprep.subr.bf16.mxu0 0
        %2360 = vmatpush2.bf16.msra.mxu0 0
        %2361 = vmatprep.subr.bf16.mxu0 0
        %2362 = vmatpush2.bf16.msra.mxu0 0
        %2363 = vmatprep.subr.bf16.mxu0 0
        %2364 = vmatpush2.bf16.msra.mxu0 0
        %2365 = vmatprep.subr.bf16.mxu0 0
        %2366 = vmatpush2.bf16.msra.mxu0 0
        %2367 = vmatprep.mubr.bf16.mxu0 0
        %2368 = vmatmul.mubr.bf16.gmra.mxu0 %v2312
        %v2369 = vpop.f32.mrf.mxu0
        %v2370 = vadd.f32 %v2194, %v2369
        %v2371 = vpop.f32.mrf.mxu0
        %v2372 = vpop.f32.mrf.mxu0
        %v2373 = vadd.f32 %v2199, %v2372
        %v2374 = vpop.f32.mrf.mxu0
        %2375 = vmatprep.mubr.bf16.mxu0 0
        %2376 = vmatmul.mubr.bf16.gmra.mxu0 %v2315
        %v2377 = vpop.f32.mrf.mxu0
        %v2378 = vadd.f32 %v2204, %v2377
        %v2379 = vpop.f32.mrf.mxu0
        %v2380 = vpop.f32.mrf.mxu0
        %v2381 = vadd.f32 %v2209, %v2380
        %v2382 = vpop.f32.mrf.mxu0
        %2383 = vmatprep.mubr.bf16.mxu0 0
        %2384 = vmatmul.mubr.bf16.gmra.mxu0 %v2318
        %v2385 = vpop.f32.mrf.mxu0
        %v2386 = vadd.f32 %v2214, %v2385
        %v2387 = vpop.f32.mrf.mxu0
        %v2388 = vpop.f32.mrf.mxu0
        %v2389 = vadd.f32 %v2219, %v2388
        %v2390 = vpop.f32.mrf.mxu0
        %2391 = vmatprep.mubr.bf16.mxu0 0
        %2392 = vmatmul.mubr.bf16.gmra.mxu0 %v2321
        %v2393 = vpop.f32.mrf.mxu0
        %v2394 = vadd.f32 %v2224, %v2393
        %v2395 = vpop.f32.mrf.mxu0
        %v2396 = vpop.f32.mrf.mxu0
        %v2397 = vadd.f32 %v2229, %v2396
        %v2398 = vpop.f32.mrf.mxu0
        %2399 = vmatprep.mubr.bf16.mxu0 0
        %2400 = vmatmul.mubr.bf16.gmra.mxu0 %v2324
        %v2401 = vpop.f32.mrf.mxu0
        %v2402 = vadd.f32 %v2234, %v2401
        %v2403 = vpop.f32.mrf.mxu0
        %v2404 = vpop.f32.mrf.mxu0
        %v2405 = vadd.f32 %v2239, %v2404
        %v2406 = vpop.f32.mrf.mxu0
        %2407 = vmatprep.mubr.bf16.mxu0 0
        %2408 = vmatmul.mubr.bf16.gmra.mxu0 %v2327
        %v2409 = vpop.f32.mrf.mxu0
        %v2410 = vadd.f32 %v2244, %v2409
        %v2411 = vpop.f32.mrf.mxu0
        %v2412 = vpop.f32.mrf.mxu0
        %v2413 = vadd.f32 %v2249, %v2412
        %v2414 = vpop.f32.mrf.mxu0
        %2415 = vmatprep.mubr.bf16.mxu0 0
        %2416 = vmatmul.mubr.bf16.gmra.mxu0 %v2330
        %v2417 = vpop.f32.mrf.mxu0
        %v2418 = vadd.f32 %v2254, %v2417
        %v2419 = vpop.f32.mrf.mxu0
        %v2420 = vpop.f32.mrf.mxu0
        %v2421 = vadd.f32 %v2259, %v2420
        %v2422 = vpop.f32.mrf.mxu0
        %2423 = vmatprep.mubr.bf16.mxu0 0
        %2424 = vmatmul.mubr.bf16.gmra.mxu0 %v2333
        %v2425 = vpop.f32.mrf.mxu0
        %v2426 = vadd.f32 %v2264, %v2425
        %v2427 = vpop.f32.mrf.mxu0
        %v2428 = vpop.f32.mrf.mxu0
        %v2429 = vadd.f32 %v2269, %v2428
        %v2430 = vpop.f32.mrf.mxu0
        %2431 = vdwg.mxu0
        %2432 = vst.msk [vmem:[%s252 + $0x300] sm:$0xff] %vm697, %v2370
        %2433 = vst.msk [vmem:[%s252 + $0x308] sm:$0xff] %vm697, %v2373
        %2434 = vst.msk [vmem:[%s252 + $0x310] sm:$0xff] %vm697, %v2378
        %2435 = vst.msk [vmem:[%s252 + $0x318] sm:$0xff] %vm697, %v2381
        %2436 = vst.msk [vmem:[%s252 + $0x320] sm:$0xff] %vm697, %v2386
        %2437 = vst.msk [vmem:[%s252 + $0x328] sm:$0xff] %vm697, %v2389
        %2438 = vst.msk [vmem:[%s252 + $0x330] sm:$0xff] %vm697, %v2394
        %2439 = vst.msk [vmem:[%s252 + $0x338] sm:$0xff] %vm697, %v2397
        %2440 = vst.msk [vmem:[%s252 + $0x340] sm:$0xff] %vm697, %v2402
        %2441 = vst.msk [vmem:[%s252 + $0x348] sm:$0xff] %vm697, %v2405
        %2442 = vst.msk [vmem:[%s252 + $0x350] sm:$0xff] %vm697, %v2410
        %2443 = vst.msk [vmem:[%s252 + $0x358] sm:$0xff] %vm697, %v2413
        %2444 = vst.msk [vmem:[%s252 + $0x360] sm:$0xff] %vm697, %v2418
        %2445 = vst.msk [vmem:[%s252 + $0x368] sm:$0xff] %vm697, %v2421
        %2446 = vst.msk [vmem:[%s252 + $0x370] sm:$0xff] %vm697, %v2426
        %2447 = vst.msk [vmem:[%s252 + $0x378] sm:$0xff] %vm697, %v2429
        %v2448 = vld [vmem:[%s2 + $0x1c0] sm:$0xf]
        %v2449 = vld [vmem:[%s2 + $0x1c4] sm:$0xf]
        %v2450 = vld [vmem:[%s2 + $0x1c8] sm:$0xf]
        %v2451 = vld [vmem:[%s2 + $0x1cc] sm:$0xf]
        %v2452 = vld [vmem:[%s2 + $0x1d0] sm:$0xf]
        %v2453 = vld [vmem:[%s2 + $0x1d4] sm:$0xf]
        %v2454 = vld [vmem:[%s2 + $0x1d8] sm:$0xf]
        %v2455 = vld [vmem:[%s2 + $0x1dc] sm:$0xf]
        %v2456 = vld [vmem:[%s2 + $0x1e0] sm:$0xf]
        %v2457 = vld [vmem:[%s2 + $0x1e4] sm:$0xf]
        %v2458 = vld [vmem:[%s2 + $0x1e8] sm:$0xf]
        %v2459 = vld [vmem:[%s2 + $0x1ec] sm:$0xf]
        %v2460 = vld [vmem:[%s2 + $0x1f0] sm:$0xf]
        %v2461 = vld [vmem:[%s2 + $0x1f4] sm:$0xf]
        %v2462 = vld [vmem:[%s2 + $0x1f8] sm:$0xf]
        %v2463 = vld [vmem:[%s2 + $0x1fc] sm:$0xf]
        %v2464 = vld [vmem:[%s4 + $0x380] sm:$0xff]
        %v2465 = vld [vmem:[%s4 + $0x388] sm:$0xff]
        %v2466 = vld [vmem:[%s4 + $0x390] sm:$0xff]
        %v2467 = vld [vmem:[%s4 + $0x398] sm:$0xff]
        %v2468 = vld [vmem:[%s4 + $0x3a0] sm:$0xff]
        %v2469 = vld [vmem:[%s4 + $0x3a8] sm:$0xff]
        %v2470 = vld [vmem:[%s4 + $0x3b0] sm:$0xff]
        %v2471 = vld [vmem:[%s4 + $0x3b8] sm:$0xff]
        %v2472 = vld [vmem:[%s4 + $0x3c0] sm:$0xff]
        %v2473 = vld [vmem:[%s4 + $0x3c8] sm:$0xff]
        %v2474 = vld [vmem:[%s4 + $0x3d0] sm:$0xff]
        %v2475 = vld [vmem:[%s4 + $0x3d8] sm:$0xff]
        %v2476 = vld [vmem:[%s4 + $0x3e0] sm:$0xff]
        %v2477 = vld [vmem:[%s4 + $0x3e8] sm:$0xff]
        %v2478 = vld [vmem:[%s4 + $0x3f0] sm:$0xff]
        %v2479 = vld [vmem:[%s4 + $0x3f8] sm:$0xff]
        %2481 = vset.pattern.permute.xlu0 0
        %2482 = vperm.xlu0 %2481, %v2464
        %v2483 = vpop.permute.xlu0 %2482
        %2486 = vset.pattern.permute.xlu0 0
        %2487 = vperm.xlu0 %2486, %v2465
        %v2488 = vpop.permute.xlu0 %2487
        %2491 = vset.pattern.permute.xlu0 0
        %2492 = vperm.xlu0 %2491, %v2466
        %v2493 = vpop.permute.xlu0 %2492
        %2496 = vset.pattern.permute.xlu0 0
        %2497 = vperm.xlu0 %2496, %v2467
        %v2498 = vpop.permute.xlu0 %2497
        %2501 = vset.pattern.permute.xlu0 0
        %2502 = vperm.xlu0 %2501, %v2468
        %v2503 = vpop.permute.xlu0 %2502
        %2506 = vset.pattern.permute.xlu0 0
        %2507 = vperm.xlu0 %2506, %v2469
        %v2508 = vpop.permute.xlu0 %2507
        %2511 = vset.pattern.permute.xlu0 0
        %2512 = vperm.xlu0 %2511, %v2470
        %v2513 = vpop.permute.xlu0 %2512
        %2516 = vset.pattern.permute.xlu0 0
        %2517 = vperm.xlu0 %2516, %v2471
        %v2518 = vpop.permute.xlu0 %2517
        %2521 = vset.pattern.permute.xlu0 0
        %2522 = vperm.xlu0 %2521, %v2472
        %v2523 = vpop.permute.xlu0 %2522
        %2526 = vset.pattern.permute.xlu0 0
        %2527 = vperm.xlu0 %2526, %v2473
        %v2528 = vpop.permute.xlu0 %2527
        %2531 = vset.pattern.permute.xlu0 0
        %2532 = vperm.xlu0 %2531, %v2474
        %v2533 = vpop.permute.xlu0 %2532
        %2536 = vset.pattern.permute.xlu0 0
        %2537 = vperm.xlu0 %2536, %v2475
        %v2538 = vpop.permute.xlu0 %2537
        %2541 = vset.pattern.permute.xlu0 0
        %2542 = vperm.xlu0 %2541, %v2476
        %v2543 = vpop.permute.xlu0 %2542
        %2546 = vset.pattern.permute.xlu0 0
        %2547 = vperm.xlu0 %2546, %v2477
        %v2548 = vpop.permute.xlu0 %2547
        %2551 = vset.pattern.permute.xlu0 0
        %2552 = vperm.xlu0 %2551, %v2478
        %v2553 = vpop.permute.xlu0 %2552
        %2556 = vset.pattern.permute.xlu0 0
        %2557 = vperm.xlu0 %2556, %v2479
        %v2558 = vpop.permute.xlu0 %2557
        %v2576 = vunpack.c.l.b16 %v2448
        %v2577 = vunpack.c.l.b16 %v2449
        %v2578 = vunpack.c.l.b16 %v2450
        %v2579 = vunpack.c.l.b16 %v2451
        %v2580 = vunpack.c.l.b16 %v2452
        %v2581 = vunpack.c.l.b16 %v2453
        %v2582 = vunpack.c.l.b16 %v2454
        %v2583 = vunpack.c.l.b16 %v2455
        %v2584 = vunpack.c.l.b16 %v2456
        %v2585 = vunpack.c.l.b16 %v2457
        %v2586 = vunpack.c.l.b16 %v2458
        %v2587 = vunpack.c.l.b16 %v2459
        %v2588 = vunpack.c.l.b16 %v2460
        %v2589 = vunpack.c.l.b16 %v2461
        %v2590 = vunpack.c.l.b16 %v2462
        %v2591 = vunpack.c.l.b16 %v2463
        %v2592 = vpack.c.b16 %v2577, %v2576
        %v2593 = vpack.c.b16 %v2579, %v2578
        %v2594 = vpack.c.b16 %v2581, %v2580
        %v2595 = vpack.c.b16 %v2583, %v2582
        %v2596 = vpack.c.b16 %v2585, %v2584
        %v2597 = vpack.c.b16 %v2587, %v2586
        %v2598 = vpack.c.b16 %v2589, %v2588
        %v2599 = vpack.c.b16 %v2591, %v2590
        %v2601 = vsel %vm575, %v2592, 0
        %v2604 = vsel %vm575, %v2593, 0
        %v2607 = vsel %vm575, %v2594, 0
        %v2610 = vsel %vm575, %v2595, 0
        %v2613 = vsel %vm575, %v2596, 0
        %v2616 = vsel %vm575, %v2597, 0
        %v2619 = vsel %vm575, %v2598, 0
        %v2622 = vsel %vm575, %v2599, 0
        %2624 = vmatprep.subr.bf16.mxu0 0
        %2625 = vmatpush1.bf16.msra.mxu0 0
        %2626 = vmatprep.subr.bf16.mxu0 0
        %2627 = vmatpush1.bf16.msra.mxu0 0
        %2628 = vmatprep.subr.bf16.mxu0 0
        %2629 = vmatpush1.bf16.msra.mxu0 0
        %2630 = vmatprep.subr.bf16.mxu0 0
        %2631 = vmatpush1.bf16.msra.mxu0 0
        %2632 = vmatprep.subr.bf16.mxu0 0
        %2633 = vmatpush1.bf16.msra.mxu0 0
        %2634 = vmatprep.subr.bf16.mxu0 0
        %2635 = vmatpush1.bf16.msra.mxu0 0
        %2636 = vmatprep.subr.bf16.mxu0 0
        %2637 = vmatpush1.bf16.msra.mxu0 %v416
        %2638 = vmatprep.subr.bf16.mxu0 0
        %2639 = vmatpush1.bf16.msra.mxu0 %v415
        %2640 = vmatprep.subr.bf16.mxu0 0
        %2641 = vmatpush2.bf16.msra.mxu0 0
        %2642 = vmatprep.subr.bf16.mxu0 0
        %2643 = vmatpush2.bf16.msra.mxu0 0
        %2644 = vmatprep.subr.bf16.mxu0 0
        %2645 = vmatpush2.bf16.msra.mxu0 0
        %2646 = vmatprep.subr.bf16.mxu0 0
        %2647 = vmatpush2.bf16.msra.mxu0 0
        %2648 = vmatprep.subr.bf16.mxu0 0
        %2649 = vmatpush2.bf16.msra.mxu0 0
        %2650 = vmatprep.subr.bf16.mxu0 0
        %2651 = vmatpush2.bf16.msra.mxu0 0
        %2652 = vmatprep.subr.bf16.mxu0 0
        %2653 = vmatpush2.bf16.msra.mxu0 0
        %2654 = vmatprep.subr.bf16.mxu0 0
        %2655 = vmatpush2.bf16.msra.mxu0 0
        %2656 = vmatprep.mubr.bf16.mxu0 0
        %2657 = vmatmul.mubr.bf16.gmra.mxu0 %v2601
        %v2658 = vpop.f32.mrf.mxu0
        %v2659 = vadd.f32 %v2483, %v2658
        %v2660 = vpop.f32.mrf.mxu0
        %v2661 = vpop.f32.mrf.mxu0
        %v2662 = vadd.f32 %v2488, %v2661
        %v2663 = vpop.f32.mrf.mxu0
        %2664 = vmatprep.mubr.bf16.mxu0 0
        %2665 = vmatmul.mubr.bf16.gmra.mxu0 %v2604
        %v2666 = vpop.f32.mrf.mxu0
        %v2667 = vadd.f32 %v2493, %v2666
        %v2668 = vpop.f32.mrf.mxu0
        %v2669 = vpop.f32.mrf.mxu0
        %v2670 = vadd.f32 %v2498, %v2669
        %v2671 = vpop.f32.mrf.mxu0
        %2672 = vmatprep.mubr.bf16.mxu0 0
        %2673 = vmatmul.mubr.bf16.gmra.mxu0 %v2607
        %v2674 = vpop.f32.mrf.mxu0
        %v2675 = vadd.f32 %v2503, %v2674
        %v2676 = vpop.f32.mrf.mxu0
        %v2677 = vpop.f32.mrf.mxu0
        %v2678 = vadd.f32 %v2508, %v2677
        %v2679 = vpop.f32.mrf.mxu0
        %2680 = vmatprep.mubr.bf16.mxu0 0
        %2681 = vmatmul.mubr.bf16.gmra.mxu0 %v2610
        %v2682 = vpop.f32.mrf.mxu0
        %v2683 = vadd.f32 %v2513, %v2682
        %v2684 = vpop.f32.mrf.mxu0
        %v2685 = vpop.f32.mrf.mxu0
        %v2686 = vadd.f32 %v2518, %v2685
        %v2687 = vpop.f32.mrf.mxu0
        %2688 = vmatprep.mubr.bf16.mxu0 0
        %2689 = vmatmul.mubr.bf16.gmra.mxu0 %v2613
        %v2690 = vpop.f32.mrf.mxu0
        %v2691 = vadd.f32 %v2523, %v2690
        %v2692 = vpop.f32.mrf.mxu0
        %v2693 = vpop.f32.mrf.mxu0
        %v2694 = vadd.f32 %v2528, %v2693
        %v2695 = vpop.f32.mrf.mxu0
        %2696 = vmatprep.mubr.bf16.mxu0 0
        %2697 = vmatmul.mubr.bf16.gmra.mxu0 %v2616
        %v2698 = vpop.f32.mrf.mxu0
        %v2699 = vadd.f32 %v2533, %v2698
        %v2700 = vpop.f32.mrf.mxu0
        %v2701 = vpop.f32.mrf.mxu0
        %v2702 = vadd.f32 %v2538, %v2701
        %v2703 = vpop.f32.mrf.mxu0
        %2704 = vmatprep.mubr.bf16.mxu0 0
        %2705 = vmatmul.mubr.bf16.gmra.mxu0 %v2619
        %v2706 = vpop.f32.mrf.mxu0
        %v2707 = vadd.f32 %v2543, %v2706
        %v2708 = vpop.f32.mrf.mxu0
        %v2709 = vpop.f32.mrf.mxu0
        %v2710 = vadd.f32 %v2548, %v2709
        %v2711 = vpop.f32.mrf.mxu0
        %2712 = vmatprep.mubr.bf16.mxu0 0
        %2713 = vmatmul.mubr.bf16.gmra.mxu0 %v2622
        %v2714 = vpop.f32.mrf.mxu0
        %v2715 = vadd.f32 %v2553, %v2714
        %v2716 = vpop.f32.mrf.mxu0
        %v2717 = vpop.f32.mrf.mxu0
        %v2718 = vadd.f32 %v2558, %v2717
        %v2719 = vpop.f32.mrf.mxu0
        %2720 = vdwg.mxu0
        %2721 = vst.msk [vmem:[%s252 + $0x380] sm:$0xff] %vm697, %v2659
        %2722 = vst.msk [vmem:[%s252 + $0x388] sm:$0xff] %vm697, %v2662
        %2723 = vst.msk [vmem:[%s252 + $0x390] sm:$0xff] %vm697, %v2667
        %2724 = vst.msk [vmem:[%s252 + $0x398] sm:$0xff] %vm697, %v2670
        %2725 = vst.msk [vmem:[%s252 + $0x3a0] sm:$0xff] %vm697, %v2675
        %2726 = vst.msk [vmem:[%s252 + $0x3a8] sm:$0xff] %vm697, %v2678
        %2727 = vst.msk [vmem:[%s252 + $0x3b0] sm:$0xff] %vm697, %v2683
        %2728 = vst.msk [vmem:[%s252 + $0x3b8] sm:$0xff] %vm697, %v2686
        %2729 = vst.msk [vmem:[%s252 + $0x3c0] sm:$0xff] %vm697, %v2691
        %2730 = vst.msk [vmem:[%s252 + $0x3c8] sm:$0xff] %vm697, %v2694
        %2731 = vst.msk [vmem:[%s252 + $0x3d0] sm:$0xff] %vm697, %v2699
        %2732 = vst.msk [vmem:[%s252 + $0x3d8] sm:$0xff] %vm697, %v2702
        %2733 = vst.msk [vmem:[%s252 + $0x3e0] sm:$0xff] %vm697, %v2707
        %2734 = vst.msk [vmem:[%s252 + $0x3e8] sm:$0xff] %vm697, %v2710
        %2735 = vst.msk [vmem:[%s252 + $0x3f0] sm:$0xff] %vm697, %v2715
        %2736 = vst.msk [vmem:[%s252 + $0x3f8] sm:$0xff] %vm697, %v2718
        %v2737 = vld [vmem:[%s2] sm:$0xf]
        %v2738 = vld [vmem:[%s2 + $0x4] sm:$0xf]
        %v2739 = vld [vmem:[%s2 + $0x8] sm:$0xf]
        %v2740 = vld [vmem:[%s2 + $0xc] sm:$0xf]
        %v2741 = vld [vmem:[%s2 + $0x10] sm:$0xf]
        %v2742 = vld [vmem:[%s2 + $0x14] sm:$0xf]
        %v2743 = vld [vmem:[%s2 + $0x18] sm:$0xf]
        %v2744 = vld [vmem:[%s2 + $0x1c] sm:$0xf]
        %v2745 = vld [vmem:[%s2 + $0x20] sm:$0xf]
        %v2746 = vld [vmem:[%s2 + $0x24] sm:$0xf]
        %v2747 = vld [vmem:[%s2 + $0x28] sm:$0xf]
        %v2748 = vld [vmem:[%s2 + $0x2c] sm:$0xf]
        %v2749 = vld [vmem:[%s2 + $0x30] sm:$0xf]
        %v2750 = vld [vmem:[%s2 + $0x34] sm:$0xf]
        %v2751 = vld [vmem:[%s2 + $0x38] sm:$0xf]
        %v2752 = vld [vmem:[%s2 + $0x3c] sm:$0xf]
        %v2753 = vld [vmem:[%s4] sm:$0xff]
        %v2754 = vld [vmem:[%s4 + $0x8] sm:$0xff]
        %v2755 = vld [vmem:[%s4 + $0x10] sm:$0xff]
        %v2756 = vld [vmem:[%s4 + $0x18] sm:$0xff]
        %v2757 = vld [vmem:[%s4 + $0x20] sm:$0xff]
        %v2758 = vld [vmem:[%s4 + $0x28] sm:$0xff]
        %v2759 = vld [vmem:[%s4 + $0x30] sm:$0xff]
        %v2760 = vld [vmem:[%s4 + $0x38] sm:$0xff]
        %v2761 = vld [vmem:[%s4 + $0x40] sm:$0xff]
        %v2762 = vld [vmem:[%s4 + $0x48] sm:$0xff]
        %v2763 = vld [vmem:[%s4 + $0x50] sm:$0xff]
        %v2764 = vld [vmem:[%s4 + $0x58] sm:$0xff]
        %v2765 = vld [vmem:[%s4 + $0x60] sm:$0xff]
        %v2766 = vld [vmem:[%s4 + $0x68] sm:$0xff]
        %v2767 = vld [vmem:[%s4 + $0x70] sm:$0xff]
        %v2768 = vld [vmem:[%s4 + $0x78] sm:$0xff]
        %2770 = vset.pattern.permute.xlu0 0
        %2771 = vperm.xlu0 %2770, %v2753
        %v2772 = vpop.permute.xlu0 %2771
        %2775 = vset.pattern.permute.xlu0 0
        %2776 = vperm.xlu0 %2775, %v2754
        %v2777 = vpop.permute.xlu0 %2776
        %2780 = vset.pattern.permute.xlu0 0
        %2781 = vperm.xlu0 %2780, %v2755
        %v2782 = vpop.permute.xlu0 %2781
        %2785 = vset.pattern.permute.xlu0 0
        %2786 = vperm.xlu0 %2785, %v2756
        %v2787 = vpop.permute.xlu0 %2786
        %2790 = vset.pattern.permute.xlu0 0
        %2791 = vperm.xlu0 %2790, %v2757
        %v2792 = vpop.permute.xlu0 %2791
        %2795 = vset.pattern.permute.xlu0 0
        %2796 = vperm.xlu0 %2795, %v2758
        %v2797 = vpop.permute.xlu0 %2796
        %2800 = vset.pattern.permute.xlu0 0
        %2801 = vperm.xlu0 %2800, %v2759
        %v2802 = vpop.permute.xlu0 %2801
        %2805 = vset.pattern.permute.xlu0 0
        %2806 = vperm.xlu0 %2805, %v2760
        %v2807 = vpop.permute.xlu0 %2806
        %2810 = vset.pattern.permute.xlu0 0
        %2811 = vperm.xlu0 %2810, %v2761
        %v2812 = vpop.permute.xlu0 %2811
        %2815 = vset.pattern.permute.xlu0 0
        %2816 = vperm.xlu0 %2815, %v2762
        %v2817 = vpop.permute.xlu0 %2816
        %2820 = vset.pattern.permute.xlu0 0
        %2821 = vperm.xlu0 %2820, %v2763
        %v2822 = vpop.permute.xlu0 %2821
        %2825 = vset.pattern.permute.xlu0 0
        %2826 = vperm.xlu0 %2825, %v2764
        %v2827 = vpop.permute.xlu0 %2826
        %2830 = vset.pattern.permute.xlu0 0
        %2831 = vperm.xlu0 %2830, %v2765
        %v2832 = vpop.permute.xlu0 %2831
        %2835 = vset.pattern.permute.xlu0 0
        %2836 = vperm.xlu0 %2835, %v2766
        %v2837 = vpop.permute.xlu0 %2836
        %2840 = vset.pattern.permute.xlu0 0
        %2841 = vperm.xlu0 %2840, %v2767
        %v2842 = vpop.permute.xlu0 %2841
        %2845 = vset.pattern.permute.xlu0 0
        %2846 = vperm.xlu0 %2845, %v2768
        %v2847 = vpop.permute.xlu0 %2846
        %v2865 = vunpack.c.l.b16 %v2737
        %v2866 = vunpack.c.l.b16 %v2738
        %v2867 = vunpack.c.l.b16 %v2739
        %v2868 = vunpack.c.l.b16 %v2740
        %v2869 = vunpack.c.l.b16 %v2741
        %v2870 = vunpack.c.l.b16 %v2742
        %v2871 = vunpack.c.l.b16 %v2743
        %v2872 = vunpack.c.l.b16 %v2744
        %v2873 = vunpack.c.l.b16 %v2745
        %v2874 = vunpack.c.l.b16 %v2746
        %v2875 = vunpack.c.l.b16 %v2747
        %v2876 = vunpack.c.l.b16 %v2748
        %v2877 = vunpack.c.l.b16 %v2749
        %v2878 = vunpack.c.l.b16 %v2750
        %v2879 = vunpack.c.l.b16 %v2751
        %v2880 = vunpack.c.l.b16 %v2752
        %v2881 = vpack.c.b16 %v2866, %v2865
        %v2882 = vpack.c.b16 %v2868, %v2867
        %v2883 = vpack.c.b16 %v2870, %v2869
        %v2884 = vpack.c.b16 %v2872, %v2871
        %v2885 = vpack.c.b16 %v2874, %v2873
        %v2886 = vpack.c.b16 %v2876, %v2875
        %v2887 = vpack.c.b16 %v2878, %v2877
        %v2888 = vpack.c.b16 %v2880, %v2879
        %v2890 = vsel %vm575, %v2881, 0
        %v2893 = vsel %vm575, %v2882, 0
        %v2896 = vsel %vm575, %v2883, 0
        %v2899 = vsel %vm575, %v2884, 0
        %v2902 = vsel %vm575, %v2885, 0
        %v2905 = vsel %vm575, %v2886, 0
        %v2908 = vsel %vm575, %v2887, 0
        %v2911 = vsel %vm575, %v2888, 0
        %2913 = vmatprep.subr.bf16.mxu0 0
        %2914 = vmatpush1.bf16.msra.mxu0 0
        %2915 = vmatprep.subr.bf16.mxu0 0
        %2916 = vmatpush1.bf16.msra.mxu0 0
        %2917 = vmatprep.subr.bf16.mxu0 0
        %2918 = vmatpush1.bf16.msra.mxu0 0
        %2919 = vmatprep.subr.bf16.mxu0 0
        %2920 = vmatpush1.bf16.msra.mxu0 0
        %2921 = vmatprep.subr.bf16.mxu0 0
        %2922 = vmatpush1.bf16.msra.mxu0 0
        %2923 = vmatprep.subr.bf16.mxu0 0
        %2924 = vmatpush1.bf16.msra.mxu0 0
        %2925 = vmatprep.subr.bf16.mxu0 0
        %2926 = vmatpush1.bf16.msra.mxu0 %v418
        %2927 = vmatprep.subr.bf16.mxu0 0
        %2928 = vmatpush1.bf16.msra.mxu0 %v417
        %2929 = vmatprep.subr.bf16.mxu0 0
        %2930 = vmatpush2.bf16.msra.mxu0 0
        %2931 = vmatprep.subr.bf16.mxu0 0
        %2932 = vmatpush2.bf16.msra.mxu0 0
        %2933 = vmatprep.subr.bf16.mxu0 0
        %2934 = vmatpush2.bf16.msra.mxu0 0
        %2935 = vmatprep.subr.bf16.mxu0 0
        %2936 = vmatpush2.bf16.msra.mxu0 0
        %2937 = vmatprep.subr.bf16.mxu0 0
        %2938 = vmatpush2.bf16.msra.mxu0 0
        %2939 = vmatprep.subr.bf16.mxu0 0
        %2940 = vmatpush2.bf16.msra.mxu0 0
        %2941 = vmatprep.subr.bf16.mxu0 0
        %2942 = vmatpush2.bf16.msra.mxu0 0
        %2943 = vmatprep.subr.bf16.mxu0 0
        %2944 = vmatpush2.bf16.msra.mxu0 0
        %2945 = vmatprep.mubr.bf16.mxu0 0
        %2946 = vmatmul.mubr.bf16.gmra.mxu0 %v2890
        %v2947 = vpop.f32.mrf.mxu0
        %v2948 = vadd.f32 %v2772, %v2947
        %v2949 = vpop.f32.mrf.mxu0
        %v2950 = vpop.f32.mrf.mxu0
        %v2951 = vadd.f32 %v2777, %v2950
        %v2952 = vpop.f32.mrf.mxu0
        %2953 = vmatprep.mubr.bf16.mxu0 0
        %2954 = vmatmul.mubr.bf16.gmra.mxu0 %v2893
        %v2955 = vpop.f32.mrf.mxu0
        %v2956 = vadd.f32 %v2782, %v2955
        %v2957 = vpop.f32.mrf.mxu0
        %v2958 = vpop.f32.mrf.mxu0
        %v2959 = vadd.f32 %v2787, %v2958
        %v2960 = vpop.f32.mrf.mxu0
        %2961 = vmatprep.mubr.bf16.mxu0 0
        %2962 = vmatmul.mubr.bf16.gmra.mxu0 %v2896
        %v2963 = vpop.f32.mrf.mxu0
        %v2964 = vadd.f32 %v2792, %v2963
        %v2965 = vpop.f32.mrf.mxu0
        %v2966 = vpop.f32.mrf.mxu0
        %v2967 = vadd.f32 %v2797, %v2966
        %v2968 = vpop.f32.mrf.mxu0
        %2969 = vmatprep.mubr.bf16.mxu0 0
        %2970 = vmatmul.mubr.bf16.gmra.mxu0 %v2899
        %v2971 = vpop.f32.mrf.mxu0
        %v2972 = vadd.f32 %v2802, %v2971
        %v2973 = vpop.f32.mrf.mxu0
        %v2974 = vpop.f32.mrf.mxu0
        %v2975 = vadd.f32 %v2807, %v2974
        %v2976 = vpop.f32.mrf.mxu0
        %2977 = vmatprep.mubr.bf16.mxu0 0
        %2978 = vmatmul.mubr.bf16.gmra.mxu0 %v2902
        %v2979 = vpop.f32.mrf.mxu0
        %v2980 = vadd.f32 %v2812, %v2979
        %v2981 = vpop.f32.mrf.mxu0
        %v2982 = vpop.f32.mrf.mxu0
        %v2983 = vadd.f32 %v2817, %v2982
        %v2984 = vpop.f32.mrf.mxu0
        %2985 = vmatprep.mubr.bf16.mxu0 0
        %2986 = vmatmul.mubr.bf16.gmra.mxu0 %v2905
        %v2987 = vpop.f32.mrf.mxu0
        %v2988 = vadd.f32 %v2822, %v2987
        %v2989 = vpop.f32.mrf.mxu0
        %v2990 = vpop.f32.mrf.mxu0
        %v2991 = vadd.f32 %v2827, %v2990
        %v2992 = vpop.f32.mrf.mxu0
        %2993 = vmatprep.mubr.bf16.mxu0 0
        %2994 = vmatmul.mubr.bf16.gmra.mxu0 %v2908
        %v2995 = vpop.f32.mrf.mxu0
        %v2996 = vadd.f32 %v2832, %v2995
        %v2997 = vpop.f32.mrf.mxu0
        %v2998 = vpop.f32.mrf.mxu0
        %v2999 = vadd.f32 %v2837, %v2998
        %v3000 = vpop.f32.mrf.mxu0
        %3001 = vmatprep.mubr.bf16.mxu0 0
        %3002 = vmatmul.mubr.bf16.gmra.mxu0 %v2911
        %v3003 = vpop.f32.mrf.mxu0
        %v3004 = vadd.f32 %v2842, %v3003
        %v3005 = vpop.f32.mrf.mxu0
        %v3006 = vpop.f32.mrf.mxu0
        %v3007 = vadd.f32 %v2847, %v3006
        %v3008 = vpop.f32.mrf.mxu0
        %3009 = vdwg.mxu0
        %s3010 = scalar_lea.vmem %s252, 1024
        %3011 = vst.msk [vmem:[%s3010] sm:$0xff] %vm697, %v2948
        %3012 = vst.msk [vmem:[%s3010 + $0x8] sm:$0xff] %vm697, %v2951
        %3013 = vst.msk [vmem:[%s3010 + $0x10] sm:$0xff] %vm697, %v2956
        %3014 = vst.msk [vmem:[%s3010 + $0x18] sm:$0xff] %vm697, %v2959
        %3015 = vst.msk [vmem:[%s3010 + $0x20] sm:$0xff] %vm697, %v2964
        %3016 = vst.msk [vmem:[%s3010 + $0x28] sm:$0xff] %vm697, %v2967
        %3017 = vst.msk [vmem:[%s3010 + $0x30] sm:$0xff] %vm697, %v2972
        %3018 = vst.msk [vmem:[%s3010 + $0x38] sm:$0xff] %vm697, %v2975
        %3019 = vst.msk [vmem:[%s3010 + $0x40] sm:$0xff] %vm697, %v2980
        %3020 = vst.msk [vmem:[%s3010 + $0x48] sm:$0xff] %vm697, %v2983
        %3021 = vst.msk [vmem:[%s3010 + $0x50] sm:$0xff] %vm697, %v2988
        %3022 = vst.msk [vmem:[%s3010 + $0x58] sm:$0xff] %vm697, %v2991
        %3023 = vst.msk [vmem:[%s3010 + $0x60] sm:$0xff] %vm697, %v2996
        %3024 = vst.msk [vmem:[%s3010 + $0x68] sm:$0xff] %vm697, %v2999
        %3025 = vst.msk [vmem:[%s3010 + $0x70] sm:$0xff] %vm697, %v3004
        %3026 = vst.msk [vmem:[%s3010 + $0x78] sm:$0xff] %vm697, %v3007
        %v3027 = vld [vmem:[%s2 + $0x40] sm:$0xf]
        %v3028 = vld [vmem:[%s2 + $0x44] sm:$0xf]
        %v3029 = vld [vmem:[%s2 + $0x48] sm:$0xf]
        %v3030 = vld [vmem:[%s2 + $0x4c] sm:$0xf]
        %v3031 = vld [vmem:[%s2 + $0x50] sm:$0xf]
        %v3032 = vld [vmem:[%s2 + $0x54] sm:$0xf]
        %v3033 = vld [vmem:[%s2 + $0x58] sm:$0xf]
        %v3034 = vld [vmem:[%s2 + $0x5c] sm:$0xf]
        %v3035 = vld [vmem:[%s2 + $0x60] sm:$0xf]
        %v3036 = vld [vmem:[%s2 + $0x64] sm:$0xf]
        %v3037 = vld [vmem:[%s2 + $0x68] sm:$0xf]
        %v3038 = vld [vmem:[%s2 + $0x6c] sm:$0xf]
        %v3039 = vld [vmem:[%s2 + $0x70] sm:$0xf]
        %v3040 = vld [vmem:[%s2 + $0x74] sm:$0xf]
        %v3041 = vld [vmem:[%s2 + $0x78] sm:$0xf]
        %v3042 = vld [vmem:[%s2 + $0x7c] sm:$0xf]
        %v3043 = vld [vmem:[%s4 + $0x80] sm:$0xff]
        %v3044 = vld [vmem:[%s4 + $0x88] sm:$0xff]
        %v3045 = vld [vmem:[%s4 + $0x90] sm:$0xff]
        %v3046 = vld [vmem:[%s4 + $0x98] sm:$0xff]
        %v3047 = vld [vmem:[%s4 + $0xa0] sm:$0xff]
        %v3048 = vld [vmem:[%s4 + $0xa8] sm:$0xff]
        %v3049 = vld [vmem:[%s4 + $0xb0] sm:$0xff]
        %v3050 = vld [vmem:[%s4 + $0xb8] sm:$0xff]
        %v3051 = vld [vmem:[%s4 + $0xc0] sm:$0xff]
        %v3052 = vld [vmem:[%s4 + $0xc8] sm:$0xff]
        %v3053 = vld [vmem:[%s4 + $0xd0] sm:$0xff]
        %v3054 = vld [vmem:[%s4 + $0xd8] sm:$0xff]
        %v3055 = vld [vmem:[%s4 + $0xe0] sm:$0xff]
        %v3056 = vld [vmem:[%s4 + $0xe8] sm:$0xff]
        %v3057 = vld [vmem:[%s4 + $0xf0] sm:$0xff]
        %v3058 = vld [vmem:[%s4 + $0xf8] sm:$0xff]
        %3060 = vset.pattern.permute.xlu0 0
        %3061 = vperm.xlu0 %3060, %v3043
        %v3062 = vpop.permute.xlu0 %3061
        %3065 = vset.pattern.permute.xlu0 0
        %3066 = vperm.xlu0 %3065, %v3044
        %v3067 = vpop.permute.xlu0 %3066
        %3070 = vset.pattern.permute.xlu0 0
        %3071 = vperm.xlu0 %3070, %v3045
        %v3072 = vpop.permute.xlu0 %3071
        %3075 = vset.pattern.permute.xlu0 0
        %3076 = vperm.xlu0 %3075, %v3046
        %v3077 = vpop.permute.xlu0 %3076
        %3080 = vset.pattern.permute.xlu0 0
        %3081 = vperm.xlu0 %3080, %v3047
        %v3082 = vpop.permute.xlu0 %3081
        %3085 = vset.pattern.permute.xlu0 0
        %3086 = vperm.xlu0 %3085, %v3048
        %v3087 = vpop.permute.xlu0 %3086
        %3090 = vset.pattern.permute.xlu0 0
        %3091 = vperm.xlu0 %3090, %v3049
        %v3092 = vpop.permute.xlu0 %3091
        %3095 = vset.pattern.permute.xlu0 0
        %3096 = vperm.xlu0 %3095, %v3050
        %v3097 = vpop.permute.xlu0 %3096
        %3100 = vset.pattern.permute.xlu0 0
        %3101 = vperm.xlu0 %3100, %v3051
        %v3102 = vpop.permute.xlu0 %3101
        %3105 = vset.pattern.permute.xlu0 0
        %3106 = vperm.xlu0 %3105, %v3052
        %v3107 = vpop.permute.xlu0 %3106
        %3110 = vset.pattern.permute.xlu0 0
        %3111 = vperm.xlu0 %3110, %v3053
        %v3112 = vpop.permute.xlu0 %3111
        %3115 = vset.pattern.permute.xlu0 0
        %3116 = vperm.xlu0 %3115, %v3054
        %v3117 = vpop.permute.xlu0 %3116
        %3120 = vset.pattern.permute.xlu0 0
        %3121 = vperm.xlu0 %3120, %v3055
        %v3122 = vpop.permute.xlu0 %3121
        %3125 = vset.pattern.permute.xlu0 0
        %3126 = vperm.xlu0 %3125, %v3056
        %v3127 = vpop.permute.xlu0 %3126
        %3130 = vset.pattern.permute.xlu0 0
        %3131 = vperm.xlu0 %3130, %v3057
        %v3132 = vpop.permute.xlu0 %3131
        %3135 = vset.pattern.permute.xlu0 0
        %3136 = vperm.xlu0 %3135, %v3058
        %v3137 = vpop.permute.xlu0 %3136
        %v3155 = vunpack.c.l.b16 %v3027
        %v3156 = vunpack.c.l.b16 %v3028
        %v3157 = vunpack.c.l.b16 %v3029
        %v3158 = vunpack.c.l.b16 %v3030
        %v3159 = vunpack.c.l.b16 %v3031
        %v3160 = vunpack.c.l.b16 %v3032
        %v3161 = vunpack.c.l.b16 %v3033
        %v3162 = vunpack.c.l.b16 %v3034
        %v3163 = vunpack.c.l.b16 %v3035
        %v3164 = vunpack.c.l.b16 %v3036
        %v3165 = vunpack.c.l.b16 %v3037
        %v3166 = vunpack.c.l.b16 %v3038
        %v3167 = vunpack.c.l.b16 %v3039
        %v3168 = vunpack.c.l.b16 %v3040
        %v3169 = vunpack.c.l.b16 %v3041
        %v3170 = vunpack.c.l.b16 %v3042
        %v3171 = vpack.c.b16 %v3156, %v3155
        %v3172 = vpack.c.b16 %v3158, %v3157
        %v3173 = vpack.c.b16 %v3160, %v3159
        %v3174 = vpack.c.b16 %v3162, %v3161
        %v3175 = vpack.c.b16 %v3164, %v3163
        %v3176 = vpack.c.b16 %v3166, %v3165
        %v3177 = vpack.c.b16 %v3168, %v3167
        %v3178 = vpack.c.b16 %v3170, %v3169
        %v3180 = vsel %vm575, %v3171, 0
        %v3183 = vsel %vm575, %v3172, 0
        %v3186 = vsel %vm575, %v3173, 0
        %v3189 = vsel %vm575, %v3174, 0
        %v3192 = vsel %vm575, %v3175, 0
        %v3195 = vsel %vm575, %v3176, 0
        %v3198 = vsel %vm575, %v3177, 0
        %v3201 = vsel %vm575, %v3178, 0
        %3203 = vmatprep.subr.bf16.mxu0 0
        %3204 = vmatpush1.bf16.msra.mxu0 0
        %3205 = vmatprep.subr.bf16.mxu0 0
        %3206 = vmatpush1.bf16.msra.mxu0 0
        %3207 = vmatprep.subr.bf16.mxu0 0
        %3208 = vmatpush1.bf16.msra.mxu0 0
        %3209 = vmatprep.subr.bf16.mxu0 0
        %3210 = vmatpush1.bf16.msra.mxu0 0
        %3211 = vmatprep.subr.bf16.mxu0 0
        %3212 = vmatpush1.bf16.msra.mxu0 0
        %3213 = vmatprep.subr.bf16.mxu0 0
        %3214 = vmatpush1.bf16.msra.mxu0 0
        %3215 = vmatprep.subr.bf16.mxu0 0
        %3216 = vmatpush1.bf16.msra.mxu0 %v418
        %3217 = vmatprep.subr.bf16.mxu0 0
        %3218 = vmatpush1.bf16.msra.mxu0 %v417
        %3219 = vmatprep.subr.bf16.mxu0 0
        %3220 = vmatpush2.bf16.msra.mxu0 0
        %3221 = vmatprep.subr.bf16.mxu0 0
        %3222 = vmatpush2.bf16.msra.mxu0 0
        %3223 = vmatprep.subr.bf16.mxu0 0
        %3224 = vmatpush2.bf16.msra.mxu0 0
        %3225 = vmatprep.subr.bf16.mxu0 0
        %3226 = vmatpush2.bf16.msra.mxu0 0
        %3227 = vmatprep.subr.bf16.mxu0 0
        %3228 = vmatpush2.bf16.msra.mxu0 0
        %3229 = vmatprep.subr.bf16.mxu0 0
        %3230 = vmatpush2.bf16.msra.mxu0 0
        %3231 = vmatprep.subr.bf16.mxu0 0
        %3232 = vmatpush2.bf16.msra.mxu0 0
        %3233 = vmatprep.subr.bf16.mxu0 0
        %3234 = vmatpush2.bf16.msra.mxu0 0
        %3235 = vmatprep.mubr.bf16.mxu0 0
        %3236 = vmatmul.mubr.bf16.gmra.mxu0 %v3180
        %v3237 = vpop.f32.mrf.mxu0
        %v3238 = vadd.f32 %v3062, %v3237
        %v3239 = vpop.f32.mrf.mxu0
        %v3240 = vpop.f32.mrf.mxu0
        %v3241 = vadd.f32 %v3067, %v3240
        %v3242 = vpop.f32.mrf.mxu0
        %3243 = vmatprep.mubr.bf16.mxu0 0
        %3244 = vmatmul.mubr.bf16.gmra.mxu0 %v3183
        %v3245 = vpop.f32.mrf.mxu0
        %v3246 = vadd.f32 %v3072, %v3245
        %v3247 = vpop.f32.mrf.mxu0
        %v3248 = vpop.f32.mrf.mxu0
        %v3249 = vadd.f32 %v3077, %v3248
        %v3250 = vpop.f32.mrf.mxu0
        %3251 = vmatprep.mubr.bf16.mxu0 0
        %3252 = vmatmul.mubr.bf16.gmra.mxu0 %v3186
        %v3253 = vpop.f32.mrf.mxu0
        %v3254 = vadd.f32 %v3082, %v3253
        %v3255 = vpop.f32.mrf.mxu0
        %v3256 = vpop.f32.mrf.mxu0
        %v3257 = vadd.f32 %v3087, %v3256
        %v3258 = vpop.f32.mrf.mxu0
        %3259 = vmatprep.mubr.bf16.mxu0 0
        %3260 = vmatmul.mubr.bf16.gmra.mxu0 %v3189
        %v3261 = vpop.f32.mrf.mxu0
        %v3262 = vadd.f32 %v3092, %v3261
        %v3263 = vpop.f32.mrf.mxu0
        %v3264 = vpop.f32.mrf.mxu0
        %v3265 = vadd.f32 %v3097, %v3264
        %v3266 = vpop.f32.mrf.mxu0
        %3267 = vmatprep.mubr.bf16.mxu0 0
        %3268 = vmatmul.mubr.bf16.gmra.mxu0 %v3192
        %v3269 = vpop.f32.mrf.mxu0
        %v3270 = vadd.f32 %v3102, %v3269
        %v3271 = vpop.f32.mrf.mxu0
        %v3272 = vpop.f32.mrf.mxu0
        %v3273 = vadd.f32 %v3107, %v3272
        %v3274 = vpop.f32.mrf.mxu0
        %3275 = vmatprep.mubr.bf16.mxu0 0
        %3276 = vmatmul.mubr.bf16.gmra.mxu0 %v3195
        %v3277 = vpop.f32.mrf.mxu0
        %v3278 = vadd.f32 %v3112, %v3277
        %v3279 = vpop.f32.mrf.mxu0
        %v3280 = vpop.f32.mrf.mxu0
        %v3281 = vadd.f32 %v3117, %v3280
        %v3282 = vpop.f32.mrf.mxu0
        %3283 = vmatprep.mubr.bf16.mxu0 0
        %3284 = vmatmul.mubr.bf16.gmra.mxu0 %v3198
        %v3285 = vpop.f32.mrf.mxu0
        %v3286 = vadd.f32 %v3122, %v3285
        %v3287 = vpop.f32.mrf.mxu0
        %v3288 = vpop.f32.mrf.mxu0
        %v3289 = vadd.f32 %v3127, %v3288
        %v3290 = vpop.f32.mrf.mxu0
        %3291 = vmatprep.mubr.bf16.mxu0 0
        %3292 = vmatmul.mubr.bf16.gmra.mxu0 %v3201
        %v3293 = vpop.f32.mrf.mxu0
        %v3294 = vadd.f32 %v3132, %v3293
        %v3295 = vpop.f32.mrf.mxu0
        %v3296 = vpop.f32.mrf.mxu0
        %v3297 = vadd.f32 %v3137, %v3296
        %v3298 = vpop.f32.mrf.mxu0
        %3299 = vdwg.mxu0
        %3300 = vst.msk [vmem:[%s3010 + $0x80] sm:$0xff] %vm697, %v3238
        %3301 = vst.msk [vmem:[%s3010 + $0x88] sm:$0xff] %vm697, %v3241
        %3302 = vst.msk [vmem:[%s3010 + $0x90] sm:$0xff] %vm697, %v3246
        %3303 = vst.msk [vmem:[%s3010 + $0x98] sm:$0xff] %vm697, %v3249
        %3304 = vst.msk [vmem:[%s3010 + $0xa0] sm:$0xff] %vm697, %v3254
        %3305 = vst.msk [vmem:[%s3010 + $0xa8] sm:$0xff] %vm697, %v3257
        %3306 = vst.msk [vmem:[%s3010 + $0xb0] sm:$0xff] %vm697, %v3262
        %3307 = vst.msk [vmem:[%s3010 + $0xb8] sm:$0xff] %vm697, %v3265
        %3308 = vst.msk [vmem:[%s3010 + $0xc0] sm:$0xff] %vm697, %v3270
        %3309 = vst.msk [vmem:[%s3010 + $0xc8] sm:$0xff] %vm697, %v3273
        %3310 = vst.msk [vmem:[%s3010 + $0xd0] sm:$0xff] %vm697, %v3278
        %3311 = vst.msk [vmem:[%s3010 + $0xd8] sm:$0xff] %vm697, %v3281
        %3312 = vst.msk [vmem:[%s3010 + $0xe0] sm:$0xff] %vm697, %v3286
        %3313 = vst.msk [vmem:[%s3010 + $0xe8] sm:$0xff] %vm697, %v3289
        %3314 = vst.msk [vmem:[%s3010 + $0xf0] sm:$0xff] %vm697, %v3294
        %3315 = vst.msk [vmem:[%s3010 + $0xf8] sm:$0xff] %vm697, %v3297
        %v3316 = vld [vmem:[%s2 + $0x80] sm:$0xf]
        %v3317 = vld [vmem:[%s2 + $0x84] sm:$0xf]
        %v3318 = vld [vmem:[%s2 + $0x88] sm:$0xf]
        %v3319 = vld [vmem:[%s2 + $0x8c] sm:$0xf]
        %v3320 = vld [vmem:[%s2 + $0x90] sm:$0xf]
        %v3321 = vld [vmem:[%s2 + $0x94] sm:$0xf]
        %v3322 = vld [vmem:[%s2 + $0x98] sm:$0xf]
        %v3323 = vld [vmem:[%s2 + $0x9c] sm:$0xf]
        %v3324 = vld [vmem:[%s2 + $0xa0] sm:$0xf]
        %v3325 = vld [vmem:[%s2 + $0xa4] sm:$0xf]
        %v3326 = vld [vmem:[%s2 + $0xa8] sm:$0xf]
        %v3327 = vld [vmem:[%s2 + $0xac] sm:$0xf]
        %v3328 = vld [vmem:[%s2 + $0xb0] sm:$0xf]
        %v3329 = vld [vmem:[%s2 + $0xb4] sm:$0xf]
        %v3330 = vld [vmem:[%s2 + $0xb8] sm:$0xf]
        %v3331 = vld [vmem:[%s2 + $0xbc] sm:$0xf]
        %v3332 = vld [vmem:[%s4 + $0x100] sm:$0xff]
        %v3333 = vld [vmem:[%s4 + $0x108] sm:$0xff]
        %v3334 = vld [vmem:[%s4 + $0x110] sm:$0xff]
        %v3335 = vld [vmem:[%s4 + $0x118] sm:$0xff]
        %v3336 = vld [vmem:[%s4 + $0x120] sm:$0xff]
        %v3337 = vld [vmem:[%s4 + $0x128] sm:$0xff]
        %v3338 = vld [vmem:[%s4 + $0x130] sm:$0xff]
        %v3339 = vld [vmem:[%s4 + $0x138] sm:$0xff]
        %v3340 = vld [vmem:[%s4 + $0x140] sm:$0xff]
        %v3341 = vld [vmem:[%s4 + $0x148] sm:$0xff]
        %v3342 = vld [vmem:[%s4 + $0x150] sm:$0xff]
        %v3343 = vld [vmem:[%s4 + $0x158] sm:$0xff]
        %v3344 = vld [vmem:[%s4 + $0x160] sm:$0xff]
        %v3345 = vld [vmem:[%s4 + $0x168] sm:$0xff]
        %v3346 = vld [vmem:[%s4 + $0x170] sm:$0xff]
        %v3347 = vld [vmem:[%s4 + $0x178] sm:$0xff]
        %3349 = vset.pattern.permute.xlu0 0
        %3350 = vperm.xlu0 %3349, %v3332
        %v3351 = vpop.permute.xlu0 %3350
        %3354 = vset.pattern.permute.xlu0 0
        %3355 = vperm.xlu0 %3354, %v3333
        %v3356 = vpop.permute.xlu0 %3355
        %3359 = vset.pattern.permute.xlu0 0
        %3360 = vperm.xlu0 %3359, %v3334
        %v3361 = vpop.permute.xlu0 %3360
        %3364 = vset.pattern.permute.xlu0 0
        %3365 = vperm.xlu0 %3364, %v3335
        %v3366 = vpop.permute.xlu0 %3365
        %3369 = vset.pattern.permute.xlu0 0
        %3370 = vperm.xlu0 %3369, %v3336
        %v3371 = vpop.permute.xlu0 %3370
        %3374 = vset.pattern.permute.xlu0 0
        %3375 = vperm.xlu0 %3374, %v3337
        %v3376 = vpop.permute.xlu0 %3375
        %3379 = vset.pattern.permute.xlu0 0
        %3380 = vperm.xlu0 %3379, %v3338
        %v3381 = vpop.permute.xlu0 %3380
        %3384 = vset.pattern.permute.xlu0 0
        %3385 = vperm.xlu0 %3384, %v3339
        %v3386 = vpop.permute.xlu0 %3385
        %3389 = vset.pattern.permute.xlu0 0
        %3390 = vperm.xlu0 %3389, %v3340
        %v3391 = vpop.permute.xlu0 %3390
        %3394 = vset.pattern.permute.xlu0 0
        %3395 = vperm.xlu0 %3394, %v3341
        %v3396 = vpop.permute.xlu0 %3395
        %3399 = vset.pattern.permute.xlu0 0
        %3400 = vperm.xlu0 %3399, %v3342
        %v3401 = vpop.permute.xlu0 %3400
        %3404 = vset.pattern.permute.xlu0 0
        %3405 = vperm.xlu0 %3404, %v3343
        %v3406 = vpop.permute.xlu0 %3405
        %3409 = vset.pattern.permute.xlu0 0
        %3410 = vperm.xlu0 %3409, %v3344
        %v3411 = vpop.permute.xlu0 %3410
        %3414 = vset.pattern.permute.xlu0 0
        %3415 = vperm.xlu0 %3414, %v3345
        %v3416 = vpop.permute.xlu0 %3415
        %3419 = vset.pattern.permute.xlu0 0
        %3420 = vperm.xlu0 %3419, %v3346
        %v3421 = vpop.permute.xlu0 %3420
        %3424 = vset.pattern.permute.xlu0 0
        %3425 = vperm.xlu0 %3424, %v3347
        %v3426 = vpop.permute.xlu0 %3425
        %v3444 = vunpack.c.l.b16 %v3316
        %v3445 = vunpack.c.l.b16 %v3317
        %v3446 = vunpack.c.l.b16 %v3318
        %v3447 = vunpack.c.l.b16 %v3319
        %v3448 = vunpack.c.l.b16 %v3320
        %v3449 = vunpack.c.l.b16 %v3321
        %v3450 = vunpack.c.l.b16 %v3322
        %v3451 = vunpack.c.l.b16 %v3323
        %v3452 = vunpack.c.l.b16 %v3324
        %v3453 = vunpack.c.l.b16 %v3325
        %v3454 = vunpack.c.l.b16 %v3326
        %v3455 = vunpack.c.l.b16 %v3327
        %v3456 = vunpack.c.l.b16 %v3328
        %v3457 = vunpack.c.l.b16 %v3329
        %v3458 = vunpack.c.l.b16 %v3330
        %v3459 = vunpack.c.l.b16 %v3331
        %v3460 = vpack.c.b16 %v3445, %v3444
        %v3461 = vpack.c.b16 %v3447, %v3446
        %v3462 = vpack.c.b16 %v3449, %v3448
        %v3463 = vpack.c.b16 %v3451, %v3450
        %v3464 = vpack.c.b16 %v3453, %v3452
        %v3465 = vpack.c.b16 %v3455, %v3454
        %v3466 = vpack.c.b16 %v3457, %v3456
        %v3467 = vpack.c.b16 %v3459, %v3458
        %v3469 = vsel %vm575, %v3460, 0
        %v3472 = vsel %vm575, %v3461, 0
        %v3475 = vsel %vm575, %v3462, 0
        %v3478 = vsel %vm575, %v3463, 0
        %v3481 = vsel %vm575, %v3464, 0
        %v3484 = vsel %vm575, %v3465, 0
        %v3487 = vsel %vm575, %v3466, 0
        %v3490 = vsel %vm575, %v3467, 0
        %3492 = vmatprep.subr.bf16.mxu0 0
        %3493 = vmatpush1.bf16.msra.mxu0 0
        %3494 = vmatprep.subr.bf16.mxu0 0
        %3495 = vmatpush1.bf16.msra.mxu0 0
        %3496 = vmatprep.subr.bf16.mxu0 0
        %3497 = vmatpush1.bf16.msra.mxu0 0
        %3498 = vmatprep.subr.bf16.mxu0 0
        %3499 = vmatpush1.bf16.msra.mxu0 0
        %3500 = vmatprep.subr.bf16.mxu0 0
        %3501 = vmatpush1.bf16.msra.mxu0 0
        %3502 = vmatprep.subr.bf16.mxu0 0
        %3503 = vmatpush1.bf16.msra.mxu0 0
        %3504 = vmatprep.subr.bf16.mxu0 0
        %3505 = vmatpush1.bf16.msra.mxu0 %v418
        %3506 = vmatprep.subr.bf16.mxu0 0
        %3507 = vmatpush1.bf16.msra.mxu0 %v417
        %3508 = vmatprep.subr.bf16.mxu0 0
        %3509 = vmatpush2.bf16.msra.mxu0 0
        %3510 = vmatprep.subr.bf16.mxu0 0
        %3511 = vmatpush2.bf16.msra.mxu0 0
        %3512 = vmatprep.subr.bf16.mxu0 0
        %3513 = vmatpush2.bf16.msra.mxu0 0
        %3514 = vmatprep.subr.bf16.mxu0 0
        %3515 = vmatpush2.bf16.msra.mxu0 0
        %3516 = vmatprep.subr.bf16.mxu0 0
        %3517 = vmatpush2.bf16.msra.mxu0 0
        %3518 = vmatprep.subr.bf16.mxu0 0
        %3519 = vmatpush2.bf16.msra.mxu0 0
        %3520 = vmatprep.subr.bf16.mxu0 0
        %3521 = vmatpush2.bf16.msra.mxu0 0
        %3522 = vmatprep.subr.bf16.mxu0 0
        %3523 = vmatpush2.bf16.msra.mxu0 0
        %3524 = vmatprep.mubr.bf16.mxu0 0
        %3525 = vmatmul.mubr.bf16.gmra.mxu0 %v3469
        %v3526 = vpop.f32.mrf.mxu0
        %v3527 = vadd.f32 %v3351, %v3526
        %v3528 = vpop.f32.mrf.mxu0
        %v3529 = vpop.f32.mrf.mxu0
        %v3530 = vadd.f32 %v3356, %v3529
        %v3531 = vpop.f32.mrf.mxu0
        %3532 = vmatprep.mubr.bf16.mxu0 0
        %3533 = vmatmul.mubr.bf16.gmra.mxu0 %v3472
        %v3534 = vpop.f32.mrf.mxu0
        %v3535 = vadd.f32 %v3361, %v3534
        %v3536 = vpop.f32.mrf.mxu0
        %v3537 = vpop.f32.mrf.mxu0
        %v3538 = vadd.f32 %v3366, %v3537
        %v3539 = vpop.f32.mrf.mxu0
        %3540 = vmatprep.mubr.bf16.mxu0 0
        %3541 = vmatmul.mubr.bf16.gmra.mxu0 %v3475
        %v3542 = vpop.f32.mrf.mxu0
        %v3543 = vadd.f32 %v3371, %v3542
        %v3544 = vpop.f32.mrf.mxu0
        %v3545 = vpop.f32.mrf.mxu0
        %v3546 = vadd.f32 %v3376, %v3545
        %v3547 = vpop.f32.mrf.mxu0
        %3548 = vmatprep.mubr.bf16.mxu0 0
        %3549 = vmatmul.mubr.bf16.gmra.mxu0 %v3478
        %v3550 = vpop.f32.mrf.mxu0
        %v3551 = vadd.f32 %v3381, %v3550
        %v3552 = vpop.f32.mrf.mxu0
        %v3553 = vpop.f32.mrf.mxu0
        %v3554 = vadd.f32 %v3386, %v3553
        %v3555 = vpop.f32.mrf.mxu0
        %3556 = vmatprep.mubr.bf16.mxu0 0
        %3557 = vmatmul.mubr.bf16.gmra.mxu0 %v3481
        %v3558 = vpop.f32.mrf.mxu0
        %v3559 = vadd.f32 %v3391, %v3558
        %v3560 = vpop.f32.mrf.mxu0
        %v3561 = vpop.f32.mrf.mxu0
        %v3562 = vadd.f32 %v3396, %v3561
        %v3563 = vpop.f32.mrf.mxu0
        %3564 = vmatprep.mubr.bf16.mxu0 0
        %3565 = vmatmul.mubr.bf16.gmra.mxu0 %v3484
        %v3566 = vpop.f32.mrf.mxu0
        %v3567 = vadd.f32 %v3401, %v3566
        %v3568 = vpop.f32.mrf.mxu0
        %v3569 = vpop.f32.mrf.mxu0
        %v3570 = vadd.f32 %v3406, %v3569
        %v3571 = vpop.f32.mrf.mxu0
        %3572 = vmatprep.mubr.bf16.mxu0 0
        %3573 = vmatmul.mubr.bf16.gmra.mxu0 %v3487
        %v3574 = vpop.f32.mrf.mxu0
        %v3575 = vadd.f32 %v3411, %v3574
        %v3576 = vpop.f32.mrf.mxu0
        %v3577 = vpop.f32.mrf.mxu0
        %v3578 = vadd.f32 %v3416, %v3577
        %v3579 = vpop.f32.mrf.mxu0
        %3580 = vmatprep.mubr.bf16.mxu0 0
        %3581 = vmatmul.mubr.bf16.gmra.mxu0 %v3490
        %v3582 = vpop.f32.mrf.mxu0
        %v3583 = vadd.f32 %v3421, %v3582
        %v3584 = vpop.f32.mrf.mxu0
        %v3585 = vpop.f32.mrf.mxu0
        %v3586 = vadd.f32 %v3426, %v3585
        %v3587 = vpop.f32.mrf.mxu0
        %3588 = vdwg.mxu0
        %3589 = vst.msk [vmem:[%s3010 + $0x100] sm:$0xff] %vm697, %v3527
        %3590 = vst.msk [vmem:[%s3010 + $0x108] sm:$0xff] %vm697, %v3530
        %3591 = vst.msk [vmem:[%s3010 + $0x110] sm:$0xff] %vm697, %v3535
        %3592 = vst.msk [vmem:[%s3010 + $0x118] sm:$0xff] %vm697, %v3538
        %3593 = vst.msk [vmem:[%s3010 + $0x120] sm:$0xff] %vm697, %v3543
        %3594 = vst.msk [vmem:[%s3010 + $0x128] sm:$0xff] %vm697, %v3546
        %3595 = vst.msk [vmem:[%s3010 + $0x130] sm:$0xff] %vm697, %v3551
        %3596 = vst.msk [vmem:[%s3010 + $0x138] sm:$0xff] %vm697, %v3554
        %3597 = vst.msk [vmem:[%s3010 + $0x140] sm:$0xff] %vm697, %v3559
        %3598 = vst.msk [vmem:[%s3010 + $0x148] sm:$0xff] %vm697, %v3562
        %3599 = vst.msk [vmem:[%s3010 + $0x150] sm:$0xff] %vm697, %v3567
        %3600 = vst.msk [vmem:[%s3010 + $0x158] sm:$0xff] %vm697, %v3570
        %3601 = vst.msk [vmem:[%s3010 + $0x160] sm:$0xff] %vm697, %v3575
        %3602 = vst.msk [vmem:[%s3010 + $0x168] sm:$0xff] %vm697, %v3578
        %3603 = vst.msk [vmem:[%s3010 + $0x170] sm:$0xff] %vm697, %v3583
        %3604 = vst.msk [vmem:[%s3010 + $0x178] sm:$0xff] %vm697, %v3586
        %v3605 = vld [vmem:[%s2 + $0xc0] sm:$0xf]
        %v3606 = vld [vmem:[%s2 + $0xc4] sm:$0xf]
        %v3607 = vld [vmem:[%s2 + $0xc8] sm:$0xf]
        %v3608 = vld [vmem:[%s2 + $0xcc] sm:$0xf]
        %v3609 = vld [vmem:[%s2 + $0xd0] sm:$0xf]
        %v3610 = vld [vmem:[%s2 + $0xd4] sm:$0xf]
        %v3611 = vld [vmem:[%s2 + $0xd8] sm:$0xf]
        %v3612 = vld [vmem:[%s2 + $0xdc] sm:$0xf]
        %v3613 = vld [vmem:[%s2 + $0xe0] sm:$0xf]
        %v3614 = vld [vmem:[%s2 + $0xe4] sm:$0xf]
        %v3615 = vld [vmem:[%s2 + $0xe8] sm:$0xf]
        %v3616 = vld [vmem:[%s2 + $0xec] sm:$0xf]
        %v3617 = vld [vmem:[%s2 + $0xf0] sm:$0xf]
        %v3618 = vld [vmem:[%s2 + $0xf4] sm:$0xf]
        %v3619 = vld [vmem:[%s2 + $0xf8] sm:$0xf]
        %v3620 = vld [vmem:[%s2 + $0xfc] sm:$0xf]
        %v3621 = vld [vmem:[%s4 + $0x180] sm:$0xff]
        %v3622 = vld [vmem:[%s4 + $0x188] sm:$0xff]
        %v3623 = vld [vmem:[%s4 + $0x190] sm:$0xff]
        %v3624 = vld [vmem:[%s4 + $0x198] sm:$0xff]
        %v3625 = vld [vmem:[%s4 + $0x1a0] sm:$0xff]
        %v3626 = vld [vmem:[%s4 + $0x1a8] sm:$0xff]
        %v3627 = vld [vmem:[%s4 + $0x1b0] sm:$0xff]
        %v3628 = vld [vmem:[%s4 + $0x1b8] sm:$0xff]
        %v3629 = vld [vmem:[%s4 + $0x1c0] sm:$0xff]
        %v3630 = vld [vmem:[%s4 + $0x1c8] sm:$0xff]
        %v3631 = vld [vmem:[%s4 + $0x1d0] sm:$0xff]
        %v3632 = vld [vmem:[%s4 + $0x1d8] sm:$0xff]
        %v3633 = vld [vmem:[%s4 + $0x1e0] sm:$0xff]
        %v3634 = vld [vmem:[%s4 + $0x1e8] sm:$0xff]
        %v3635 = vld [vmem:[%s4 + $0x1f0] sm:$0xff]
        %v3636 = vld [vmem:[%s4 + $0x1f8] sm:$0xff]
        %3638 = vset.pattern.permute.xlu0 0
        %3639 = vperm.xlu0 %3638, %v3621
        %v3640 = vpop.permute.xlu0 %3639
        %3643 = vset.pattern.permute.xlu0 0
        %3644 = vperm.xlu0 %3643, %v3622
        %v3645 = vpop.permute.xlu0 %3644
        %3648 = vset.pattern.permute.xlu0 0
        %3649 = vperm.xlu0 %3648, %v3623
        %v3650 = vpop.permute.xlu0 %3649
        %3653 = vset.pattern.permute.xlu0 0
        %3654 = vperm.xlu0 %3653, %v3624
        %v3655 = vpop.permute.xlu0 %3654
        %3658 = vset.pattern.permute.xlu0 0
        %3659 = vperm.xlu0 %3658, %v3625
        %v3660 = vpop.permute.xlu0 %3659
        %3663 = vset.pattern.permute.xlu0 0
        %3664 = vperm.xlu0 %3663, %v3626
        %v3665 = vpop.permute.xlu0 %3664
        %3668 = vset.pattern.permute.xlu0 0
        %3669 = vperm.xlu0 %3668, %v3627
        %v3670 = vpop.permute.xlu0 %3669
        %3673 = vset.pattern.permute.xlu0 0
        %3674 = vperm.xlu0 %3673, %v3628
        %v3675 = vpop.permute.xlu0 %3674
        %3678 = vset.pattern.permute.xlu0 0
        %3679 = vperm.xlu0 %3678, %v3629
        %v3680 = vpop.permute.xlu0 %3679
        %3683 = vset.pattern.permute.xlu0 0
        %3684 = vperm.xlu0 %3683, %v3630
        %v3685 = vpop.permute.xlu0 %3684
        %3688 = vset.pattern.permute.xlu0 0
        %3689 = vperm.xlu0 %3688, %v3631
        %v3690 = vpop.permute.xlu0 %3689
        %3693 = vset.pattern.permute.xlu0 0
        %3694 = vperm.xlu0 %3693, %v3632
        %v3695 = vpop.permute.xlu0 %3694
        %3698 = vset.pattern.permute.xlu0 0
        %3699 = vperm.xlu0 %3698, %v3633
        %v3700 = vpop.permute.xlu0 %3699
        %3703 = vset.pattern.permute.xlu0 0
        %3704 = vperm.xlu0 %3703, %v3634
        %v3705 = vpop.permute.xlu0 %3704
        %3708 = vset.pattern.permute.xlu0 0
        %3709 = vperm.xlu0 %3708, %v3635
        %v3710 = vpop.permute.xlu0 %3709
        %3713 = vset.pattern.permute.xlu0 0
        %3714 = vperm.xlu0 %3713, %v3636
        %v3715 = vpop.permute.xlu0 %3714
        %v3733 = vunpack.c.l.b16 %v3605
        %v3734 = vunpack.c.l.b16 %v3606
        %v3735 = vunpack.c.l.b16 %v3607
        %v3736 = vunpack.c.l.b16 %v3608
        %v3737 = vunpack.c.l.b16 %v3609
        %v3738 = vunpack.c.l.b16 %v3610
        %v3739 = vunpack.c.l.b16 %v3611
        %v3740 = vunpack.c.l.b16 %v3612
        %v3741 = vunpack.c.l.b16 %v3613
        %v3742 = vunpack.c.l.b16 %v3614
        %v3743 = vunpack.c.l.b16 %v3615
        %v3744 = vunpack.c.l.b16 %v3616
        %v3745 = vunpack.c.l.b16 %v3617
        %v3746 = vunpack.c.l.b16 %v3618
        %v3747 = vunpack.c.l.b16 %v3619
        %v3748 = vunpack.c.l.b16 %v3620
        %v3749 = vpack.c.b16 %v3734, %v3733
        %v3750 = vpack.c.b16 %v3736, %v3735
        %v3751 = vpack.c.b16 %v3738, %v3737
        %v3752 = vpack.c.b16 %v3740, %v3739
        %v3753 = vpack.c.b16 %v3742, %v3741
        %v3754 = vpack.c.b16 %v3744, %v3743
        %v3755 = vpack.c.b16 %v3746, %v3745
        %v3756 = vpack.c.b16 %v3748, %v3747
        %v3758 = vsel %vm575, %v3749, 0
        %v3761 = vsel %vm575, %v3750, 0
        %v3764 = vsel %vm575, %v3751, 0
        %v3767 = vsel %vm575, %v3752, 0
        %v3770 = vsel %vm575, %v3753, 0
        %v3773 = vsel %vm575, %v3754, 0
        %v3776 = vsel %vm575, %v3755, 0
        %v3779 = vsel %vm575, %v3756, 0
        %3781 = vmatprep.subr.bf16.mxu0 0
        %3782 = vmatpush1.bf16.msra.mxu0 0
        %3783 = vmatprep.subr.bf16.mxu0 0
        %3784 = vmatpush1.bf16.msra.mxu0 0
        %3785 = vmatprep.subr.bf16.mxu0 0
        %3786 = vmatpush1.bf16.msra.mxu0 0
        %3787 = vmatprep.subr.bf16.mxu0 0
        %3788 = vmatpush1.bf16.msra.mxu0 0
        %3789 = vmatprep.subr.bf16.mxu0 0
        %3790 = vmatpush1.bf16.msra.mxu0 0
        %3791 = vmatprep.subr.bf16.mxu0 0
        %3792 = vmatpush1.bf16.msra.mxu0 0
        %3793 = vmatprep.subr.bf16.mxu0 0
        %3794 = vmatpush1.bf16.msra.mxu0 %v418
        %3795 = vmatprep.subr.bf16.mxu0 0
        %3796 = vmatpush1.bf16.msra.mxu0 %v417
        %3797 = vmatprep.subr.bf16.mxu0 0
        %3798 = vmatpush2.bf16.msra.mxu0 0
        %3799 = vmatprep.subr.bf16.mxu0 0
        %3800 = vmatpush2.bf16.msra.mxu0 0
        %3801 = vmatprep.subr.bf16.mxu0 0
        %3802 = vmatpush2.bf16.msra.mxu0 0
        %3803 = vmatprep.subr.bf16.mxu0 0
        %3804 = vmatpush2.bf16.msra.mxu0 0
        %3805 = vmatprep.subr.bf16.mxu0 0
        %3806 = vmatpush2.bf16.msra.mxu0 0
        %3807 = vmatprep.subr.bf16.mxu0 0
        %3808 = vmatpush2.bf16.msra.mxu0 0
        %3809 = vmatprep.subr.bf16.mxu0 0
        %3810 = vmatpush2.bf16.msra.mxu0 0
        %3811 = vmatprep.subr.bf16.mxu0 0
        %3812 = vmatpush2.bf16.msra.mxu0 0
        %3813 = vmatprep.mubr.bf16.mxu0 0
        %3814 = vmatmul.mubr.bf16.gmra.mxu0 %v3758
        %v3815 = vpop.f32.mrf.mxu0
        %v3816 = vadd.f32 %v3640, %v3815
        %v3817 = vpop.f32.mrf.mxu0
        %v3818 = vpop.f32.mrf.mxu0
        %v3819 = vadd.f32 %v3645, %v3818
        %v3820 = vpop.f32.mrf.mxu0
        %3821 = vmatprep.mubr.bf16.mxu0 0
        %3822 = vmatmul.mubr.bf16.gmra.mxu0 %v3761
        %v3823 = vpop.f32.mrf.mxu0
        %v3824 = vadd.f32 %v3650, %v3823
        %v3825 = vpop.f32.mrf.mxu0
        %v3826 = vpop.f32.mrf.mxu0
        %v3827 = vadd.f32 %v3655, %v3826
        %v3828 = vpop.f32.mrf.mxu0
        %3829 = vmatprep.mubr.bf16.mxu0 0
        %3830 = vmatmul.mubr.bf16.gmra.mxu0 %v3764
        %v3831 = vpop.f32.mrf.mxu0
        %v3832 = vadd.f32 %v3660, %v3831
        %v3833 = vpop.f32.mrf.mxu0
        %v3834 = vpop.f32.mrf.mxu0
        %v3835 = vadd.f32 %v3665, %v3834
        %v3836 = vpop.f32.mrf.mxu0
        %3837 = vmatprep.mubr.bf16.mxu0 0
        %3838 = vmatmul.mubr.bf16.gmra.mxu0 %v3767
        %v3839 = vpop.f32.mrf.mxu0
        %v3840 = vadd.f32 %v3670, %v3839
        %v3841 = vpop.f32.mrf.mxu0
        %v3842 = vpop.f32.mrf.mxu0
        %v3843 = vadd.f32 %v3675, %v3842
        %v3844 = vpop.f32.mrf.mxu0
        %3845 = vmatprep.mubr.bf16.mxu0 0
        %3846 = vmatmul.mubr.bf16.gmra.mxu0 %v3770
        %v3847 = vpop.f32.mrf.mxu0
        %v3848 = vadd.f32 %v3680, %v3847
        %v3849 = vpop.f32.mrf.mxu0
        %v3850 = vpop.f32.mrf.mxu0
        %v3851 = vadd.f32 %v3685, %v3850
        %v3852 = vpop.f32.mrf.mxu0
        %3853 = vmatprep.mubr.bf16.mxu0 0
        %3854 = vmatmul.mubr.bf16.gmra.mxu0 %v3773
        %v3855 = vpop.f32.mrf.mxu0
        %v3856 = vadd.f32 %v3690, %v3855
        %v3857 = vpop.f32.mrf.mxu0
        %v3858 = vpop.f32.mrf.mxu0
        %v3859 = vadd.f32 %v3695, %v3858
        %v3860 = vpop.f32.mrf.mxu0
        %3861 = vmatprep.mubr.bf16.mxu0 0
        %3862 = vmatmul.mubr.bf16.gmra.mxu0 %v3776
        %v3863 = vpop.f32.mrf.mxu0
        %v3864 = vadd.f32 %v3700, %v3863
        %v3865 = vpop.f32.mrf.mxu0
        %v3866 = vpop.f32.mrf.mxu0
        %v3867 = vadd.f32 %v3705, %v3866
        %v3868 = vpop.f32.mrf.mxu0
        %3869 = vmatprep.mubr.bf16.mxu0 0
        %3870 = vmatmul.mubr.bf16.gmra.mxu0 %v3779
        %v3871 = vpop.f32.mrf.mxu0
        %v3872 = vadd.f32 %v3710, %v3871
        %v3873 = vpop.f32.mrf.mxu0
        %v3874 = vpop.f32.mrf.mxu0
        %v3875 = vadd.f32 %v3715, %v3874
        %v3876 = vpop.f32.mrf.mxu0
        %3877 = vdwg.mxu0
        %3878 = vst.msk [vmem:[%s3010 + $0x180] sm:$0xff] %vm697, %v3816
        %3879 = vst.msk [vmem:[%s3010 + $0x188] sm:$0xff] %vm697, %v3819
        %3880 = vst.msk [vmem:[%s3010 + $0x190] sm:$0xff] %vm697, %v3824
        %3881 = vst.msk [vmem:[%s3010 + $0x198] sm:$0xff] %vm697, %v3827
        %3882 = vst.msk [vmem:[%s3010 + $0x1a0] sm:$0xff] %vm697, %v3832
        %3883 = vst.msk [vmem:[%s3010 + $0x1a8] sm:$0xff] %vm697, %v3835
        %3884 = vst.msk [vmem:[%s3010 + $0x1b0] sm:$0xff] %vm697, %v3840
        %3885 = vst.msk [vmem:[%s3010 + $0x1b8] sm:$0xff] %vm697, %v3843
        %3886 = vst.msk [vmem:[%s3010 + $0x1c0] sm:$0xff] %vm697, %v3848
        %3887 = vst.msk [vmem:[%s3010 + $0x1c8] sm:$0xff] %vm697, %v3851
        %3888 = vst.msk [vmem:[%s3010 + $0x1d0] sm:$0xff] %vm697, %v3856
        %3889 = vst.msk [vmem:[%s3010 + $0x1d8] sm:$0xff] %vm697, %v3859
        %3890 = vst.msk [vmem:[%s3010 + $0x1e0] sm:$0xff] %vm697, %v3864
        %3891 = vst.msk [vmem:[%s3010 + $0x1e8] sm:$0xff] %vm697, %v3867
        %3892 = vst.msk [vmem:[%s3010 + $0x1f0] sm:$0xff] %vm697, %v3872
        %3893 = vst.msk [vmem:[%s3010 + $0x1f8] sm:$0xff] %vm697, %v3875
        %v3894 = vld [vmem:[%s2 + $0x100] sm:$0xf]
        %v3895 = vld [vmem:[%s2 + $0x104] sm:$0xf]
        %v3896 = vld [vmem:[%s2 + $0x108] sm:$0xf]
        %v3897 = vld [vmem:[%s2 + $0x10c] sm:$0xf]
        %v3898 = vld [vmem:[%s2 + $0x110] sm:$0xf]
        %v3899 = vld [vmem:[%s2 + $0x114] sm:$0xf]
        %v3900 = vld [vmem:[%s2 + $0x118] sm:$0xf]
        %v3901 = vld [vmem:[%s2 + $0x11c] sm:$0xf]
        %v3902 = vld [vmem:[%s2 + $0x120] sm:$0xf]
        %v3903 = vld [vmem:[%s2 + $0x124] sm:$0xf]
        %v3904 = vld [vmem:[%s2 + $0x128] sm:$0xf]
        %v3905 = vld [vmem:[%s2 + $0x12c] sm:$0xf]
        %v3906 = vld [vmem:[%s2 + $0x130] sm:$0xf]
        %v3907 = vld [vmem:[%s2 + $0x134] sm:$0xf]
        %v3908 = vld [vmem:[%s2 + $0x138] sm:$0xf]
        %v3909 = vld [vmem:[%s2 + $0x13c] sm:$0xf]
        %v3910 = vld [vmem:[%s4 + $0x200] sm:$0xff]
        %v3911 = vld [vmem:[%s4 + $0x208] sm:$0xff]
        %v3912 = vld [vmem:[%s4 + $0x210] sm:$0xff]
        %v3913 = vld [vmem:[%s4 + $0x218] sm:$0xff]
        %v3914 = vld [vmem:[%s4 + $0x220] sm:$0xff]
        %v3915 = vld [vmem:[%s4 + $0x228] sm:$0xff]
        %v3916 = vld [vmem:[%s4 + $0x230] sm:$0xff]
        %v3917 = vld [vmem:[%s4 + $0x238] sm:$0xff]
        %v3918 = vld [vmem:[%s4 + $0x240] sm:$0xff]
        %v3919 = vld [vmem:[%s4 + $0x248] sm:$0xff]
        %v3920 = vld [vmem:[%s4 + $0x250] sm:$0xff]
        %v3921 = vld [vmem:[%s4 + $0x258] sm:$0xff]
        %v3922 = vld [vmem:[%s4 + $0x260] sm:$0xff]
        %v3923 = vld [vmem:[%s4 + $0x268] sm:$0xff]
        %v3924 = vld [vmem:[%s4 + $0x270] sm:$0xff]
        %v3925 = vld [vmem:[%s4 + $0x278] sm:$0xff]
        %3927 = vset.pattern.permute.xlu0 0
        %3928 = vperm.xlu0 %3927, %v3910
        %v3929 = vpop.permute.xlu0 %3928
        %3932 = vset.pattern.permute.xlu0 0
        %3933 = vperm.xlu0 %3932, %v3911
        %v3934 = vpop.permute.xlu0 %3933
        %3937 = vset.pattern.permute.xlu0 0
        %3938 = vperm.xlu0 %3937, %v3912
        %v3939 = vpop.permute.xlu0 %3938
        %3942 = vset.pattern.permute.xlu0 0
        %3943 = vperm.xlu0 %3942, %v3913
        %v3944 = vpop.permute.xlu0 %3943
        %3947 = vset.pattern.permute.xlu0 0
        %3948 = vperm.xlu0 %3947, %v3914
        %v3949 = vpop.permute.xlu0 %3948
        %3952 = vset.pattern.permute.xlu0 0
        %3953 = vperm.xlu0 %3952, %v3915
        %v3954 = vpop.permute.xlu0 %3953
        %3957 = vset.pattern.permute.xlu0 0
        %3958 = vperm.xlu0 %3957, %v3916
        %v3959 = vpop.permute.xlu0 %3958
        %3962 = vset.pattern.permute.xlu0 0
        %3963 = vperm.xlu0 %3962, %v3917
        %v3964 = vpop.permute.xlu0 %3963
        %3967 = vset.pattern.permute.xlu0 0
        %3968 = vperm.xlu0 %3967, %v3918
        %v3969 = vpop.permute.xlu0 %3968
        %3972 = vset.pattern.permute.xlu0 0
        %3973 = vperm.xlu0 %3972, %v3919
        %v3974 = vpop.permute.xlu0 %3973
        %3977 = vset.pattern.permute.xlu0 0
        %3978 = vperm.xlu0 %3977, %v3920
        %v3979 = vpop.permute.xlu0 %3978
        %3982 = vset.pattern.permute.xlu0 0
        %3983 = vperm.xlu0 %3982, %v3921
        %v3984 = vpop.permute.xlu0 %3983
        %3987 = vset.pattern.permute.xlu0 0
        %3988 = vperm.xlu0 %3987, %v3922
        %v3989 = vpop.permute.xlu0 %3988
        %3992 = vset.pattern.permute.xlu0 0
        %3993 = vperm.xlu0 %3992, %v3923
        %v3994 = vpop.permute.xlu0 %3993
        %3997 = vset.pattern.permute.xlu0 0
        %3998 = vperm.xlu0 %3997, %v3924
        %v3999 = vpop.permute.xlu0 %3998
        %4002 = vset.pattern.permute.xlu0 0
        %4003 = vperm.xlu0 %4002, %v3925
        %v4004 = vpop.permute.xlu0 %4003
        %v4022 = vunpack.c.l.b16 %v3894
        %v4023 = vunpack.c.l.b16 %v3895
        %v4024 = vunpack.c.l.b16 %v3896
        %v4025 = vunpack.c.l.b16 %v3897
        %v4026 = vunpack.c.l.b16 %v3898
        %v4027 = vunpack.c.l.b16 %v3899
        %v4028 = vunpack.c.l.b16 %v3900
        %v4029 = vunpack.c.l.b16 %v3901
        %v4030 = vunpack.c.l.b16 %v3902
        %v4031 = vunpack.c.l.b16 %v3903
        %v4032 = vunpack.c.l.b16 %v3904
        %v4033 = vunpack.c.l.b16 %v3905
        %v4034 = vunpack.c.l.b16 %v3906
        %v4035 = vunpack.c.l.b16 %v3907
        %v4036 = vunpack.c.l.b16 %v3908
        %v4037 = vunpack.c.l.b16 %v3909
        %v4038 = vpack.c.b16 %v4023, %v4022
        %v4039 = vpack.c.b16 %v4025, %v4024
        %v4040 = vpack.c.b16 %v4027, %v4026
        %v4041 = vpack.c.b16 %v4029, %v4028
        %v4042 = vpack.c.b16 %v4031, %v4030
        %v4043 = vpack.c.b16 %v4033, %v4032
        %v4044 = vpack.c.b16 %v4035, %v4034
        %v4045 = vpack.c.b16 %v4037, %v4036
        %v4047 = vsel %vm575, %v4038, 0
        %v4050 = vsel %vm575, %v4039, 0
        %v4053 = vsel %vm575, %v4040, 0
        %v4056 = vsel %vm575, %v4041, 0
        %v4059 = vsel %vm575, %v4042, 0
        %v4062 = vsel %vm575, %v4043, 0
        %v4065 = vsel %vm575, %v4044, 0
        %v4068 = vsel %vm575, %v4045, 0
        %4070 = vmatprep.subr.bf16.mxu0 0
        %4071 = vmatpush1.bf16.msra.mxu0 0
        %4072 = vmatprep.subr.bf16.mxu0 0
        %4073 = vmatpush1.bf16.msra.mxu0 0
        %4074 = vmatprep.subr.bf16.mxu0 0
        %4075 = vmatpush1.bf16.msra.mxu0 0
        %4076 = vmatprep.subr.bf16.mxu0 0
        %4077 = vmatpush1.bf16.msra.mxu0 0
        %4078 = vmatprep.subr.bf16.mxu0 0
        %4079 = vmatpush1.bf16.msra.mxu0 0
        %4080 = vmatprep.subr.bf16.mxu0 0
        %4081 = vmatpush1.bf16.msra.mxu0 0
        %4082 = vmatprep.subr.bf16.mxu0 0
        %4083 = vmatpush1.bf16.msra.mxu0 %v418
        %4084 = vmatprep.subr.bf16.mxu0 0
        %4085 = vmatpush1.bf16.msra.mxu0 %v417
        %4086 = vmatprep.subr.bf16.mxu0 0
        %4087 = vmatpush2.bf16.msra.mxu0 0
        %4088 = vmatprep.subr.bf16.mxu0 0
        %4089 = vmatpush2.bf16.msra.mxu0 0
        %4090 = vmatprep.subr.bf16.mxu0 0
        %4091 = vmatpush2.bf16.msra.mxu0 0
        %4092 = vmatprep.subr.bf16.mxu0 0
        %4093 = vmatpush2.bf16.msra.mxu0 0
        %4094 = vmatprep.subr.bf16.mxu0 0
        %4095 = vmatpush2.bf16.msra.mxu0 0
        %4096 = vmatprep.subr.bf16.mxu0 0
        %4097 = vmatpush2.bf16.msra.mxu0 0
        %4098 = vmatprep.subr.bf16.mxu0 0
        %4099 = vmatpush2.bf16.msra.mxu0 0
        %4100 = vmatprep.subr.bf16.mxu0 0
        %4101 = vmatpush2.bf16.msra.mxu0 0
        %4102 = vmatprep.mubr.bf16.mxu0 0
        %4103 = vmatmul.mubr.bf16.gmra.mxu0 %v4047
        %v4104 = vpop.f32.mrf.mxu0
        %v4105 = vadd.f32 %v3929, %v4104
        %v4106 = vpop.f32.mrf.mxu0
        %v4107 = vpop.f32.mrf.mxu0
        %v4108 = vadd.f32 %v3934, %v4107
        %v4109 = vpop.f32.mrf.mxu0
        %4110 = vmatprep.mubr.bf16.mxu0 0
        %4111 = vmatmul.mubr.bf16.gmra.mxu0 %v4050
        %v4112 = vpop.f32.mrf.mxu0
        %v4113 = vadd.f32 %v3939, %v4112
        %v4114 = vpop.f32.mrf.mxu0
        %v4115 = vpop.f32.mrf.mxu0
        %v4116 = vadd.f32 %v3944, %v4115
        %v4117 = vpop.f32.mrf.mxu0
        %4118 = vmatprep.mubr.bf16.mxu0 0
        %4119 = vmatmul.mubr.bf16.gmra.mxu0 %v4053
        %v4120 = vpop.f32.mrf.mxu0
        %v4121 = vadd.f32 %v3949, %v4120
        %v4122 = vpop.f32.mrf.mxu0
        %v4123 = vpop.f32.mrf.mxu0
        %v4124 = vadd.f32 %v3954, %v4123
        %v4125 = vpop.f32.mrf.mxu0
        %4126 = vmatprep.mubr.bf16.mxu0 0
        %4127 = vmatmul.mubr.bf16.gmra.mxu0 %v4056
        %v4128 = vpop.f32.mrf.mxu0
        %v4129 = vadd.f32 %v3959, %v4128
        %v4130 = vpop.f32.mrf.mxu0
        %v4131 = vpop.f32.mrf.mxu0
        %v4132 = vadd.f32 %v3964, %v4131
        %v4133 = vpop.f32.mrf.mxu0
        %4134 = vmatprep.mubr.bf16.mxu0 0
        %4135 = vmatmul.mubr.bf16.gmra.mxu0 %v4059
        %v4136 = vpop.f32.mrf.mxu0
        %v4137 = vadd.f32 %v3969, %v4136
        %v4138 = vpop.f32.mrf.mxu0
        %v4139 = vpop.f32.mrf.mxu0
        %v4140 = vadd.f32 %v3974, %v4139
        %v4141 = vpop.f32.mrf.mxu0
        %4142 = vmatprep.mubr.bf16.mxu0 0
        %4143 = vmatmul.mubr.bf16.gmra.mxu0 %v4062
        %v4144 = vpop.f32.mrf.mxu0
        %v4145 = vadd.f32 %v3979, %v4144
        %v4146 = vpop.f32.mrf.mxu0
        %v4147 = vpop.f32.mrf.mxu0
        %v4148 = vadd.f32 %v3984, %v4147
        %v4149 = vpop.f32.mrf.mxu0
        %4150 = vmatprep.mubr.bf16.mxu0 0
        %4151 = vmatmul.mubr.bf16.gmra.mxu0 %v4065
        %v4152 = vpop.f32.mrf.mxu0
        %v4153 = vadd.f32 %v3989, %v4152
        %v4154 = vpop.f32.mrf.mxu0
        %v4155 = vpop.f32.mrf.mxu0
        %v4156 = vadd.f32 %v3994, %v4155
        %v4157 = vpop.f32.mrf.mxu0
        %4158 = vmatprep.mubr.bf16.mxu0 0
        %4159 = vmatmul.mubr.bf16.gmra.mxu0 %v4068
        %v4160 = vpop.f32.mrf.mxu0
        %v4161 = vadd.f32 %v3999, %v4160
        %v4162 = vpop.f32.mrf.mxu0
        %v4163 = vpop.f32.mrf.mxu0
        %v4164 = vadd.f32 %v4004, %v4163
        %v4165 = vpop.f32.mrf.mxu0
        %4166 = vdwg.mxu0
        %4167 = vst.msk [vmem:[%s3010 + $0x200] sm:$0xff] %vm697, %v4105
        %4168 = vst.msk [vmem:[%s3010 + $0x208] sm:$0xff] %vm697, %v4108
        %4169 = vst.msk [vmem:[%s3010 + $0x210] sm:$0xff] %vm697, %v4113
        %4170 = vst.msk [vmem:[%s3010 + $0x218] sm:$0xff] %vm697, %v4116
        %4171 = vst.msk [vmem:[%s3010 + $0x220] sm:$0xff] %vm697, %v4121
        %4172 = vst.msk [vmem:[%s3010 + $0x228] sm:$0xff] %vm697, %v4124
        %4173 = vst.msk [vmem:[%s3010 + $0x230] sm:$0xff] %vm697, %v4129
        %4174 = vst.msk [vmem:[%s3010 + $0x238] sm:$0xff] %vm697, %v4132
        %4175 = vst.msk [vmem:[%s3010 + $0x240] sm:$0xff] %vm697, %v4137
        %4176 = vst.msk [vmem:[%s3010 + $0x248] sm:$0xff] %vm697, %v4140
        %4177 = vst.msk [vmem:[%s3010 + $0x250] sm:$0xff] %vm697, %v4145
        %4178 = vst.msk [vmem:[%s3010 + $0x258] sm:$0xff] %vm697, %v4148
        %4179 = vst.msk [vmem:[%s3010 + $0x260] sm:$0xff] %vm697, %v4153
        %4180 = vst.msk [vmem:[%s3010 + $0x268] sm:$0xff] %vm697, %v4156
        %4181 = vst.msk [vmem:[%s3010 + $0x270] sm:$0xff] %vm697, %v4161
        %4182 = vst.msk [vmem:[%s3010 + $0x278] sm:$0xff] %vm697, %v4164
        %v4183 = vld [vmem:[%s2 + $0x140] sm:$0xf]
        %v4184 = vld [vmem:[%s2 + $0x144] sm:$0xf]
        %v4185 = vld [vmem:[%s2 + $0x148] sm:$0xf]
        %v4186 = vld [vmem:[%s2 + $0x14c] sm:$0xf]
        %v4187 = vld [vmem:[%s2 + $0x150] sm:$0xf]
        %v4188 = vld [vmem:[%s2 + $0x154] sm:$0xf]
        %v4189 = vld [vmem:[%s2 + $0x158] sm:$0xf]
        %v4190 = vld [vmem:[%s2 + $0x15c] sm:$0xf]
        %v4191 = vld [vmem:[%s2 + $0x160] sm:$0xf]
        %v4192 = vld [vmem:[%s2 + $0x164] sm:$0xf]
        %v4193 = vld [vmem:[%s2 + $0x168] sm:$0xf]
        %v4194 = vld [vmem:[%s2 + $0x16c] sm:$0xf]
        %v4195 = vld [vmem:[%s2 + $0x170] sm:$0xf]
        %v4196 = vld [vmem:[%s2 + $0x174] sm:$0xf]
        %v4197 = vld [vmem:[%s2 + $0x178] sm:$0xf]
        %v4198 = vld [vmem:[%s2 + $0x17c] sm:$0xf]
        %v4199 = vld [vmem:[%s4 + $0x280] sm:$0xff]
        %v4200 = vld [vmem:[%s4 + $0x288] sm:$0xff]
        %v4201 = vld [vmem:[%s4 + $0x290] sm:$0xff]
        %v4202 = vld [vmem:[%s4 + $0x298] sm:$0xff]
        %v4203 = vld [vmem:[%s4 + $0x2a0] sm:$0xff]
        %v4204 = vld [vmem:[%s4 + $0x2a8] sm:$0xff]
        %v4205 = vld [vmem:[%s4 + $0x2b0] sm:$0xff]
        %v4206 = vld [vmem:[%s4 + $0x2b8] sm:$0xff]
        %v4207 = vld [vmem:[%s4 + $0x2c0] sm:$0xff]
        %v4208 = vld [vmem:[%s4 + $0x2c8] sm:$0xff]
        %v4209 = vld [vmem:[%s4 + $0x2d0] sm:$0xff]
        %v4210 = vld [vmem:[%s4 + $0x2d8] sm:$0xff]
        %v4211 = vld [vmem:[%s4 + $0x2e0] sm:$0xff]
        %v4212 = vld [vmem:[%s4 + $0x2e8] sm:$0xff]
        %v4213 = vld [vmem:[%s4 + $0x2f0] sm:$0xff]
        %v4214 = vld [vmem:[%s4 + $0x2f8] sm:$0xff]
        %4216 = vset.pattern.permute.xlu0 0
        %4217 = vperm.xlu0 %4216, %v4199
        %v4218 = vpop.permute.xlu0 %4217
        %4221 = vset.pattern.permute.xlu0 0
        %4222 = vperm.xlu0 %4221, %v4200
        %v4223 = vpop.permute.xlu0 %4222
        %4226 = vset.pattern.permute.xlu0 0
        %4227 = vperm.xlu0 %4226, %v4201
        %v4228 = vpop.permute.xlu0 %4227
        %4231 = vset.pattern.permute.xlu0 0
        %4232 = vperm.xlu0 %4231, %v4202
        %v4233 = vpop.permute.xlu0 %4232
        %4236 = vset.pattern.permute.xlu0 0
        %4237 = vperm.xlu0 %4236, %v4203
        %v4238 = vpop.permute.xlu0 %4237
        %4241 = vset.pattern.permute.xlu0 0
        %4242 = vperm.xlu0 %4241, %v4204
        %v4243 = vpop.permute.xlu0 %4242
        %4246 = vset.pattern.permute.xlu0 0
        %4247 = vperm.xlu0 %4246, %v4205
        %v4248 = vpop.permute.xlu0 %4247
        %4251 = vset.pattern.permute.xlu0 0
        %4252 = vperm.xlu0 %4251, %v4206
        %v4253 = vpop.permute.xlu0 %4252
        %4256 = vset.pattern.permute.xlu0 0
        %4257 = vperm.xlu0 %4256, %v4207
        %v4258 = vpop.permute.xlu0 %4257
        %4261 = vset.pattern.permute.xlu0 0
        %4262 = vperm.xlu0 %4261, %v4208
        %v4263 = vpop.permute.xlu0 %4262
        %4266 = vset.pattern.permute.xlu0 0
        %4267 = vperm.xlu0 %4266, %v4209
        %v4268 = vpop.permute.xlu0 %4267
        %4271 = vset.pattern.permute.xlu0 0
        %4272 = vperm.xlu0 %4271, %v4210
        %v4273 = vpop.permute.xlu0 %4272
        %4276 = vset.pattern.permute.xlu0 0
        %4277 = vperm.xlu0 %4276, %v4211
        %v4278 = vpop.permute.xlu0 %4277
        %4281 = vset.pattern.permute.xlu0 0
        %4282 = vperm.xlu0 %4281, %v4212
        %v4283 = vpop.permute.xlu0 %4282
        %4286 = vset.pattern.permute.xlu0 0
        %4287 = vperm.xlu0 %4286, %v4213
        %v4288 = vpop.permute.xlu0 %4287
        %4291 = vset.pattern.permute.xlu0 0
        %4292 = vperm.xlu0 %4291, %v4214
        %v4293 = vpop.permute.xlu0 %4292
        %v4311 = vunpack.c.l.b16 %v4183
        %v4312 = vunpack.c.l.b16 %v4184
        %v4313 = vunpack.c.l.b16 %v4185
        %v4314 = vunpack.c.l.b16 %v4186
        %v4315 = vunpack.c.l.b16 %v4187
        %v4316 = vunpack.c.l.b16 %v4188
        %v4317 = vunpack.c.l.b16 %v4189
        %v4318 = vunpack.c.l.b16 %v4190
        %v4319 = vunpack.c.l.b16 %v4191
        %v4320 = vunpack.c.l.b16 %v4192
        %v4321 = vunpack.c.l.b16 %v4193
        %v4322 = vunpack.c.l.b16 %v4194
        %v4323 = vunpack.c.l.b16 %v4195
        %v4324 = vunpack.c.l.b16 %v4196
        %v4325 = vunpack.c.l.b16 %v4197
        %v4326 = vunpack.c.l.b16 %v4198
        %v4327 = vpack.c.b16 %v4312, %v4311
        %v4328 = vpack.c.b16 %v4314, %v4313
        %v4329 = vpack.c.b16 %v4316, %v4315
        %v4330 = vpack.c.b16 %v4318, %v4317
        %v4331 = vpack.c.b16 %v4320, %v4319
        %v4332 = vpack.c.b16 %v4322, %v4321
        %v4333 = vpack.c.b16 %v4324, %v4323
        %v4334 = vpack.c.b16 %v4326, %v4325
        %v4336 = vsel %vm575, %v4327, 0
        %v4339 = vsel %vm575, %v4328, 0
        %v4342 = vsel %vm575, %v4329, 0
        %v4345 = vsel %vm575, %v4330, 0
        %v4348 = vsel %vm575, %v4331, 0
        %v4351 = vsel %vm575, %v4332, 0
        %v4354 = vsel %vm575, %v4333, 0
        %v4357 = vsel %vm575, %v4334, 0
        %4359 = vmatprep.subr.bf16.mxu0 0
        %4360 = vmatpush1.bf16.msra.mxu0 0
        %4361 = vmatprep.subr.bf16.mxu0 0
        %4362 = vmatpush1.bf16.msra.mxu0 0
        %4363 = vmatprep.subr.bf16.mxu0 0
        %4364 = vmatpush1.bf16.msra.mxu0 0
        %4365 = vmatprep.subr.bf16.mxu0 0
        %4366 = vmatpush1.bf16.msra.mxu0 0
        %4367 = vmatprep.subr.bf16.mxu0 0
        %4368 = vmatpush1.bf16.msra.mxu0 0
        %4369 = vmatprep.subr.bf16.mxu0 0
        %4370 = vmatpush1.bf16.msra.mxu0 0
        %4371 = vmatprep.subr.bf16.mxu0 0
        %4372 = vmatpush1.bf16.msra.mxu0 %v418
        %4373 = vmatprep.subr.bf16.mxu0 0
        %4374 = vmatpush1.bf16.msra.mxu0 %v417
        %4375 = vmatprep.subr.bf16.mxu0 0
        %4376 = vmatpush2.bf16.msra.mxu0 0
        %4377 = vmatprep.subr.bf16.mxu0 0
        %4378 = vmatpush2.bf16.msra.mxu0 0
        %4379 = vmatprep.subr.bf16.mxu0 0
        %4380 = vmatpush2.bf16.msra.mxu0 0
        %4381 = vmatprep.subr.bf16.mxu0 0
        %4382 = vmatpush2.bf16.msra.mxu0 0
        %4383 = vmatprep.subr.bf16.mxu0 0
        %4384 = vmatpush2.bf16.msra.mxu0 0
        %4385 = vmatprep.subr.bf16.mxu0 0
        %4386 = vmatpush2.bf16.msra.mxu0 0
        %4387 = vmatprep.subr.bf16.mxu0 0
        %4388 = vmatpush2.bf16.msra.mxu0 0
        %4389 = vmatprep.subr.bf16.mxu0 0
        %4390 = vmatpush2.bf16.msra.mxu0 0
        %4391 = vmatprep.mubr.bf16.mxu0 0
        %4392 = vmatmul.mubr.bf16.gmra.mxu0 %v4336
        %v4393 = vpop.f32.mrf.mxu0
        %v4394 = vadd.f32 %v4218, %v4393
        %v4395 = vpop.f32.mrf.mxu0
        %v4396 = vpop.f32.mrf.mxu0
        %v4397 = vadd.f32 %v4223, %v4396
        %v4398 = vpop.f32.mrf.mxu0
        %4399 = vmatprep.mubr.bf16.mxu0 0
        %4400 = vmatmul.mubr.bf16.gmra.mxu0 %v4339
        %v4401 = vpop.f32.mrf.mxu0
        %v4402 = vadd.f32 %v4228, %v4401
        %v4403 = vpop.f32.mrf.mxu0
        %v4404 = vpop.f32.mrf.mxu0
        %v4405 = vadd.f32 %v4233, %v4404
        %v4406 = vpop.f32.mrf.mxu0
        %4407 = vmatprep.mubr.bf16.mxu0 0
        %4408 = vmatmul.mubr.bf16.gmra.mxu0 %v4342
        %v4409 = vpop.f32.mrf.mxu0
        %v4410 = vadd.f32 %v4238, %v4409
        %v4411 = vpop.f32.mrf.mxu0
        %v4412 = vpop.f32.mrf.mxu0
        %v4413 = vadd.f32 %v4243, %v4412
        %v4414 = vpop.f32.mrf.mxu0
        %4415 = vmatprep.mubr.bf16.mxu0 0
        %4416 = vmatmul.mubr.bf16.gmra.mxu0 %v4345
        %v4417 = vpop.f32.mrf.mxu0
        %v4418 = vadd.f32 %v4248, %v4417
        %v4419 = vpop.f32.mrf.mxu0
        %v4420 = vpop.f32.mrf.mxu0
        %v4421 = vadd.f32 %v4253, %v4420
        %v4422 = vpop.f32.mrf.mxu0
        %4423 = vmatprep.mubr.bf16.mxu0 0
        %4424 = vmatmul.mubr.bf16.gmra.mxu0 %v4348
        %v4425 = vpop.f32.mrf.mxu0
        %v4426 = vadd.f32 %v4258, %v4425
        %v4427 = vpop.f32.mrf.mxu0
        %v4428 = vpop.f32.mrf.mxu0
        %v4429 = vadd.f32 %v4263, %v4428
        %v4430 = vpop.f32.mrf.mxu0
        %4431 = vmatprep.mubr.bf16.mxu0 0
        %4432 = vmatmul.mubr.bf16.gmra.mxu0 %v4351
        %v4433 = vpop.f32.mrf.mxu0
        %v4434 = vadd.f32 %v4268, %v4433
        %v4435 = vpop.f32.mrf.mxu0
        %v4436 = vpop.f32.mrf.mxu0
        %v4437 = vadd.f32 %v4273, %v4436
        %v4438 = vpop.f32.mrf.mxu0
        %4439 = vmatprep.mubr.bf16.mxu0 0
        %4440 = vmatmul.mubr.bf16.gmra.mxu0 %v4354
        %v4441 = vpop.f32.mrf.mxu0
        %v4442 = vadd.f32 %v4278, %v4441
        %v4443 = vpop.f32.mrf.mxu0
        %v4444 = vpop.f32.mrf.mxu0
        %v4445 = vadd.f32 %v4283, %v4444
        %v4446 = vpop.f32.mrf.mxu0
        %4447 = vmatprep.mubr.bf16.mxu0 0
        %4448 = vmatmul.mubr.bf16.gmra.mxu0 %v4357
        %v4449 = vpop.f32.mrf.mxu0
        %v4450 = vadd.f32 %v4288, %v4449
        %v4451 = vpop.f32.mrf.mxu0
        %v4452 = vpop.f32.mrf.mxu0
        %v4453 = vadd.f32 %v4293, %v4452
        %v4454 = vpop.f32.mrf.mxu0
        %4455 = vdwg.mxu0
        %4456 = vst.msk [vmem:[%s3010 + $0x280] sm:$0xff] %vm697, %v4394
        %4457 = vst.msk [vmem:[%s3010 + $0x288] sm:$0xff] %vm697, %v4397
        %4458 = vst.msk [vmem:[%s3010 + $0x290] sm:$0xff] %vm697, %v4402
        %4459 = vst.msk [vmem:[%s3010 + $0x298] sm:$0xff] %vm697, %v4405
        %4460 = vst.msk [vmem:[%s3010 + $0x2a0] sm:$0xff] %vm697, %v4410
        %4461 = vst.msk [vmem:[%s3010 + $0x2a8] sm:$0xff] %vm697, %v4413
        %4462 = vst.msk [vmem:[%s3010 + $0x2b0] sm:$0xff] %vm697, %v4418
        %4463 = vst.msk [vmem:[%s3010 + $0x2b8] sm:$0xff] %vm697, %v4421
        %4464 = vst.msk [vmem:[%s3010 + $0x2c0] sm:$0xff] %vm697, %v4426
        %4465 = vst.msk [vmem:[%s3010 + $0x2c8] sm:$0xff] %vm697, %v4429
        %4466 = vst.msk [vmem:[%s3010 + $0x2d0] sm:$0xff] %vm697, %v4434
        %4467 = vst.msk [vmem:[%s3010 + $0x2d8] sm:$0xff] %vm697, %v4437
        %4468 = vst.msk [vmem:[%s3010 + $0x2e0] sm:$0xff] %vm697, %v4442
        %4469 = vst.msk [vmem:[%s3010 + $0x2e8] sm:$0xff] %vm697, %v4445
        %4470 = vst.msk [vmem:[%s3010 + $0x2f0] sm:$0xff] %vm697, %v4450
        %4471 = vst.msk [vmem:[%s3010 + $0x2f8] sm:$0xff] %vm697, %v4453
        %v4472 = vld [vmem:[%s2 + $0x180] sm:$0xf]
        %v4473 = vld [vmem:[%s2 + $0x184] sm:$0xf]
        %v4474 = vld [vmem:[%s2 + $0x188] sm:$0xf]
        %v4475 = vld [vmem:[%s2 + $0x18c] sm:$0xf]
        %v4476 = vld [vmem:[%s2 + $0x190] sm:$0xf]
        %v4477 = vld [vmem:[%s2 + $0x194] sm:$0xf]
        %v4478 = vld [vmem:[%s2 + $0x198] sm:$0xf]
        %v4479 = vld [vmem:[%s2 + $0x19c] sm:$0xf]
        %v4480 = vld [vmem:[%s2 + $0x1a0] sm:$0xf]
        %v4481 = vld [vmem:[%s2 + $0x1a4] sm:$0xf]
        %v4482 = vld [vmem:[%s2 + $0x1a8] sm:$0xf]
        %v4483 = vld [vmem:[%s2 + $0x1ac] sm:$0xf]
        %v4484 = vld [vmem:[%s2 + $0x1b0] sm:$0xf]
        %v4485 = vld [vmem:[%s2 + $0x1b4] sm:$0xf]
        %v4486 = vld [vmem:[%s2 + $0x1b8] sm:$0xf]
        %v4487 = vld [vmem:[%s2 + $0x1bc] sm:$0xf]
        %v4488 = vld [vmem:[%s4 + $0x300] sm:$0xff]
        %v4489 = vld [vmem:[%s4 + $0x308] sm:$0xff]
        %v4490 = vld [vmem:[%s4 + $0x310] sm:$0xff]
        %v4491 = vld [vmem:[%s4 + $0x318] sm:$0xff]
        %v4492 = vld [vmem:[%s4 + $0x320] sm:$0xff]
        %v4493 = vld [vmem:[%s4 + $0x328] sm:$0xff]
        %v4494 = vld [vmem:[%s4 + $0x330] sm:$0xff]
        %v4495 = vld [vmem:[%s4 + $0x338] sm:$0xff]
        %v4496 = vld [vmem:[%s4 + $0x340] sm:$0xff]
        %v4497 = vld [vmem:[%s4 + $0x348] sm:$0xff]
        %v4498 = vld [vmem:[%s4 + $0x350] sm:$0xff]
        %v4499 = vld [vmem:[%s4 + $0x358] sm:$0xff]
        %v4500 = vld [vmem:[%s4 + $0x360] sm:$0xff]
        %v4501 = vld [vmem:[%s4 + $0x368] sm:$0xff]
        %v4502 = vld [vmem:[%s4 + $0x370] sm:$0xff]
        %v4503 = vld [vmem:[%s4 + $0x378] sm:$0xff]
        %4505 = vset.pattern.permute.xlu0 0
        %4506 = vperm.xlu0 %4505, %v4488
        %v4507 = vpop.permute.xlu0 %4506
        %4510 = vset.pattern.permute.xlu0 0
        %4511 = vperm.xlu0 %4510, %v4489
        %v4512 = vpop.permute.xlu0 %4511
        %4515 = vset.pattern.permute.xlu0 0
        %4516 = vperm.xlu0 %4515, %v4490
        %v4517 = vpop.permute.xlu0 %4516
        %4520 = vset.pattern.permute.xlu0 0
        %4521 = vperm.xlu0 %4520, %v4491
        %v4522 = vpop.permute.xlu0 %4521
        %4525 = vset.pattern.permute.xlu0 0
        %4526 = vperm.xlu0 %4525, %v4492
        %v4527 = vpop.permute.xlu0 %4526
        %4530 = vset.pattern.permute.xlu0 0
        %4531 = vperm.xlu0 %4530, %v4493
        %v4532 = vpop.permute.xlu0 %4531
        %4535 = vset.pattern.permute.xlu0 0
        %4536 = vperm.xlu0 %4535, %v4494
        %v4537 = vpop.permute.xlu0 %4536
        %4540 = vset.pattern.permute.xlu0 0
        %4541 = vperm.xlu0 %4540, %v4495
        %v4542 = vpop.permute.xlu0 %4541
        %4545 = vset.pattern.permute.xlu0 0
        %4546 = vperm.xlu0 %4545, %v4496
        %v4547 = vpop.permute.xlu0 %4546
        %4550 = vset.pattern.permute.xlu0 0
        %4551 = vperm.xlu0 %4550, %v4497
        %v4552 = vpop.permute.xlu0 %4551
        %4555 = vset.pattern.permute.xlu0 0
        %4556 = vperm.xlu0 %4555, %v4498
        %v4557 = vpop.permute.xlu0 %4556
        %4560 = vset.pattern.permute.xlu0 0
        %4561 = vperm.xlu0 %4560, %v4499
        %v4562 = vpop.permute.xlu0 %4561
        %4565 = vset.pattern.permute.xlu0 0
        %4566 = vperm.xlu0 %4565, %v4500
        %v4567 = vpop.permute.xlu0 %4566
        %4570 = vset.pattern.permute.xlu0 0
        %4571 = vperm.xlu0 %4570, %v4501
        %v4572 = vpop.permute.xlu0 %4571
        %4575 = vset.pattern.permute.xlu0 0
        %4576 = vperm.xlu0 %4575, %v4502
        %v4577 = vpop.permute.xlu0 %4576
        %4580 = vset.pattern.permute.xlu0 0
        %4581 = vperm.xlu0 %4580, %v4503
        %v4582 = vpop.permute.xlu0 %4581
        %v4600 = vunpack.c.l.b16 %v4472
        %v4601 = vunpack.c.l.b16 %v4473
        %v4602 = vunpack.c.l.b16 %v4474
        %v4603 = vunpack.c.l.b16 %v4475
        %v4604 = vunpack.c.l.b16 %v4476
        %v4605 = vunpack.c.l.b16 %v4477
        %v4606 = vunpack.c.l.b16 %v4478
        %v4607 = vunpack.c.l.b16 %v4479
        %v4608 = vunpack.c.l.b16 %v4480
        %v4609 = vunpack.c.l.b16 %v4481
        %v4610 = vunpack.c.l.b16 %v4482
        %v4611 = vunpack.c.l.b16 %v4483
        %v4612 = vunpack.c.l.b16 %v4484
        %v4613 = vunpack.c.l.b16 %v4485
        %v4614 = vunpack.c.l.b16 %v4486
        %v4615 = vunpack.c.l.b16 %v4487
        %v4616 = vpack.c.b16 %v4601, %v4600
        %v4617 = vpack.c.b16 %v4603, %v4602
        %v4618 = vpack.c.b16 %v4605, %v4604
        %v4619 = vpack.c.b16 %v4607, %v4606
        %v4620 = vpack.c.b16 %v4609, %v4608
        %v4621 = vpack.c.b16 %v4611, %v4610
        %v4622 = vpack.c.b16 %v4613, %v4612
        %v4623 = vpack.c.b16 %v4615, %v4614
        %v4625 = vsel %vm575, %v4616, 0
        %v4628 = vsel %vm575, %v4617, 0
        %v4631 = vsel %vm575, %v4618, 0
        %v4634 = vsel %vm575, %v4619, 0
        %v4637 = vsel %vm575, %v4620, 0
        %v4640 = vsel %vm575, %v4621, 0
        %v4643 = vsel %vm575, %v4622, 0
        %v4646 = vsel %vm575, %v4623, 0
        %4648 = vmatprep.subr.bf16.mxu0 0
        %4649 = vmatpush1.bf16.msra.mxu0 0
        %4650 = vmatprep.subr.bf16.mxu0 0
        %4651 = vmatpush1.bf16.msra.mxu0 0
        %4652 = vmatprep.subr.bf16.mxu0 0
        %4653 = vmatpush1.bf16.msra.mxu0 0
        %4654 = vmatprep.subr.bf16.mxu0 0
        %4655 = vmatpush1.bf16.msra.mxu0 0
        %4656 = vmatprep.subr.bf16.mxu0 0
        %4657 = vmatpush1.bf16.msra.mxu0 0
        %4658 = vmatprep.subr.bf16.mxu0 0
        %4659 = vmatpush1.bf16.msra.mxu0 0
        %4660 = vmatprep.subr.bf16.mxu0 0
        %4661 = vmatpush1.bf16.msra.mxu0 %v418
        %4662 = vmatprep.subr.bf16.mxu0 0
        %4663 = vmatpush1.bf16.msra.mxu0 %v417
        %4664 = vmatprep.subr.bf16.mxu0 0
        %4665 = vmatpush2.bf16.msra.mxu0 0
        %4666 = vmatprep.subr.bf16.mxu0 0
        %4667 = vmatpush2.bf16.msra.mxu0 0
        %4668 = vmatprep.subr.bf16.mxu0 0
        %4669 = vmatpush2.bf16.msra.mxu0 0
        %4670 = vmatprep.subr.bf16.mxu0 0
        %4671 = vmatpush2.bf16.msra.mxu0 0
        %4672 = vmatprep.subr.bf16.mxu0 0
        %4673 = vmatpush2.bf16.msra.mxu0 0
        %4674 = vmatprep.subr.bf16.mxu0 0
        %4675 = vmatpush2.bf16.msra.mxu0 0
        %4676 = vmatprep.subr.bf16.mxu0 0
        %4677 = vmatpush2.bf16.msra.mxu0 0
        %4678 = vmatprep.subr.bf16.mxu0 0
        %4679 = vmatpush2.bf16.msra.mxu0 0
        %4680 = vmatprep.mubr.bf16.mxu0 0
        %4681 = vmatmul.mubr.bf16.gmra.mxu0 %v4625
        %v4682 = vpop.f32.mrf.mxu0
        %v4683 = vadd.f32 %v4507, %v4682
        %v4684 = vpop.f32.mrf.mxu0
        %v4685 = vpop.f32.mrf.mxu0
        %v4686 = vadd.f32 %v4512, %v4685
        %v4687 = vpop.f32.mrf.mxu0
        %4688 = vmatprep.mubr.bf16.mxu0 0
        %4689 = vmatmul.mubr.bf16.gmra.mxu0 %v4628
        %v4690 = vpop.f32.mrf.mxu0
        %v4691 = vadd.f32 %v4517, %v4690
        %v4692 = vpop.f32.mrf.mxu0
        %v4693 = vpop.f32.mrf.mxu0
        %v4694 = vadd.f32 %v4522, %v4693
        %v4695 = vpop.f32.mrf.mxu0
        %4696 = vmatprep.mubr.bf16.mxu0 0
        %4697 = vmatmul.mubr.bf16.gmra.mxu0 %v4631
        %v4698 = vpop.f32.mrf.mxu0
        %v4699 = vadd.f32 %v4527, %v4698
        %v4700 = vpop.f32.mrf.mxu0
        %v4701 = vpop.f32.mrf.mxu0
        %v4702 = vadd.f32 %v4532, %v4701
        %v4703 = vpop.f32.mrf.mxu0
        %4704 = vmatprep.mubr.bf16.mxu0 0
        %4705 = vmatmul.mubr.bf16.gmra.mxu0 %v4634
        %v4706 = vpop.f32.mrf.mxu0
        %v4707 = vadd.f32 %v4537, %v4706
        %v4708 = vpop.f32.mrf.mxu0
        %v4709 = vpop.f32.mrf.mxu0
        %v4710 = vadd.f32 %v4542, %v4709
        %v4711 = vpop.f32.mrf.mxu0
        %4712 = vmatprep.mubr.bf16.mxu0 0
        %4713 = vmatmul.mubr.bf16.gmra.mxu0 %v4637
        %v4714 = vpop.f32.mrf.mxu0
        %v4715 = vadd.f32 %v4547, %v4714
        %v4716 = vpop.f32.mrf.mxu0
        %v4717 = vpop.f32.mrf.mxu0
        %v4718 = vadd.f32 %v4552, %v4717
        %v4719 = vpop.f32.mrf.mxu0
        %4720 = vmatprep.mubr.bf16.mxu0 0
        %4721 = vmatmul.mubr.bf16.gmra.mxu0 %v4640
        %v4722 = vpop.f32.mrf.mxu0
        %v4723 = vadd.f32 %v4557, %v4722
        %v4724 = vpop.f32.mrf.mxu0
        %v4725 = vpop.f32.mrf.mxu0
        %v4726 = vadd.f32 %v4562, %v4725
        %v4727 = vpop.f32.mrf.mxu0
        %4728 = vmatprep.mubr.bf16.mxu0 0
        %4729 = vmatmul.mubr.bf16.gmra.mxu0 %v4643
        %v4730 = vpop.f32.mrf.mxu0
        %v4731 = vadd.f32 %v4567, %v4730
        %v4732 = vpop.f32.mrf.mxu0
        %v4733 = vpop.f32.mrf.mxu0
        %v4734 = vadd.f32 %v4572, %v4733
        %v4735 = vpop.f32.mrf.mxu0
        %4736 = vmatprep.mubr.bf16.mxu0 0
        %4737 = vmatmul.mubr.bf16.gmra.mxu0 %v4646
        %v4738 = vpop.f32.mrf.mxu0
        %v4739 = vadd.f32 %v4577, %v4738
        %v4740 = vpop.f32.mrf.mxu0
        %v4741 = vpop.f32.mrf.mxu0
        %v4742 = vadd.f32 %v4582, %v4741
        %v4743 = vpop.f32.mrf.mxu0
        %4744 = vdwg.mxu0
        %4745 = vst.msk [vmem:[%s3010 + $0x300] sm:$0xff] %vm697, %v4683
        %4746 = vst.msk [vmem:[%s3010 + $0x308] sm:$0xff] %vm697, %v4686
        %4747 = vst.msk [vmem:[%s3010 + $0x310] sm:$0xff] %vm697, %v4691
        %4748 = vst.msk [vmem:[%s3010 + $0x318] sm:$0xff] %vm697, %v4694
        %4749 = vst.msk [vmem:[%s3010 + $0x320] sm:$0xff] %vm697, %v4699
        %4750 = vst.msk [vmem:[%s3010 + $0x328] sm:$0xff] %vm697, %v4702
        %4751 = vst.msk [vmem:[%s3010 + $0x330] sm:$0xff] %vm697, %v4707
        %4752 = vst.msk [vmem:[%s3010 + $0x338] sm:$0xff] %vm697, %v4710
        %4753 = vst.msk [vmem:[%s3010 + $0x340] sm:$0xff] %vm697, %v4715
        %4754 = vst.msk [vmem:[%s3010 + $0x348] sm:$0xff] %vm697, %v4718
        %4755 = vst.msk [vmem:[%s3010 + $0x350] sm:$0xff] %vm697, %v4723
        %4756 = vst.msk [vmem:[%s3010 + $0x358] sm:$0xff] %vm697, %v4726
        %4757 = vst.msk [vmem:[%s3010 + $0x360] sm:$0xff] %vm697, %v4731
        %4758 = vst.msk [vmem:[%s3010 + $0x368] sm:$0xff] %vm697, %v4734
        %4759 = vst.msk [vmem:[%s3010 + $0x370] sm:$0xff] %vm697, %v4739
        %4760 = vst.msk [vmem:[%s3010 + $0x378] sm:$0xff] %vm697, %v4742
        %v4761 = vld [vmem:[%s2 + $0x1c0] sm:$0xf]
        %v4762 = vld [vmem:[%s2 + $0x1c4] sm:$0xf]
        %v4763 = vld [vmem:[%s2 + $0x1c8] sm:$0xf]
        %v4764 = vld [vmem:[%s2 + $0x1cc] sm:$0xf]
        %v4765 = vld [vmem:[%s2 + $0x1d0] sm:$0xf]
        %v4766 = vld [vmem:[%s2 + $0x1d4] sm:$0xf]
        %v4767 = vld [vmem:[%s2 + $0x1d8] sm:$0xf]
        %v4768 = vld [vmem:[%s2 + $0x1dc] sm:$0xf]
        %v4769 = vld [vmem:[%s2 + $0x1e0] sm:$0xf]
        %v4770 = vld [vmem:[%s2 + $0x1e4] sm:$0xf]
        %v4771 = vld [vmem:[%s2 + $0x1e8] sm:$0xf]
        %v4772 = vld [vmem:[%s2 + $0x1ec] sm:$0xf]
        %v4773 = vld [vmem:[%s2 + $0x1f0] sm:$0xf]
        %v4774 = vld [vmem:[%s2 + $0x1f4] sm:$0xf]
        %v4775 = vld [vmem:[%s2 + $0x1f8] sm:$0xf]
        %v4776 = vld [vmem:[%s2 + $0x1fc] sm:$0xf]
        %v4777 = vld [vmem:[%s4 + $0x380] sm:$0xff]
        %v4778 = vld [vmem:[%s4 + $0x388] sm:$0xff]
        %v4779 = vld [vmem:[%s4 + $0x390] sm:$0xff]
        %v4780 = vld [vmem:[%s4 + $0x398] sm:$0xff]
        %v4781 = vld [vmem:[%s4 + $0x3a0] sm:$0xff]
        %v4782 = vld [vmem:[%s4 + $0x3a8] sm:$0xff]
        %v4783 = vld [vmem:[%s4 + $0x3b0] sm:$0xff]
        %v4784 = vld [vmem:[%s4 + $0x3b8] sm:$0xff]
        %v4785 = vld [vmem:[%s4 + $0x3c0] sm:$0xff]
        %v4786 = vld [vmem:[%s4 + $0x3c8] sm:$0xff]
        %v4787 = vld [vmem:[%s4 + $0x3d0] sm:$0xff]
        %v4788 = vld [vmem:[%s4 + $0x3d8] sm:$0xff]
        %v4789 = vld [vmem:[%s4 + $0x3e0] sm:$0xff]
        %v4790 = vld [vmem:[%s4 + $0x3e8] sm:$0xff]
        %v4791 = vld [vmem:[%s4 + $0x3f0] sm:$0xff]
        %v4792 = vld [vmem:[%s4 + $0x3f8] sm:$0xff]
        %4794 = vset.pattern.permute.xlu0 0
        %4795 = vperm.xlu0 %4794, %v4777
        %v4796 = vpop.permute.xlu0 %4795
        %4799 = vset.pattern.permute.xlu0 0
        %4800 = vperm.xlu0 %4799, %v4778
        %v4801 = vpop.permute.xlu0 %4800
        %4804 = vset.pattern.permute.xlu0 0
        %4805 = vperm.xlu0 %4804, %v4779
        %v4806 = vpop.permute.xlu0 %4805
        %4809 = vset.pattern.permute.xlu0 0
        %4810 = vperm.xlu0 %4809, %v4780
        %v4811 = vpop.permute.xlu0 %4810
        %4814 = vset.pattern.permute.xlu0 0
        %4815 = vperm.xlu0 %4814, %v4781
        %v4816 = vpop.permute.xlu0 %4815
        %4819 = vset.pattern.permute.xlu0 0
        %4820 = vperm.xlu0 %4819, %v4782
        %v4821 = vpop.permute.xlu0 %4820
        %4824 = vset.pattern.permute.xlu0 0
        %4825 = vperm.xlu0 %4824, %v4783
        %v4826 = vpop.permute.xlu0 %4825
        %4829 = vset.pattern.permute.xlu0 0
        %4830 = vperm.xlu0 %4829, %v4784
        %v4831 = vpop.permute.xlu0 %4830
        %4834 = vset.pattern.permute.xlu0 0
        %4835 = vperm.xlu0 %4834, %v4785
        %v4836 = vpop.permute.xlu0 %4835
        %4839 = vset.pattern.permute.xlu0 0
        %4840 = vperm.xlu0 %4839, %v4786
        %v4841 = vpop.permute.xlu0 %4840
        %4844 = vset.pattern.permute.xlu0 0
        %4845 = vperm.xlu0 %4844, %v4787
        %v4846 = vpop.permute.xlu0 %4845
        %4849 = vset.pattern.permute.xlu0 0
        %4850 = vperm.xlu0 %4849, %v4788
        %v4851 = vpop.permute.xlu0 %4850
        %4854 = vset.pattern.permute.xlu0 0
        %4855 = vperm.xlu0 %4854, %v4789
        %v4856 = vpop.permute.xlu0 %4855
        %4859 = vset.pattern.permute.xlu0 0
        %4860 = vperm.xlu0 %4859, %v4790
        %v4861 = vpop.permute.xlu0 %4860
        %4864 = vset.pattern.permute.xlu0 0
        %4865 = vperm.xlu0 %4864, %v4791
        %v4866 = vpop.permute.xlu0 %4865
        %4869 = vset.pattern.permute.xlu0 0
        %4870 = vperm.xlu0 %4869, %v4792
        %v4871 = vpop.permute.xlu0 %4870
        %v4889 = vunpack.c.l.b16 %v4761
        %v4890 = vunpack.c.l.b16 %v4762
        %v4891 = vunpack.c.l.b16 %v4763
        %v4892 = vunpack.c.l.b16 %v4764
        %v4893 = vunpack.c.l.b16 %v4765
        %v4894 = vunpack.c.l.b16 %v4766
        %v4895 = vunpack.c.l.b16 %v4767
        %v4896 = vunpack.c.l.b16 %v4768
        %v4897 = vunpack.c.l.b16 %v4769
        %v4898 = vunpack.c.l.b16 %v4770
        %v4899 = vunpack.c.l.b16 %v4771
        %v4900 = vunpack.c.l.b16 %v4772
        %v4901 = vunpack.c.l.b16 %v4773
        %v4902 = vunpack.c.l.b16 %v4774
        %v4903 = vunpack.c.l.b16 %v4775
        %v4904 = vunpack.c.l.b16 %v4776
        %v4905 = vpack.c.b16 %v4890, %v4889
        %v4906 = vpack.c.b16 %v4892, %v4891
        %v4907 = vpack.c.b16 %v4894, %v4893
        %v4908 = vpack.c.b16 %v4896, %v4895
        %v4909 = vpack.c.b16 %v4898, %v4897
        %v4910 = vpack.c.b16 %v4900, %v4899
        %v4911 = vpack.c.b16 %v4902, %v4901
        %v4912 = vpack.c.b16 %v4904, %v4903
        %v4914 = vsel %vm575, %v4905, 0
        %v4917 = vsel %vm575, %v4906, 0
        %v4920 = vsel %vm575, %v4907, 0
        %v4923 = vsel %vm575, %v4908, 0
        %v4926 = vsel %vm575, %v4909, 0
        %v4929 = vsel %vm575, %v4910, 0
        %v4932 = vsel %vm575, %v4911, 0
        %v4935 = vsel %vm575, %v4912, 0
        %4937 = vmatprep.subr.bf16.mxu0 0
        %4938 = vmatpush1.bf16.msra.mxu0 0
        %4939 = vmatprep.subr.bf16.mxu0 0
        %4940 = vmatpush1.bf16.msra.mxu0 0
        %4941 = vmatprep.subr.bf16.mxu0 0
        %4942 = vmatpush1.bf16.msra.mxu0 0
        %4943 = vmatprep.subr.bf16.mxu0 0
        %4944 = vmatpush1.bf16.msra.mxu0 0
        %4945 = vmatprep.subr.bf16.mxu0 0
        %4946 = vmatpush1.bf16.msra.mxu0 0
        %4947 = vmatprep.subr.bf16.mxu0 0
        %4948 = vmatpush1.bf16.msra.mxu0 0
        %4949 = vmatprep.subr.bf16.mxu0 0
        %4950 = vmatpush1.bf16.msra.mxu0 %v418
        %4951 = vmatprep.subr.bf16.mxu0 0
        %4952 = vmatpush1.bf16.msra.mxu0 %v417
        %4953 = vmatprep.subr.bf16.mxu0 0
        %4954 = vmatpush2.bf16.msra.mxu0 0
        %4955 = vmatprep.subr.bf16.mxu0 0
        %4956 = vmatpush2.bf16.msra.mxu0 0
        %4957 = vmatprep.subr.bf16.mxu0 0
        %4958 = vmatpush2.bf16.msra.mxu0 0
        %4959 = vmatprep.subr.bf16.mxu0 0
        %4960 = vmatpush2.bf16.msra.mxu0 0
        %4961 = vmatprep.subr.bf16.mxu0 0
        %4962 = vmatpush2.bf16.msra.mxu0 0
        %4963 = vmatprep.subr.bf16.mxu0 0
        %4964 = vmatpush2.bf16.msra.mxu0 0
        %4965 = vmatprep.subr.bf16.mxu0 0
        %4966 = vmatpush2.bf16.msra.mxu0 0
        %4967 = vmatprep.subr.bf16.mxu0 0
        %4968 = vmatpush2.bf16.msra.mxu0 0
        %4969 = vmatprep.mubr.bf16.mxu0 0
        %4970 = vmatmul.mubr.bf16.gmra.mxu0 %v4914
        %v4971 = vpop.f32.mrf.mxu0
        %v4972 = vadd.f32 %v4796, %v4971
        %v4973 = vpop.f32.mrf.mxu0
        %v4974 = vpop.f32.mrf.mxu0
        %v4975 = vadd.f32 %v4801, %v4974
        %v4976 = vpop.f32.mrf.mxu0
        %4977 = vmatprep.mubr.bf16.mxu0 0
        %4978 = vmatmul.mubr.bf16.gmra.mxu0 %v4917
        %v4979 = vpop.f32.mrf.mxu0
        %v4980 = vadd.f32 %v4806, %v4979
        %v4981 = vpop.f32.mrf.mxu0
        %v4982 = vpop.f32.mrf.mxu0
        %v4983 = vadd.f32 %v4811, %v4982
        %v4984 = vpop.f32.mrf.mxu0
        %4985 = vmatprep.mubr.bf16.mxu0 0
        %4986 = vmatmul.mubr.bf16.gmra.mxu0 %v4920
        %v4987 = vpop.f32.mrf.mxu0
        %v4988 = vadd.f32 %v4816, %v4987
        %v4989 = vpop.f32.mrf.mxu0
        %v4990 = vpop.f32.mrf.mxu0
        %v4991 = vadd.f32 %v4821, %v4990
        %v4992 = vpop.f32.mrf.mxu0
        %4993 = vmatprep.mubr.bf16.mxu0 0
        %4994 = vmatmul.mubr.bf16.gmra.mxu0 %v4923
        %v4995 = vpop.f32.mrf.mxu0
        %v4996 = vadd.f32 %v4826, %v4995
        %v4997 = vpop.f32.mrf.mxu0
        %v4998 = vpop.f32.mrf.mxu0
        %v4999 = vadd.f32 %v4831, %v4998
        %v5000 = vpop.f32.mrf.mxu0
        %5001 = vmatprep.mubr.bf16.mxu0 0
        %5002 = vmatmul.mubr.bf16.gmra.mxu0 %v4926
        %v5003 = vpop.f32.mrf.mxu0
        %v5004 = vadd.f32 %v4836, %v5003
        %v5005 = vpop.f32.mrf.mxu0
        %v5006 = vpop.f32.mrf.mxu0
        %v5007 = vadd.f32 %v4841, %v5006
        %v5008 = vpop.f32.mrf.mxu0
        %5009 = vmatprep.mubr.bf16.mxu0 0
        %5010 = vmatmul.mubr.bf16.gmra.mxu0 %v4929
        %v5011 = vpop.f32.mrf.mxu0
        %v5012 = vadd.f32 %v4846, %v5011
        %v5013 = vpop.f32.mrf.mxu0
        %v5014 = vpop.f32.mrf.mxu0
        %v5015 = vadd.f32 %v4851, %v5014
        %v5016 = vpop.f32.mrf.mxu0
        %5017 = vmatprep.mubr.bf16.mxu0 0
        %5018 = vmatmul.mubr.bf16.gmra.mxu0 %v4932
        %v5019 = vpop.f32.mrf.mxu0
        %v5020 = vadd.f32 %v4856, %v5019
        %v5021 = vpop.f32.mrf.mxu0
        %v5022 = vpop.f32.mrf.mxu0
        %v5023 = vadd.f32 %v4861, %v5022
        %v5024 = vpop.f32.mrf.mxu0
        %5025 = vmatprep.mubr.bf16.mxu0 0
        %5026 = vmatmul.mubr.bf16.gmra.mxu0 %v4935
        %v5027 = vpop.f32.mrf.mxu0
        %v5028 = vadd.f32 %v4866, %v5027
        %v5029 = vpop.f32.mrf.mxu0
        %v5030 = vpop.f32.mrf.mxu0
        %v5031 = vadd.f32 %v4871, %v5030
        %v5032 = vpop.f32.mrf.mxu0
        %5033 = vdwg.mxu0
        %5034 = vst.msk [vmem:[%s3010 + $0x380] sm:$0xff] %vm697, %v4972
        %5035 = vst.msk [vmem:[%s3010 + $0x388] sm:$0xff] %vm697, %v4975
        %5036 = vst.msk [vmem:[%s3010 + $0x390] sm:$0xff] %vm697, %v4980
        %5037 = vst.msk [vmem:[%s3010 + $0x398] sm:$0xff] %vm697, %v4983
        %5038 = vst.msk [vmem:[%s3010 + $0x3a0] sm:$0xff] %vm697, %v4988
        %5039 = vst.msk [vmem:[%s3010 + $0x3a8] sm:$0xff] %vm697, %v4991
        %5040 = vst.msk [vmem:[%s3010 + $0x3b0] sm:$0xff] %vm697, %v4996
        %5041 = vst.msk [vmem:[%s3010 + $0x3b8] sm:$0xff] %vm697, %v4999
        %5042 = vst.msk [vmem:[%s3010 + $0x3c0] sm:$0xff] %vm697, %v5004
        %5043 = vst.msk [vmem:[%s3010 + $0x3c8] sm:$0xff] %vm697, %v5007
        %5044 = vst.msk [vmem:[%s3010 + $0x3d0] sm:$0xff] %vm697, %v5012
        %5045 = vst.msk [vmem:[%s3010 + $0x3d8] sm:$0xff] %vm697, %v5015
        %5046 = vst.msk [vmem:[%s3010 + $0x3e0] sm:$0xff] %vm697, %v5020
        %5047 = vst.msk [vmem:[%s3010 + $0x3e8] sm:$0xff] %vm697, %v5023
        %5048 = vst.msk [vmem:[%s3010 + $0x3f0] sm:$0xff] %vm697, %v5028
        %5049 = vst.msk [vmem:[%s3010 + $0x3f8] sm:$0xff] %vm697, %v5031
        %v5050 = vld [vmem:[%s2] sm:$0xf]
        %v5051 = vld [vmem:[%s2 + $0x4] sm:$0xf]
        %v5052 = vld [vmem:[%s2 + $0x8] sm:$0xf]
        %v5053 = vld [vmem:[%s2 + $0xc] sm:$0xf]
        %v5054 = vld [vmem:[%s2 + $0x10] sm:$0xf]
        %v5055 = vld [vmem:[%s2 + $0x14] sm:$0xf]
        %v5056 = vld [vmem:[%s2 + $0x18] sm:$0xf]
        %v5057 = vld [vmem:[%s2 + $0x1c] sm:$0xf]
        %v5058 = vld [vmem:[%s2 + $0x20] sm:$0xf]
        %v5059 = vld [vmem:[%s2 + $0x24] sm:$0xf]
        %v5060 = vld [vmem:[%s2 + $0x28] sm:$0xf]
        %v5061 = vld [vmem:[%s2 + $0x2c] sm:$0xf]
        %v5062 = vld [vmem:[%s2 + $0x30] sm:$0xf]
        %v5063 = vld [vmem:[%s2 + $0x34] sm:$0xf]
        %v5064 = vld [vmem:[%s2 + $0x38] sm:$0xf]
        %v5065 = vld [vmem:[%s2 + $0x3c] sm:$0xf]
        %v5066 = vld [vmem:[%s4] sm:$0xff]
        %v5067 = vld [vmem:[%s4 + $0x8] sm:$0xff]
        %v5068 = vld [vmem:[%s4 + $0x10] sm:$0xff]
        %v5069 = vld [vmem:[%s4 + $0x18] sm:$0xff]
        %v5070 = vld [vmem:[%s4 + $0x20] sm:$0xff]
        %v5071 = vld [vmem:[%s4 + $0x28] sm:$0xff]
        %v5072 = vld [vmem:[%s4 + $0x30] sm:$0xff]
        %v5073 = vld [vmem:[%s4 + $0x38] sm:$0xff]
        %v5074 = vld [vmem:[%s4 + $0x40] sm:$0xff]
        %v5075 = vld [vmem:[%s4 + $0x48] sm:$0xff]
        %v5076 = vld [vmem:[%s4 + $0x50] sm:$0xff]
        %v5077 = vld [vmem:[%s4 + $0x58] sm:$0xff]
        %v5078 = vld [vmem:[%s4 + $0x60] sm:$0xff]
        %v5079 = vld [vmem:[%s4 + $0x68] sm:$0xff]
        %v5080 = vld [vmem:[%s4 + $0x70] sm:$0xff]
        %v5081 = vld [vmem:[%s4 + $0x78] sm:$0xff]
        %5083 = vset.pattern.permute.xlu0 0
        %5084 = vperm.xlu0 %5083, %v5066
        %v5085 = vpop.permute.xlu0 %5084
        %5088 = vset.pattern.permute.xlu0 0
        %5089 = vperm.xlu0 %5088, %v5067
        %v5090 = vpop.permute.xlu0 %5089
        %5093 = vset.pattern.permute.xlu0 0
        %5094 = vperm.xlu0 %5093, %v5068
        %v5095 = vpop.permute.xlu0 %5094
        %5098 = vset.pattern.permute.xlu0 0
        %5099 = vperm.xlu0 %5098, %v5069
        %v5100 = vpop.permute.xlu0 %5099
        %5103 = vset.pattern.permute.xlu0 0
        %5104 = vperm.xlu0 %5103, %v5070
        %v5105 = vpop.permute.xlu0 %5104
        %5108 = vset.pattern.permute.xlu0 0
        %5109 = vperm.xlu0 %5108, %v5071
        %v5110 = vpop.permute.xlu0 %5109
        %5113 = vset.pattern.permute.xlu0 0
        %5114 = vperm.xlu0 %5113, %v5072
        %v5115 = vpop.permute.xlu0 %5114
        %5118 = vset.pattern.permute.xlu0 0
        %5119 = vperm.xlu0 %5118, %v5073
        %v5120 = vpop.permute.xlu0 %5119
        %5123 = vset.pattern.permute.xlu0 0
        %5124 = vperm.xlu0 %5123, %v5074
        %v5125 = vpop.permute.xlu0 %5124
        %5128 = vset.pattern.permute.xlu0 0
        %5129 = vperm.xlu0 %5128, %v5075
        %v5130 = vpop.permute.xlu0 %5129
        %5133 = vset.pattern.permute.xlu0 0
        %5134 = vperm.xlu0 %5133, %v5076
        %v5135 = vpop.permute.xlu0 %5134
        %5138 = vset.pattern.permute.xlu0 0
        %5139 = vperm.xlu0 %5138, %v5077
        %v5140 = vpop.permute.xlu0 %5139
        %5143 = vset.pattern.permute.xlu0 0
        %5144 = vperm.xlu0 %5143, %v5078
        %v5145 = vpop.permute.xlu0 %5144
        %5148 = vset.pattern.permute.xlu0 0
        %5149 = vperm.xlu0 %5148, %v5079
        %v5150 = vpop.permute.xlu0 %5149
        %5153 = vset.pattern.permute.xlu0 0
        %5154 = vperm.xlu0 %5153, %v5080
        %v5155 = vpop.permute.xlu0 %5154
        %5158 = vset.pattern.permute.xlu0 0
        %5159 = vperm.xlu0 %5158, %v5081
        %v5160 = vpop.permute.xlu0 %5159
        %v5178 = vunpack.c.l.b16 %v5050
        %v5179 = vunpack.c.l.b16 %v5051
        %v5180 = vunpack.c.l.b16 %v5052
        %v5181 = vunpack.c.l.b16 %v5053
        %v5182 = vunpack.c.l.b16 %v5054
        %v5183 = vunpack.c.l.b16 %v5055
        %v5184 = vunpack.c.l.b16 %v5056
        %v5185 = vunpack.c.l.b16 %v5057
        %v5186 = vunpack.c.l.b16 %v5058
        %v5187 = vunpack.c.l.b16 %v5059
        %v5188 = vunpack.c.l.b16 %v5060
        %v5189 = vunpack.c.l.b16 %v5061
        %v5190 = vunpack.c.l.b16 %v5062
        %v5191 = vunpack.c.l.b16 %v5063
        %v5192 = vunpack.c.l.b16 %v5064
        %v5193 = vunpack.c.l.b16 %v5065
        %v5194 = vpack.c.b16 %v5179, %v5178
        %v5195 = vpack.c.b16 %v5181, %v5180
        %v5196 = vpack.c.b16 %v5183, %v5182
        %v5197 = vpack.c.b16 %v5185, %v5184
        %v5198 = vpack.c.b16 %v5187, %v5186
        %v5199 = vpack.c.b16 %v5189, %v5188
        %v5200 = vpack.c.b16 %v5191, %v5190
        %v5201 = vpack.c.b16 %v5193, %v5192
        %v5203 = vsel %vm575, %v5194, 0
        %v5206 = vsel %vm575, %v5195, 0
        %v5209 = vsel %vm575, %v5196, 0
        %v5212 = vsel %vm575, %v5197, 0
        %v5215 = vsel %vm575, %v5198, 0
        %v5218 = vsel %vm575, %v5199, 0
        %v5221 = vsel %vm575, %v5200, 0
        %v5224 = vsel %vm575, %v5201, 0
        %5226 = vmatprep.subr.bf16.mxu0 0
        %5227 = vmatpush1.bf16.msra.mxu0 0
        %5228 = vmatprep.subr.bf16.mxu0 0
        %5229 = vmatpush1.bf16.msra.mxu0 0
        %5230 = vmatprep.subr.bf16.mxu0 0
        %5231 = vmatpush1.bf16.msra.mxu0 0
        %5232 = vmatprep.subr.bf16.mxu0 0
        %5233 = vmatpush1.bf16.msra.mxu0 0
        %5234 = vmatprep.subr.bf16.mxu0 0
        %5235 = vmatpush1.bf16.msra.mxu0 0
        %5236 = vmatprep.subr.bf16.mxu0 0
        %5237 = vmatpush1.bf16.msra.mxu0 0
        %5238 = vmatprep.subr.bf16.mxu0 0
        %5239 = vmatpush1.bf16.msra.mxu0 %v420
        %5240 = vmatprep.subr.bf16.mxu0 0
        %5241 = vmatpush1.bf16.msra.mxu0 %v419
        %5242 = vmatprep.subr.bf16.mxu0 0
        %5243 = vmatpush2.bf16.msra.mxu0 0
        %5244 = vmatprep.subr.bf16.mxu0 0
        %5245 = vmatpush2.bf16.msra.mxu0 0
        %5246 = vmatprep.subr.bf16.mxu0 0
        %5247 = vmatpush2.bf16.msra.mxu0 0
        %5248 = vmatprep.subr.bf16.mxu0 0
        %5249 = vmatpush2.bf16.msra.mxu0 0
        %5250 = vmatprep.subr.bf16.mxu0 0
        %5251 = vmatpush2.bf16.msra.mxu0 0
        %5252 = vmatprep.subr.bf16.mxu0 0
        %5253 = vmatpush2.bf16.msra.mxu0 0
        %5254 = vmatprep.subr.bf16.mxu0 0
        %5255 = vmatpush2.bf16.msra.mxu0 0
        %5256 = vmatprep.subr.bf16.mxu0 0
        %5257 = vmatpush2.bf16.msra.mxu0 0
        %5258 = vmatprep.mubr.bf16.mxu0 0
        %5259 = vmatmul.mubr.bf16.gmra.mxu0 %v5203
        %v5260 = vpop.f32.mrf.mxu0
        %v5261 = vadd.f32 %v5085, %v5260
        %v5262 = vpop.f32.mrf.mxu0
        %v5263 = vpop.f32.mrf.mxu0
        %v5264 = vadd.f32 %v5090, %v5263
        %v5265 = vpop.f32.mrf.mxu0
        %5266 = vmatprep.mubr.bf16.mxu0 0
        %5267 = vmatmul.mubr.bf16.gmra.mxu0 %v5206
        %v5268 = vpop.f32.mrf.mxu0
        %v5269 = vadd.f32 %v5095, %v5268
        %v5270 = vpop.f32.mrf.mxu0
        %v5271 = vpop.f32.mrf.mxu0
        %v5272 = vadd.f32 %v5100, %v5271
        %v5273 = vpop.f32.mrf.mxu0
        %5274 = vmatprep.mubr.bf16.mxu0 0
        %5275 = vmatmul.mubr.bf16.gmra.mxu0 %v5209
        %v5276 = vpop.f32.mrf.mxu0
        %v5277 = vadd.f32 %v5105, %v5276
        %v5278 = vpop.f32.mrf.mxu0
        %v5279 = vpop.f32.mrf.mxu0
        %v5280 = vadd.f32 %v5110, %v5279
        %v5281 = vpop.f32.mrf.mxu0
        %5282 = vmatprep.mubr.bf16.mxu0 0
        %5283 = vmatmul.mubr.bf16.gmra.mxu0 %v5212
        %v5284 = vpop.f32.mrf.mxu0
        %v5285 = vadd.f32 %v5115, %v5284
        %v5286 = vpop.f32.mrf.mxu0
        %v5287 = vpop.f32.mrf.mxu0
        %v5288 = vadd.f32 %v5120, %v5287
        %v5289 = vpop.f32.mrf.mxu0
        %5290 = vmatprep.mubr.bf16.mxu0 0
        %5291 = vmatmul.mubr.bf16.gmra.mxu0 %v5215
        %v5292 = vpop.f32.mrf.mxu0
        %v5293 = vadd.f32 %v5125, %v5292
        %v5294 = vpop.f32.mrf.mxu0
        %v5295 = vpop.f32.mrf.mxu0
        %v5296 = vadd.f32 %v5130, %v5295
        %v5297 = vpop.f32.mrf.mxu0
        %5298 = vmatprep.mubr.bf16.mxu0 0
        %5299 = vmatmul.mubr.bf16.gmra.mxu0 %v5218
        %v5300 = vpop.f32.mrf.mxu0
        %v5301 = vadd.f32 %v5135, %v5300
        %v5302 = vpop.f32.mrf.mxu0
        %v5303 = vpop.f32.mrf.mxu0
        %v5304 = vadd.f32 %v5140, %v5303
        %v5305 = vpop.f32.mrf.mxu0
        %5306 = vmatprep.mubr.bf16.mxu0 0
        %5307 = vmatmul.mubr.bf16.gmra.mxu0 %v5221
        %v5308 = vpop.f32.mrf.mxu0
        %v5309 = vadd.f32 %v5145, %v5308
        %v5310 = vpop.f32.mrf.mxu0
        %v5311 = vpop.f32.mrf.mxu0
        %v5312 = vadd.f32 %v5150, %v5311
        %v5313 = vpop.f32.mrf.mxu0
        %5314 = vmatprep.mubr.bf16.mxu0 0
        %5315 = vmatmul.mubr.bf16.gmra.mxu0 %v5224
        %v5316 = vpop.f32.mrf.mxu0
        %v5317 = vadd.f32 %v5155, %v5316
        %v5318 = vpop.f32.mrf.mxu0
        %v5319 = vpop.f32.mrf.mxu0
        %v5320 = vadd.f32 %v5160, %v5319
        %v5321 = vpop.f32.mrf.mxu0
        %5322 = vdwg.mxu0
        %s5323 = scalar_lea.vmem %s252, 2048
        %5324 = vst.msk [vmem:[%s5323] sm:$0xff] %vm697, %v5261
        %5325 = vst.msk [vmem:[%s5323 + $0x8] sm:$0xff] %vm697, %v5264
        %5326 = vst.msk [vmem:[%s5323 + $0x10] sm:$0xff] %vm697, %v5269
        %5327 = vst.msk [vmem:[%s5323 + $0x18] sm:$0xff] %vm697, %v5272
        %5328 = vst.msk [vmem:[%s5323 + $0x20] sm:$0xff] %vm697, %v5277
        %5329 = vst.msk [vmem:[%s5323 + $0x28] sm:$0xff] %vm697, %v5280
        %5330 = vst.msk [vmem:[%s5323 + $0x30] sm:$0xff] %vm697, %v5285
        %5331 = vst.msk [vmem:[%s5323 + $0x38] sm:$0xff] %vm697, %v5288
        %5332 = vst.msk [vmem:[%s5323 + $0x40] sm:$0xff] %vm697, %v5293
        %5333 = vst.msk [vmem:[%s5323 + $0x48] sm:$0xff] %vm697, %v5296
        %5334 = vst.msk [vmem:[%s5323 + $0x50] sm:$0xff] %vm697, %v5301
        %5335 = vst.msk [vmem:[%s5323 + $0x58] sm:$0xff] %vm697, %v5304
        %5336 = vst.msk [vmem:[%s5323 + $0x60] sm:$0xff] %vm697, %v5309
        %5337 = vst.msk [vmem:[%s5323 + $0x68] sm:$0xff] %vm697, %v5312
        %5338 = vst.msk [vmem:[%s5323 + $0x70] sm:$0xff] %vm697, %v5317
        %5339 = vst.msk [vmem:[%s5323 + $0x78] sm:$0xff] %vm697, %v5320
        %v5340 = vld [vmem:[%s2 + $0x40] sm:$0xf]
        %v5341 = vld [vmem:[%s2 + $0x44] sm:$0xf]
        %v5342 = vld [vmem:[%s2 + $0x48] sm:$0xf]
        %v5343 = vld [vmem:[%s2 + $0x4c] sm:$0xf]
        %v5344 = vld [vmem:[%s2 + $0x50] sm:$0xf]
        %v5345 = vld [vmem:[%s2 + $0x54] sm:$0xf]
        %v5346 = vld [vmem:[%s2 + $0x58] sm:$0xf]
        %v5347 = vld [vmem:[%s2 + $0x5c] sm:$0xf]
        %v5348 = vld [vmem:[%s2 + $0x60] sm:$0xf]
        %v5349 = vld [vmem:[%s2 + $0x64] sm:$0xf]
        %v5350 = vld [vmem:[%s2 + $0x68] sm:$0xf]
        %v5351 = vld [vmem:[%s2 + $0x6c] sm:$0xf]
        %v5352 = vld [vmem:[%s2 + $0x70] sm:$0xf]
        %v5353 = vld [vmem:[%s2 + $0x74] sm:$0xf]
        %v5354 = vld [vmem:[%s2 + $0x78] sm:$0xf]
        %v5355 = vld [vmem:[%s2 + $0x7c] sm:$0xf]
        %v5356 = vld [vmem:[%s4 + $0x80] sm:$0xff]
        %v5357 = vld [vmem:[%s4 + $0x88] sm:$0xff]
        %v5358 = vld [vmem:[%s4 + $0x90] sm:$0xff]
        %v5359 = vld [vmem:[%s4 + $0x98] sm:$0xff]
        %v5360 = vld [vmem:[%s4 + $0xa0] sm:$0xff]
        %v5361 = vld [vmem:[%s4 + $0xa8] sm:$0xff]
        %v5362 = vld [vmem:[%s4 + $0xb0] sm:$0xff]
        %v5363 = vld [vmem:[%s4 + $0xb8] sm:$0xff]
        %v5364 = vld [vmem:[%s4 + $0xc0] sm:$0xff]
        %v5365 = vld [vmem:[%s4 + $0xc8] sm:$0xff]
        %v5366 = vld [vmem:[%s4 + $0xd0] sm:$0xff]
        %v5367 = vld [vmem:[%s4 + $0xd8] sm:$0xff]
        %v5368 = vld [vmem:[%s4 + $0xe0] sm:$0xff]
        %v5369 = vld [vmem:[%s4 + $0xe8] sm:$0xff]
        %v5370 = vld [vmem:[%s4 + $0xf0] sm:$0xff]
        %v5371 = vld [vmem:[%s4 + $0xf8] sm:$0xff]
        %5373 = vset.pattern.permute.xlu0 0
        %5374 = vperm.xlu0 %5373, %v5356
        %v5375 = vpop.permute.xlu0 %5374
        %5378 = vset.pattern.permute.xlu0 0
        %5379 = vperm.xlu0 %5378, %v5357
        %v5380 = vpop.permute.xlu0 %5379
        %5383 = vset.pattern.permute.xlu0 0
        %5384 = vperm.xlu0 %5383, %v5358
        %v5385 = vpop.permute.xlu0 %5384
        %5388 = vset.pattern.permute.xlu0 0
        %5389 = vperm.xlu0 %5388, %v5359
        %v5390 = vpop.permute.xlu0 %5389
        %5393 = vset.pattern.permute.xlu0 0
        %5394 = vperm.xlu0 %5393, %v5360
        %v5395 = vpop.permute.xlu0 %5394
        %5398 = vset.pattern.permute.xlu0 0
        %5399 = vperm.xlu0 %5398, %v5361
        %v5400 = vpop.permute.xlu0 %5399
        %5403 = vset.pattern.permute.xlu0 0
        %5404 = vperm.xlu0 %5403, %v5362
        %v5405 = vpop.permute.xlu0 %5404
        %5408 = vset.pattern.permute.xlu0 0
        %5409 = vperm.xlu0 %5408, %v5363
        %v5410 = vpop.permute.xlu0 %5409
        %5413 = vset.pattern.permute.xlu0 0
        %5414 = vperm.xlu0 %5413, %v5364
        %v5415 = vpop.permute.xlu0 %5414
        %5418 = vset.pattern.permute.xlu0 0
        %5419 = vperm.xlu0 %5418, %v5365
        %v5420 = vpop.permute.xlu0 %5419
        %5423 = vset.pattern.permute.xlu0 0
        %5424 = vperm.xlu0 %5423, %v5366
        %v5425 = vpop.permute.xlu0 %5424
        %5428 = vset.pattern.permute.xlu0 0
        %5429 = vperm.xlu0 %5428, %v5367
        %v5430 = vpop.permute.xlu0 %5429
        %5433 = vset.pattern.permute.xlu0 0
        %5434 = vperm.xlu0 %5433, %v5368
        %v5435 = vpop.permute.xlu0 %5434
        %5438 = vset.pattern.permute.xlu0 0
        %5439 = vperm.xlu0 %5438, %v5369
        %v5440 = vpop.permute.xlu0 %5439
        %5443 = vset.pattern.permute.xlu0 0
        %5444 = vperm.xlu0 %5443, %v5370
        %v5445 = vpop.permute.xlu0 %5444
        %5448 = vset.pattern.permute.xlu0 0
        %5449 = vperm.xlu0 %5448, %v5371
        %v5450 = vpop.permute.xlu0 %5449
        %v5468 = vunpack.c.l.b16 %v5340
        %v5469 = vunpack.c.l.b16 %v5341
        %v5470 = vunpack.c.l.b16 %v5342
        %v5471 = vunpack.c.l.b16 %v5343
        %v5472 = vunpack.c.l.b16 %v5344
        %v5473 = vunpack.c.l.b16 %v5345
        %v5474 = vunpack.c.l.b16 %v5346
        %v5475 = vunpack.c.l.b16 %v5347
        %v5476 = vunpack.c.l.b16 %v5348
        %v5477 = vunpack.c.l.b16 %v5349
        %v5478 = vunpack.c.l.b16 %v5350
        %v5479 = vunpack.c.l.b16 %v5351
        %v5480 = vunpack.c.l.b16 %v5352
        %v5481 = vunpack.c.l.b16 %v5353
        %v5482 = vunpack.c.l.b16 %v5354
        %v5483 = vunpack.c.l.b16 %v5355
        %v5484 = vpack.c.b16 %v5469, %v5468
        %v5485 = vpack.c.b16 %v5471, %v5470
        %v5486 = vpack.c.b16 %v5473, %v5472
        %v5487 = vpack.c.b16 %v5475, %v5474
        %v5488 = vpack.c.b16 %v5477, %v5476
        %v5489 = vpack.c.b16 %v5479, %v5478
        %v5490 = vpack.c.b16 %v5481, %v5480
        %v5491 = vpack.c.b16 %v5483, %v5482
        %v5493 = vsel %vm575, %v5484, 0
        %v5496 = vsel %vm575, %v5485, 0
        %v5499 = vsel %vm575, %v5486, 0
        %v5502 = vsel %vm575, %v5487, 0
        %v5505 = vsel %vm575, %v5488, 0
        %v5508 = vsel %vm575, %v5489, 0
        %v5511 = vsel %vm575, %v5490, 0
        %v5514 = vsel %vm575, %v5491, 0
        %5516 = vmatprep.subr.bf16.mxu0 0
        %5517 = vmatpush1.bf16.msra.mxu0 0
        %5518 = vmatprep.subr.bf16.mxu0 0
        %5519 = vmatpush1.bf16.msra.mxu0 0
        %5520 = vmatprep.subr.bf16.mxu0 0
        %5521 = vmatpush1.bf16.msra.mxu0 0
        %5522 = vmatprep.subr.bf16.mxu0 0
        %5523 = vmatpush1.bf16.msra.mxu0 0
        %5524 = vmatprep.subr.bf16.mxu0 0
        %5525 = vmatpush1.bf16.msra.mxu0 0
        %5526 = vmatprep.subr.bf16.mxu0 0
        %5527 = vmatpush1.bf16.msra.mxu0 0
        %5528 = vmatprep.subr.bf16.mxu0 0
        %5529 = vmatpush1.bf16.msra.mxu0 %v420
        %5530 = vmatprep.subr.bf16.mxu0 0
        %5531 = vmatpush1.bf16.msra.mxu0 %v419
        %5532 = vmatprep.subr.bf16.mxu0 0
        %5533 = vmatpush2.bf16.msra.mxu0 0
        %5534 = vmatprep.subr.bf16.mxu0 0
        %5535 = vmatpush2.bf16.msra.mxu0 0
        %5536 = vmatprep.subr.bf16.mxu0 0
        %5537 = vmatpush2.bf16.msra.mxu0 0
        %5538 = vmatprep.subr.bf16.mxu0 0
        %5539 = vmatpush2.bf16.msra.mxu0 0
        %5540 = vmatprep.subr.bf16.mxu0 0
        %5541 = vmatpush2.bf16.msra.mxu0 0
        %5542 = vmatprep.subr.bf16.mxu0 0
        %5543 = vmatpush2.bf16.msra.mxu0 0
        %5544 = vmatprep.subr.bf16.mxu0 0
        %5545 = vmatpush2.bf16.msra.mxu0 0
        %5546 = vmatprep.subr.bf16.mxu0 0
        %5547 = vmatpush2.bf16.msra.mxu0 0
        %5548 = vmatprep.mubr.bf16.mxu0 0
        %5549 = vmatmul.mubr.bf16.gmra.mxu0 %v5493
        %v5550 = vpop.f32.mrf.mxu0
        %v5551 = vadd.f32 %v5375, %v5550
        %v5552 = vpop.f32.mrf.mxu0
        %v5553 = vpop.f32.mrf.mxu0
        %v5554 = vadd.f32 %v5380, %v5553
        %v5555 = vpop.f32.mrf.mxu0
        %5556 = vmatprep.mubr.bf16.mxu0 0
        %5557 = vmatmul.mubr.bf16.gmra.mxu0 %v5496
        %v5558 = vpop.f32.mrf.mxu0
        %v5559 = vadd.f32 %v5385, %v5558
        %v5560 = vpop.f32.mrf.mxu0
        %v5561 = vpop.f32.mrf.mxu0
        %v5562 = vadd.f32 %v5390, %v5561
        %v5563 = vpop.f32.mrf.mxu0
        %5564 = vmatprep.mubr.bf16.mxu0 0
        %5565 = vmatmul.mubr.bf16.gmra.mxu0 %v5499
        %v5566 = vpop.f32.mrf.mxu0
        %v5567 = vadd.f32 %v5395, %v5566
        %v5568 = vpop.f32.mrf.mxu0
        %v5569 = vpop.f32.mrf.mxu0
        %v5570 = vadd.f32 %v5400, %v5569
        %v5571 = vpop.f32.mrf.mxu0
        %5572 = vmatprep.mubr.bf16.mxu0 0
        %5573 = vmatmul.mubr.bf16.gmra.mxu0 %v5502
        %v5574 = vpop.f32.mrf.mxu0
        %v5575 = vadd.f32 %v5405, %v5574
        %v5576 = vpop.f32.mrf.mxu0
        %v5577 = vpop.f32.mrf.mxu0
        %v5578 = vadd.f32 %v5410, %v5577
        %v5579 = vpop.f32.mrf.mxu0
        %5580 = vmatprep.mubr.bf16.mxu0 0
        %5581 = vmatmul.mubr.bf16.gmra.mxu0 %v5505
        %v5582 = vpop.f32.mrf.mxu0
        %v5583 = vadd.f32 %v5415, %v5582
        %v5584 = vpop.f32.mrf.mxu0
        %v5585 = vpop.f32.mrf.mxu0
        %v5586 = vadd.f32 %v5420, %v5585
        %v5587 = vpop.f32.mrf.mxu0
        %5588 = vmatprep.mubr.bf16.mxu0 0
        %5589 = vmatmul.mubr.bf16.gmra.mxu0 %v5508
        %v5590 = vpop.f32.mrf.mxu0
        %v5591 = vadd.f32 %v5425, %v5590
        %v5592 = vpop.f32.mrf.mxu0
        %v5593 = vpop.f32.mrf.mxu0
        %v5594 = vadd.f32 %v5430, %v5593
        %v5595 = vpop.f32.mrf.mxu0
        %5596 = vmatprep.mubr.bf16.mxu0 0
        %5597 = vmatmul.mubr.bf16.gmra.mxu0 %v5511
        %v5598 = vpop.f32.mrf.mxu0
        %v5599 = vadd.f32 %v5435, %v5598
        %v5600 = vpop.f32.mrf.mxu0
        %v5601 = vpop.f32.mrf.mxu0
        %v5602 = vadd.f32 %v5440, %v5601
        %v5603 = vpop.f32.mrf.mxu0
        %5604 = vmatprep.mubr.bf16.mxu0 0
        %5605 = vmatmul.mubr.bf16.gmra.mxu0 %v5514
        %v5606 = vpop.f32.mrf.mxu0
        %v5607 = vadd.f32 %v5445, %v5606
        %v5608 = vpop.f32.mrf.mxu0
        %v5609 = vpop.f32.mrf.mxu0
        %v5610 = vadd.f32 %v5450, %v5609
        %v5611 = vpop.f32.mrf.mxu0
        %5612 = vdwg.mxu0
        %5613 = vst.msk [vmem:[%s5323 + $0x80] sm:$0xff] %vm697, %v5551
        %5614 = vst.msk [vmem:[%s5323 + $0x88] sm:$0xff] %vm697, %v5554
        %5615 = vst.msk [vmem:[%s5323 + $0x90] sm:$0xff] %vm697, %v5559
        %5616 = vst.msk [vmem:[%s5323 + $0x98] sm:$0xff] %vm697, %v5562
        %5617 = vst.msk [vmem:[%s5323 + $0xa0] sm:$0xff] %vm697, %v5567
        %5618 = vst.msk [vmem:[%s5323 + $0xa8] sm:$0xff] %vm697, %v5570
        %5619 = vst.msk [vmem:[%s5323 + $0xb0] sm:$0xff] %vm697, %v5575
        %5620 = vst.msk [vmem:[%s5323 + $0xb8] sm:$0xff] %vm697, %v5578
        %5621 = vst.msk [vmem:[%s5323 + $0xc0] sm:$0xff] %vm697, %v5583
        %5622 = vst.msk [vmem:[%s5323 + $0xc8] sm:$0xff] %vm697, %v5586
        %5623 = vst.msk [vmem:[%s5323 + $0xd0] sm:$0xff] %vm697, %v5591
        %5624 = vst.msk [vmem:[%s5323 + $0xd8] sm:$0xff] %vm697, %v5594
        %5625 = vst.msk [vmem:[%s5323 + $0xe0] sm:$0xff] %vm697, %v5599
        %5626 = vst.msk [vmem:[%s5323 + $0xe8] sm:$0xff] %vm697, %v5602
        %5627 = vst.msk [vmem:[%s5323 + $0xf0] sm:$0xff] %vm697, %v5607
        %5628 = vst.msk [vmem:[%s5323 + $0xf8] sm:$0xff] %vm697, %v5610
        %v5629 = vld [vmem:[%s2 + $0x80] sm:$0xf]
        %v5630 = vld [vmem:[%s2 + $0x84] sm:$0xf]
        %v5631 = vld [vmem:[%s2 + $0x88] sm:$0xf]
        %v5632 = vld [vmem:[%s2 + $0x8c] sm:$0xf]
        %v5633 = vld [vmem:[%s2 + $0x90] sm:$0xf]
        %v5634 = vld [vmem:[%s2 + $0x94] sm:$0xf]
        %v5635 = vld [vmem:[%s2 + $0x98] sm:$0xf]
        %v5636 = vld [vmem:[%s2 + $0x9c] sm:$0xf]
        %v5637 = vld [vmem:[%s2 + $0xa0] sm:$0xf]
        %v5638 = vld [vmem:[%s2 + $0xa4] sm:$0xf]
        %v5639 = vld [vmem:[%s2 + $0xa8] sm:$0xf]
        %v5640 = vld [vmem:[%s2 + $0xac] sm:$0xf]
        %v5641 = vld [vmem:[%s2 + $0xb0] sm:$0xf]
        %v5642 = vld [vmem:[%s2 + $0xb4] sm:$0xf]
        %v5643 = vld [vmem:[%s2 + $0xb8] sm:$0xf]
        %v5644 = vld [vmem:[%s2 + $0xbc] sm:$0xf]
        %v5645 = vld [vmem:[%s4 + $0x100] sm:$0xff]
        %v5646 = vld [vmem:[%s4 + $0x108] sm:$0xff]
        %v5647 = vld [vmem:[%s4 + $0x110] sm:$0xff]
        %v5648 = vld [vmem:[%s4 + $0x118] sm:$0xff]
        %v5649 = vld [vmem:[%s4 + $0x120] sm:$0xff]
        %v5650 = vld [vmem:[%s4 + $0x128] sm:$0xff]
        %v5651 = vld [vmem:[%s4 + $0x130] sm:$0xff]
        %v5652 = vld [vmem:[%s4 + $0x138] sm:$0xff]
        %v5653 = vld [vmem:[%s4 + $0x140] sm:$0xff]
        %v5654 = vld [vmem:[%s4 + $0x148] sm:$0xff]
        %v5655 = vld [vmem:[%s4 + $0x150] sm:$0xff]
        %v5656 = vld [vmem:[%s4 + $0x158] sm:$0xff]
        %v5657 = vld [vmem:[%s4 + $0x160] sm:$0xff]
        %v5658 = vld [vmem:[%s4 + $0x168] sm:$0xff]
        %v5659 = vld [vmem:[%s4 + $0x170] sm:$0xff]
        %v5660 = vld [vmem:[%s4 + $0x178] sm:$0xff]
        %5662 = vset.pattern.permute.xlu0 0
        %5663 = vperm.xlu0 %5662, %v5645
        %v5664 = vpop.permute.xlu0 %5663
        %5667 = vset.pattern.permute.xlu0 0
        %5668 = vperm.xlu0 %5667, %v5646
        %v5669 = vpop.permute.xlu0 %5668
        %5672 = vset.pattern.permute.xlu0 0
        %5673 = vperm.xlu0 %5672, %v5647
        %v5674 = vpop.permute.xlu0 %5673
        %5677 = vset.pattern.permute.xlu0 0
        %5678 = vperm.xlu0 %5677, %v5648
        %v5679 = vpop.permute.xlu0 %5678
        %5682 = vset.pattern.permute.xlu0 0
        %5683 = vperm.xlu0 %5682, %v5649
        %v5684 = vpop.permute.xlu0 %5683
        %5687 = vset.pattern.permute.xlu0 0
        %5688 = vperm.xlu0 %5687, %v5650
        %v5689 = vpop.permute.xlu0 %5688
        %5692 = vset.pattern.permute.xlu0 0
        %5693 = vperm.xlu0 %5692, %v5651
        %v5694 = vpop.permute.xlu0 %5693
        %5697 = vset.pattern.permute.xlu0 0
        %5698 = vperm.xlu0 %5697, %v5652
        %v5699 = vpop.permute.xlu0 %5698
        %5702 = vset.pattern.permute.xlu0 0
        %5703 = vperm.xlu0 %5702, %v5653
        %v5704 = vpop.permute.xlu0 %5703
        %5707 = vset.pattern.permute.xlu0 0
        %5708 = vperm.xlu0 %5707, %v5654
        %v5709 = vpop.permute.xlu0 %5708
        %5712 = vset.pattern.permute.xlu0 0
        %5713 = vperm.xlu0 %5712, %v5655
        %v5714 = vpop.permute.xlu0 %5713
        %5717 = vset.pattern.permute.xlu0 0
        %5718 = vperm.xlu0 %5717, %v5656
        %v5719 = vpop.permute.xlu0 %5718
        %5722 = vset.pattern.permute.xlu0 0
        %5723 = vperm.xlu0 %5722, %v5657
        %v5724 = vpop.permute.xlu0 %5723
        %5727 = vset.pattern.permute.xlu0 0
        %5728 = vperm.xlu0 %5727, %v5658
        %v5729 = vpop.permute.xlu0 %5728
        %5732 = vset.pattern.permute.xlu0 0
        %5733 = vperm.xlu0 %5732, %v5659
        %v5734 = vpop.permute.xlu0 %5733
        %5737 = vset.pattern.permute.xlu0 0
        %5738 = vperm.xlu0 %5737, %v5660
        %v5739 = vpop.permute.xlu0 %5738
        %v5757 = vunpack.c.l.b16 %v5629
        %v5758 = vunpack.c.l.b16 %v5630
        %v5759 = vunpack.c.l.b16 %v5631
        %v5760 = vunpack.c.l.b16 %v5632
        %v5761 = vunpack.c.l.b16 %v5633
        %v5762 = vunpack.c.l.b16 %v5634
        %v5763 = vunpack.c.l.b16 %v5635
        %v5764 = vunpack.c.l.b16 %v5636
        %v5765 = vunpack.c.l.b16 %v5637
        %v5766 = vunpack.c.l.b16 %v5638
        %v5767 = vunpack.c.l.b16 %v5639
        %v5768 = vunpack.c.l.b16 %v5640
        %v5769 = vunpack.c.l.b16 %v5641
        %v5770 = vunpack.c.l.b16 %v5642
        %v5771 = vunpack.c.l.b16 %v5643
        %v5772 = vunpack.c.l.b16 %v5644
        %v5773 = vpack.c.b16 %v5758, %v5757
        %v5774 = vpack.c.b16 %v5760, %v5759
        %v5775 = vpack.c.b16 %v5762, %v5761
        %v5776 = vpack.c.b16 %v5764, %v5763
        %v5777 = vpack.c.b16 %v5766, %v5765
        %v5778 = vpack.c.b16 %v5768, %v5767
        %v5779 = vpack.c.b16 %v5770, %v5769
        %v5780 = vpack.c.b16 %v5772, %v5771
        %v5782 = vsel %vm575, %v5773, 0
        %v5785 = vsel %vm575, %v5774, 0
        %v5788 = vsel %vm575, %v5775, 0
        %v5791 = vsel %vm575, %v5776, 0
        %v5794 = vsel %vm575, %v5777, 0
        %v5797 = vsel %vm575, %v5778, 0
        %v5800 = vsel %vm575, %v5779, 0
        %v5803 = vsel %vm575, %v5780, 0
        %5805 = vmatprep.subr.bf16.mxu0 0
        %5806 = vmatpush1.bf16.msra.mxu0 0
        %5807 = vmatprep.subr.bf16.mxu0 0
        %5808 = vmatpush1.bf16.msra.mxu0 0
        %5809 = vmatprep.subr.bf16.mxu0 0
        %5810 = vmatpush1.bf16.msra.mxu0 0
        %5811 = vmatprep.subr.bf16.mxu0 0
        %5812 = vmatpush1.bf16.msra.mxu0 0
        %5813 = vmatprep.subr.bf16.mxu0 0
        %5814 = vmatpush1.bf16.msra.mxu0 0
        %5815 = vmatprep.subr.bf16.mxu0 0
        %5816 = vmatpush1.bf16.msra.mxu0 0
        %5817 = vmatprep.subr.bf16.mxu0 0
        %5818 = vmatpush1.bf16.msra.mxu0 %v420
        %5819 = vmatprep.subr.bf16.mxu0 0
        %5820 = vmatpush1.bf16.msra.mxu0 %v419
        %5821 = vmatprep.subr.bf16.mxu0 0
        %5822 = vmatpush2.bf16.msra.mxu0 0
        %5823 = vmatprep.subr.bf16.mxu0 0
        %5824 = vmatpush2.bf16.msra.mxu0 0
        %5825 = vmatprep.subr.bf16.mxu0 0
        %5826 = vmatpush2.bf16.msra.mxu0 0
        %5827 = vmatprep.subr.bf16.mxu0 0
        %5828 = vmatpush2.bf16.msra.mxu0 0
        %5829 = vmatprep.subr.bf16.mxu0 0
        %5830 = vmatpush2.bf16.msra.mxu0 0
        %5831 = vmatprep.subr.bf16.mxu0 0
        %5832 = vmatpush2.bf16.msra.mxu0 0
        %5833 = vmatprep.subr.bf16.mxu0 0
        %5834 = vmatpush2.bf16.msra.mxu0 0
        %5835 = vmatprep.subr.bf16.mxu0 0
        %5836 = vmatpush2.bf16.msra.mxu0 0
        %5837 = vmatprep.mubr.bf16.mxu0 0
        %5838 = vmatmul.mubr.bf16.gmra.mxu0 %v5782
        %v5839 = vpop.f32.mrf.mxu0
        %v5840 = vadd.f32 %v5664, %v5839
        %v5841 = vpop.f32.mrf.mxu0
        %v5842 = vpop.f32.mrf.mxu0
        %v5843 = vadd.f32 %v5669, %v5842
        %v5844 = vpop.f32.mrf.mxu0
        %5845 = vmatprep.mubr.bf16.mxu0 0
        %5846 = vmatmul.mubr.bf16.gmra.mxu0 %v5785
        %v5847 = vpop.f32.mrf.mxu0
        %v5848 = vadd.f32 %v5674, %v5847
        %v5849 = vpop.f32.mrf.mxu0
        %v5850 = vpop.f32.mrf.mxu0
        %v5851 = vadd.f32 %v5679, %v5850
        %v5852 = vpop.f32.mrf.mxu0
        %5853 = vmatprep.mubr.bf16.mxu0 0
        %5854 = vmatmul.mubr.bf16.gmra.mxu0 %v5788
        %v5855 = vpop.f32.mrf.mxu0
        %v5856 = vadd.f32 %v5684, %v5855
        %v5857 = vpop.f32.mrf.mxu0
        %v5858 = vpop.f32.mrf.mxu0
        %v5859 = vadd.f32 %v5689, %v5858
        %v5860 = vpop.f32.mrf.mxu0
        %5861 = vmatprep.mubr.bf16.mxu0 0
        %5862 = vmatmul.mubr.bf16.gmra.mxu0 %v5791
        %v5863 = vpop.f32.mrf.mxu0
        %v5864 = vadd.f32 %v5694, %v5863
        %v5865 = vpop.f32.mrf.mxu0
        %v5866 = vpop.f32.mrf.mxu0
        %v5867 = vadd.f32 %v5699, %v5866
        %v5868 = vpop.f32.mrf.mxu0
        %5869 = vmatprep.mubr.bf16.mxu0 0
        %5870 = vmatmul.mubr.bf16.gmra.mxu0 %v5794
        %v5871 = vpop.f32.mrf.mxu0
        %v5872 = vadd.f32 %v5704, %v5871
        %v5873 = vpop.f32.mrf.mxu0
        %v5874 = vpop.f32.mrf.mxu0
        %v5875 = vadd.f32 %v5709, %v5874
        %v5876 = vpop.f32.mrf.mxu0
        %5877 = vmatprep.mubr.bf16.mxu0 0
        %5878 = vmatmul.mubr.bf16.gmra.mxu0 %v5797
        %v5879 = vpop.f32.mrf.mxu0
        %v5880 = vadd.f32 %v5714, %v5879
        %v5881 = vpop.f32.mrf.mxu0
        %v5882 = vpop.f32.mrf.mxu0
        %v5883 = vadd.f32 %v5719, %v5882
        %v5884 = vpop.f32.mrf.mxu0
        %5885 = vmatprep.mubr.bf16.mxu0 0
        %5886 = vmatmul.mubr.bf16.gmra.mxu0 %v5800
        %v5887 = vpop.f32.mrf.mxu0
        %v5888 = vadd.f32 %v5724, %v5887
        %v5889 = vpop.f32.mrf.mxu0
        %v5890 = vpop.f32.mrf.mxu0
        %v5891 = vadd.f32 %v5729, %v5890
        %v5892 = vpop.f32.mrf.mxu0
        %5893 = vmatprep.mubr.bf16.mxu0 0
        %5894 = vmatmul.mubr.bf16.gmra.mxu0 %v5803
        %v5895 = vpop.f32.mrf.mxu0
        %v5896 = vadd.f32 %v5734, %v5895
        %v5897 = vpop.f32.mrf.mxu0
        %v5898 = vpop.f32.mrf.mxu0
        %v5899 = vadd.f32 %v5739, %v5898
        %v5900 = vpop.f32.mrf.mxu0
        %5901 = vdwg.mxu0
        %5902 = vst.msk [vmem:[%s5323 + $0x100] sm:$0xff] %vm697, %v5840
        %5903 = vst.msk [vmem:[%s5323 + $0x108] sm:$0xff] %vm697, %v5843
        %5904 = vst.msk [vmem:[%s5323 + $0x110] sm:$0xff] %vm697, %v5848
        %5905 = vst.msk [vmem:[%s5323 + $0x118] sm:$0xff] %vm697, %v5851
        %5906 = vst.msk [vmem:[%s5323 + $0x120] sm:$0xff] %vm697, %v5856
        %5907 = vst.msk [vmem:[%s5323 + $0x128] sm:$0xff] %vm697, %v5859
        %5908 = vst.msk [vmem:[%s5323 + $0x130] sm:$0xff] %vm697, %v5864
        %5909 = vst.msk [vmem:[%s5323 + $0x138] sm:$0xff] %vm697, %v5867
        %5910 = vst.msk [vmem:[%s5323 + $0x140] sm:$0xff] %vm697, %v5872
        %5911 = vst.msk [vmem:[%s5323 + $0x148] sm:$0xff] %vm697, %v5875
        %5912 = vst.msk [vmem:[%s5323 + $0x150] sm:$0xff] %vm697, %v5880
        %5913 = vst.msk [vmem:[%s5323 + $0x158] sm:$0xff] %vm697, %v5883
        %5914 = vst.msk [vmem:[%s5323 + $0x160] sm:$0xff] %vm697, %v5888
        %5915 = vst.msk [vmem:[%s5323 + $0x168] sm:$0xff] %vm697, %v5891
        %5916 = vst.msk [vmem:[%s5323 + $0x170] sm:$0xff] %vm697, %v5896
        %5917 = vst.msk [vmem:[%s5323 + $0x178] sm:$0xff] %vm697, %v5899
        %v5918 = vld [vmem:[%s2 + $0xc0] sm:$0xf]
        %v5919 = vld [vmem:[%s2 + $0xc4] sm:$0xf]
        %v5920 = vld [vmem:[%s2 + $0xc8] sm:$0xf]
        %v5921 = vld [vmem:[%s2 + $0xcc] sm:$0xf]
        %v5922 = vld [vmem:[%s2 + $0xd0] sm:$0xf]
        %v5923 = vld [vmem:[%s2 + $0xd4] sm:$0xf]
        %v5924 = vld [vmem:[%s2 + $0xd8] sm:$0xf]
        %v5925 = vld [vmem:[%s2 + $0xdc] sm:$0xf]
        %v5926 = vld [vmem:[%s2 + $0xe0] sm:$0xf]
        %v5927 = vld [vmem:[%s2 + $0xe4] sm:$0xf]
        %v5928 = vld [vmem:[%s2 + $0xe8] sm:$0xf]
        %v5929 = vld [vmem:[%s2 + $0xec] sm:$0xf]
        %v5930 = vld [vmem:[%s2 + $0xf0] sm:$0xf]
        %v5931 = vld [vmem:[%s2 + $0xf4] sm:$0xf]
        %v5932 = vld [vmem:[%s2 + $0xf8] sm:$0xf]
        %v5933 = vld [vmem:[%s2 + $0xfc] sm:$0xf]
        %v5934 = vld [vmem:[%s4 + $0x180] sm:$0xff]
        %v5935 = vld [vmem:[%s4 + $0x188] sm:$0xff]
        %v5936 = vld [vmem:[%s4 + $0x190] sm:$0xff]
        %v5937 = vld [vmem:[%s4 + $0x198] sm:$0xff]
        %v5938 = vld [vmem:[%s4 + $0x1a0] sm:$0xff]
        %v5939 = vld [vmem:[%s4 + $0x1a8] sm:$0xff]
        %v5940 = vld [vmem:[%s4 + $0x1b0] sm:$0xff]
        %v5941 = vld [vmem:[%s4 + $0x1b8] sm:$0xff]
        %v5942 = vld [vmem:[%s4 + $0x1c0] sm:$0xff]
        %v5943 = vld [vmem:[%s4 + $0x1c8] sm:$0xff]
        %v5944 = vld [vmem:[%s4 + $0x1d0] sm:$0xff]
        %v5945 = vld [vmem:[%s4 + $0x1d8] sm:$0xff]
        %v5946 = vld [vmem:[%s4 + $0x1e0] sm:$0xff]
        %v5947 = vld [vmem:[%s4 + $0x1e8] sm:$0xff]
        %v5948 = vld [vmem:[%s4 + $0x1f0] sm:$0xff]
        %v5949 = vld [vmem:[%s4 + $0x1f8] sm:$0xff]
        %5951 = vset.pattern.permute.xlu0 0
        %5952 = vperm.xlu0 %5951, %v5934
        %v5953 = vpop.permute.xlu0 %5952
        %5956 = vset.pattern.permute.xlu0 0
        %5957 = vperm.xlu0 %5956, %v5935
        %v5958 = vpop.permute.xlu0 %5957
        %5961 = vset.pattern.permute.xlu0 0
        %5962 = vperm.xlu0 %5961, %v5936
        %v5963 = vpop.permute.xlu0 %5962
        %5966 = vset.pattern.permute.xlu0 0
        %5967 = vperm.xlu0 %5966, %v5937
        %v5968 = vpop.permute.xlu0 %5967
        %5971 = vset.pattern.permute.xlu0 0
        %5972 = vperm.xlu0 %5971, %v5938
        %v5973 = vpop.permute.xlu0 %5972
        %5976 = vset.pattern.permute.xlu0 0
        %5977 = vperm.xlu0 %5976, %v5939
        %v5978 = vpop.permute.xlu0 %5977
        %5981 = vset.pattern.permute.xlu0 0
        %5982 = vperm.xlu0 %5981, %v5940
        %v5983 = vpop.permute.xlu0 %5982
        %5986 = vset.pattern.permute.xlu0 0
        %5987 = vperm.xlu0 %5986, %v5941
        %v5988 = vpop.permute.xlu0 %5987
        %5991 = vset.pattern.permute.xlu0 0
        %5992 = vperm.xlu0 %5991, %v5942
        %v5993 = vpop.permute.xlu0 %5992
        %5996 = vset.pattern.permute.xlu0 0
        %5997 = vperm.xlu0 %5996, %v5943
        %v5998 = vpop.permute.xlu0 %5997
        %6001 = vset.pattern.permute.xlu0 0
        %6002 = vperm.xlu0 %6001, %v5944
        %v6003 = vpop.permute.xlu0 %6002
        %6006 = vset.pattern.permute.xlu0 0
        %6007 = vperm.xlu0 %6006, %v5945
        %v6008 = vpop.permute.xlu0 %6007
        %6011 = vset.pattern.permute.xlu0 0
        %6012 = vperm.xlu0 %6011, %v5946
        %v6013 = vpop.permute.xlu0 %6012
        %6016 = vset.pattern.permute.xlu0 0
        %6017 = vperm.xlu0 %6016, %v5947
        %v6018 = vpop.permute.xlu0 %6017
        %6021 = vset.pattern.permute.xlu0 0
        %6022 = vperm.xlu0 %6021, %v5948
        %v6023 = vpop.permute.xlu0 %6022
        %6026 = vset.pattern.permute.xlu0 0
        %6027 = vperm.xlu0 %6026, %v5949
        %v6028 = vpop.permute.xlu0 %6027
        %v6046 = vunpack.c.l.b16 %v5918
        %v6047 = vunpack.c.l.b16 %v5919
        %v6048 = vunpack.c.l.b16 %v5920
        %v6049 = vunpack.c.l.b16 %v5921
        %v6050 = vunpack.c.l.b16 %v5922
        %v6051 = vunpack.c.l.b16 %v5923
        %v6052 = vunpack.c.l.b16 %v5924
        %v6053 = vunpack.c.l.b16 %v5925
        %v6054 = vunpack.c.l.b16 %v5926
        %v6055 = vunpack.c.l.b16 %v5927
        %v6056 = vunpack.c.l.b16 %v5928
        %v6057 = vunpack.c.l.b16 %v5929
        %v6058 = vunpack.c.l.b16 %v5930
        %v6059 = vunpack.c.l.b16 %v5931
        %v6060 = vunpack.c.l.b16 %v5932
        %v6061 = vunpack.c.l.b16 %v5933
        %v6062 = vpack.c.b16 %v6047, %v6046
        %v6063 = vpack.c.b16 %v6049, %v6048
        %v6064 = vpack.c.b16 %v6051, %v6050
        %v6065 = vpack.c.b16 %v6053, %v6052
        %v6066 = vpack.c.b16 %v6055, %v6054
        %v6067 = vpack.c.b16 %v6057, %v6056
        %v6068 = vpack.c.b16 %v6059, %v6058
        %v6069 = vpack.c.b16 %v6061, %v6060
        %v6071 = vsel %vm575, %v6062, 0
        %v6074 = vsel %vm575, %v6063, 0
        %v6077 = vsel %vm575, %v6064, 0
        %v6080 = vsel %vm575, %v6065, 0
        %v6083 = vsel %vm575, %v6066, 0
        %v6086 = vsel %vm575, %v6067, 0
        %v6089 = vsel %vm575, %v6068, 0
        %v6092 = vsel %vm575, %v6069, 0
        %6094 = vmatprep.subr.bf16.mxu0 0
        %6095 = vmatpush1.bf16.msra.mxu0 0
        %6096 = vmatprep.subr.bf16.mxu0 0
        %6097 = vmatpush1.bf16.msra.mxu0 0
        %6098 = vmatprep.subr.bf16.mxu0 0
        %6099 = vmatpush1.bf16.msra.mxu0 0
        %6100 = vmatprep.subr.bf16.mxu0 0
        %6101 = vmatpush1.bf16.msra.mxu0 0
        %6102 = vmatprep.subr.bf16.mxu0 0
        %6103 = vmatpush1.bf16.msra.mxu0 0
        %6104 = vmatprep.subr.bf16.mxu0 0
        %6105 = vmatpush1.bf16.msra.mxu0 0
        %6106 = vmatprep.subr.bf16.mxu0 0
        %6107 = vmatpush1.bf16.msra.mxu0 %v420
        %6108 = vmatprep.subr.bf16.mxu0 0
        %6109 = vmatpush1.bf16.msra.mxu0 %v419
        %6110 = vmatprep.subr.bf16.mxu0 0
        %6111 = vmatpush2.bf16.msra.mxu0 0
        %6112 = vmatprep.subr.bf16.mxu0 0
        %6113 = vmatpush2.bf16.msra.mxu0 0
        %6114 = vmatprep.subr.bf16.mxu0 0
        %6115 = vmatpush2.bf16.msra.mxu0 0
        %6116 = vmatprep.subr.bf16.mxu0 0
        %6117 = vmatpush2.bf16.msra.mxu0 0
        %6118 = vmatprep.subr.bf16.mxu0 0
        %6119 = vmatpush2.bf16.msra.mxu0 0
        %6120 = vmatprep.subr.bf16.mxu0 0
        %6121 = vmatpush2.bf16.msra.mxu0 0
        %6122 = vmatprep.subr.bf16.mxu0 0
        %6123 = vmatpush2.bf16.msra.mxu0 0
        %6124 = vmatprep.subr.bf16.mxu0 0
        %6125 = vmatpush2.bf16.msra.mxu0 0
        %6126 = vmatprep.mubr.bf16.mxu0 0
        %6127 = vmatmul.mubr.bf16.gmra.mxu0 %v6071
        %v6128 = vpop.f32.mrf.mxu0
        %v6129 = vadd.f32 %v5953, %v6128
        %v6130 = vpop.f32.mrf.mxu0
        %v6131 = vpop.f32.mrf.mxu0
        %v6132 = vadd.f32 %v5958, %v6131
        %v6133 = vpop.f32.mrf.mxu0
        %6134 = vmatprep.mubr.bf16.mxu0 0
        %6135 = vmatmul.mubr.bf16.gmra.mxu0 %v6074
        %v6136 = vpop.f32.mrf.mxu0
        %v6137 = vadd.f32 %v5963, %v6136
        %v6138 = vpop.f32.mrf.mxu0
        %v6139 = vpop.f32.mrf.mxu0
        %v6140 = vadd.f32 %v5968, %v6139
        %v6141 = vpop.f32.mrf.mxu0
        %6142 = vmatprep.mubr.bf16.mxu0 0
        %6143 = vmatmul.mubr.bf16.gmra.mxu0 %v6077
        %v6144 = vpop.f32.mrf.mxu0
        %v6145 = vadd.f32 %v5973, %v6144
        %v6146 = vpop.f32.mrf.mxu0
        %v6147 = vpop.f32.mrf.mxu0
        %v6148 = vadd.f32 %v5978, %v6147
        %v6149 = vpop.f32.mrf.mxu0
        %6150 = vmatprep.mubr.bf16.mxu0 0
        %6151 = vmatmul.mubr.bf16.gmra.mxu0 %v6080
        %v6152 = vpop.f32.mrf.mxu0
        %v6153 = vadd.f32 %v5983, %v6152
        %v6154 = vpop.f32.mrf.mxu0
        %v6155 = vpop.f32.mrf.mxu0
        %v6156 = vadd.f32 %v5988, %v6155
        %v6157 = vpop.f32.mrf.mxu0
        %6158 = vmatprep.mubr.bf16.mxu0 0
        %6159 = vmatmul.mubr.bf16.gmra.mxu0 %v6083
        %v6160 = vpop.f32.mrf.mxu0
        %v6161 = vadd.f32 %v5993, %v6160
        %v6162 = vpop.f32.mrf.mxu0
        %v6163 = vpop.f32.mrf.mxu0
        %v6164 = vadd.f32 %v5998, %v6163
        %v6165 = vpop.f32.mrf.mxu0
        %6166 = vmatprep.mubr.bf16.mxu0 0
        %6167 = vmatmul.mubr.bf16.gmra.mxu0 %v6086
        %v6168 = vpop.f32.mrf.mxu0
        %v6169 = vadd.f32 %v6003, %v6168
        %v6170 = vpop.f32.mrf.mxu0
        %v6171 = vpop.f32.mrf.mxu0
        %v6172 = vadd.f32 %v6008, %v6171
        %v6173 = vpop.f32.mrf.mxu0
        %6174 = vmatprep.mubr.bf16.mxu0 0
        %6175 = vmatmul.mubr.bf16.gmra.mxu0 %v6089
        %v6176 = vpop.f32.mrf.mxu0
        %v6177 = vadd.f32 %v6013, %v6176
        %v6178 = vpop.f32.mrf.mxu0
        %v6179 = vpop.f32.mrf.mxu0
        %v6180 = vadd.f32 %v6018, %v6179
        %v6181 = vpop.f32.mrf.mxu0
        %6182 = vmatprep.mubr.bf16.mxu0 0
        %6183 = vmatmul.mubr.bf16.gmra.mxu0 %v6092
        %v6184 = vpop.f32.mrf.mxu0
        %v6185 = vadd.f32 %v6023, %v6184
        %v6186 = vpop.f32.mrf.mxu0
        %v6187 = vpop.f32.mrf.mxu0
        %v6188 = vadd.f32 %v6028, %v6187
        %v6189 = vpop.f32.mrf.mxu0
        %6190 = vdwg.mxu0
        %6191 = vst.msk [vmem:[%s5323 + $0x180] sm:$0xff] %vm697, %v6129
        %6192 = vst.msk [vmem:[%s5323 + $0x188] sm:$0xff] %vm697, %v6132
        %6193 = vst.msk [vmem:[%s5323 + $0x190] sm:$0xff] %vm697, %v6137
        %6194 = vst.msk [vmem:[%s5323 + $0x198] sm:$0xff] %vm697, %v6140
        %6195 = vst.msk [vmem:[%s5323 + $0x1a0] sm:$0xff] %vm697, %v6145
        %6196 = vst.msk [vmem:[%s5323 + $0x1a8] sm:$0xff] %vm697, %v6148
        %6197 = vst.msk [vmem:[%s5323 + $0x1b0] sm:$0xff] %vm697, %v6153
        %6198 = vst.msk [vmem:[%s5323 + $0x1b8] sm:$0xff] %vm697, %v6156
        %6199 = vst.msk [vmem:[%s5323 + $0x1c0] sm:$0xff] %vm697, %v6161
        %6200 = vst.msk [vmem:[%s5323 + $0x1c8] sm:$0xff] %vm697, %v6164
        %6201 = vst.msk [vmem:[%s5323 + $0x1d0] sm:$0xff] %vm697, %v6169
        %6202 = vst.msk [vmem:[%s5323 + $0x1d8] sm:$0xff] %vm697, %v6172
        %6203 = vst.msk [vmem:[%s5323 + $0x1e0] sm:$0xff] %vm697, %v6177
        %6204 = vst.msk [vmem:[%s5323 + $0x1e8] sm:$0xff] %vm697, %v6180
        %6205 = vst.msk [vmem:[%s5323 + $0x1f0] sm:$0xff] %vm697, %v6185
        %6206 = vst.msk [vmem:[%s5323 + $0x1f8] sm:$0xff] %vm697, %v6188
        %v6207 = vld [vmem:[%s2 + $0x100] sm:$0xf]
        %v6208 = vld [vmem:[%s2 + $0x104] sm:$0xf]
        %v6209 = vld [vmem:[%s2 + $0x108] sm:$0xf]
        %v6210 = vld [vmem:[%s2 + $0x10c] sm:$0xf]
        %v6211 = vld [vmem:[%s2 + $0x110] sm:$0xf]
        %v6212 = vld [vmem:[%s2 + $0x114] sm:$0xf]
        %v6213 = vld [vmem:[%s2 + $0x118] sm:$0xf]
        %v6214 = vld [vmem:[%s2 + $0x11c] sm:$0xf]
        %v6215 = vld [vmem:[%s2 + $0x120] sm:$0xf]
        %v6216 = vld [vmem:[%s2 + $0x124] sm:$0xf]
        %v6217 = vld [vmem:[%s2 + $0x128] sm:$0xf]
        %v6218 = vld [vmem:[%s2 + $0x12c] sm:$0xf]
        %v6219 = vld [vmem:[%s2 + $0x130] sm:$0xf]
        %v6220 = vld [vmem:[%s2 + $0x134] sm:$0xf]
        %v6221 = vld [vmem:[%s2 + $0x138] sm:$0xf]
        %v6222 = vld [vmem:[%s2 + $0x13c] sm:$0xf]
        %v6223 = vld [vmem:[%s4 + $0x200] sm:$0xff]
        %v6224 = vld [vmem:[%s4 + $0x208] sm:$0xff]
        %v6225 = vld [vmem:[%s4 + $0x210] sm:$0xff]
        %v6226 = vld [vmem:[%s4 + $0x218] sm:$0xff]
        %v6227 = vld [vmem:[%s4 + $0x220] sm:$0xff]
        %v6228 = vld [vmem:[%s4 + $0x228] sm:$0xff]
        %v6229 = vld [vmem:[%s4 + $0x230] sm:$0xff]
        %v6230 = vld [vmem:[%s4 + $0x238] sm:$0xff]
        %v6231 = vld [vmem:[%s4 + $0x240] sm:$0xff]
        %v6232 = vld [vmem:[%s4 + $0x248] sm:$0xff]
        %v6233 = vld [vmem:[%s4 + $0x250] sm:$0xff]
        %v6234 = vld [vmem:[%s4 + $0x258] sm:$0xff]
        %v6235 = vld [vmem:[%s4 + $0x260] sm:$0xff]
        %v6236 = vld [vmem:[%s4 + $0x268] sm:$0xff]
        %v6237 = vld [vmem:[%s4 + $0x270] sm:$0xff]
        %v6238 = vld [vmem:[%s4 + $0x278] sm:$0xff]
        %6240 = vset.pattern.permute.xlu0 0
        %6241 = vperm.xlu0 %6240, %v6223
        %v6242 = vpop.permute.xlu0 %6241
        %6245 = vset.pattern.permute.xlu0 0
        %6246 = vperm.xlu0 %6245, %v6224
        %v6247 = vpop.permute.xlu0 %6246
        %6250 = vset.pattern.permute.xlu0 0
        %6251 = vperm.xlu0 %6250, %v6225
        %v6252 = vpop.permute.xlu0 %6251
        %6255 = vset.pattern.permute.xlu0 0
        %6256 = vperm.xlu0 %6255, %v6226
        %v6257 = vpop.permute.xlu0 %6256
        %6260 = vset.pattern.permute.xlu0 0
        %6261 = vperm.xlu0 %6260, %v6227
        %v6262 = vpop.permute.xlu0 %6261
        %6265 = vset.pattern.permute.xlu0 0
        %6266 = vperm.xlu0 %6265, %v6228
        %v6267 = vpop.permute.xlu0 %6266
        %6270 = vset.pattern.permute.xlu0 0
        %6271 = vperm.xlu0 %6270, %v6229
        %v6272 = vpop.permute.xlu0 %6271
        %6275 = vset.pattern.permute.xlu0 0
        %6276 = vperm.xlu0 %6275, %v6230
        %v6277 = vpop.permute.xlu0 %6276
        %6280 = vset.pattern.permute.xlu0 0
        %6281 = vperm.xlu0 %6280, %v6231
        %v6282 = vpop.permute.xlu0 %6281
        %6285 = vset.pattern.permute.xlu0 0
        %6286 = vperm.xlu0 %6285, %v6232
        %v6287 = vpop.permute.xlu0 %6286
        %6290 = vset.pattern.permute.xlu0 0
        %6291 = vperm.xlu0 %6290, %v6233
        %v6292 = vpop.permute.xlu0 %6291
        %6295 = vset.pattern.permute.xlu0 0
        %6296 = vperm.xlu0 %6295, %v6234
        %v6297 = vpop.permute.xlu0 %6296
        %6300 = vset.pattern.permute.xlu0 0
        %6301 = vperm.xlu0 %6300, %v6235
        %v6302 = vpop.permute.xlu0 %6301
        %6305 = vset.pattern.permute.xlu0 0
        %6306 = vperm.xlu0 %6305, %v6236
        %v6307 = vpop.permute.xlu0 %6306
        %6310 = vset.pattern.permute.xlu0 0
        %6311 = vperm.xlu0 %6310, %v6237
        %v6312 = vpop.permute.xlu0 %6311
        %6315 = vset.pattern.permute.xlu0 0
        %6316 = vperm.xlu0 %6315, %v6238
        %v6317 = vpop.permute.xlu0 %6316
        %v6335 = vunpack.c.l.b16 %v6207
        %v6336 = vunpack.c.l.b16 %v6208
        %v6337 = vunpack.c.l.b16 %v6209
        %v6338 = vunpack.c.l.b16 %v6210
        %v6339 = vunpack.c.l.b16 %v6211
        %v6340 = vunpack.c.l.b16 %v6212
        %v6341 = vunpack.c.l.b16 %v6213
        %v6342 = vunpack.c.l.b16 %v6214
        %v6343 = vunpack.c.l.b16 %v6215
        %v6344 = vunpack.c.l.b16 %v6216
        %v6345 = vunpack.c.l.b16 %v6217
        %v6346 = vunpack.c.l.b16 %v6218
        %v6347 = vunpack.c.l.b16 %v6219
        %v6348 = vunpack.c.l.b16 %v6220
        %v6349 = vunpack.c.l.b16 %v6221
        %v6350 = vunpack.c.l.b16 %v6222
        %v6351 = vpack.c.b16 %v6336, %v6335
        %v6352 = vpack.c.b16 %v6338, %v6337
        %v6353 = vpack.c.b16 %v6340, %v6339
        %v6354 = vpack.c.b16 %v6342, %v6341
        %v6355 = vpack.c.b16 %v6344, %v6343
        %v6356 = vpack.c.b16 %v6346, %v6345
        %v6357 = vpack.c.b16 %v6348, %v6347
        %v6358 = vpack.c.b16 %v6350, %v6349
        %v6360 = vsel %vm575, %v6351, 0
        %v6363 = vsel %vm575, %v6352, 0
        %v6366 = vsel %vm575, %v6353, 0
        %v6369 = vsel %vm575, %v6354, 0
        %v6372 = vsel %vm575, %v6355, 0
        %v6375 = vsel %vm575, %v6356, 0
        %v6378 = vsel %vm575, %v6357, 0
        %v6381 = vsel %vm575, %v6358, 0
        %6383 = vmatprep.subr.bf16.mxu0 0
        %6384 = vmatpush1.bf16.msra.mxu0 0
        %6385 = vmatprep.subr.bf16.mxu0 0
        %6386 = vmatpush1.bf16.msra.mxu0 0
        %6387 = vmatprep.subr.bf16.mxu0 0
        %6388 = vmatpush1.bf16.msra.mxu0 0
        %6389 = vmatprep.subr.bf16.mxu0 0
        %6390 = vmatpush1.bf16.msra.mxu0 0
        %6391 = vmatprep.subr.bf16.mxu0 0
        %6392 = vmatpush1.bf16.msra.mxu0 0
        %6393 = vmatprep.subr.bf16.mxu0 0
        %6394 = vmatpush1.bf16.msra.mxu0 0
        %6395 = vmatprep.subr.bf16.mxu0 0
        %6396 = vmatpush1.bf16.msra.mxu0 %v420
        %6397 = vmatprep.subr.bf16.mxu0 0
        %6398 = vmatpush1.bf16.msra.mxu0 %v419
        %6399 = vmatprep.subr.bf16.mxu0 0
        %6400 = vmatpush2.bf16.msra.mxu0 0
        %6401 = vmatprep.subr.bf16.mxu0 0
        %6402 = vmatpush2.bf16.msra.mxu0 0
        %6403 = vmatprep.subr.bf16.mxu0 0
        %6404 = vmatpush2.bf16.msra.mxu0 0
        %6405 = vmatprep.subr.bf16.mxu0 0
        %6406 = vmatpush2.bf16.msra.mxu0 0
        %6407 = vmatprep.subr.bf16.mxu0 0
        %6408 = vmatpush2.bf16.msra.mxu0 0
        %6409 = vmatprep.subr.bf16.mxu0 0
        %6410 = vmatpush2.bf16.msra.mxu0 0
        %6411 = vmatprep.subr.bf16.mxu0 0
        %6412 = vmatpush2.bf16.msra.mxu0 0
        %6413 = vmatprep.subr.bf16.mxu0 0
        %6414 = vmatpush2.bf16.msra.mxu0 0
        %6415 = vmatprep.mubr.bf16.mxu0 0
        %6416 = vmatmul.mubr.bf16.gmra.mxu0 %v6360
        %v6417 = vpop.f32.mrf.mxu0
        %v6418 = vadd.f32 %v6242, %v6417
        %v6419 = vpop.f32.mrf.mxu0
        %v6420 = vpop.f32.mrf.mxu0
        %v6421 = vadd.f32 %v6247, %v6420
        %v6422 = vpop.f32.mrf.mxu0
        %6423 = vmatprep.mubr.bf16.mxu0 0
        %6424 = vmatmul.mubr.bf16.gmra.mxu0 %v6363
        %v6425 = vpop.f32.mrf.mxu0
        %v6426 = vadd.f32 %v6252, %v6425
        %v6427 = vpop.f32.mrf.mxu0
        %v6428 = vpop.f32.mrf.mxu0
        %v6429 = vadd.f32 %v6257, %v6428
        %v6430 = vpop.f32.mrf.mxu0
        %6431 = vmatprep.mubr.bf16.mxu0 0
        %6432 = vmatmul.mubr.bf16.gmra.mxu0 %v6366
        %v6433 = vpop.f32.mrf.mxu0
        %v6434 = vadd.f32 %v6262, %v6433
        %v6435 = vpop.f32.mrf.mxu0
        %v6436 = vpop.f32.mrf.mxu0
        %v6437 = vadd.f32 %v6267, %v6436
        %v6438 = vpop.f32.mrf.mxu0
        %6439 = vmatprep.mubr.bf16.mxu0 0
        %6440 = vmatmul.mubr.bf16.gmra.mxu0 %v6369
        %v6441 = vpop.f32.mrf.mxu0
        %v6442 = vadd.f32 %v6272, %v6441
        %v6443 = vpop.f32.mrf.mxu0
        %v6444 = vpop.f32.mrf.mxu0
        %v6445 = vadd.f32 %v6277, %v6444
        %v6446 = vpop.f32.mrf.mxu0
        %6447 = vmatprep.mubr.bf16.mxu0 0
        %6448 = vmatmul.mubr.bf16.gmra.mxu0 %v6372
        %v6449 = vpop.f32.mrf.mxu0
        %v6450 = vadd.f32 %v6282, %v6449
        %v6451 = vpop.f32.mrf.mxu0
        %v6452 = vpop.f32.mrf.mxu0
        %v6453 = vadd.f32 %v6287, %v6452
        %v6454 = vpop.f32.mrf.mxu0
        %6455 = vmatprep.mubr.bf16.mxu0 0
        %6456 = vmatmul.mubr.bf16.gmra.mxu0 %v6375
        %v6457 = vpop.f32.mrf.mxu0
        %v6458 = vadd.f32 %v6292, %v6457
        %v6459 = vpop.f32.mrf.mxu0
        %v6460 = vpop.f32.mrf.mxu0
        %v6461 = vadd.f32 %v6297, %v6460
        %v6462 = vpop.f32.mrf.mxu0
        %6463 = vmatprep.mubr.bf16.mxu0 0
        %6464 = vmatmul.mubr.bf16.gmra.mxu0 %v6378
        %v6465 = vpop.f32.mrf.mxu0
        %v6466 = vadd.f32 %v6302, %v6465
        %v6467 = vpop.f32.mrf.mxu0
        %v6468 = vpop.f32.mrf.mxu0
        %v6469 = vadd.f32 %v6307, %v6468
        %v6470 = vpop.f32.mrf.mxu0
        %6471 = vmatprep.mubr.bf16.mxu0 0
        %6472 = vmatmul.mubr.bf16.gmra.mxu0 %v6381
        %v6473 = vpop.f32.mrf.mxu0
        %v6474 = vadd.f32 %v6312, %v6473
        %v6475 = vpop.f32.mrf.mxu0
        %v6476 = vpop.f32.mrf.mxu0
        %v6477 = vadd.f32 %v6317, %v6476
        %v6478 = vpop.f32.mrf.mxu0
        %6479 = vdwg.mxu0
        %6480 = vst.msk [vmem:[%s5323 + $0x200] sm:$0xff] %vm697, %v6418
        %6481 = vst.msk [vmem:[%s5323 + $0x208] sm:$0xff] %vm697, %v6421
        %6482 = vst.msk [vmem:[%s5323 + $0x210] sm:$0xff] %vm697, %v6426
        %6483 = vst.msk [vmem:[%s5323 + $0x218] sm:$0xff] %vm697, %v6429
        %6484 = vst.msk [vmem:[%s5323 + $0x220] sm:$0xff] %vm697, %v6434
        %6485 = vst.msk [vmem:[%s5323 + $0x228] sm:$0xff] %vm697, %v6437
        %6486 = vst.msk [vmem:[%s5323 + $0x230] sm:$0xff] %vm697, %v6442
        %6487 = vst.msk [vmem:[%s5323 + $0x238] sm:$0xff] %vm697, %v6445
        %6488 = vst.msk [vmem:[%s5323 + $0x240] sm:$0xff] %vm697, %v6450
        %6489 = vst.msk [vmem:[%s5323 + $0x248] sm:$0xff] %vm697, %v6453
        %6490 = vst.msk [vmem:[%s5323 + $0x250] sm:$0xff] %vm697, %v6458
        %6491 = vst.msk [vmem:[%s5323 + $0x258] sm:$0xff] %vm697, %v6461
        %6492 = vst.msk [vmem:[%s5323 + $0x260] sm:$0xff] %vm697, %v6466
        %6493 = vst.msk [vmem:[%s5323 + $0x268] sm:$0xff] %vm697, %v6469
        %6494 = vst.msk [vmem:[%s5323 + $0x270] sm:$0xff] %vm697, %v6474
        %6495 = vst.msk [vmem:[%s5323 + $0x278] sm:$0xff] %vm697, %v6477
        %v6496 = vld [vmem:[%s2 + $0x140] sm:$0xf]
        %v6497 = vld [vmem:[%s2 + $0x144] sm:$0xf]
        %v6498 = vld [vmem:[%s2 + $0x148] sm:$0xf]
        %v6499 = vld [vmem:[%s2 + $0x14c] sm:$0xf]
        %v6500 = vld [vmem:[%s2 + $0x150] sm:$0xf]
        %v6501 = vld [vmem:[%s2 + $0x154] sm:$0xf]
        %v6502 = vld [vmem:[%s2 + $0x158] sm:$0xf]
        %v6503 = vld [vmem:[%s2 + $0x15c] sm:$0xf]
        %v6504 = vld [vmem:[%s2 + $0x160] sm:$0xf]
        %v6505 = vld [vmem:[%s2 + $0x164] sm:$0xf]
        %v6506 = vld [vmem:[%s2 + $0x168] sm:$0xf]
        %v6507 = vld [vmem:[%s2 + $0x16c] sm:$0xf]
        %v6508 = vld [vmem:[%s2 + $0x170] sm:$0xf]
        %v6509 = vld [vmem:[%s2 + $0x174] sm:$0xf]
        %v6510 = vld [vmem:[%s2 + $0x178] sm:$0xf]
        %v6511 = vld [vmem:[%s2 + $0x17c] sm:$0xf]
        %v6512 = vld [vmem:[%s4 + $0x280] sm:$0xff]
        %v6513 = vld [vmem:[%s4 + $0x288] sm:$0xff]
        %v6514 = vld [vmem:[%s4 + $0x290] sm:$0xff]
        %v6515 = vld [vmem:[%s4 + $0x298] sm:$0xff]
        %v6516 = vld [vmem:[%s4 + $0x2a0] sm:$0xff]
        %v6517 = vld [vmem:[%s4 + $0x2a8] sm:$0xff]
        %v6518 = vld [vmem:[%s4 + $0x2b0] sm:$0xff]
        %v6519 = vld [vmem:[%s4 + $0x2b8] sm:$0xff]
        %v6520 = vld [vmem:[%s4 + $0x2c0] sm:$0xff]
        %v6521 = vld [vmem:[%s4 + $0x2c8] sm:$0xff]
        %v6522 = vld [vmem:[%s4 + $0x2d0] sm:$0xff]
        %v6523 = vld [vmem:[%s4 + $0x2d8] sm:$0xff]
        %v6524 = vld [vmem:[%s4 + $0x2e0] sm:$0xff]
        %v6525 = vld [vmem:[%s4 + $0x2e8] sm:$0xff]
        %v6526 = vld [vmem:[%s4 + $0x2f0] sm:$0xff]
        %v6527 = vld [vmem:[%s4 + $0x2f8] sm:$0xff]
        %6529 = vset.pattern.permute.xlu0 0
        %6530 = vperm.xlu0 %6529, %v6512
        %v6531 = vpop.permute.xlu0 %6530
        %6534 = vset.pattern.permute.xlu0 0
        %6535 = vperm.xlu0 %6534, %v6513
        %v6536 = vpop.permute.xlu0 %6535
        %6539 = vset.pattern.permute.xlu0 0
        %6540 = vperm.xlu0 %6539, %v6514
        %v6541 = vpop.permute.xlu0 %6540
        %6544 = vset.pattern.permute.xlu0 0
        %6545 = vperm.xlu0 %6544, %v6515
        %v6546 = vpop.permute.xlu0 %6545
        %6549 = vset.pattern.permute.xlu0 0
        %6550 = vperm.xlu0 %6549, %v6516
        %v6551 = vpop.permute.xlu0 %6550
        %6554 = vset.pattern.permute.xlu0 0
        %6555 = vperm.xlu0 %6554, %v6517
        %v6556 = vpop.permute.xlu0 %6555
        %6559 = vset.pattern.permute.xlu0 0
        %6560 = vperm.xlu0 %6559, %v6518
        %v6561 = vpop.permute.xlu0 %6560
        %6564 = vset.pattern.permute.xlu0 0
        %6565 = vperm.xlu0 %6564, %v6519
        %v6566 = vpop.permute.xlu0 %6565
        %6569 = vset.pattern.permute.xlu0 0
        %6570 = vperm.xlu0 %6569, %v6520
        %v6571 = vpop.permute.xlu0 %6570
        %6574 = vset.pattern.permute.xlu0 0
        %6575 = vperm.xlu0 %6574, %v6521
        %v6576 = vpop.permute.xlu0 %6575
        %6579 = vset.pattern.permute.xlu0 0
        %6580 = vperm.xlu0 %6579, %v6522
        %v6581 = vpop.permute.xlu0 %6580
        %6584 = vset.pattern.permute.xlu0 0
        %6585 = vperm.xlu0 %6584, %v6523
        %v6586 = vpop.permute.xlu0 %6585
        %6589 = vset.pattern.permute.xlu0 0
        %6590 = vperm.xlu0 %6589, %v6524
        %v6591 = vpop.permute.xlu0 %6590
        %6594 = vset.pattern.permute.xlu0 0
        %6595 = vperm.xlu0 %6594, %v6525
        %v6596 = vpop.permute.xlu0 %6595
        %6599 = vset.pattern.permute.xlu0 0
        %6600 = vperm.xlu0 %6599, %v6526
        %v6601 = vpop.permute.xlu0 %6600
        %6604 = vset.pattern.permute.xlu0 0
        %6605 = vperm.xlu0 %6604, %v6527
        %v6606 = vpop.permute.xlu0 %6605
        %v6624 = vunpack.c.l.b16 %v6496
        %v6625 = vunpack.c.l.b16 %v6497
        %v6626 = vunpack.c.l.b16 %v6498
        %v6627 = vunpack.c.l.b16 %v6499
        %v6628 = vunpack.c.l.b16 %v6500
        %v6629 = vunpack.c.l.b16 %v6501
        %v6630 = vunpack.c.l.b16 %v6502
        %v6631 = vunpack.c.l.b16 %v6503
        %v6632 = vunpack.c.l.b16 %v6504
        %v6633 = vunpack.c.l.b16 %v6505
        %v6634 = vunpack.c.l.b16 %v6506
        %v6635 = vunpack.c.l.b16 %v6507
        %v6636 = vunpack.c.l.b16 %v6508
        %v6637 = vunpack.c.l.b16 %v6509
        %v6638 = vunpack.c.l.b16 %v6510
        %v6639 = vunpack.c.l.b16 %v6511
        %v6640 = vpack.c.b16 %v6625, %v6624
        %v6641 = vpack.c.b16 %v6627, %v6626
        %v6642 = vpack.c.b16 %v6629, %v6628
        %v6643 = vpack.c.b16 %v6631, %v6630
        %v6644 = vpack.c.b16 %v6633, %v6632
        %v6645 = vpack.c.b16 %v6635, %v6634
        %v6646 = vpack.c.b16 %v6637, %v6636
        %v6647 = vpack.c.b16 %v6639, %v6638
        %v6649 = vsel %vm575, %v6640, 0
        %v6652 = vsel %vm575, %v6641, 0
        %v6655 = vsel %vm575, %v6642, 0
        %v6658 = vsel %vm575, %v6643, 0
        %v6661 = vsel %vm575, %v6644, 0
        %v6664 = vsel %vm575, %v6645, 0
        %v6667 = vsel %vm575, %v6646, 0
        %v6670 = vsel %vm575, %v6647, 0
        %6672 = vmatprep.subr.bf16.mxu0 0
        %6673 = vmatpush1.bf16.msra.mxu0 0
        %6674 = vmatprep.subr.bf16.mxu0 0
        %6675 = vmatpush1.bf16.msra.mxu0 0
        %6676 = vmatprep.subr.bf16.mxu0 0
        %6677 = vmatpush1.bf16.msra.mxu0 0
        %6678 = vmatprep.subr.bf16.mxu0 0
        %6679 = vmatpush1.bf16.msra.mxu0 0
        %6680 = vmatprep.subr.bf16.mxu0 0
        %6681 = vmatpush1.bf16.msra.mxu0 0
        %6682 = vmatprep.subr.bf16.mxu0 0
        %6683 = vmatpush1.bf16.msra.mxu0 0
        %6684 = vmatprep.subr.bf16.mxu0 0
        %6685 = vmatpush1.bf16.msra.mxu0 %v420
        %6686 = vmatprep.subr.bf16.mxu0 0
        %6687 = vmatpush1.bf16.msra.mxu0 %v419
        %6688 = vmatprep.subr.bf16.mxu0 0
        %6689 = vmatpush2.bf16.msra.mxu0 0
        %6690 = vmatprep.subr.bf16.mxu0 0
        %6691 = vmatpush2.bf16.msra.mxu0 0
        %6692 = vmatprep.subr.bf16.mxu0 0
        %6693 = vmatpush2.bf16.msra.mxu0 0
        %6694 = vmatprep.subr.bf16.mxu0 0
        %6695 = vmatpush2.bf16.msra.mxu0 0
        %6696 = vmatprep.subr.bf16.mxu0 0
        %6697 = vmatpush2.bf16.msra.mxu0 0
        %6698 = vmatprep.subr.bf16.mxu0 0
        %6699 = vmatpush2.bf16.msra.mxu0 0
        %6700 = vmatprep.subr.bf16.mxu0 0
        %6701 = vmatpush2.bf16.msra.mxu0 0
        %6702 = vmatprep.subr.bf16.mxu0 0
        %6703 = vmatpush2.bf16.msra.mxu0 0
        %6704 = vmatprep.mubr.bf16.mxu0 0
        %6705 = vmatmul.mubr.bf16.gmra.mxu0 %v6649
        %v6706 = vpop.f32.mrf.mxu0
        %v6707 = vadd.f32 %v6531, %v6706
        %v6708 = vpop.f32.mrf.mxu0
        %v6709 = vpop.f32.mrf.mxu0
        %v6710 = vadd.f32 %v6536, %v6709
        %v6711 = vpop.f32.mrf.mxu0
        %6712 = vmatprep.mubr.bf16.mxu0 0
        %6713 = vmatmul.mubr.bf16.gmra.mxu0 %v6652
        %v6714 = vpop.f32.mrf.mxu0
        %v6715 = vadd.f32 %v6541, %v6714
        %v6716 = vpop.f32.mrf.mxu0
        %v6717 = vpop.f32.mrf.mxu0
        %v6718 = vadd.f32 %v6546, %v6717
        %v6719 = vpop.f32.mrf.mxu0
        %6720 = vmatprep.mubr.bf16.mxu0 0
        %6721 = vmatmul.mubr.bf16.gmra.mxu0 %v6655
        %v6722 = vpop.f32.mrf.mxu0
        %v6723 = vadd.f32 %v6551, %v6722
        %v6724 = vpop.f32.mrf.mxu0
        %v6725 = vpop.f32.mrf.mxu0
        %v6726 = vadd.f32 %v6556, %v6725
        %v6727 = vpop.f32.mrf.mxu0
        %6728 = vmatprep.mubr.bf16.mxu0 0
        %6729 = vmatmul.mubr.bf16.gmra.mxu0 %v6658
        %v6730 = vpop.f32.mrf.mxu0
        %v6731 = vadd.f32 %v6561, %v6730
        %v6732 = vpop.f32.mrf.mxu0
        %v6733 = vpop.f32.mrf.mxu0
        %v6734 = vadd.f32 %v6566, %v6733
        %v6735 = vpop.f32.mrf.mxu0
        %6736 = vmatprep.mubr.bf16.mxu0 0
        %6737 = vmatmul.mubr.bf16.gmra.mxu0 %v6661
        %v6738 = vpop.f32.mrf.mxu0
        %v6739 = vadd.f32 %v6571, %v6738
        %v6740 = vpop.f32.mrf.mxu0
        %v6741 = vpop.f32.mrf.mxu0
        %v6742 = vadd.f32 %v6576, %v6741
        %v6743 = vpop.f32.mrf.mxu0
        %6744 = vmatprep.mubr.bf16.mxu0 0
        %6745 = vmatmul.mubr.bf16.gmra.mxu0 %v6664
        %v6746 = vpop.f32.mrf.mxu0
        %v6747 = vadd.f32 %v6581, %v6746
        %v6748 = vpop.f32.mrf.mxu0
        %v6749 = vpop.f32.mrf.mxu0
        %v6750 = vadd.f32 %v6586, %v6749
        %v6751 = vpop.f32.mrf.mxu0
        %6752 = vmatprep.mubr.bf16.mxu0 0
        %6753 = vmatmul.mubr.bf16.gmra.mxu0 %v6667
        %v6754 = vpop.f32.mrf.mxu0
        %v6755 = vadd.f32 %v6591, %v6754
        %v6756 = vpop.f32.mrf.mxu0
        %v6757 = vpop.f32.mrf.mxu0
        %v6758 = vadd.f32 %v6596, %v6757
        %v6759 = vpop.f32.mrf.mxu0
        %6760 = vmatprep.mubr.bf16.mxu0 0
        %6761 = vmatmul.mubr.bf16.gmra.mxu0 %v6670
        %v6762 = vpop.f32.mrf.mxu0
        %v6763 = vadd.f32 %v6601, %v6762
        %v6764 = vpop.f32.mrf.mxu0
        %v6765 = vpop.f32.mrf.mxu0
        %v6766 = vadd.f32 %v6606, %v6765
        %v6767 = vpop.f32.mrf.mxu0
        %6768 = vdwg.mxu0
        %6769 = vst.msk [vmem:[%s5323 + $0x280] sm:$0xff] %vm697, %v6707
        %6770 = vst.msk [vmem:[%s5323 + $0x288] sm:$0xff] %vm697, %v6710
        %6771 = vst.msk [vmem:[%s5323 + $0x290] sm:$0xff] %vm697, %v6715
        %6772 = vst.msk [vmem:[%s5323 + $0x298] sm:$0xff] %vm697, %v6718
        %6773 = vst.msk [vmem:[%s5323 + $0x2a0] sm:$0xff] %vm697, %v6723
        %6774 = vst.msk [vmem:[%s5323 + $0x2a8] sm:$0xff] %vm697, %v6726
        %6775 = vst.msk [vmem:[%s5323 + $0x2b0] sm:$0xff] %vm697, %v6731
        %6776 = vst.msk [vmem:[%s5323 + $0x2b8] sm:$0xff] %vm697, %v6734
        %6777 = vst.msk [vmem:[%s5323 + $0x2c0] sm:$0xff] %vm697, %v6739
        %6778 = vst.msk [vmem:[%s5323 + $0x2c8] sm:$0xff] %vm697, %v6742
        %6779 = vst.msk [vmem:[%s5323 + $0x2d0] sm:$0xff] %vm697, %v6747
        %6780 = vst.msk [vmem:[%s5323 + $0x2d8] sm:$0xff] %vm697, %v6750
        %6781 = vst.msk [vmem:[%s5323 + $0x2e0] sm:$0xff] %vm697, %v6755
        %6782 = vst.msk [vmem:[%s5323 + $0x2e8] sm:$0xff] %vm697, %v6758
        %6783 = vst.msk [vmem:[%s5323 + $0x2f0] sm:$0xff] %vm697, %v6763
        %6784 = vst.msk [vmem:[%s5323 + $0x2f8] sm:$0xff] %vm697, %v6766
        %v6785 = vld [vmem:[%s2 + $0x180] sm:$0xf]
        %v6786 = vld [vmem:[%s2 + $0x184] sm:$0xf]
        %v6787 = vld [vmem:[%s2 + $0x188] sm:$0xf]
        %v6788 = vld [vmem:[%s2 + $0x18c] sm:$0xf]
        %v6789 = vld [vmem:[%s2 + $0x190] sm:$0xf]
        %v6790 = vld [vmem:[%s2 + $0x194] sm:$0xf]
        %v6791 = vld [vmem:[%s2 + $0x198] sm:$0xf]
        %v6792 = vld [vmem:[%s2 + $0x19c] sm:$0xf]
        %v6793 = vld [vmem:[%s2 + $0x1a0] sm:$0xf]
        %v6794 = vld [vmem:[%s2 + $0x1a4] sm:$0xf]
        %v6795 = vld [vmem:[%s2 + $0x1a8] sm:$0xf]
        %v6796 = vld [vmem:[%s2 + $0x1ac] sm:$0xf]
        %v6797 = vld [vmem:[%s2 + $0x1b0] sm:$0xf]
        %v6798 = vld [vmem:[%s2 + $0x1b4] sm:$0xf]
        %v6799 = vld [vmem:[%s2 + $0x1b8] sm:$0xf]
        %v6800 = vld [vmem:[%s2 + $0x1bc] sm:$0xf]
        %v6801 = vld [vmem:[%s4 + $0x300] sm:$0xff]
        %v6802 = vld [vmem:[%s4 + $0x308] sm:$0xff]
        %v6803 = vld [vmem:[%s4 + $0x310] sm:$0xff]
        %v6804 = vld [vmem:[%s4 + $0x318] sm:$0xff]
        %v6805 = vld [vmem:[%s4 + $0x320] sm:$0xff]
        %v6806 = vld [vmem:[%s4 + $0x328] sm:$0xff]
        %v6807 = vld [vmem:[%s4 + $0x330] sm:$0xff]
        %v6808 = vld [vmem:[%s4 + $0x338] sm:$0xff]
        %v6809 = vld [vmem:[%s4 + $0x340] sm:$0xff]
        %v6810 = vld [vmem:[%s4 + $0x348] sm:$0xff]
        %v6811 = vld [vmem:[%s4 + $0x350] sm:$0xff]
        %v6812 = vld [vmem:[%s4 + $0x358] sm:$0xff]
        %v6813 = vld [vmem:[%s4 + $0x360] sm:$0xff]
        %v6814 = vld [vmem:[%s4 + $0x368] sm:$0xff]
        %v6815 = vld [vmem:[%s4 + $0x370] sm:$0xff]
        %v6816 = vld [vmem:[%s4 + $0x378] sm:$0xff]
        %6818 = vset.pattern.permute.xlu0 0
        %6819 = vperm.xlu0 %6818, %v6801
        %v6820 = vpop.permute.xlu0 %6819
        %6823 = vset.pattern.permute.xlu0 0
        %6824 = vperm.xlu0 %6823, %v6802
        %v6825 = vpop.permute.xlu0 %6824
        %6828 = vset.pattern.permute.xlu0 0
        %6829 = vperm.xlu0 %6828, %v6803
        %v6830 = vpop.permute.xlu0 %6829
        %6833 = vset.pattern.permute.xlu0 0
        %6834 = vperm.xlu0 %6833, %v6804
        %v6835 = vpop.permute.xlu0 %6834
        %6838 = vset.pattern.permute.xlu0 0
        %6839 = vperm.xlu0 %6838, %v6805
        %v6840 = vpop.permute.xlu0 %6839
        %6843 = vset.pattern.permute.xlu0 0
        %6844 = vperm.xlu0 %6843, %v6806
        %v6845 = vpop.permute.xlu0 %6844
        %6848 = vset.pattern.permute.xlu0 0
        %6849 = vperm.xlu0 %6848, %v6807
        %v6850 = vpop.permute.xlu0 %6849
        %6853 = vset.pattern.permute.xlu0 0
        %6854 = vperm.xlu0 %6853, %v6808
        %v6855 = vpop.permute.xlu0 %6854
        %6858 = vset.pattern.permute.xlu0 0
        %6859 = vperm.xlu0 %6858, %v6809
        %v6860 = vpop.permute.xlu0 %6859
        %6863 = vset.pattern.permute.xlu0 0
        %6864 = vperm.xlu0 %6863, %v6810
        %v6865 = vpop.permute.xlu0 %6864
        %6868 = vset.pattern.permute.xlu0 0
        %6869 = vperm.xlu0 %6868, %v6811
        %v6870 = vpop.permute.xlu0 %6869
        %6873 = vset.pattern.permute.xlu0 0
        %6874 = vperm.xlu0 %6873, %v6812
        %v6875 = vpop.permute.xlu0 %6874
        %6878 = vset.pattern.permute.xlu0 0
        %6879 = vperm.xlu0 %6878, %v6813
        %v6880 = vpop.permute.xlu0 %6879
        %6883 = vset.pattern.permute.xlu0 0
        %6884 = vperm.xlu0 %6883, %v6814
        %v6885 = vpop.permute.xlu0 %6884
        %6888 = vset.pattern.permute.xlu0 0
        %6889 = vperm.xlu0 %6888, %v6815
        %v6890 = vpop.permute.xlu0 %6889
        %6893 = vset.pattern.permute.xlu0 0
        %6894 = vperm.xlu0 %6893, %v6816
        %v6895 = vpop.permute.xlu0 %6894
        %v6913 = vunpack.c.l.b16 %v6785
        %v6914 = vunpack.c.l.b16 %v6786
        %v6915 = vunpack.c.l.b16 %v6787
        %v6916 = vunpack.c.l.b16 %v6788
        %v6917 = vunpack.c.l.b16 %v6789
        %v6918 = vunpack.c.l.b16 %v6790
        %v6919 = vunpack.c.l.b16 %v6791
        %v6920 = vunpack.c.l.b16 %v6792
        %v6921 = vunpack.c.l.b16 %v6793
        %v6922 = vunpack.c.l.b16 %v6794
        %v6923 = vunpack.c.l.b16 %v6795
        %v6924 = vunpack.c.l.b16 %v6796
        %v6925 = vunpack.c.l.b16 %v6797
        %v6926 = vunpack.c.l.b16 %v6798
        %v6927 = vunpack.c.l.b16 %v6799
        %v6928 = vunpack.c.l.b16 %v6800
        %v6929 = vpack.c.b16 %v6914, %v6913
        %v6930 = vpack.c.b16 %v6916, %v6915
        %v6931 = vpack.c.b16 %v6918, %v6917
        %v6932 = vpack.c.b16 %v6920, %v6919
        %v6933 = vpack.c.b16 %v6922, %v6921
        %v6934 = vpack.c.b16 %v6924, %v6923
        %v6935 = vpack.c.b16 %v6926, %v6925
        %v6936 = vpack.c.b16 %v6928, %v6927
        %v6938 = vsel %vm575, %v6929, 0
        %v6941 = vsel %vm575, %v6930, 0
        %v6944 = vsel %vm575, %v6931, 0
        %v6947 = vsel %vm575, %v6932, 0
        %v6950 = vsel %vm575, %v6933, 0
        %v6953 = vsel %vm575, %v6934, 0
        %v6956 = vsel %vm575, %v6935, 0
        %v6959 = vsel %vm575, %v6936, 0
        %6961 = vmatprep.subr.bf16.mxu0 0
        %6962 = vmatpush1.bf16.msra.mxu0 0
        %6963 = vmatprep.subr.bf16.mxu0 0
        %6964 = vmatpush1.bf16.msra.mxu0 0
        %6965 = vmatprep.subr.bf16.mxu0 0
        %6966 = vmatpush1.bf16.msra.mxu0 0
        %6967 = vmatprep.subr.bf16.mxu0 0
        %6968 = vmatpush1.bf16.msra.mxu0 0
        %6969 = vmatprep.subr.bf16.mxu0 0
        %6970 = vmatpush1.bf16.msra.mxu0 0
        %6971 = vmatprep.subr.bf16.mxu0 0
        %6972 = vmatpush1.bf16.msra.mxu0 0
        %6973 = vmatprep.subr.bf16.mxu0 0
        %6974 = vmatpush1.bf16.msra.mxu0 %v420
        %6975 = vmatprep.subr.bf16.mxu0 0
        %6976 = vmatpush1.bf16.msra.mxu0 %v419
        %6977 = vmatprep.subr.bf16.mxu0 0
        %6978 = vmatpush2.bf16.msra.mxu0 0
        %6979 = vmatprep.subr.bf16.mxu0 0
        %6980 = vmatpush2.bf16.msra.mxu0 0
        %6981 = vmatprep.subr.bf16.mxu0 0
        %6982 = vmatpush2.bf16.msra.mxu0 0
        %6983 = vmatprep.subr.bf16.mxu0 0
        %6984 = vmatpush2.bf16.msra.mxu0 0
        %6985 = vmatprep.subr.bf16.mxu0 0
        %6986 = vmatpush2.bf16.msra.mxu0 0
        %6987 = vmatprep.subr.bf16.mxu0 0
        %6988 = vmatpush2.bf16.msra.mxu0 0
        %6989 = vmatprep.subr.bf16.mxu0 0
        %6990 = vmatpush2.bf16.msra.mxu0 0
        %6991 = vmatprep.subr.bf16.mxu0 0
        %6992 = vmatpush2.bf16.msra.mxu0 0
        %6993 = vmatprep.mubr.bf16.mxu0 0
        %6994 = vmatmul.mubr.bf16.gmra.mxu0 %v6938
        %v6995 = vpop.f32.mrf.mxu0
        %v6996 = vadd.f32 %v6820, %v6995
        %v6997 = vpop.f32.mrf.mxu0
        %v6998 = vpop.f32.mrf.mxu0
        %v6999 = vadd.f32 %v6825, %v6998
        %v7000 = vpop.f32.mrf.mxu0
        %7001 = vmatprep.mubr.bf16.mxu0 0
        %7002 = vmatmul.mubr.bf16.gmra.mxu0 %v6941
        %v7003 = vpop.f32.mrf.mxu0
        %v7004 = vadd.f32 %v6830, %v7003
        %v7005 = vpop.f32.mrf.mxu0
        %v7006 = vpop.f32.mrf.mxu0
        %v7007 = vadd.f32 %v6835, %v7006
        %v7008 = vpop.f32.mrf.mxu0
        %7009 = vmatprep.mubr.bf16.mxu0 0
        %7010 = vmatmul.mubr.bf16.gmra.mxu0 %v6944
        %v7011 = vpop.f32.mrf.mxu0
        %v7012 = vadd.f32 %v6840, %v7011
        %v7013 = vpop.f32.mrf.mxu0
        %v7014 = vpop.f32.mrf.mxu0
        %v7015 = vadd.f32 %v6845, %v7014
        %v7016 = vpop.f32.mrf.mxu0
        %7017 = vmatprep.mubr.bf16.mxu0 0
        %7018 = vmatmul.mubr.bf16.gmra.mxu0 %v6947
        %v7019 = vpop.f32.mrf.mxu0
        %v7020 = vadd.f32 %v6850, %v7019
        %v7021 = vpop.f32.mrf.mxu0
        %v7022 = vpop.f32.mrf.mxu0
        %v7023 = vadd.f32 %v6855, %v7022
        %v7024 = vpop.f32.mrf.mxu0
        %7025 = vmatprep.mubr.bf16.mxu0 0
        %7026 = vmatmul.mubr.bf16.gmra.mxu0 %v6950
        %v7027 = vpop.f32.mrf.mxu0
        %v7028 = vadd.f32 %v6860, %v7027
        %v7029 = vpop.f32.mrf.mxu0
        %v7030 = vpop.f32.mrf.mxu0
        %v7031 = vadd.f32 %v6865, %v7030
        %v7032 = vpop.f32.mrf.mxu0
        %7033 = vmatprep.mubr.bf16.mxu0 0
        %7034 = vmatmul.mubr.bf16.gmra.mxu0 %v6953
        %v7035 = vpop.f32.mrf.mxu0
        %v7036 = vadd.f32 %v6870, %v7035
        %v7037 = vpop.f32.mrf.mxu0
        %v7038 = vpop.f32.mrf.mxu0
        %v7039 = vadd.f32 %v6875, %v7038
        %v7040 = vpop.f32.mrf.mxu0
        %7041 = vmatprep.mubr.bf16.mxu0 0
        %7042 = vmatmul.mubr.bf16.gmra.mxu0 %v6956
        %v7043 = vpop.f32.mrf.mxu0
        %v7044 = vadd.f32 %v6880, %v7043
        %v7045 = vpop.f32.mrf.mxu0
        %v7046 = vpop.f32.mrf.mxu0
        %v7047 = vadd.f32 %v6885, %v7046
        %v7048 = vpop.f32.mrf.mxu0
        %7049 = vmatprep.mubr.bf16.mxu0 0
        %7050 = vmatmul.mubr.bf16.gmra.mxu0 %v6959
        %v7051 = vpop.f32.mrf.mxu0
        %v7052 = vadd.f32 %v6890, %v7051
        %v7053 = vpop.f32.mrf.mxu0
        %v7054 = vpop.f32.mrf.mxu0
        %v7055 = vadd.f32 %v6895, %v7054
        %v7056 = vpop.f32.mrf.mxu0
        %7057 = vdwg.mxu0
        %7058 = vst.msk [vmem:[%s5323 + $0x300] sm:$0xff] %vm697, %v6996
        %7059 = vst.msk [vmem:[%s5323 + $0x308] sm:$0xff] %vm697, %v6999
        %7060 = vst.msk [vmem:[%s5323 + $0x310] sm:$0xff] %vm697, %v7004
        %7061 = vst.msk [vmem:[%s5323 + $0x318] sm:$0xff] %vm697, %v7007
        %7062 = vst.msk [vmem:[%s5323 + $0x320] sm:$0xff] %vm697, %v7012
        %7063 = vst.msk [vmem:[%s5323 + $0x328] sm:$0xff] %vm697, %v7015
        %7064 = vst.msk [vmem:[%s5323 + $0x330] sm:$0xff] %vm697, %v7020
        %7065 = vst.msk [vmem:[%s5323 + $0x338] sm:$0xff] %vm697, %v7023
        %7066 = vst.msk [vmem:[%s5323 + $0x340] sm:$0xff] %vm697, %v7028
        %7067 = vst.msk [vmem:[%s5323 + $0x348] sm:$0xff] %vm697, %v7031
        %7068 = vst.msk [vmem:[%s5323 + $0x350] sm:$0xff] %vm697, %v7036
        %7069 = vst.msk [vmem:[%s5323 + $0x358] sm:$0xff] %vm697, %v7039
        %7070 = vst.msk [vmem:[%s5323 + $0x360] sm:$0xff] %vm697, %v7044
        %7071 = vst.msk [vmem:[%s5323 + $0x368] sm:$0xff] %vm697, %v7047
        %7072 = vst.msk [vmem:[%s5323 + $0x370] sm:$0xff] %vm697, %v7052
        %7073 = vst.msk [vmem:[%s5323 + $0x378] sm:$0xff] %vm697, %v7055
        %v7074 = vld [vmem:[%s2 + $0x1c0] sm:$0xf]
        %v7075 = vld [vmem:[%s2 + $0x1c4] sm:$0xf]
        %v7076 = vld [vmem:[%s2 + $0x1c8] sm:$0xf]
        %v7077 = vld [vmem:[%s2 + $0x1cc] sm:$0xf]
        %v7078 = vld [vmem:[%s2 + $0x1d0] sm:$0xf]
        %v7079 = vld [vmem:[%s2 + $0x1d4] sm:$0xf]
        %v7080 = vld [vmem:[%s2 + $0x1d8] sm:$0xf]
        %v7081 = vld [vmem:[%s2 + $0x1dc] sm:$0xf]
        %v7082 = vld [vmem:[%s2 + $0x1e0] sm:$0xf]
        %v7083 = vld [vmem:[%s2 + $0x1e4] sm:$0xf]
        %v7084 = vld [vmem:[%s2 + $0x1e8] sm:$0xf]
        %v7085 = vld [vmem:[%s2 + $0x1ec] sm:$0xf]
        %v7086 = vld [vmem:[%s2 + $0x1f0] sm:$0xf]
        %v7087 = vld [vmem:[%s2 + $0x1f4] sm:$0xf]
        %v7088 = vld [vmem:[%s2 + $0x1f8] sm:$0xf]
        %v7089 = vld [vmem:[%s2 + $0x1fc] sm:$0xf]
        %v7090 = vld [vmem:[%s4 + $0x380] sm:$0xff]
        %v7091 = vld [vmem:[%s4 + $0x388] sm:$0xff]
        %v7092 = vld [vmem:[%s4 + $0x390] sm:$0xff]
        %v7093 = vld [vmem:[%s4 + $0x398] sm:$0xff]
        %v7094 = vld [vmem:[%s4 + $0x3a0] sm:$0xff]
        %v7095 = vld [vmem:[%s4 + $0x3a8] sm:$0xff]
        %v7096 = vld [vmem:[%s4 + $0x3b0] sm:$0xff]
        %v7097 = vld [vmem:[%s4 + $0x3b8] sm:$0xff]
        %v7098 = vld [vmem:[%s4 + $0x3c0] sm:$0xff]
        %v7099 = vld [vmem:[%s4 + $0x3c8] sm:$0xff]
        %v7100 = vld [vmem:[%s4 + $0x3d0] sm:$0xff]
        %v7101 = vld [vmem:[%s4 + $0x3d8] sm:$0xff]
        %v7102 = vld [vmem:[%s4 + $0x3e0] sm:$0xff]
        %v7103 = vld [vmem:[%s4 + $0x3e8] sm:$0xff]
        %v7104 = vld [vmem:[%s4 + $0x3f0] sm:$0xff]
        %v7105 = vld [vmem:[%s4 + $0x3f8] sm:$0xff]
        %7107 = vset.pattern.permute.xlu0 0
        %7108 = vperm.xlu0 %7107, %v7090
        %v7109 = vpop.permute.xlu0 %7108
        %7112 = vset.pattern.permute.xlu0 0
        %7113 = vperm.xlu0 %7112, %v7091
        %v7114 = vpop.permute.xlu0 %7113
        %7117 = vset.pattern.permute.xlu0 0
        %7118 = vperm.xlu0 %7117, %v7092
        %v7119 = vpop.permute.xlu0 %7118
        %7122 = vset.pattern.permute.xlu0 0
        %7123 = vperm.xlu0 %7122, %v7093
        %v7124 = vpop.permute.xlu0 %7123
        %7127 = vset.pattern.permute.xlu0 0
        %7128 = vperm.xlu0 %7127, %v7094
        %v7129 = vpop.permute.xlu0 %7128
        %7132 = vset.pattern.permute.xlu0 0
        %7133 = vperm.xlu0 %7132, %v7095
        %v7134 = vpop.permute.xlu0 %7133
        %7137 = vset.pattern.permute.xlu0 0
        %7138 = vperm.xlu0 %7137, %v7096
        %v7139 = vpop.permute.xlu0 %7138
        %7142 = vset.pattern.permute.xlu0 0
        %7143 = vperm.xlu0 %7142, %v7097
        %v7144 = vpop.permute.xlu0 %7143
        %7147 = vset.pattern.permute.xlu0 0
        %7148 = vperm.xlu0 %7147, %v7098
        %v7149 = vpop.permute.xlu0 %7148
        %7152 = vset.pattern.permute.xlu0 0
        %7153 = vperm.xlu0 %7152, %v7099
        %v7154 = vpop.permute.xlu0 %7153
        %7157 = vset.pattern.permute.xlu0 0
        %7158 = vperm.xlu0 %7157, %v7100
        %v7159 = vpop.permute.xlu0 %7158
        %7162 = vset.pattern.permute.xlu0 0
        %7163 = vperm.xlu0 %7162, %v7101
        %v7164 = vpop.permute.xlu0 %7163
        %7167 = vset.pattern.permute.xlu0 0
        %7168 = vperm.xlu0 %7167, %v7102
        %v7169 = vpop.permute.xlu0 %7168
        %7172 = vset.pattern.permute.xlu0 0
        %7173 = vperm.xlu0 %7172, %v7103
        %v7174 = vpop.permute.xlu0 %7173
        %7177 = vset.pattern.permute.xlu0 0
        %7178 = vperm.xlu0 %7177, %v7104
        %v7179 = vpop.permute.xlu0 %7178
        %7182 = vset.pattern.permute.xlu0 0
        %7183 = vperm.xlu0 %7182, %v7105
        %v7184 = vpop.permute.xlu0 %7183
        %v7202 = vunpack.c.l.b16 %v7074
        %v7203 = vunpack.c.l.b16 %v7075
        %v7204 = vunpack.c.l.b16 %v7076
        %v7205 = vunpack.c.l.b16 %v7077
        %v7206 = vunpack.c.l.b16 %v7078
        %v7207 = vunpack.c.l.b16 %v7079
        %v7208 = vunpack.c.l.b16 %v7080
        %v7209 = vunpack.c.l.b16 %v7081
        %v7210 = vunpack.c.l.b16 %v7082
        %v7211 = vunpack.c.l.b16 %v7083
        %v7212 = vunpack.c.l.b16 %v7084
        %v7213 = vunpack.c.l.b16 %v7085
        %v7214 = vunpack.c.l.b16 %v7086
        %v7215 = vunpack.c.l.b16 %v7087
        %v7216 = vunpack.c.l.b16 %v7088
        %v7217 = vunpack.c.l.b16 %v7089
        %v7218 = vpack.c.b16 %v7203, %v7202
        %v7219 = vpack.c.b16 %v7205, %v7204
        %v7220 = vpack.c.b16 %v7207, %v7206
        %v7221 = vpack.c.b16 %v7209, %v7208
        %v7222 = vpack.c.b16 %v7211, %v7210
        %v7223 = vpack.c.b16 %v7213, %v7212
        %v7224 = vpack.c.b16 %v7215, %v7214
        %v7225 = vpack.c.b16 %v7217, %v7216
        %v7227 = vsel %vm575, %v7218, 0
        %v7230 = vsel %vm575, %v7219, 0
        %v7233 = vsel %vm575, %v7220, 0
        %v7236 = vsel %vm575, %v7221, 0
        %v7239 = vsel %vm575, %v7222, 0
        %v7242 = vsel %vm575, %v7223, 0
        %v7245 = vsel %vm575, %v7224, 0
        %v7248 = vsel %vm575, %v7225, 0
        %7250 = vmatprep.subr.bf16.mxu0 0
        %7251 = vmatpush1.bf16.msra.mxu0 0
        %7252 = vmatprep.subr.bf16.mxu0 0
        %7253 = vmatpush1.bf16.msra.mxu0 0
        %7254 = vmatprep.subr.bf16.mxu0 0
        %7255 = vmatpush1.bf16.msra.mxu0 0
        %7256 = vmatprep.subr.bf16.mxu0 0
        %7257 = vmatpush1.bf16.msra.mxu0 0
        %7258 = vmatprep.subr.bf16.mxu0 0
        %7259 = vmatpush1.bf16.msra.mxu0 0
        %7260 = vmatprep.subr.bf16.mxu0 0
        %7261 = vmatpush1.bf16.msra.mxu0 0
        %7262 = vmatprep.subr.bf16.mxu0 0
        %7263 = vmatpush1.bf16.msra.mxu0 %v420
        %7264 = vmatprep.subr.bf16.mxu0 0
        %7265 = vmatpush1.bf16.msra.mxu0 %v419
        %7266 = vmatprep.subr.bf16.mxu0 0
        %7267 = vmatpush2.bf16.msra.mxu0 0
        %7268 = vmatprep.subr.bf16.mxu0 0
        %7269 = vmatpush2.bf16.msra.mxu0 0
        %7270 = vmatprep.subr.bf16.mxu0 0
        %7271 = vmatpush2.bf16.msra.mxu0 0
        %7272 = vmatprep.subr.bf16.mxu0 0
        %7273 = vmatpush2.bf16.msra.mxu0 0
        %7274 = vmatprep.subr.bf16.mxu0 0
        %7275 = vmatpush2.bf16.msra.mxu0 0
        %7276 = vmatprep.subr.bf16.mxu0 0
        %7277 = vmatpush2.bf16.msra.mxu0 0
        %7278 = vmatprep.subr.bf16.mxu0 0
        %7279 = vmatpush2.bf16.msra.mxu0 0
        %7280 = vmatprep.subr.bf16.mxu0 0
        %7281 = vmatpush2.bf16.msra.mxu0 0
        %7282 = vmatprep.mubr.bf16.mxu0 0
        %7283 = vmatmul.mubr.bf16.gmra.mxu0 %v7227
        %v7284 = vpop.f32.mrf.mxu0
        %v7285 = vadd.f32 %v7109, %v7284
        %v7286 = vpop.f32.mrf.mxu0
        %v7287 = vpop.f32.mrf.mxu0
        %v7288 = vadd.f32 %v7114, %v7287
        %v7289 = vpop.f32.mrf.mxu0
        %7290 = vmatprep.mubr.bf16.mxu0 0
        %7291 = vmatmul.mubr.bf16.gmra.mxu0 %v7230
        %v7292 = vpop.f32.mrf.mxu0
        %v7293 = vadd.f32 %v7119, %v7292
        %v7294 = vpop.f32.mrf.mxu0
        %v7295 = vpop.f32.mrf.mxu0
        %v7296 = vadd.f32 %v7124, %v7295
        %v7297 = vpop.f32.mrf.mxu0
        %7298 = vmatprep.mubr.bf16.mxu0 0
        %7299 = vmatmul.mubr.bf16.gmra.mxu0 %v7233
        %v7300 = vpop.f32.mrf.mxu0
        %v7301 = vadd.f32 %v7129, %v7300
        %v7302 = vpop.f32.mrf.mxu0
        %v7303 = vpop.f32.mrf.mxu0
        %v7304 = vadd.f32 %v7134, %v7303
        %v7305 = vpop.f32.mrf.mxu0
        %7306 = vmatprep.mubr.bf16.mxu0 0
        %7307 = vmatmul.mubr.bf16.gmra.mxu0 %v7236
        %v7308 = vpop.f32.mrf.mxu0
        %v7309 = vadd.f32 %v7139, %v7308
        %v7310 = vpop.f32.mrf.mxu0
        %v7311 = vpop.f32.mrf.mxu0
        %v7312 = vadd.f32 %v7144, %v7311
        %v7313 = vpop.f32.mrf.mxu0
        %7314 = vmatprep.mubr.bf16.mxu0 0
        %7315 = vmatmul.mubr.bf16.gmra.mxu0 %v7239
        %v7316 = vpop.f32.mrf.mxu0
        %v7317 = vadd.f32 %v7149, %v7316
        %v7318 = vpop.f32.mrf.mxu0
        %v7319 = vpop.f32.mrf.mxu0
        %v7320 = vadd.f32 %v7154, %v7319
        %v7321 = vpop.f32.mrf.mxu0
        %7322 = vmatprep.mubr.bf16.mxu0 0
        %7323 = vmatmul.mubr.bf16.gmra.mxu0 %v7242
        %v7324 = vpop.f32.mrf.mxu0
        %v7325 = vadd.f32 %v7159, %v7324
        %v7326 = vpop.f32.mrf.mxu0
        %v7327 = vpop.f32.mrf.mxu0
        %v7328 = vadd.f32 %v7164, %v7327
        %v7329 = vpop.f32.mrf.mxu0
        %7330 = vmatprep.mubr.bf16.mxu0 0
        %7331 = vmatmul.mubr.bf16.gmra.mxu0 %v7245
        %v7332 = vpop.f32.mrf.mxu0
        %v7333 = vadd.f32 %v7169, %v7332
        %v7334 = vpop.f32.mrf.mxu0
        %v7335 = vpop.f32.mrf.mxu0
        %v7336 = vadd.f32 %v7174, %v7335
        %v7337 = vpop.f32.mrf.mxu0
        %7338 = vmatprep.mubr.bf16.mxu0 0
        %7339 = vmatmul.mubr.bf16.gmra.mxu0 %v7248
        %v7340 = vpop.f32.mrf.mxu0
        %v7341 = vadd.f32 %v7179, %v7340
        %v7342 = vpop.f32.mrf.mxu0
        %v7343 = vpop.f32.mrf.mxu0
        %v7344 = vadd.f32 %v7184, %v7343
        %v7345 = vpop.f32.mrf.mxu0
        %7346 = vdwg.mxu0
        %7347 = vst.msk [vmem:[%s5323 + $0x380] sm:$0xff] %vm697, %v7285
        %7348 = vst.msk [vmem:[%s5323 + $0x388] sm:$0xff] %vm697, %v7288
        %7349 = vst.msk [vmem:[%s5323 + $0x390] sm:$0xff] %vm697, %v7293
        %7350 = vst.msk [vmem:[%s5323 + $0x398] sm:$0xff] %vm697, %v7296
        %7351 = vst.msk [vmem:[%s5323 + $0x3a0] sm:$0xff] %vm697, %v7301
        %7352 = vst.msk [vmem:[%s5323 + $0x3a8] sm:$0xff] %vm697, %v7304
        %7353 = vst.msk [vmem:[%s5323 + $0x3b0] sm:$0xff] %vm697, %v7309
        %7354 = vst.msk [vmem:[%s5323 + $0x3b8] sm:$0xff] %vm697, %v7312
        %7355 = vst.msk [vmem:[%s5323 + $0x3c0] sm:$0xff] %vm697, %v7317
        %7356 = vst.msk [vmem:[%s5323 + $0x3c8] sm:$0xff] %vm697, %v7320
        %7357 = vst.msk [vmem:[%s5323 + $0x3d0] sm:$0xff] %vm697, %v7325
        %7358 = vst.msk [vmem:[%s5323 + $0x3d8] sm:$0xff] %vm697, %v7328
        %7359 = vst.msk [vmem:[%s5323 + $0x3e0] sm:$0xff] %vm697, %v7333
        %7360 = vst.msk [vmem:[%s5323 + $0x3e8] sm:$0xff] %vm697, %v7336
        %7361 = vst.msk [vmem:[%s5323 + $0x3f0] sm:$0xff] %vm697, %v7341
        %7362 = vst.msk [vmem:[%s5323 + $0x3f8] sm:$0xff] %vm697, %v7344
        %v7363 = vld [vmem:[%s2] sm:$0xf]
        %v7364 = vld [vmem:[%s2 + $0x4] sm:$0xf]
        %v7365 = vld [vmem:[%s2 + $0x8] sm:$0xf]
        %v7366 = vld [vmem:[%s2 + $0xc] sm:$0xf]
        %v7367 = vld [vmem:[%s2 + $0x10] sm:$0xf]
        %v7368 = vld [vmem:[%s2 + $0x14] sm:$0xf]
        %v7369 = vld [vmem:[%s2 + $0x18] sm:$0xf]
        %v7370 = vld [vmem:[%s2 + $0x1c] sm:$0xf]
        %v7371 = vld [vmem:[%s2 + $0x20] sm:$0xf]
        %v7372 = vld [vmem:[%s2 + $0x24] sm:$0xf]
        %v7373 = vld [vmem:[%s2 + $0x28] sm:$0xf]
        %v7374 = vld [vmem:[%s2 + $0x2c] sm:$0xf]
        %v7375 = vld [vmem:[%s2 + $0x30] sm:$0xf]
        %v7376 = vld [vmem:[%s2 + $0x34] sm:$0xf]
        %v7377 = vld [vmem:[%s2 + $0x38] sm:$0xf]
        %v7378 = vld [vmem:[%s2 + $0x3c] sm:$0xf]
        %v7379 = vld [vmem:[%s4] sm:$0xff]
        %v7380 = vld [vmem:[%s4 + $0x8] sm:$0xff]
        %v7381 = vld [vmem:[%s4 + $0x10] sm:$0xff]
        %v7382 = vld [vmem:[%s4 + $0x18] sm:$0xff]
        %v7383 = vld [vmem:[%s4 + $0x20] sm:$0xff]
        %v7384 = vld [vmem:[%s4 + $0x28] sm:$0xff]
        %v7385 = vld [vmem:[%s4 + $0x30] sm:$0xff]
        %v7386 = vld [vmem:[%s4 + $0x38] sm:$0xff]
        %v7387 = vld [vmem:[%s4 + $0x40] sm:$0xff]
        %v7388 = vld [vmem:[%s4 + $0x48] sm:$0xff]
        %v7389 = vld [vmem:[%s4 + $0x50] sm:$0xff]
        %v7390 = vld [vmem:[%s4 + $0x58] sm:$0xff]
        %v7391 = vld [vmem:[%s4 + $0x60] sm:$0xff]
        %v7392 = vld [vmem:[%s4 + $0x68] sm:$0xff]
        %v7393 = vld [vmem:[%s4 + $0x70] sm:$0xff]
        %v7394 = vld [vmem:[%s4 + $0x78] sm:$0xff]
        %7396 = vset.pattern.permute.xlu0 0
        %7397 = vperm.xlu0 %7396, %v7379
        %v7398 = vpop.permute.xlu0 %7397
        %7401 = vset.pattern.permute.xlu0 0
        %7402 = vperm.xlu0 %7401, %v7380
        %v7403 = vpop.permute.xlu0 %7402
        %7406 = vset.pattern.permute.xlu0 0
        %7407 = vperm.xlu0 %7406, %v7381
        %v7408 = vpop.permute.xlu0 %7407
        %7411 = vset.pattern.permute.xlu0 0
        %7412 = vperm.xlu0 %7411, %v7382
        %v7413 = vpop.permute.xlu0 %7412
        %7416 = vset.pattern.permute.xlu0 0
        %7417 = vperm.xlu0 %7416, %v7383
        %v7418 = vpop.permute.xlu0 %7417
        %7421 = vset.pattern.permute.xlu0 0
        %7422 = vperm.xlu0 %7421, %v7384
        %v7423 = vpop.permute.xlu0 %7422
        %7426 = vset.pattern.permute.xlu0 0
        %7427 = vperm.xlu0 %7426, %v7385
        %v7428 = vpop.permute.xlu0 %7427
        %7431 = vset.pattern.permute.xlu0 0
        %7432 = vperm.xlu0 %7431, %v7386
        %v7433 = vpop.permute.xlu0 %7432
        %7436 = vset.pattern.permute.xlu0 0
        %7437 = vperm.xlu0 %7436, %v7387
        %v7438 = vpop.permute.xlu0 %7437
        %7441 = vset.pattern.permute.xlu0 0
        %7442 = vperm.xlu0 %7441, %v7388
        %v7443 = vpop.permute.xlu0 %7442
        %7446 = vset.pattern.permute.xlu0 0
        %7447 = vperm.xlu0 %7446, %v7389
        %v7448 = vpop.permute.xlu0 %7447
        %7451 = vset.pattern.permute.xlu0 0
        %7452 = vperm.xlu0 %7451, %v7390
        %v7453 = vpop.permute.xlu0 %7452
        %7456 = vset.pattern.permute.xlu0 0
        %7457 = vperm.xlu0 %7456, %v7391
        %v7458 = vpop.permute.xlu0 %7457
        %7461 = vset.pattern.permute.xlu0 0
        %7462 = vperm.xlu0 %7461, %v7392
        %v7463 = vpop.permute.xlu0 %7462
        %7466 = vset.pattern.permute.xlu0 0
        %7467 = vperm.xlu0 %7466, %v7393
        %v7468 = vpop.permute.xlu0 %7467
        %7471 = vset.pattern.permute.xlu0 0
        %7472 = vperm.xlu0 %7471, %v7394
        %v7473 = vpop.permute.xlu0 %7472
        %v7491 = vunpack.c.l.b16 %v7363
        %v7492 = vunpack.c.l.b16 %v7364
        %v7493 = vunpack.c.l.b16 %v7365
        %v7494 = vunpack.c.l.b16 %v7366
        %v7495 = vunpack.c.l.b16 %v7367
        %v7496 = vunpack.c.l.b16 %v7368
        %v7497 = vunpack.c.l.b16 %v7369
        %v7498 = vunpack.c.l.b16 %v7370
        %v7499 = vunpack.c.l.b16 %v7371
        %v7500 = vunpack.c.l.b16 %v7372
        %v7501 = vunpack.c.l.b16 %v7373
        %v7502 = vunpack.c.l.b16 %v7374
        %v7503 = vunpack.c.l.b16 %v7375
        %v7504 = vunpack.c.l.b16 %v7376
        %v7505 = vunpack.c.l.b16 %v7377
        %v7506 = vunpack.c.l.b16 %v7378
        %v7507 = vpack.c.b16 %v7492, %v7491
        %v7508 = vpack.c.b16 %v7494, %v7493
        %v7509 = vpack.c.b16 %v7496, %v7495
        %v7510 = vpack.c.b16 %v7498, %v7497
        %v7511 = vpack.c.b16 %v7500, %v7499
        %v7512 = vpack.c.b16 %v7502, %v7501
        %v7513 = vpack.c.b16 %v7504, %v7503
        %v7514 = vpack.c.b16 %v7506, %v7505
        %v7516 = vsel %vm575, %v7507, 0
        %v7519 = vsel %vm575, %v7508, 0
        %v7522 = vsel %vm575, %v7509, 0
        %v7525 = vsel %vm575, %v7510, 0
        %v7528 = vsel %vm575, %v7511, 0
        %v7531 = vsel %vm575, %v7512, 0
        %v7534 = vsel %vm575, %v7513, 0
        %v7537 = vsel %vm575, %v7514, 0
        %7539 = vmatprep.subr.bf16.mxu0 0
        %7540 = vmatpush1.bf16.msra.mxu0 0
        %7541 = vmatprep.subr.bf16.mxu0 0
        %7542 = vmatpush1.bf16.msra.mxu0 0
        %7543 = vmatprep.subr.bf16.mxu0 0
        %7544 = vmatpush1.bf16.msra.mxu0 0
        %7545 = vmatprep.subr.bf16.mxu0 0
        %7546 = vmatpush1.bf16.msra.mxu0 0
        %7547 = vmatprep.subr.bf16.mxu0 0
        %7548 = vmatpush1.bf16.msra.mxu0 0
        %7549 = vmatprep.subr.bf16.mxu0 0
        %7550 = vmatpush1.bf16.msra.mxu0 0
        %7551 = vmatprep.subr.bf16.mxu0 0
        %7552 = vmatpush1.bf16.msra.mxu0 %v422
        %7553 = vmatprep.subr.bf16.mxu0 0
        %7554 = vmatpush1.bf16.msra.mxu0 %v421
        %7555 = vmatprep.subr.bf16.mxu0 0
        %7556 = vmatpush2.bf16.msra.mxu0 0
        %7557 = vmatprep.subr.bf16.mxu0 0
        %7558 = vmatpush2.bf16.msra.mxu0 0
        %7559 = vmatprep.subr.bf16.mxu0 0
        %7560 = vmatpush2.bf16.msra.mxu0 0
        %7561 = vmatprep.subr.bf16.mxu0 0
        %7562 = vmatpush2.bf16.msra.mxu0 0
        %7563 = vmatprep.subr.bf16.mxu0 0
        %7564 = vmatpush2.bf16.msra.mxu0 0
        %7565 = vmatprep.subr.bf16.mxu0 0
        %7566 = vmatpush2.bf16.msra.mxu0 0
        %7567 = vmatprep.subr.bf16.mxu0 0
        %7568 = vmatpush2.bf16.msra.mxu0 0
        %7569 = vmatprep.subr.bf16.mxu0 0
        %7570 = vmatpush2.bf16.msra.mxu0 0
        %7571 = vmatprep.mubr.bf16.mxu0 0
        %7572 = vmatmul.mubr.bf16.gmra.mxu0 %v7516
        %v7573 = vpop.f32.mrf.mxu0
        %v7574 = vadd.f32 %v7398, %v7573
        %v7575 = vpop.f32.mrf.mxu0
        %v7576 = vpop.f32.mrf.mxu0
        %v7577 = vadd.f32 %v7403, %v7576
        %v7578 = vpop.f32.mrf.mxu0
        %7579 = vmatprep.mubr.bf16.mxu0 0
        %7580 = vmatmul.mubr.bf16.gmra.mxu0 %v7519
        %v7581 = vpop.f32.mrf.mxu0
        %v7582 = vadd.f32 %v7408, %v7581
        %v7583 = vpop.f32.mrf.mxu0
        %v7584 = vpop.f32.mrf.mxu0
        %v7585 = vadd.f32 %v7413, %v7584
        %v7586 = vpop.f32.mrf.mxu0
        %7587 = vmatprep.mubr.bf16.mxu0 0
        %7588 = vmatmul.mubr.bf16.gmra.mxu0 %v7522
        %v7589 = vpop.f32.mrf.mxu0
        %v7590 = vadd.f32 %v7418, %v7589
        %v7591 = vpop.f32.mrf.mxu0
        %v7592 = vpop.f32.mrf.mxu0
        %v7593 = vadd.f32 %v7423, %v7592
        %v7594 = vpop.f32.mrf.mxu0
        %7595 = vmatprep.mubr.bf16.mxu0 0
        %7596 = vmatmul.mubr.bf16.gmra.mxu0 %v7525
        %v7597 = vpop.f32.mrf.mxu0
        %v7598 = vadd.f32 %v7428, %v7597
        %v7599 = vpop.f32.mrf.mxu0
        %v7600 = vpop.f32.mrf.mxu0
        %v7601 = vadd.f32 %v7433, %v7600
        %v7602 = vpop.f32.mrf.mxu0
        %7603 = vmatprep.mubr.bf16.mxu0 0
        %7604 = vmatmul.mubr.bf16.gmra.mxu0 %v7528
        %v7605 = vpop.f32.mrf.mxu0
        %v7606 = vadd.f32 %v7438, %v7605
        %v7607 = vpop.f32.mrf.mxu0
        %v7608 = vpop.f32.mrf.mxu0
        %v7609 = vadd.f32 %v7443, %v7608
        %v7610 = vpop.f32.mrf.mxu0
        %7611 = vmatprep.mubr.bf16.mxu0 0
        %7612 = vmatmul.mubr.bf16.gmra.mxu0 %v7531
        %v7613 = vpop.f32.mrf.mxu0
        %v7614 = vadd.f32 %v7448, %v7613
        %v7615 = vpop.f32.mrf.mxu0
        %v7616 = vpop.f32.mrf.mxu0
        %v7617 = vadd.f32 %v7453, %v7616
        %v7618 = vpop.f32.mrf.mxu0
        %7619 = vmatprep.mubr.bf16.mxu0 0
        %7620 = vmatmul.mubr.bf16.gmra.mxu0 %v7534
        %v7621 = vpop.f32.mrf.mxu0
        %v7622 = vadd.f32 %v7458, %v7621
        %v7623 = vpop.f32.mrf.mxu0
        %v7624 = vpop.f32.mrf.mxu0
        %v7625 = vadd.f32 %v7463, %v7624
        %v7626 = vpop.f32.mrf.mxu0
        %7627 = vmatprep.mubr.bf16.mxu0 0
        %7628 = vmatmul.mubr.bf16.gmra.mxu0 %v7537
        %v7629 = vpop.f32.mrf.mxu0
        %v7630 = vadd.f32 %v7468, %v7629
        %v7631 = vpop.f32.mrf.mxu0
        %v7632 = vpop.f32.mrf.mxu0
        %v7633 = vadd.f32 %v7473, %v7632
        %v7634 = vpop.f32.mrf.mxu0
        %7635 = vdwg.mxu0
        %s7636 = scalar_lea.vmem %s252, 3072
        %7637 = vst.msk [vmem:[%s7636] sm:$0xff] %vm697, %v7574
        %7638 = vst.msk [vmem:[%s7636 + $0x8] sm:$0xff] %vm697, %v7577
        %7639 = vst.msk [vmem:[%s7636 + $0x10] sm:$0xff] %vm697, %v7582
        %7640 = vst.msk [vmem:[%s7636 + $0x18] sm:$0xff] %vm697, %v7585
        %7641 = vst.msk [vmem:[%s7636 + $0x20] sm:$0xff] %vm697, %v7590
        %7642 = vst.msk [vmem:[%s7636 + $0x28] sm:$0xff] %vm697, %v7593
        %7643 = vst.msk [vmem:[%s7636 + $0x30] sm:$0xff] %vm697, %v7598
        %7644 = vst.msk [vmem:[%s7636 + $0x38] sm:$0xff] %vm697, %v7601
        %7645 = vst.msk [vmem:[%s7636 + $0x40] sm:$0xff] %vm697, %v7606
        %7646 = vst.msk [vmem:[%s7636 + $0x48] sm:$0xff] %vm697, %v7609
        %7647 = vst.msk [vmem:[%s7636 + $0x50] sm:$0xff] %vm697, %v7614
        %7648 = vst.msk [vmem:[%s7636 + $0x58] sm:$0xff] %vm697, %v7617
        %7649 = vst.msk [vmem:[%s7636 + $0x60] sm:$0xff] %vm697, %v7622
        %7650 = vst.msk [vmem:[%s7636 + $0x68] sm:$0xff] %vm697, %v7625
        %7651 = vst.msk [vmem:[%s7636 + $0x70] sm:$0xff] %vm697, %v7630
        %7652 = vst.msk [vmem:[%s7636 + $0x78] sm:$0xff] %vm697, %v7633
        %v7653 = vld [vmem:[%s2 + $0x40] sm:$0xf]
        %v7654 = vld [vmem:[%s2 + $0x44] sm:$0xf]
        %v7655 = vld [vmem:[%s2 + $0x48] sm:$0xf]
        %v7656 = vld [vmem:[%s2 + $0x4c] sm:$0xf]
        %v7657 = vld [vmem:[%s2 + $0x50] sm:$0xf]
        %v7658 = vld [vmem:[%s2 + $0x54] sm:$0xf]
        %v7659 = vld [vmem:[%s2 + $0x58] sm:$0xf]
        %v7660 = vld [vmem:[%s2 + $0x5c] sm:$0xf]
        %v7661 = vld [vmem:[%s2 + $0x60] sm:$0xf]
        %v7662 = vld [vmem:[%s2 + $0x64] sm:$0xf]
        %v7663 = vld [vmem:[%s2 + $0x68] sm:$0xf]
        %v7664 = vld [vmem:[%s2 + $0x6c] sm:$0xf]
        %v7665 = vld [vmem:[%s2 + $0x70] sm:$0xf]
        %v7666 = vld [vmem:[%s2 + $0x74] sm:$0xf]
        %v7667 = vld [vmem:[%s2 + $0x78] sm:$0xf]
        %v7668 = vld [vmem:[%s2 + $0x7c] sm:$0xf]
        %v7669 = vld [vmem:[%s4 + $0x80] sm:$0xff]
        %v7670 = vld [vmem:[%s4 + $0x88] sm:$0xff]
        %v7671 = vld [vmem:[%s4 + $0x90] sm:$0xff]
        %v7672 = vld [vmem:[%s4 + $0x98] sm:$0xff]
        %v7673 = vld [vmem:[%s4 + $0xa0] sm:$0xff]
        %v7674 = vld [vmem:[%s4 + $0xa8] sm:$0xff]
        %v7675 = vld [vmem:[%s4 + $0xb0] sm:$0xff]
        %v7676 = vld [vmem:[%s4 + $0xb8] sm:$0xff]
        %v7677 = vld [vmem:[%s4 + $0xc0] sm:$0xff]
        %v7678 = vld [vmem:[%s4 + $0xc8] sm:$0xff]
        %v7679 = vld [vmem:[%s4 + $0xd0] sm:$0xff]
        %v7680 = vld [vmem:[%s4 + $0xd8] sm:$0xff]
        %v7681 = vld [vmem:[%s4 + $0xe0] sm:$0xff]
        %v7682 = vld [vmem:[%s4 + $0xe8] sm:$0xff]
        %v7683 = vld [vmem:[%s4 + $0xf0] sm:$0xff]
        %v7684 = vld [vmem:[%s4 + $0xf8] sm:$0xff]
        %7686 = vset.pattern.permute.xlu0 0
        %7687 = vperm.xlu0 %7686, %v7669
        %v7688 = vpop.permute.xlu0 %7687
        %7691 = vset.pattern.permute.xlu0 0
        %7692 = vperm.xlu0 %7691, %v7670
        %v7693 = vpop.permute.xlu0 %7692
        %7696 = vset.pattern.permute.xlu0 0
        %7697 = vperm.xlu0 %7696, %v7671
        %v7698 = vpop.permute.xlu0 %7697
        %7701 = vset.pattern.permute.xlu0 0
        %7702 = vperm.xlu0 %7701, %v7672
        %v7703 = vpop.permute.xlu0 %7702
        %7706 = vset.pattern.permute.xlu0 0
        %7707 = vperm.xlu0 %7706, %v7673
        %v7708 = vpop.permute.xlu0 %7707
        %7711 = vset.pattern.permute.xlu0 0
        %7712 = vperm.xlu0 %7711, %v7674
        %v7713 = vpop.permute.xlu0 %7712
        %7716 = vset.pattern.permute.xlu0 0
        %7717 = vperm.xlu0 %7716, %v7675
        %v7718 = vpop.permute.xlu0 %7717
        %7721 = vset.pattern.permute.xlu0 0
        %7722 = vperm.xlu0 %7721, %v7676
        %v7723 = vpop.permute.xlu0 %7722
        %7726 = vset.pattern.permute.xlu0 0
        %7727 = vperm.xlu0 %7726, %v7677
        %v7728 = vpop.permute.xlu0 %7727
        %7731 = vset.pattern.permute.xlu0 0
        %7732 = vperm.xlu0 %7731, %v7678
        %v7733 = vpop.permute.xlu0 %7732
        %7736 = vset.pattern.permute.xlu0 0
        %7737 = vperm.xlu0 %7736, %v7679
        %v7738 = vpop.permute.xlu0 %7737
        %7741 = vset.pattern.permute.xlu0 0
        %7742 = vperm.xlu0 %7741, %v7680
        %v7743 = vpop.permute.xlu0 %7742
        %7746 = vset.pattern.permute.xlu0 0
        %7747 = vperm.xlu0 %7746, %v7681
        %v7748 = vpop.permute.xlu0 %7747
        %7751 = vset.pattern.permute.xlu0 0
        %7752 = vperm.xlu0 %7751, %v7682
        %v7753 = vpop.permute.xlu0 %7752
        %7756 = vset.pattern.permute.xlu0 0
        %7757 = vperm.xlu0 %7756, %v7683
        %v7758 = vpop.permute.xlu0 %7757
        %7761 = vset.pattern.permute.xlu0 0
        %7762 = vperm.xlu0 %7761, %v7684
        %v7763 = vpop.permute.xlu0 %7762
        %v7781 = vunpack.c.l.b16 %v7653
        %v7782 = vunpack.c.l.b16 %v7654
        %v7783 = vunpack.c.l.b16 %v7655
        %v7784 = vunpack.c.l.b16 %v7656
        %v7785 = vunpack.c.l.b16 %v7657
        %v7786 = vunpack.c.l.b16 %v7658
        %v7787 = vunpack.c.l.b16 %v7659
        %v7788 = vunpack.c.l.b16 %v7660
        %v7789 = vunpack.c.l.b16 %v7661
        %v7790 = vunpack.c.l.b16 %v7662
        %v7791 = vunpack.c.l.b16 %v7663
        %v7792 = vunpack.c.l.b16 %v7664
        %v7793 = vunpack.c.l.b16 %v7665
        %v7794 = vunpack.c.l.b16 %v7666
        %v7795 = vunpack.c.l.b16 %v7667
        %v7796 = vunpack.c.l.b16 %v7668
        %v7797 = vpack.c.b16 %v7782, %v7781
        %v7798 = vpack.c.b16 %v7784, %v7783
        %v7799 = vpack.c.b16 %v7786, %v7785
        %v7800 = vpack.c.b16 %v7788, %v7787
        %v7801 = vpack.c.b16 %v7790, %v7789
        %v7802 = vpack.c.b16 %v7792, %v7791
        %v7803 = vpack.c.b16 %v7794, %v7793
        %v7804 = vpack.c.b16 %v7796, %v7795
        %v7806 = vsel %vm575, %v7797, 0
        %v7809 = vsel %vm575, %v7798, 0
        %v7812 = vsel %vm575, %v7799, 0
        %v7815 = vsel %vm575, %v7800, 0
        %v7818 = vsel %vm575, %v7801, 0
        %v7821 = vsel %vm575, %v7802, 0
        %v7824 = vsel %vm575, %v7803, 0
        %v7827 = vsel %vm575, %v7804, 0
        %7829 = vmatprep.subr.bf16.mxu0 0
        %7830 = vmatpush1.bf16.msra.mxu0 0
        %7831 = vmatprep.subr.bf16.mxu0 0
        %7832 = vmatpush1.bf16.msra.mxu0 0
        %7833 = vmatprep.subr.bf16.mxu0 0
        %7834 = vmatpush1.bf16.msra.mxu0 0
        %7835 = vmatprep.subr.bf16.mxu0 0
        %7836 = vmatpush1.bf16.msra.mxu0 0
        %7837 = vmatprep.subr.bf16.mxu0 0
        %7838 = vmatpush1.bf16.msra.mxu0 0
        %7839 = vmatprep.subr.bf16.mxu0 0
        %7840 = vmatpush1.bf16.msra.mxu0 0
        %7841 = vmatprep.subr.bf16.mxu0 0
        %7842 = vmatpush1.bf16.msra.mxu0 %v422
        %7843 = vmatprep.subr.bf16.mxu0 0
        %7844 = vmatpush1.bf16.msra.mxu0 %v421
        %7845 = vmatprep.subr.bf16.mxu0 0
        %7846 = vmatpush2.bf16.msra.mxu0 0
        %7847 = vmatprep.subr.bf16.mxu0 0
        %7848 = vmatpush2.bf16.msra.mxu0 0
        %7849 = vmatprep.subr.bf16.mxu0 0
        %7850 = vmatpush2.bf16.msra.mxu0 0
        %7851 = vmatprep.subr.bf16.mxu0 0
        %7852 = vmatpush2.bf16.msra.mxu0 0
        %7853 = vmatprep.subr.bf16.mxu0 0
        %7854 = vmatpush2.bf16.msra.mxu0 0
        %7855 = vmatprep.subr.bf16.mxu0 0
        %7856 = vmatpush2.bf16.msra.mxu0 0
        %7857 = vmatprep.subr.bf16.mxu0 0
        %7858 = vmatpush2.bf16.msra.mxu0 0
        %7859 = vmatprep.subr.bf16.mxu0 0
        %7860 = vmatpush2.bf16.msra.mxu0 0
        %7861 = vmatprep.mubr.bf16.mxu0 0
        %7862 = vmatmul.mubr.bf16.gmra.mxu0 %v7806
        %v7863 = vpop.f32.mrf.mxu0
        %v7864 = vadd.f32 %v7688, %v7863
        %v7865 = vpop.f32.mrf.mxu0
        %v7866 = vpop.f32.mrf.mxu0
        %v7867 = vadd.f32 %v7693, %v7866
        %v7868 = vpop.f32.mrf.mxu0
        %7869 = vmatprep.mubr.bf16.mxu0 0
        %7870 = vmatmul.mubr.bf16.gmra.mxu0 %v7809
        %v7871 = vpop.f32.mrf.mxu0
        %v7872 = vadd.f32 %v7698, %v7871
        %v7873 = vpop.f32.mrf.mxu0
        %v7874 = vpop.f32.mrf.mxu0
        %v7875 = vadd.f32 %v7703, %v7874
        %v7876 = vpop.f32.mrf.mxu0
        %7877 = vmatprep.mubr.bf16.mxu0 0
        %7878 = vmatmul.mubr.bf16.gmra.mxu0 %v7812
        %v7879 = vpop.f32.mrf.mxu0
        %v7880 = vadd.f32 %v7708, %v7879
        %v7881 = vpop.f32.mrf.mxu0
        %v7882 = vpop.f32.mrf.mxu0
        %v7883 = vadd.f32 %v7713, %v7882
        %v7884 = vpop.f32.mrf.mxu0
        %7885 = vmatprep.mubr.bf16.mxu0 0
        %7886 = vmatmul.mubr.bf16.gmra.mxu0 %v7815
        %v7887 = vpop.f32.mrf.mxu0
        %v7888 = vadd.f32 %v7718, %v7887
        %v7889 = vpop.f32.mrf.mxu0
        %v7890 = vpop.f32.mrf.mxu0
        %v7891 = vadd.f32 %v7723, %v7890
        %v7892 = vpop.f32.mrf.mxu0
        %7893 = vmatprep.mubr.bf16.mxu0 0
        %7894 = vmatmul.mubr.bf16.gmra.mxu0 %v7818
        %v7895 = vpop.f32.mrf.mxu0
        %v7896 = vadd.f32 %v7728, %v7895
        %v7897 = vpop.f32.mrf.mxu0
        %v7898 = vpop.f32.mrf.mxu0
        %v7899 = vadd.f32 %v7733, %v7898
        %v7900 = vpop.f32.mrf.mxu0
        %7901 = vmatprep.mubr.bf16.mxu0 0
        %7902 = vmatmul.mubr.bf16.gmra.mxu0 %v7821
        %v7903 = vpop.f32.mrf.mxu0
        %v7904 = vadd.f32 %v7738, %v7903
        %v7905 = vpop.f32.mrf.mxu0
        %v7906 = vpop.f32.mrf.mxu0
        %v7907 = vadd.f32 %v7743, %v7906
        %v7908 = vpop.f32.mrf.mxu0
        %7909 = vmatprep.mubr.bf16.mxu0 0
        %7910 = vmatmul.mubr.bf16.gmra.mxu0 %v7824
        %v7911 = vpop.f32.mrf.mxu0
        %v7912 = vadd.f32 %v7748, %v7911
        %v7913 = vpop.f32.mrf.mxu0
        %v7914 = vpop.f32.mrf.mxu0
        %v7915 = vadd.f32 %v7753, %v7914
        %v7916 = vpop.f32.mrf.mxu0
        %7917 = vmatprep.mubr.bf16.mxu0 0
        %7918 = vmatmul.mubr.bf16.gmra.mxu0 %v7827
        %v7919 = vpop.f32.mrf.mxu0
        %v7920 = vadd.f32 %v7758, %v7919
        %v7921 = vpop.f32.mrf.mxu0
        %v7922 = vpop.f32.mrf.mxu0
        %v7923 = vadd.f32 %v7763, %v7922
        %v7924 = vpop.f32.mrf.mxu0
        %7925 = vdwg.mxu0
        %7926 = vst.msk [vmem:[%s7636 + $0x80] sm:$0xff] %vm697, %v7864
        %7927 = vst.msk [vmem:[%s7636 + $0x88] sm:$0xff] %vm697, %v7867
        %7928 = vst.msk [vmem:[%s7636 + $0x90] sm:$0xff] %vm697, %v7872
        %7929 = vst.msk [vmem:[%s7636 + $0x98] sm:$0xff] %vm697, %v7875
        %7930 = vst.msk [vmem:[%s7636 + $0xa0] sm:$0xff] %vm697, %v7880
        %7931 = vst.msk [vmem:[%s7636 + $0xa8] sm:$0xff] %vm697, %v7883
        %7932 = vst.msk [vmem:[%s7636 + $0xb0] sm:$0xff] %vm697, %v7888
        %7933 = vst.msk [vmem:[%s7636 + $0xb8] sm:$0xff] %vm697, %v7891
        %7934 = vst.msk [vmem:[%s7636 + $0xc0] sm:$0xff] %vm697, %v7896
        %7935 = vst.msk [vmem:[%s7636 + $0xc8] sm:$0xff] %vm697, %v7899
        %7936 = vst.msk [vmem:[%s7636 + $0xd0] sm:$0xff] %vm697, %v7904
        %7937 = vst.msk [vmem:[%s7636 + $0xd8] sm:$0xff] %vm697, %v7907
        %7938 = vst.msk [vmem:[%s7636 + $0xe0] sm:$0xff] %vm697, %v7912
        %7939 = vst.msk [vmem:[%s7636 + $0xe8] sm:$0xff] %vm697, %v7915
        %7940 = vst.msk [vmem:[%s7636 + $0xf0] sm:$0xff] %vm697, %v7920
        %7941 = vst.msk [vmem:[%s7636 + $0xf8] sm:$0xff] %vm697, %v7923
        %v7942 = vld [vmem:[%s2 + $0x80] sm:$0xf]
        %v7943 = vld [vmem:[%s2 + $0x84] sm:$0xf]
        %v7944 = vld [vmem:[%s2 + $0x88] sm:$0xf]
        %v7945 = vld [vmem:[%s2 + $0x8c] sm:$0xf]
        %v7946 = vld [vmem:[%s2 + $0x90] sm:$0xf]
        %v7947 = vld [vmem:[%s2 + $0x94] sm:$0xf]
        %v7948 = vld [vmem:[%s2 + $0x98] sm:$0xf]
        %v7949 = vld [vmem:[%s2 + $0x9c] sm:$0xf]
        %v7950 = vld [vmem:[%s2 + $0xa0] sm:$0xf]
        %v7951 = vld [vmem:[%s2 + $0xa4] sm:$0xf]
        %v7952 = vld [vmem:[%s2 + $0xa8] sm:$0xf]
        %v7953 = vld [vmem:[%s2 + $0xac] sm:$0xf]
        %v7954 = vld [vmem:[%s2 + $0xb0] sm:$0xf]
        %v7955 = vld [vmem:[%s2 + $0xb4] sm:$0xf]
        %v7956 = vld [vmem:[%s2 + $0xb8] sm:$0xf]
        %v7957 = vld [vmem:[%s2 + $0xbc] sm:$0xf]
        %v7958 = vld [vmem:[%s4 + $0x100] sm:$0xff]
        %v7959 = vld [vmem:[%s4 + $0x108] sm:$0xff]
        %v7960 = vld [vmem:[%s4 + $0x110] sm:$0xff]
        %v7961 = vld [vmem:[%s4 + $0x118] sm:$0xff]
        %v7962 = vld [vmem:[%s4 + $0x120] sm:$0xff]
        %v7963 = vld [vmem:[%s4 + $0x128] sm:$0xff]
        %v7964 = vld [vmem:[%s4 + $0x130] sm:$0xff]
        %v7965 = vld [vmem:[%s4 + $0x138] sm:$0xff]
        %v7966 = vld [vmem:[%s4 + $0x140] sm:$0xff]
        %v7967 = vld [vmem:[%s4 + $0x148] sm:$0xff]
        %v7968 = vld [vmem:[%s4 + $0x150] sm:$0xff]
        %v7969 = vld [vmem:[%s4 + $0x158] sm:$0xff]
        %v7970 = vld [vmem:[%s4 + $0x160] sm:$0xff]
        %v7971 = vld [vmem:[%s4 + $0x168] sm:$0xff]
        %v7972 = vld [vmem:[%s4 + $0x170] sm:$0xff]
        %v7973 = vld [vmem:[%s4 + $0x178] sm:$0xff]
        %7975 = vset.pattern.permute.xlu0 0
        %7976 = vperm.xlu0 %7975, %v7958
        %v7977 = vpop.permute.xlu0 %7976
        %7980 = vset.pattern.permute.xlu0 0
        %7981 = vperm.xlu0 %7980, %v7959
        %v7982 = vpop.permute.xlu0 %7981
        %7985 = vset.pattern.permute.xlu0 0
        %7986 = vperm.xlu0 %7985, %v7960
        %v7987 = vpop.permute.xlu0 %7986
        %7990 = vset.pattern.permute.xlu0 0
        %7991 = vperm.xlu0 %7990, %v7961
        %v7992 = vpop.permute.xlu0 %7991
        %7995 = vset.pattern.permute.xlu0 0
        %7996 = vperm.xlu0 %7995, %v7962
        %v7997 = vpop.permute.xlu0 %7996
        %8000 = vset.pattern.permute.xlu0 0
        %8001 = vperm.xlu0 %8000, %v7963
        %v8002 = vpop.permute.xlu0 %8001
        %8005 = vset.pattern.permute.xlu0 0
        %8006 = vperm.xlu0 %8005, %v7964
        %v8007 = vpop.permute.xlu0 %8006
        %8010 = vset.pattern.permute.xlu0 0
        %8011 = vperm.xlu0 %8010, %v7965
        %v8012 = vpop.permute.xlu0 %8011
        %8015 = vset.pattern.permute.xlu0 0
        %8016 = vperm.xlu0 %8015, %v7966
        %v8017 = vpop.permute.xlu0 %8016
        %8020 = vset.pattern.permute.xlu0 0
        %8021 = vperm.xlu0 %8020, %v7967
        %v8022 = vpop.permute.xlu0 %8021
        %8025 = vset.pattern.permute.xlu0 0
        %8026 = vperm.xlu0 %8025, %v7968
        %v8027 = vpop.permute.xlu0 %8026
        %8030 = vset.pattern.permute.xlu0 0
        %8031 = vperm.xlu0 %8030, %v7969
        %v8032 = vpop.permute.xlu0 %8031
        %8035 = vset.pattern.permute.xlu0 0
        %8036 = vperm.xlu0 %8035, %v7970
        %v8037 = vpop.permute.xlu0 %8036
        %8040 = vset.pattern.permute.xlu0 0
        %8041 = vperm.xlu0 %8040, %v7971
        %v8042 = vpop.permute.xlu0 %8041
        %8045 = vset.pattern.permute.xlu0 0
        %8046 = vperm.xlu0 %8045, %v7972
        %v8047 = vpop.permute.xlu0 %8046
        %8050 = vset.pattern.permute.xlu0 0
        %8051 = vperm.xlu0 %8050, %v7973
        %v8052 = vpop.permute.xlu0 %8051
        %v8070 = vunpack.c.l.b16 %v7942
        %v8071 = vunpack.c.l.b16 %v7943
        %v8072 = vunpack.c.l.b16 %v7944
        %v8073 = vunpack.c.l.b16 %v7945
        %v8074 = vunpack.c.l.b16 %v7946
        %v8075 = vunpack.c.l.b16 %v7947
        %v8076 = vunpack.c.l.b16 %v7948
        %v8077 = vunpack.c.l.b16 %v7949
        %v8078 = vunpack.c.l.b16 %v7950
        %v8079 = vunpack.c.l.b16 %v7951
        %v8080 = vunpack.c.l.b16 %v7952
        %v8081 = vunpack.c.l.b16 %v7953
        %v8082 = vunpack.c.l.b16 %v7954
        %v8083 = vunpack.c.l.b16 %v7955
        %v8084 = vunpack.c.l.b16 %v7956
        %v8085 = vunpack.c.l.b16 %v7957
        %v8086 = vpack.c.b16 %v8071, %v8070
        %v8087 = vpack.c.b16 %v8073, %v8072
        %v8088 = vpack.c.b16 %v8075, %v8074
        %v8089 = vpack.c.b16 %v8077, %v8076
        %v8090 = vpack.c.b16 %v8079, %v8078
        %v8091 = vpack.c.b16 %v8081, %v8080
        %v8092 = vpack.c.b16 %v8083, %v8082
        %v8093 = vpack.c.b16 %v8085, %v8084
        %v8095 = vsel %vm575, %v8086, 0
        %v8098 = vsel %vm575, %v8087, 0
        %v8101 = vsel %vm575, %v8088, 0
        %v8104 = vsel %vm575, %v8089, 0
        %v8107 = vsel %vm575, %v8090, 0
        %v8110 = vsel %vm575, %v8091, 0
        %v8113 = vsel %vm575, %v8092, 0
        %v8116 = vsel %vm575, %v8093, 0
        %8118 = vmatprep.subr.bf16.mxu0 0
        %8119 = vmatpush1.bf16.msra.mxu0 0
        %8120 = vmatprep.subr.bf16.mxu0 0
        %8121 = vmatpush1.bf16.msra.mxu0 0
        %8122 = vmatprep.subr.bf16.mxu0 0
        %8123 = vmatpush1.bf16.msra.mxu0 0
        %8124 = vmatprep.subr.bf16.mxu0 0
        %8125 = vmatpush1.bf16.msra.mxu0 0
        %8126 = vmatprep.subr.bf16.mxu0 0
        %8127 = vmatpush1.bf16.msra.mxu0 0
        %8128 = vmatprep.subr.bf16.mxu0 0
        %8129 = vmatpush1.bf16.msra.mxu0 0
        %8130 = vmatprep.subr.bf16.mxu0 0
        %8131 = vmatpush1.bf16.msra.mxu0 %v422
        %8132 = vmatprep.subr.bf16.mxu0 0
        %8133 = vmatpush1.bf16.msra.mxu0 %v421
        %8134 = vmatprep.subr.bf16.mxu0 0
        %8135 = vmatpush2.bf16.msra.mxu0 0
        %8136 = vmatprep.subr.bf16.mxu0 0
        %8137 = vmatpush2.bf16.msra.mxu0 0
        %8138 = vmatprep.subr.bf16.mxu0 0
        %8139 = vmatpush2.bf16.msra.mxu0 0
        %8140 = vmatprep.subr.bf16.mxu0 0
        %8141 = vmatpush2.bf16.msra.mxu0 0
        %8142 = vmatprep.subr.bf16.mxu0 0
        %8143 = vmatpush2.bf16.msra.mxu0 0
        %8144 = vmatprep.subr.bf16.mxu0 0
        %8145 = vmatpush2.bf16.msra.mxu0 0
        %8146 = vmatprep.subr.bf16.mxu0 0
        %8147 = vmatpush2.bf16.msra.mxu0 0
        %8148 = vmatprep.subr.bf16.mxu0 0
        %8149 = vmatpush2.bf16.msra.mxu0 0
        %8150 = vmatprep.mubr.bf16.mxu0 0
        %8151 = vmatmul.mubr.bf16.gmra.mxu0 %v8095
        %v8152 = vpop.f32.mrf.mxu0
        %v8153 = vadd.f32 %v7977, %v8152
        %v8154 = vpop.f32.mrf.mxu0
        %v8155 = vpop.f32.mrf.mxu0
        %v8156 = vadd.f32 %v7982, %v8155
        %v8157 = vpop.f32.mrf.mxu0
        %8158 = vmatprep.mubr.bf16.mxu0 0
        %8159 = vmatmul.mubr.bf16.gmra.mxu0 %v8098
        %v8160 = vpop.f32.mrf.mxu0
        %v8161 = vadd.f32 %v7987, %v8160
        %v8162 = vpop.f32.mrf.mxu0
        %v8163 = vpop.f32.mrf.mxu0
        %v8164 = vadd.f32 %v7992, %v8163
        %v8165 = vpop.f32.mrf.mxu0
        %8166 = vmatprep.mubr.bf16.mxu0 0
        %8167 = vmatmul.mubr.bf16.gmra.mxu0 %v8101
        %v8168 = vpop.f32.mrf.mxu0
        %v8169 = vadd.f32 %v7997, %v8168
        %v8170 = vpop.f32.mrf.mxu0
        %v8171 = vpop.f32.mrf.mxu0
        %v8172 = vadd.f32 %v8002, %v8171
        %v8173 = vpop.f32.mrf.mxu0
        %8174 = vmatprep.mubr.bf16.mxu0 0
        %8175 = vmatmul.mubr.bf16.gmra.mxu0 %v8104
        %v8176 = vpop.f32.mrf.mxu0
        %v8177 = vadd.f32 %v8007, %v8176
        %v8178 = vpop.f32.mrf.mxu0
        %v8179 = vpop.f32.mrf.mxu0
        %v8180 = vadd.f32 %v8012, %v8179
        %v8181 = vpop.f32.mrf.mxu0
        %8182 = vmatprep.mubr.bf16.mxu0 0
        %8183 = vmatmul.mubr.bf16.gmra.mxu0 %v8107
        %v8184 = vpop.f32.mrf.mxu0
        %v8185 = vadd.f32 %v8017, %v8184
        %v8186 = vpop.f32.mrf.mxu0
        %v8187 = vpop.f32.mrf.mxu0
        %v8188 = vadd.f32 %v8022, %v8187
        %v8189 = vpop.f32.mrf.mxu0
        %8190 = vmatprep.mubr.bf16.mxu0 0
        %8191 = vmatmul.mubr.bf16.gmra.mxu0 %v8110
        %v8192 = vpop.f32.mrf.mxu0
        %v8193 = vadd.f32 %v8027, %v8192
        %v8194 = vpop.f32.mrf.mxu0
        %v8195 = vpop.f32.mrf.mxu0
        %v8196 = vadd.f32 %v8032, %v8195
        %v8197 = vpop.f32.mrf.mxu0
        %8198 = vmatprep.mubr.bf16.mxu0 0
        %8199 = vmatmul.mubr.bf16.gmra.mxu0 %v8113
        %v8200 = vpop.f32.mrf.mxu0
        %v8201 = vadd.f32 %v8037, %v8200
        %v8202 = vpop.f32.mrf.mxu0
        %v8203 = vpop.f32.mrf.mxu0
        %v8204 = vadd.f32 %v8042, %v8203
        %v8205 = vpop.f32.mrf.mxu0
        %8206 = vmatprep.mubr.bf16.mxu0 0
        %8207 = vmatmul.mubr.bf16.gmra.mxu0 %v8116
        %v8208 = vpop.f32.mrf.mxu0
        %v8209 = vadd.f32 %v8047, %v8208
        %v8210 = vpop.f32.mrf.mxu0
        %v8211 = vpop.f32.mrf.mxu0
        %v8212 = vadd.f32 %v8052, %v8211
        %v8213 = vpop.f32.mrf.mxu0
        %8214 = vdwg.mxu0
        %8215 = vst.msk [vmem:[%s7636 + $0x100] sm:$0xff] %vm697, %v8153
        %8216 = vst.msk [vmem:[%s7636 + $0x108] sm:$0xff] %vm697, %v8156
        %8217 = vst.msk [vmem:[%s7636 + $0x110] sm:$0xff] %vm697, %v8161
        %8218 = vst.msk [vmem:[%s7636 + $0x118] sm:$0xff] %vm697, %v8164
        %8219 = vst.msk [vmem:[%s7636 + $0x120] sm:$0xff] %vm697, %v8169
        %8220 = vst.msk [vmem:[%s7636 + $0x128] sm:$0xff] %vm697, %v8172
        %8221 = vst.msk [vmem:[%s7636 + $0x130] sm:$0xff] %vm697, %v8177
        %8222 = vst.msk [vmem:[%s7636 + $0x138] sm:$0xff] %vm697, %v8180
        %8223 = vst.msk [vmem:[%s7636 + $0x140] sm:$0xff] %vm697, %v8185
        %8224 = vst.msk [vmem:[%s7636 + $0x148] sm:$0xff] %vm697, %v8188
        %8225 = vst.msk [vmem:[%s7636 + $0x150] sm:$0xff] %vm697, %v8193
        %8226 = vst.msk [vmem:[%s7636 + $0x158] sm:$0xff] %vm697, %v8196
        %8227 = vst.msk [vmem:[%s7636 + $0x160] sm:$0xff] %vm697, %v8201
        %8228 = vst.msk [vmem:[%s7636 + $0x168] sm:$0xff] %vm697, %v8204
        %8229 = vst.msk [vmem:[%s7636 + $0x170] sm:$0xff] %vm697, %v8209
        %8230 = vst.msk [vmem:[%s7636 + $0x178] sm:$0xff] %vm697, %v8212
        %v8231 = vld [vmem:[%s2 + $0xc0] sm:$0xf]
        %v8232 = vld [vmem:[%s2 + $0xc4] sm:$0xf]
        %v8233 = vld [vmem:[%s2 + $0xc8] sm:$0xf]
        %v8234 = vld [vmem:[%s2 + $0xcc] sm:$0xf]
        %v8235 = vld [vmem:[%s2 + $0xd0] sm:$0xf]
        %v8236 = vld [vmem:[%s2 + $0xd4] sm:$0xf]
        %v8237 = vld [vmem:[%s2 + $0xd8] sm:$0xf]
        %v8238 = vld [vmem:[%s2 + $0xdc] sm:$0xf]
        %v8239 = vld [vmem:[%s2 + $0xe0] sm:$0xf]
        %v8240 = vld [vmem:[%s2 + $0xe4] sm:$0xf]
        %v8241 = vld [vmem:[%s2 + $0xe8] sm:$0xf]
        %v8242 = vld [vmem:[%s2 + $0xec] sm:$0xf]
        %v8243 = vld [vmem:[%s2 + $0xf0] sm:$0xf]
        %v8244 = vld [vmem:[%s2 + $0xf4] sm:$0xf]
        %v8245 = vld [vmem:[%s2 + $0xf8] sm:$0xf]
        %v8246 = vld [vmem:[%s2 + $0xfc] sm:$0xf]
        %v8247 = vld [vmem:[%s4 + $0x180] sm:$0xff]
        %v8248 = vld [vmem:[%s4 + $0x188] sm:$0xff]
        %v8249 = vld [vmem:[%s4 + $0x190] sm:$0xff]
        %v8250 = vld [vmem:[%s4 + $0x198] sm:$0xff]
        %v8251 = vld [vmem:[%s4 + $0x1a0] sm:$0xff]
        %v8252 = vld [vmem:[%s4 + $0x1a8] sm:$0xff]
        %v8253 = vld [vmem:[%s4 + $0x1b0] sm:$0xff]
        %v8254 = vld [vmem:[%s4 + $0x1b8] sm:$0xff]
        %v8255 = vld [vmem:[%s4 + $0x1c0] sm:$0xff]
        %v8256 = vld [vmem:[%s4 + $0x1c8] sm:$0xff]
        %v8257 = vld [vmem:[%s4 + $0x1d0] sm:$0xff]
        %v8258 = vld [vmem:[%s4 + $0x1d8] sm:$0xff]
        %v8259 = vld [vmem:[%s4 + $0x1e0] sm:$0xff]
        %v8260 = vld [vmem:[%s4 + $0x1e8] sm:$0xff]
        %v8261 = vld [vmem:[%s4 + $0x1f0] sm:$0xff]
        %v8262 = vld [vmem:[%s4 + $0x1f8] sm:$0xff]
        %8264 = vset.pattern.permute.xlu0 0
        %8265 = vperm.xlu0 %8264, %v8247
        %v8266 = vpop.permute.xlu0 %8265
        %8269 = vset.pattern.permute.xlu0 0
        %8270 = vperm.xlu0 %8269, %v8248
        %v8271 = vpop.permute.xlu0 %8270
        %8274 = vset.pattern.permute.xlu0 0
        %8275 = vperm.xlu0 %8274, %v8249
        %v8276 = vpop.permute.xlu0 %8275
        %8279 = vset.pattern.permute.xlu0 0
        %8280 = vperm.xlu0 %8279, %v8250
        %v8281 = vpop.permute.xlu0 %8280
        %8284 = vset.pattern.permute.xlu0 0
        %8285 = vperm.xlu0 %8284, %v8251
        %v8286 = vpop.permute.xlu0 %8285
        %8289 = vset.pattern.permute.xlu0 0
        %8290 = vperm.xlu0 %8289, %v8252
        %v8291 = vpop.permute.xlu0 %8290
        %8294 = vset.pattern.permute.xlu0 0
        %8295 = vperm.xlu0 %8294, %v8253
        %v8296 = vpop.permute.xlu0 %8295
        %8299 = vset.pattern.permute.xlu0 0
        %8300 = vperm.xlu0 %8299, %v8254
        %v8301 = vpop.permute.xlu0 %8300
        %8304 = vset.pattern.permute.xlu0 0
        %8305 = vperm.xlu0 %8304, %v8255
        %v8306 = vpop.permute.xlu0 %8305
        %8309 = vset.pattern.permute.xlu0 0
        %8310 = vperm.xlu0 %8309, %v8256
        %v8311 = vpop.permute.xlu0 %8310
        %8314 = vset.pattern.permute.xlu0 0
        %8315 = vperm.xlu0 %8314, %v8257
        %v8316 = vpop.permute.xlu0 %8315
        %8319 = vset.pattern.permute.xlu0 0
        %8320 = vperm.xlu0 %8319, %v8258
        %v8321 = vpop.permute.xlu0 %8320
        %8324 = vset.pattern.permute.xlu0 0
        %8325 = vperm.xlu0 %8324, %v8259
        %v8326 = vpop.permute.xlu0 %8325
        %8329 = vset.pattern.permute.xlu0 0
        %8330 = vperm.xlu0 %8329, %v8260
        %v8331 = vpop.permute.xlu0 %8330
        %8334 = vset.pattern.permute.xlu0 0
        %8335 = vperm.xlu0 %8334, %v8261
        %v8336 = vpop.permute.xlu0 %8335
        %8339 = vset.pattern.permute.xlu0 0
        %8340 = vperm.xlu0 %8339, %v8262
        %v8341 = vpop.permute.xlu0 %8340
        %v8359 = vunpack.c.l.b16 %v8231
        %v8360 = vunpack.c.l.b16 %v8232
        %v8361 = vunpack.c.l.b16 %v8233
        %v8362 = vunpack.c.l.b16 %v8234
        %v8363 = vunpack.c.l.b16 %v8235
        %v8364 = vunpack.c.l.b16 %v8236
        %v8365 = vunpack.c.l.b16 %v8237
        %v8366 = vunpack.c.l.b16 %v8238
        %v8367 = vunpack.c.l.b16 %v8239
        %v8368 = vunpack.c.l.b16 %v8240
        %v8369 = vunpack.c.l.b16 %v8241
        %v8370 = vunpack.c.l.b16 %v8242
        %v8371 = vunpack.c.l.b16 %v8243
        %v8372 = vunpack.c.l.b16 %v8244
        %v8373 = vunpack.c.l.b16 %v8245
        %v8374 = vunpack.c.l.b16 %v8246
        %v8375 = vpack.c.b16 %v8360, %v8359
        %v8376 = vpack.c.b16 %v8362, %v8361
        %v8377 = vpack.c.b16 %v8364, %v8363
        %v8378 = vpack.c.b16 %v8366, %v8365
        %v8379 = vpack.c.b16 %v8368, %v8367
        %v8380 = vpack.c.b16 %v8370, %v8369
        %v8381 = vpack.c.b16 %v8372, %v8371
        %v8382 = vpack.c.b16 %v8374, %v8373
        %v8384 = vsel %vm575, %v8375, 0
        %v8387 = vsel %vm575, %v8376, 0
        %v8390 = vsel %vm575, %v8377, 0
        %v8393 = vsel %vm575, %v8378, 0
        %v8396 = vsel %vm575, %v8379, 0
        %v8399 = vsel %vm575, %v8380, 0
        %v8402 = vsel %vm575, %v8381, 0
        %v8405 = vsel %vm575, %v8382, 0
        %8407 = vmatprep.subr.bf16.mxu0 0
        %8408 = vmatpush1.bf16.msra.mxu0 0
        %8409 = vmatprep.subr.bf16.mxu0 0
        %8410 = vmatpush1.bf16.msra.mxu0 0
        %8411 = vmatprep.subr.bf16.mxu0 0
        %8412 = vmatpush1.bf16.msra.mxu0 0
        %8413 = vmatprep.subr.bf16.mxu0 0
        %8414 = vmatpush1.bf16.msra.mxu0 0
        %8415 = vmatprep.subr.bf16.mxu0 0
        %8416 = vmatpush1.bf16.msra.mxu0 0
        %8417 = vmatprep.subr.bf16.mxu0 0
        %8418 = vmatpush1.bf16.msra.mxu0 0
        %8419 = vmatprep.subr.bf16.mxu0 0
        %8420 = vmatpush1.bf16.msra.mxu0 %v422
        %8421 = vmatprep.subr.bf16.mxu0 0
        %8422 = vmatpush1.bf16.msra.mxu0 %v421
        %8423 = vmatprep.subr.bf16.mxu0 0
        %8424 = vmatpush2.bf16.msra.mxu0 0
        %8425 = vmatprep.subr.bf16.mxu0 0
        %8426 = vmatpush2.bf16.msra.mxu0 0
        %8427 = vmatprep.subr.bf16.mxu0 0
        %8428 = vmatpush2.bf16.msra.mxu0 0
        %8429 = vmatprep.subr.bf16.mxu0 0
        %8430 = vmatpush2.bf16.msra.mxu0 0
        %8431 = vmatprep.subr.bf16.mxu0 0
        %8432 = vmatpush2.bf16.msra.mxu0 0
        %8433 = vmatprep.subr.bf16.mxu0 0
        %8434 = vmatpush2.bf16.msra.mxu0 0
        %8435 = vmatprep.subr.bf16.mxu0 0
        %8436 = vmatpush2.bf16.msra.mxu0 0
        %8437 = vmatprep.subr.bf16.mxu0 0
        %8438 = vmatpush2.bf16.msra.mxu0 0
        %8439 = vmatprep.mubr.bf16.mxu0 0
        %8440 = vmatmul.mubr.bf16.gmra.mxu0 %v8384
        %v8441 = vpop.f32.mrf.mxu0
        %v8442 = vadd.f32 %v8266, %v8441
        %v8443 = vpop.f32.mrf.mxu0
        %v8444 = vpop.f32.mrf.mxu0
        %v8445 = vadd.f32 %v8271, %v8444
        %v8446 = vpop.f32.mrf.mxu0
        %8447 = vmatprep.mubr.bf16.mxu0 0
        %8448 = vmatmul.mubr.bf16.gmra.mxu0 %v8387
        %v8449 = vpop.f32.mrf.mxu0
        %v8450 = vadd.f32 %v8276, %v8449
        %v8451 = vpop.f32.mrf.mxu0
        %v8452 = vpop.f32.mrf.mxu0
        %v8453 = vadd.f32 %v8281, %v8452
        %v8454 = vpop.f32.mrf.mxu0
        %8455 = vmatprep.mubr.bf16.mxu0 0
        %8456 = vmatmul.mubr.bf16.gmra.mxu0 %v8390
        %v8457 = vpop.f32.mrf.mxu0
        %v8458 = vadd.f32 %v8286, %v8457
        %v8459 = vpop.f32.mrf.mxu0
        %v8460 = vpop.f32.mrf.mxu0
        %v8461 = vadd.f32 %v8291, %v8460
        %v8462 = vpop.f32.mrf.mxu0
        %8463 = vmatprep.mubr.bf16.mxu0 0
        %8464 = vmatmul.mubr.bf16.gmra.mxu0 %v8393
        %v8465 = vpop.f32.mrf.mxu0
        %v8466 = vadd.f32 %v8296, %v8465
        %v8467 = vpop.f32.mrf.mxu0
        %v8468 = vpop.f32.mrf.mxu0
        %v8469 = vadd.f32 %v8301, %v8468
        %v8470 = vpop.f32.mrf.mxu0
        %8471 = vmatprep.mubr.bf16.mxu0 0
        %8472 = vmatmul.mubr.bf16.gmra.mxu0 %v8396
        %v8473 = vpop.f32.mrf.mxu0
        %v8474 = vadd.f32 %v8306, %v8473
        %v8475 = vpop.f32.mrf.mxu0
        %v8476 = vpop.f32.mrf.mxu0
        %v8477 = vadd.f32 %v8311, %v8476
        %v8478 = vpop.f32.mrf.mxu0
        %8479 = vmatprep.mubr.bf16.mxu0 0
        %8480 = vmatmul.mubr.bf16.gmra.mxu0 %v8399
        %v8481 = vpop.f32.mrf.mxu0
        %v8482 = vadd.f32 %v8316, %v8481
        %v8483 = vpop.f32.mrf.mxu0
        %v8484 = vpop.f32.mrf.mxu0
        %v8485 = vadd.f32 %v8321, %v8484
        %v8486 = vpop.f32.mrf.mxu0
        %8487 = vmatprep.mubr.bf16.mxu0 0
        %8488 = vmatmul.mubr.bf16.gmra.mxu0 %v8402
        %v8489 = vpop.f32.mrf.mxu0
        %v8490 = vadd.f32 %v8326, %v8489
        %v8491 = vpop.f32.mrf.mxu0
        %v8492 = vpop.f32.mrf.mxu0
        %v8493 = vadd.f32 %v8331, %v8492
        %v8494 = vpop.f32.mrf.mxu0
        %8495 = vmatprep.mubr.bf16.mxu0 0
        %8496 = vmatmul.mubr.bf16.gmra.mxu0 %v8405
        %v8497 = vpop.f32.mrf.mxu0
        %v8498 = vadd.f32 %v8336, %v8497
        %v8499 = vpop.f32.mrf.mxu0
        %v8500 = vpop.f32.mrf.mxu0
        %v8501 = vadd.f32 %v8341, %v8500
        %v8502 = vpop.f32.mrf.mxu0
        %8503 = vdwg.mxu0
        %8504 = vst.msk [vmem:[%s7636 + $0x180] sm:$0xff] %vm697, %v8442
        %8505 = vst.msk [vmem:[%s7636 + $0x188] sm:$0xff] %vm697, %v8445
        %8506 = vst.msk [vmem:[%s7636 + $0x190] sm:$0xff] %vm697, %v8450
        %8507 = vst.msk [vmem:[%s7636 + $0x198] sm:$0xff] %vm697, %v8453
        %8508 = vst.msk [vmem:[%s7636 + $0x1a0] sm:$0xff] %vm697, %v8458
        %8509 = vst.msk [vmem:[%s7636 + $0x1a8] sm:$0xff] %vm697, %v8461
        %8510 = vst.msk [vmem:[%s7636 + $0x1b0] sm:$0xff] %vm697, %v8466
        %8511 = vst.msk [vmem:[%s7636 + $0x1b8] sm:$0xff] %vm697, %v8469
        %8512 = vst.msk [vmem:[%s7636 + $0x1c0] sm:$0xff] %vm697, %v8474
        %8513 = vst.msk [vmem:[%s7636 + $0x1c8] sm:$0xff] %vm697, %v8477
        %8514 = vst.msk [vmem:[%s7636 + $0x1d0] sm:$0xff] %vm697, %v8482
        %8515 = vst.msk [vmem:[%s7636 + $0x1d8] sm:$0xff] %vm697, %v8485
        %8516 = vst.msk [vmem:[%s7636 + $0x1e0] sm:$0xff] %vm697, %v8490
        %8517 = vst.msk [vmem:[%s7636 + $0x1e8] sm:$0xff] %vm697, %v8493
        %8518 = vst.msk [vmem:[%s7636 + $0x1f0] sm:$0xff] %vm697, %v8498
        %8519 = vst.msk [vmem:[%s7636 + $0x1f8] sm:$0xff] %vm697, %v8501
        %v8520 = vld [vmem:[%s2 + $0x100] sm:$0xf]
        %v8521 = vld [vmem:[%s2 + $0x104] sm:$0xf]
        %v8522 = vld [vmem:[%s2 + $0x108] sm:$0xf]
        %v8523 = vld [vmem:[%s2 + $0x10c] sm:$0xf]
        %v8524 = vld [vmem:[%s2 + $0x110] sm:$0xf]
        %v8525 = vld [vmem:[%s2 + $0x114] sm:$0xf]
        %v8526 = vld [vmem:[%s2 + $0x118] sm:$0xf]
        %v8527 = vld [vmem:[%s2 + $0x11c] sm:$0xf]
        %v8528 = vld [vmem:[%s2 + $0x120] sm:$0xf]
        %v8529 = vld [vmem:[%s2 + $0x124] sm:$0xf]
        %v8530 = vld [vmem:[%s2 + $0x128] sm:$0xf]
        %v8531 = vld [vmem:[%s2 + $0x12c] sm:$0xf]
        %v8532 = vld [vmem:[%s2 + $0x130] sm:$0xf]
        %v8533 = vld [vmem:[%s2 + $0x134] sm:$0xf]
        %v8534 = vld [vmem:[%s2 + $0x138] sm:$0xf]
        %v8535 = vld [vmem:[%s2 + $0x13c] sm:$0xf]
        %v8536 = vld [vmem:[%s4 + $0x200] sm:$0xff]
        %v8537 = vld [vmem:[%s4 + $0x208] sm:$0xff]
        %v8538 = vld [vmem:[%s4 + $0x210] sm:$0xff]
        %v8539 = vld [vmem:[%s4 + $0x218] sm:$0xff]
        %v8540 = vld [vmem:[%s4 + $0x220] sm:$0xff]
        %v8541 = vld [vmem:[%s4 + $0x228] sm:$0xff]
        %v8542 = vld [vmem:[%s4 + $0x230] sm:$0xff]
        %v8543 = vld [vmem:[%s4 + $0x238] sm:$0xff]
        %v8544 = vld [vmem:[%s4 + $0x240] sm:$0xff]
        %v8545 = vld [vmem:[%s4 + $0x248] sm:$0xff]
        %v8546 = vld [vmem:[%s4 + $0x250] sm:$0xff]
        %v8547 = vld [vmem:[%s4 + $0x258] sm:$0xff]
        %v8548 = vld [vmem:[%s4 + $0x260] sm:$0xff]
        %v8549 = vld [vmem:[%s4 + $0x268] sm:$0xff]
        %v8550 = vld [vmem:[%s4 + $0x270] sm:$0xff]
        %v8551 = vld [vmem:[%s4 + $0x278] sm:$0xff]
        %8553 = vset.pattern.permute.xlu0 0
        %8554 = vperm.xlu0 %8553, %v8536
        %v8555 = vpop.permute.xlu0 %8554
        %8558 = vset.pattern.permute.xlu0 0
        %8559 = vperm.xlu0 %8558, %v8537
        %v8560 = vpop.permute.xlu0 %8559
        %8563 = vset.pattern.permute.xlu0 0
        %8564 = vperm.xlu0 %8563, %v8538
        %v8565 = vpop.permute.xlu0 %8564
        %8568 = vset.pattern.permute.xlu0 0
        %8569 = vperm.xlu0 %8568, %v8539
        %v8570 = vpop.permute.xlu0 %8569
        %8573 = vset.pattern.permute.xlu0 0
        %8574 = vperm.xlu0 %8573, %v8540
        %v8575 = vpop.permute.xlu0 %8574
        %8578 = vset.pattern.permute.xlu0 0
        %8579 = vperm.xlu0 %8578, %v8541
        %v8580 = vpop.permute.xlu0 %8579
        %8583 = vset.pattern.permute.xlu0 0
        %8584 = vperm.xlu0 %8583, %v8542
        %v8585 = vpop.permute.xlu0 %8584
        %8588 = vset.pattern.permute.xlu0 0
        %8589 = vperm.xlu0 %8588, %v8543
        %v8590 = vpop.permute.xlu0 %8589
        %8593 = vset.pattern.permute.xlu0 0
        %8594 = vperm.xlu0 %8593, %v8544
        %v8595 = vpop.permute.xlu0 %8594
        %8598 = vset.pattern.permute.xlu0 0
        %8599 = vperm.xlu0 %8598, %v8545
        %v8600 = vpop.permute.xlu0 %8599
        %8603 = vset.pattern.permute.xlu0 0
        %8604 = vperm.xlu0 %8603, %v8546
        %v8605 = vpop.permute.xlu0 %8604
        %8608 = vset.pattern.permute.xlu0 0
        %8609 = vperm.xlu0 %8608, %v8547
        %v8610 = vpop.permute.xlu0 %8609
        %8613 = vset.pattern.permute.xlu0 0
        %8614 = vperm.xlu0 %8613, %v8548
        %v8615 = vpop.permute.xlu0 %8614
        %8618 = vset.pattern.permute.xlu0 0
        %8619 = vperm.xlu0 %8618, %v8549
        %v8620 = vpop.permute.xlu0 %8619
        %8623 = vset.pattern.permute.xlu0 0
        %8624 = vperm.xlu0 %8623, %v8550
        %v8625 = vpop.permute.xlu0 %8624
        %8628 = vset.pattern.permute.xlu0 0
        %8629 = vperm.xlu0 %8628, %v8551
        %v8630 = vpop.permute.xlu0 %8629
        %v8648 = vunpack.c.l.b16 %v8520
        %v8649 = vunpack.c.l.b16 %v8521
        %v8650 = vunpack.c.l.b16 %v8522
        %v8651 = vunpack.c.l.b16 %v8523
        %v8652 = vunpack.c.l.b16 %v8524
        %v8653 = vunpack.c.l.b16 %v8525
        %v8654 = vunpack.c.l.b16 %v8526
        %v8655 = vunpack.c.l.b16 %v8527
        %v8656 = vunpack.c.l.b16 %v8528
        %v8657 = vunpack.c.l.b16 %v8529
        %v8658 = vunpack.c.l.b16 %v8530
        %v8659 = vunpack.c.l.b16 %v8531
        %v8660 = vunpack.c.l.b16 %v8532
        %v8661 = vunpack.c.l.b16 %v8533
        %v8662 = vunpack.c.l.b16 %v8534
        %v8663 = vunpack.c.l.b16 %v8535
        %v8664 = vpack.c.b16 %v8649, %v8648
        %v8665 = vpack.c.b16 %v8651, %v8650
        %v8666 = vpack.c.b16 %v8653, %v8652
        %v8667 = vpack.c.b16 %v8655, %v8654
        %v8668 = vpack.c.b16 %v8657, %v8656
        %v8669 = vpack.c.b16 %v8659, %v8658
        %v8670 = vpack.c.b16 %v8661, %v8660
        %v8671 = vpack.c.b16 %v8663, %v8662
        %v8673 = vsel %vm575, %v8664, 0
        %v8676 = vsel %vm575, %v8665, 0
        %v8679 = vsel %vm575, %v8666, 0
        %v8682 = vsel %vm575, %v8667, 0
        %v8685 = vsel %vm575, %v8668, 0
        %v8688 = vsel %vm575, %v8669, 0
        %v8691 = vsel %vm575, %v8670, 0
        %v8694 = vsel %vm575, %v8671, 0
        %8696 = vmatprep.subr.bf16.mxu0 0
        %8697 = vmatpush1.bf16.msra.mxu0 0
        %8698 = vmatprep.subr.bf16.mxu0 0
        %8699 = vmatpush1.bf16.msra.mxu0 0
        %8700 = vmatprep.subr.bf16.mxu0 0
        %8701 = vmatpush1.bf16.msra.mxu0 0
        %8702 = vmatprep.subr.bf16.mxu0 0
        %8703 = vmatpush1.bf16.msra.mxu0 0
        %8704 = vmatprep.subr.bf16.mxu0 0
        %8705 = vmatpush1.bf16.msra.mxu0 0
        %8706 = vmatprep.subr.bf16.mxu0 0
        %8707 = vmatpush1.bf16.msra.mxu0 0
        %8708 = vmatprep.subr.bf16.mxu0 0
        %8709 = vmatpush1.bf16.msra.mxu0 %v422
        %8710 = vmatprep.subr.bf16.mxu0 0
        %8711 = vmatpush1.bf16.msra.mxu0 %v421
        %8712 = vmatprep.subr.bf16.mxu0 0
        %8713 = vmatpush2.bf16.msra.mxu0 0
        %8714 = vmatprep.subr.bf16.mxu0 0
        %8715 = vmatpush2.bf16.msra.mxu0 0
        %8716 = vmatprep.subr.bf16.mxu0 0
        %8717 = vmatpush2.bf16.msra.mxu0 0
        %8718 = vmatprep.subr.bf16.mxu0 0
        %8719 = vmatpush2.bf16.msra.mxu0 0
        %8720 = vmatprep.subr.bf16.mxu0 0
        %8721 = vmatpush2.bf16.msra.mxu0 0
        %8722 = vmatprep.subr.bf16.mxu0 0
        %8723 = vmatpush2.bf16.msra.mxu0 0
        %8724 = vmatprep.subr.bf16.mxu0 0
        %8725 = vmatpush2.bf16.msra.mxu0 0
        %8726 = vmatprep.subr.bf16.mxu0 0
        %8727 = vmatpush2.bf16.msra.mxu0 0
        %8728 = vmatprep.mubr.bf16.mxu0 0
        %8729 = vmatmul.mubr.bf16.gmra.mxu0 %v8673
        %v8730 = vpop.f32.mrf.mxu0
        %v8731 = vadd.f32 %v8555, %v8730
        %v8732 = vpop.f32.mrf.mxu0
        %v8733 = vpop.f32.mrf.mxu0
        %v8734 = vadd.f32 %v8560, %v8733
        %v8735 = vpop.f32.mrf.mxu0
        %8736 = vmatprep.mubr.bf16.mxu0 0
        %8737 = vmatmul.mubr.bf16.gmra.mxu0 %v8676
        %v8738 = vpop.f32.mrf.mxu0
        %v8739 = vadd.f32 %v8565, %v8738
        %v8740 = vpop.f32.mrf.mxu0
        %v8741 = vpop.f32.mrf.mxu0
        %v8742 = vadd.f32 %v8570, %v8741
        %v8743 = vpop.f32.mrf.mxu0
        %8744 = vmatprep.mubr.bf16.mxu0 0
        %8745 = vmatmul.mubr.bf16.gmra.mxu0 %v8679
        %v8746 = vpop.f32.mrf.mxu0
        %v8747 = vadd.f32 %v8575, %v8746
        %v8748 = vpop.f32.mrf.mxu0
        %v8749 = vpop.f32.mrf.mxu0
        %v8750 = vadd.f32 %v8580, %v8749
        %v8751 = vpop.f32.mrf.mxu0
        %8752 = vmatprep.mubr.bf16.mxu0 0
        %8753 = vmatmul.mubr.bf16.gmra.mxu0 %v8682
        %v8754 = vpop.f32.mrf.mxu0
        %v8755 = vadd.f32 %v8585, %v8754
        %v8756 = vpop.f32.mrf.mxu0
        %v8757 = vpop.f32.mrf.mxu0
        %v8758 = vadd.f32 %v8590, %v8757
        %v8759 = vpop.f32.mrf.mxu0
        %8760 = vmatprep.mubr.bf16.mxu0 0
        %8761 = vmatmul.mubr.bf16.gmra.mxu0 %v8685
        %v8762 = vpop.f32.mrf.mxu0
        %v8763 = vadd.f32 %v8595, %v8762
        %v8764 = vpop.f32.mrf.mxu0
        %v8765 = vpop.f32.mrf.mxu0
        %v8766 = vadd.f32 %v8600, %v8765
        %v8767 = vpop.f32.mrf.mxu0
        %8768 = vmatprep.mubr.bf16.mxu0 0
        %8769 = vmatmul.mubr.bf16.gmra.mxu0 %v8688
        %v8770 = vpop.f32.mrf.mxu0
        %v8771 = vadd.f32 %v8605, %v8770
        %v8772 = vpop.f32.mrf.mxu0
        %v8773 = vpop.f32.mrf.mxu0
        %v8774 = vadd.f32 %v8610, %v8773
        %v8775 = vpop.f32.mrf.mxu0
        %8776 = vmatprep.mubr.bf16.mxu0 0
        %8777 = vmatmul.mubr.bf16.gmra.mxu0 %v8691
        %v8778 = vpop.f32.mrf.mxu0
        %v8779 = vadd.f32 %v8615, %v8778
        %v8780 = vpop.f32.mrf.mxu0
        %v8781 = vpop.f32.mrf.mxu0
        %v8782 = vadd.f32 %v8620, %v8781
        %v8783 = vpop.f32.mrf.mxu0
        %8784 = vmatprep.mubr.bf16.mxu0 0
        %8785 = vmatmul.mubr.bf16.gmra.mxu0 %v8694
        %v8786 = vpop.f32.mrf.mxu0
        %v8787 = vadd.f32 %v8625, %v8786
        %v8788 = vpop.f32.mrf.mxu0
        %v8789 = vpop.f32.mrf.mxu0
        %v8790 = vadd.f32 %v8630, %v8789
        %v8791 = vpop.f32.mrf.mxu0
        %8792 = vdwg.mxu0
        %8793 = vst.msk [vmem:[%s7636 + $0x200] sm:$0xff] %vm697, %v8731
        %8794 = vst.msk [vmem:[%s7636 + $0x208] sm:$0xff] %vm697, %v8734
        %8795 = vst.msk [vmem:[%s7636 + $0x210] sm:$0xff] %vm697, %v8739
        %8796 = vst.msk [vmem:[%s7636 + $0x218] sm:$0xff] %vm697, %v8742
        %8797 = vst.msk [vmem:[%s7636 + $0x220] sm:$0xff] %vm697, %v8747
        %8798 = vst.msk [vmem:[%s7636 + $0x228] sm:$0xff] %vm697, %v8750
        %8799 = vst.msk [vmem:[%s7636 + $0x230] sm:$0xff] %vm697, %v8755
        %8800 = vst.msk [vmem:[%s7636 + $0x238] sm:$0xff] %vm697, %v8758
        %8801 = vst.msk [vmem:[%s7636 + $0x240] sm:$0xff] %vm697, %v8763
        %8802 = vst.msk [vmem:[%s7636 + $0x248] sm:$0xff] %vm697, %v8766
        %8803 = vst.msk [vmem:[%s7636 + $0x250] sm:$0xff] %vm697, %v8771
        %8804 = vst.msk [vmem:[%s7636 + $0x258] sm:$0xff] %vm697, %v8774
        %8805 = vst.msk [vmem:[%s7636 + $0x260] sm:$0xff] %vm697, %v8779
        %8806 = vst.msk [vmem:[%s7636 + $0x268] sm:$0xff] %vm697, %v8782
        %8807 = vst.msk [vmem:[%s7636 + $0x270] sm:$0xff] %vm697, %v8787
        %8808 = vst.msk [vmem:[%s7636 + $0x278] sm:$0xff] %vm697, %v8790
        %v8809 = vld [vmem:[%s2 + $0x140] sm:$0xf]
        %v8810 = vld [vmem:[%s2 + $0x144] sm:$0xf]
        %v8811 = vld [vmem:[%s2 + $0x148] sm:$0xf]
        %v8812 = vld [vmem:[%s2 + $0x14c] sm:$0xf]
        %v8813 = vld [vmem:[%s2 + $0x150] sm:$0xf]
        %v8814 = vld [vmem:[%s2 + $0x154] sm:$0xf]
        %v8815 = vld [vmem:[%s2 + $0x158] sm:$0xf]
        %v8816 = vld [vmem:[%s2 + $0x15c] sm:$0xf]
        %v8817 = vld [vmem:[%s2 + $0x160] sm:$0xf]
        %v8818 = vld [vmem:[%s2 + $0x164] sm:$0xf]
        %v8819 = vld [vmem:[%s2 + $0x168] sm:$0xf]
        %v8820 = vld [vmem:[%s2 + $0x16c] sm:$0xf]
        %v8821 = vld [vmem:[%s2 + $0x170] sm:$0xf]
        %v8822 = vld [vmem:[%s2 + $0x174] sm:$0xf]
        %v8823 = vld [vmem:[%s2 + $0x178] sm:$0xf]
        %v8824 = vld [vmem:[%s2 + $0x17c] sm:$0xf]
        %v8825 = vld [vmem:[%s4 + $0x280] sm:$0xff]
        %v8826 = vld [vmem:[%s4 + $0x288] sm:$0xff]
        %v8827 = vld [vmem:[%s4 + $0x290] sm:$0xff]
        %v8828 = vld [vmem:[%s4 + $0x298] sm:$0xff]
        %v8829 = vld [vmem:[%s4 + $0x2a0] sm:$0xff]
        %v8830 = vld [vmem:[%s4 + $0x2a8] sm:$0xff]
        %v8831 = vld [vmem:[%s4 + $0x2b0] sm:$0xff]
        %v8832 = vld [vmem:[%s4 + $0x2b8] sm:$0xff]
        %v8833 = vld [vmem:[%s4 + $0x2c0] sm:$0xff]
        %v8834 = vld [vmem:[%s4 + $0x2c8] sm:$0xff]
        %v8835 = vld [vmem:[%s4 + $0x2d0] sm:$0xff]
        %v8836 = vld [vmem:[%s4 + $0x2d8] sm:$0xff]
        %v8837 = vld [vmem:[%s4 + $0x2e0] sm:$0xff]
        %v8838 = vld [vmem:[%s4 + $0x2e8] sm:$0xff]
        %v8839 = vld [vmem:[%s4 + $0x2f0] sm:$0xff]
        %v8840 = vld [vmem:[%s4 + $0x2f8] sm:$0xff]
        %8842 = vset.pattern.permute.xlu0 0
        %8843 = vperm.xlu0 %8842, %v8825
        %v8844 = vpop.permute.xlu0 %8843
        %8847 = vset.pattern.permute.xlu0 0
        %8848 = vperm.xlu0 %8847, %v8826
        %v8849 = vpop.permute.xlu0 %8848
        %8852 = vset.pattern.permute.xlu0 0
        %8853 = vperm.xlu0 %8852, %v8827
        %v8854 = vpop.permute.xlu0 %8853
        %8857 = vset.pattern.permute.xlu0 0
        %8858 = vperm.xlu0 %8857, %v8828
        %v8859 = vpop.permute.xlu0 %8858
        %8862 = vset.pattern.permute.xlu0 0
        %8863 = vperm.xlu0 %8862, %v8829
        %v8864 = vpop.permute.xlu0 %8863
        %8867 = vset.pattern.permute.xlu0 0
        %8868 = vperm.xlu0 %8867, %v8830
        %v8869 = vpop.permute.xlu0 %8868
        %8872 = vset.pattern.permute.xlu0 0
        %8873 = vperm.xlu0 %8872, %v8831
        %v8874 = vpop.permute.xlu0 %8873
        %8877 = vset.pattern.permute.xlu0 0
        %8878 = vperm.xlu0 %8877, %v8832
        %v8879 = vpop.permute.xlu0 %8878
        %8882 = vset.pattern.permute.xlu0 0
        %8883 = vperm.xlu0 %8882, %v8833
        %v8884 = vpop.permute.xlu0 %8883
        %8887 = vset.pattern.permute.xlu0 0
        %8888 = vperm.xlu0 %8887, %v8834
        %v8889 = vpop.permute.xlu0 %8888
        %8892 = vset.pattern.permute.xlu0 0
        %8893 = vperm.xlu0 %8892, %v8835
        %v8894 = vpop.permute.xlu0 %8893
        %8897 = vset.pattern.permute.xlu0 0
        %8898 = vperm.xlu0 %8897, %v8836
        %v8899 = vpop.permute.xlu0 %8898
        %8902 = vset.pattern.permute.xlu0 0
        %8903 = vperm.xlu0 %8902, %v8837
        %v8904 = vpop.permute.xlu0 %8903
        %8907 = vset.pattern.permute.xlu0 0
        %8908 = vperm.xlu0 %8907, %v8838
        %v8909 = vpop.permute.xlu0 %8908
        %8912 = vset.pattern.permute.xlu0 0
        %8913 = vperm.xlu0 %8912, %v8839
        %v8914 = vpop.permute.xlu0 %8913
        %8917 = vset.pattern.permute.xlu0 0
        %8918 = vperm.xlu0 %8917, %v8840
        %v8919 = vpop.permute.xlu0 %8918
        %v8937 = vunpack.c.l.b16 %v8809
        %v8938 = vunpack.c.l.b16 %v8810
        %v8939 = vunpack.c.l.b16 %v8811
        %v8940 = vunpack.c.l.b16 %v8812
        %v8941 = vunpack.c.l.b16 %v8813
        %v8942 = vunpack.c.l.b16 %v8814
        %v8943 = vunpack.c.l.b16 %v8815
        %v8944 = vunpack.c.l.b16 %v8816
        %v8945 = vunpack.c.l.b16 %v8817
        %v8946 = vunpack.c.l.b16 %v8818
        %v8947 = vunpack.c.l.b16 %v8819
        %v8948 = vunpack.c.l.b16 %v8820
        %v8949 = vunpack.c.l.b16 %v8821
        %v8950 = vunpack.c.l.b16 %v8822
        %v8951 = vunpack.c.l.b16 %v8823
        %v8952 = vunpack.c.l.b16 %v8824
        %v8953 = vpack.c.b16 %v8938, %v8937
        %v8954 = vpack.c.b16 %v8940, %v8939
        %v8955 = vpack.c.b16 %v8942, %v8941
        %v8956 = vpack.c.b16 %v8944, %v8943
        %v8957 = vpack.c.b16 %v8946, %v8945
        %v8958 = vpack.c.b16 %v8948, %v8947
        %v8959 = vpack.c.b16 %v8950, %v8949
        %v8960 = vpack.c.b16 %v8952, %v8951
        %v8962 = vsel %vm575, %v8953, 0
        %v8965 = vsel %vm575, %v8954, 0
        %v8968 = vsel %vm575, %v8955, 0
        %v8971 = vsel %vm575, %v8956, 0
        %v8974 = vsel %vm575, %v8957, 0
        %v8977 = vsel %vm575, %v8958, 0
        %v8980 = vsel %vm575, %v8959, 0
        %v8983 = vsel %vm575, %v8960, 0
        %8985 = vmatprep.subr.bf16.mxu0 0
        %8986 = vmatpush1.bf16.msra.mxu0 0
        %8987 = vmatprep.subr.bf16.mxu0 0
        %8988 = vmatpush1.bf16.msra.mxu0 0
        %8989 = vmatprep.subr.bf16.mxu0 0
        %8990 = vmatpush1.bf16.msra.mxu0 0
        %8991 = vmatprep.subr.bf16.mxu0 0
        %8992 = vmatpush1.bf16.msra.mxu0 0
        %8993 = vmatprep.subr.bf16.mxu0 0
        %8994 = vmatpush1.bf16.msra.mxu0 0
        %8995 = vmatprep.subr.bf16.mxu0 0
        %8996 = vmatpush1.bf16.msra.mxu0 0
        %8997 = vmatprep.subr.bf16.mxu0 0
        %8998 = vmatpush1.bf16.msra.mxu0 %v422
        %8999 = vmatprep.subr.bf16.mxu0 0
        %9000 = vmatpush1.bf16.msra.mxu0 %v421
        %9001 = vmatprep.subr.bf16.mxu0 0
        %9002 = vmatpush2.bf16.msra.mxu0 0
        %9003 = vmatprep.subr.bf16.mxu0 0
        %9004 = vmatpush2.bf16.msra.mxu0 0
        %9005 = vmatprep.subr.bf16.mxu0 0
        %9006 = vmatpush2.bf16.msra.mxu0 0
        %9007 = vmatprep.subr.bf16.mxu0 0
        %9008 = vmatpush2.bf16.msra.mxu0 0
        %9009 = vmatprep.subr.bf16.mxu0 0
        %9010 = vmatpush2.bf16.msra.mxu0 0
        %9011 = vmatprep.subr.bf16.mxu0 0
        %9012 = vmatpush2.bf16.msra.mxu0 0
        %9013 = vmatprep.subr.bf16.mxu0 0
        %9014 = vmatpush2.bf16.msra.mxu0 0
        %9015 = vmatprep.subr.bf16.mxu0 0
        %9016 = vmatpush2.bf16.msra.mxu0 0
        %9017 = vmatprep.mubr.bf16.mxu0 0
        %9018 = vmatmul.mubr.bf16.gmra.mxu0 %v8962
        %v9019 = vpop.f32.mrf.mxu0
        %v9020 = vadd.f32 %v8844, %v9019
        %v9021 = vpop.f32.mrf.mxu0
        %v9022 = vpop.f32.mrf.mxu0
        %v9023 = vadd.f32 %v8849, %v9022
        %v9024 = vpop.f32.mrf.mxu0
        %9025 = vmatprep.mubr.bf16.mxu0 0
        %9026 = vmatmul.mubr.bf16.gmra.mxu0 %v8965
        %v9027 = vpop.f32.mrf.mxu0
        %v9028 = vadd.f32 %v8854, %v9027
        %v9029 = vpop.f32.mrf.mxu0
        %v9030 = vpop.f32.mrf.mxu0
        %v9031 = vadd.f32 %v8859, %v9030
        %v9032 = vpop.f32.mrf.mxu0
        %9033 = vmatprep.mubr.bf16.mxu0 0
        %9034 = vmatmul.mubr.bf16.gmra.mxu0 %v8968
        %v9035 = vpop.f32.mrf.mxu0
        %v9036 = vadd.f32 %v8864, %v9035
        %v9037 = vpop.f32.mrf.mxu0
        %v9038 = vpop.f32.mrf.mxu0
        %v9039 = vadd.f32 %v8869, %v9038
        %v9040 = vpop.f32.mrf.mxu0
        %9041 = vmatprep.mubr.bf16.mxu0 0
        %9042 = vmatmul.mubr.bf16.gmra.mxu0 %v8971
        %v9043 = vpop.f32.mrf.mxu0
        %v9044 = vadd.f32 %v8874, %v9043
        %v9045 = vpop.f32.mrf.mxu0
        %v9046 = vpop.f32.mrf.mxu0
        %v9047 = vadd.f32 %v8879, %v9046
        %v9048 = vpop.f32.mrf.mxu0
        %9049 = vmatprep.mubr.bf16.mxu0 0
        %9050 = vmatmul.mubr.bf16.gmra.mxu0 %v8974
        %v9051 = vpop.f32.mrf.mxu0
        %v9052 = vadd.f32 %v8884, %v9051
        %v9053 = vpop.f32.mrf.mxu0
        %v9054 = vpop.f32.mrf.mxu0
        %v9055 = vadd.f32 %v8889, %v9054
        %v9056 = vpop.f32.mrf.mxu0
        %9057 = vmatprep.mubr.bf16.mxu0 0
        %9058 = vmatmul.mubr.bf16.gmra.mxu0 %v8977
        %v9059 = vpop.f32.mrf.mxu0
        %v9060 = vadd.f32 %v8894, %v9059
        %v9061 = vpop.f32.mrf.mxu0
        %v9062 = vpop.f32.mrf.mxu0
        %v9063 = vadd.f32 %v8899, %v9062
        %v9064 = vpop.f32.mrf.mxu0
        %9065 = vmatprep.mubr.bf16.mxu0 0
        %9066 = vmatmul.mubr.bf16.gmra.mxu0 %v8980
        %v9067 = vpop.f32.mrf.mxu0
        %v9068 = vadd.f32 %v8904, %v9067
        %v9069 = vpop.f32.mrf.mxu0
        %v9070 = vpop.f32.mrf.mxu0
        %v9071 = vadd.f32 %v8909, %v9070
        %v9072 = vpop.f32.mrf.mxu0
        %9073 = vmatprep.mubr.bf16.mxu0 0
        %9074 = vmatmul.mubr.bf16.gmra.mxu0 %v8983
        %v9075 = vpop.f32.mrf.mxu0
        %v9076 = vadd.f32 %v8914, %v9075
        %v9077 = vpop.f32.mrf.mxu0
        %v9078 = vpop.f32.mrf.mxu0
        %v9079 = vadd.f32 %v8919, %v9078
        %v9080 = vpop.f32.mrf.mxu0
        %9081 = vdwg.mxu0
        %9082 = vst.msk [vmem:[%s7636 + $0x280] sm:$0xff] %vm697, %v9020
        %9083 = vst.msk [vmem:[%s7636 + $0x288] sm:$0xff] %vm697, %v9023
        %9084 = vst.msk [vmem:[%s7636 + $0x290] sm:$0xff] %vm697, %v9028
        %9085 = vst.msk [vmem:[%s7636 + $0x298] sm:$0xff] %vm697, %v9031
        %9086 = vst.msk [vmem:[%s7636 + $0x2a0] sm:$0xff] %vm697, %v9036
        %9087 = vst.msk [vmem:[%s7636 + $0x2a8] sm:$0xff] %vm697, %v9039
        %9088 = vst.msk [vmem:[%s7636 + $0x2b0] sm:$0xff] %vm697, %v9044
        %9089 = vst.msk [vmem:[%s7636 + $0x2b8] sm:$0xff] %vm697, %v9047
        %9090 = vst.msk [vmem:[%s7636 + $0x2c0] sm:$0xff] %vm697, %v9052
        %9091 = vst.msk [vmem:[%s7636 + $0x2c8] sm:$0xff] %vm697, %v9055
        %9092 = vst.msk [vmem:[%s7636 + $0x2d0] sm:$0xff] %vm697, %v9060
        %9093 = vst.msk [vmem:[%s7636 + $0x2d8] sm:$0xff] %vm697, %v9063
        %9094 = vst.msk [vmem:[%s7636 + $0x2e0] sm:$0xff] %vm697, %v9068
        %9095 = vst.msk [vmem:[%s7636 + $0x2e8] sm:$0xff] %vm697, %v9071
        %9096 = vst.msk [vmem:[%s7636 + $0x2f0] sm:$0xff] %vm697, %v9076
        %9097 = vst.msk [vmem:[%s7636 + $0x2f8] sm:$0xff] %vm697, %v9079
        %v9098 = vld [vmem:[%s2 + $0x180] sm:$0xf]
        %v9099 = vld [vmem:[%s2 + $0x184] sm:$0xf]
        %v9100 = vld [vmem:[%s2 + $0x188] sm:$0xf]
        %v9101 = vld [vmem:[%s2 + $0x18c] sm:$0xf]
        %v9102 = vld [vmem:[%s2 + $0x190] sm:$0xf]
        %v9103 = vld [vmem:[%s2 + $0x194] sm:$0xf]
        %v9104 = vld [vmem:[%s2 + $0x198] sm:$0xf]
        %v9105 = vld [vmem:[%s2 + $0x19c] sm:$0xf]
        %v9106 = vld [vmem:[%s2 + $0x1a0] sm:$0xf]
        %v9107 = vld [vmem:[%s2 + $0x1a4] sm:$0xf]
        %v9108 = vld [vmem:[%s2 + $0x1a8] sm:$0xf]
        %v9109 = vld [vmem:[%s2 + $0x1ac] sm:$0xf]
        %v9110 = vld [vmem:[%s2 + $0x1b0] sm:$0xf]
        %v9111 = vld [vmem:[%s2 + $0x1b4] sm:$0xf]
        %v9112 = vld [vmem:[%s2 + $0x1b8] sm:$0xf]
        %v9113 = vld [vmem:[%s2 + $0x1bc] sm:$0xf]
        %v9114 = vld [vmem:[%s4 + $0x300] sm:$0xff]
        %v9115 = vld [vmem:[%s4 + $0x308] sm:$0xff]
        %v9116 = vld [vmem:[%s4 + $0x310] sm:$0xff]
        %v9117 = vld [vmem:[%s4 + $0x318] sm:$0xff]
        %v9118 = vld [vmem:[%s4 + $0x320] sm:$0xff]
        %v9119 = vld [vmem:[%s4 + $0x328] sm:$0xff]
        %v9120 = vld [vmem:[%s4 + $0x330] sm:$0xff]
        %v9121 = vld [vmem:[%s4 + $0x338] sm:$0xff]
        %v9122 = vld [vmem:[%s4 + $0x340] sm:$0xff]
        %v9123 = vld [vmem:[%s4 + $0x348] sm:$0xff]
        %v9124 = vld [vmem:[%s4 + $0x350] sm:$0xff]
        %v9125 = vld [vmem:[%s4 + $0x358] sm:$0xff]
        %v9126 = vld [vmem:[%s4 + $0x360] sm:$0xff]
        %v9127 = vld [vmem:[%s4 + $0x368] sm:$0xff]
        %v9128 = vld [vmem:[%s4 + $0x370] sm:$0xff]
        %v9129 = vld [vmem:[%s4 + $0x378] sm:$0xff]
        %9131 = vset.pattern.permute.xlu0 0
        %9132 = vperm.xlu0 %9131, %v9114
        %v9133 = vpop.permute.xlu0 %9132
        %9136 = vset.pattern.permute.xlu0 0
        %9137 = vperm.xlu0 %9136, %v9115
        %v9138 = vpop.permute.xlu0 %9137
        %9141 = vset.pattern.permute.xlu0 0
        %9142 = vperm.xlu0 %9141, %v9116
        %v9143 = vpop.permute.xlu0 %9142
        %9146 = vset.pattern.permute.xlu0 0
        %9147 = vperm.xlu0 %9146, %v9117
        %v9148 = vpop.permute.xlu0 %9147
        %9151 = vset.pattern.permute.xlu0 0
        %9152 = vperm.xlu0 %9151, %v9118
        %v9153 = vpop.permute.xlu0 %9152
        %9156 = vset.pattern.permute.xlu0 0
        %9157 = vperm.xlu0 %9156, %v9119
        %v9158 = vpop.permute.xlu0 %9157
        %9161 = vset.pattern.permute.xlu0 0
        %9162 = vperm.xlu0 %9161, %v9120
        %v9163 = vpop.permute.xlu0 %9162
        %9166 = vset.pattern.permute.xlu0 0
        %9167 = vperm.xlu0 %9166, %v9121
        %v9168 = vpop.permute.xlu0 %9167
        %9171 = vset.pattern.permute.xlu0 0
        %9172 = vperm.xlu0 %9171, %v9122
        %v9173 = vpop.permute.xlu0 %9172
        %9176 = vset.pattern.permute.xlu0 0
        %9177 = vperm.xlu0 %9176, %v9123
        %v9178 = vpop.permute.xlu0 %9177
        %9181 = vset.pattern.permute.xlu0 0
        %9182 = vperm.xlu0 %9181, %v9124
        %v9183 = vpop.permute.xlu0 %9182
        %9186 = vset.pattern.permute.xlu0 0
        %9187 = vperm.xlu0 %9186, %v9125
        %v9188 = vpop.permute.xlu0 %9187
        %9191 = vset.pattern.permute.xlu0 0
        %9192 = vperm.xlu0 %9191, %v9126
        %v9193 = vpop.permute.xlu0 %9192
        %9196 = vset.pattern.permute.xlu0 0
        %9197 = vperm.xlu0 %9196, %v9127
        %v9198 = vpop.permute.xlu0 %9197
        %9201 = vset.pattern.permute.xlu0 0
        %9202 = vperm.xlu0 %9201, %v9128
        %v9203 = vpop.permute.xlu0 %9202
        %9206 = vset.pattern.permute.xlu0 0
        %9207 = vperm.xlu0 %9206, %v9129
        %v9208 = vpop.permute.xlu0 %9207
        %v9226 = vunpack.c.l.b16 %v9098
        %v9227 = vunpack.c.l.b16 %v9099
        %v9228 = vunpack.c.l.b16 %v9100
        %v9229 = vunpack.c.l.b16 %v9101
        %v9230 = vunpack.c.l.b16 %v9102
        %v9231 = vunpack.c.l.b16 %v9103
        %v9232 = vunpack.c.l.b16 %v9104
        %v9233 = vunpack.c.l.b16 %v9105
        %v9234 = vunpack.c.l.b16 %v9106
        %v9235 = vunpack.c.l.b16 %v9107
        %v9236 = vunpack.c.l.b16 %v9108
        %v9237 = vunpack.c.l.b16 %v9109
        %v9238 = vunpack.c.l.b16 %v9110
        %v9239 = vunpack.c.l.b16 %v9111
        %v9240 = vunpack.c.l.b16 %v9112
        %v9241 = vunpack.c.l.b16 %v9113
        %v9242 = vpack.c.b16 %v9227, %v9226
        %v9243 = vpack.c.b16 %v9229, %v9228
        %v9244 = vpack.c.b16 %v9231, %v9230
        %v9245 = vpack.c.b16 %v9233, %v9232
        %v9246 = vpack.c.b16 %v9235, %v9234
        %v9247 = vpack.c.b16 %v9237, %v9236
        %v9248 = vpack.c.b16 %v9239, %v9238
        %v9249 = vpack.c.b16 %v9241, %v9240
        %v9251 = vsel %vm575, %v9242, 0
        %v9254 = vsel %vm575, %v9243, 0
        %v9257 = vsel %vm575, %v9244, 0
        %v9260 = vsel %vm575, %v9245, 0
        %v9263 = vsel %vm575, %v9246, 0
        %v9266 = vsel %vm575, %v9247, 0
        %v9269 = vsel %vm575, %v9248, 0
        %v9272 = vsel %vm575, %v9249, 0
        %9274 = vmatprep.subr.bf16.mxu0 0
        %9275 = vmatpush1.bf16.msra.mxu0 0
        %9276 = vmatprep.subr.bf16.mxu0 0
        %9277 = vmatpush1.bf16.msra.mxu0 0
        %9278 = vmatprep.subr.bf16.mxu0 0
        %9279 = vmatpush1.bf16.msra.mxu0 0
        %9280 = vmatprep.subr.bf16.mxu0 0
        %9281 = vmatpush1.bf16.msra.mxu0 0
        %9282 = vmatprep.subr.bf16.mxu0 0
        %9283 = vmatpush1.bf16.msra.mxu0 0
        %9284 = vmatprep.subr.bf16.mxu0 0
        %9285 = vmatpush1.bf16.msra.mxu0 0
        %9286 = vmatprep.subr.bf16.mxu0 0
        %9287 = vmatpush1.bf16.msra.mxu0 %v422
        %9288 = vmatprep.subr.bf16.mxu0 0
        %9289 = vmatpush1.bf16.msra.mxu0 %v421
        %9290 = vmatprep.subr.bf16.mxu0 0
        %9291 = vmatpush2.bf16.msra.mxu0 0
        %9292 = vmatprep.subr.bf16.mxu0 0
        %9293 = vmatpush2.bf16.msra.mxu0 0
        %9294 = vmatprep.subr.bf16.mxu0 0
        %9295 = vmatpush2.bf16.msra.mxu0 0
        %9296 = vmatprep.subr.bf16.mxu0 0
        %9297 = vmatpush2.bf16.msra.mxu0 0
        %9298 = vmatprep.subr.bf16.mxu0 0
        %9299 = vmatpush2.bf16.msra.mxu0 0
        %9300 = vmatprep.subr.bf16.mxu0 0
        %9301 = vmatpush2.bf16.msra.mxu0 0
        %9302 = vmatprep.subr.bf16.mxu0 0
        %9303 = vmatpush2.bf16.msra.mxu0 0
        %9304 = vmatprep.subr.bf16.mxu0 0
        %9305 = vmatpush2.bf16.msra.mxu0 0
        %9306 = vmatprep.mubr.bf16.mxu0 0
        %9307 = vmatmul.mubr.bf16.gmra.mxu0 %v9251
        %v9308 = vpop.f32.mrf.mxu0
        %v9309 = vadd.f32 %v9133, %v9308
        %v9310 = vpop.f32.mrf.mxu0
        %v9311 = vpop.f32.mrf.mxu0
        %v9312 = vadd.f32 %v9138, %v9311
        %v9313 = vpop.f32.mrf.mxu0
        %9314 = vmatprep.mubr.bf16.mxu0 0
        %9315 = vmatmul.mubr.bf16.gmra.mxu0 %v9254
        %v9316 = vpop.f32.mrf.mxu0
        %v9317 = vadd.f32 %v9143, %v9316
        %v9318 = vpop.f32.mrf.mxu0
        %v9319 = vpop.f32.mrf.mxu0
        %v9320 = vadd.f32 %v9148, %v9319
        %v9321 = vpop.f32.mrf.mxu0
        %9322 = vmatprep.mubr.bf16.mxu0 0
        %9323 = vmatmul.mubr.bf16.gmra.mxu0 %v9257
        %v9324 = vpop.f32.mrf.mxu0
        %v9325 = vadd.f32 %v9153, %v9324
        %v9326 = vpop.f32.mrf.mxu0
        %v9327 = vpop.f32.mrf.mxu0
        %v9328 = vadd.f32 %v9158, %v9327
        %v9329 = vpop.f32.mrf.mxu0
        %9330 = vmatprep.mubr.bf16.mxu0 0
        %9331 = vmatmul.mubr.bf16.gmra.mxu0 %v9260
        %v9332 = vpop.f32.mrf.mxu0
        %v9333 = vadd.f32 %v9163, %v9332
        %v9334 = vpop.f32.mrf.mxu0
        %v9335 = vpop.f32.mrf.mxu0
        %v9336 = vadd.f32 %v9168, %v9335
        %v9337 = vpop.f32.mrf.mxu0
        %9338 = vmatprep.mubr.bf16.mxu0 0
        %9339 = vmatmul.mubr.bf16.gmra.mxu0 %v9263
        %v9340 = vpop.f32.mrf.mxu0
        %v9341 = vadd.f32 %v9173, %v9340
        %v9342 = vpop.f32.mrf.mxu0
        %v9343 = vpop.f32.mrf.mxu0
        %v9344 = vadd.f32 %v9178, %v9343
        %v9345 = vpop.f32.mrf.mxu0
        %9346 = vmatprep.mubr.bf16.mxu0 0
        %9347 = vmatmul.mubr.bf16.gmra.mxu0 %v9266
        %v9348 = vpop.f32.mrf.mxu0
        %v9349 = vadd.f32 %v9183, %v9348
        %v9350 = vpop.f32.mrf.mxu0
        %v9351 = vpop.f32.mrf.mxu0
        %v9352 = vadd.f32 %v9188, %v9351
        %v9353 = vpop.f32.mrf.mxu0
        %9354 = vmatprep.mubr.bf16.mxu0 0
        %9355 = vmatmul.mubr.bf16.gmra.mxu0 %v9269
        %v9356 = vpop.f32.mrf.mxu0
        %v9357 = vadd.f32 %v9193, %v9356
        %v9358 = vpop.f32.mrf.mxu0
        %v9359 = vpop.f32.mrf.mxu0
        %v9360 = vadd.f32 %v9198, %v9359
        %v9361 = vpop.f32.mrf.mxu0
        %9362 = vmatprep.mubr.bf16.mxu0 0
        %9363 = vmatmul.mubr.bf16.gmra.mxu0 %v9272
        %v9364 = vpop.f32.mrf.mxu0
        %v9365 = vadd.f32 %v9203, %v9364
        %v9366 = vpop.f32.mrf.mxu0
        %v9367 = vpop.f32.mrf.mxu0
        %v9368 = vadd.f32 %v9208, %v9367
        %v9369 = vpop.f32.mrf.mxu0
        %9370 = vdwg.mxu0
        %9371 = vst.msk [vmem:[%s7636 + $0x300] sm:$0xff] %vm697, %v9309
        %9372 = vst.msk [vmem:[%s7636 + $0x308] sm:$0xff] %vm697, %v9312
        %9373 = vst.msk [vmem:[%s7636 + $0x310] sm:$0xff] %vm697, %v9317
        %9374 = vst.msk [vmem:[%s7636 + $0x318] sm:$0xff] %vm697, %v9320
        %9375 = vst.msk [vmem:[%s7636 + $0x320] sm:$0xff] %vm697, %v9325
        %9376 = vst.msk [vmem:[%s7636 + $0x328] sm:$0xff] %vm697, %v9328
        %9377 = vst.msk [vmem:[%s7636 + $0x330] sm:$0xff] %vm697, %v9333
        %9378 = vst.msk [vmem:[%s7636 + $0x338] sm:$0xff] %vm697, %v9336
        %9379 = vst.msk [vmem:[%s7636 + $0x340] sm:$0xff] %vm697, %v9341
        %9380 = vst.msk [vmem:[%s7636 + $0x348] sm:$0xff] %vm697, %v9344
        %9381 = vst.msk [vmem:[%s7636 + $0x350] sm:$0xff] %vm697, %v9349
        %9382 = vst.msk [vmem:[%s7636 + $0x358] sm:$0xff] %vm697, %v9352
        %9383 = vst.msk [vmem:[%s7636 + $0x360] sm:$0xff] %vm697, %v9357
        %9384 = vst.msk [vmem:[%s7636 + $0x368] sm:$0xff] %vm697, %v9360
        %9385 = vst.msk [vmem:[%s7636 + $0x370] sm:$0xff] %vm697, %v9365
        %9386 = vst.msk [vmem:[%s7636 + $0x378] sm:$0xff] %vm697, %v9368
        %v9387 = vld [vmem:[%s2 + $0x1c0] sm:$0xf]
        %v9388 = vld [vmem:[%s2 + $0x1c4] sm:$0xf]
        %v9389 = vld [vmem:[%s2 + $0x1c8] sm:$0xf]
        %v9390 = vld [vmem:[%s2 + $0x1cc] sm:$0xf]
        %v9391 = vld [vmem:[%s2 + $0x1d0] sm:$0xf]
        %v9392 = vld [vmem:[%s2 + $0x1d4] sm:$0xf]
        %v9393 = vld [vmem:[%s2 + $0x1d8] sm:$0xf]
        %v9394 = vld [vmem:[%s2 + $0x1dc] sm:$0xf]
        %v9395 = vld [vmem:[%s2 + $0x1e0] sm:$0xf]
        %v9396 = vld [vmem:[%s2 + $0x1e4] sm:$0xf]
        %v9397 = vld [vmem:[%s2 + $0x1e8] sm:$0xf]
        %v9398 = vld [vmem:[%s2 + $0x1ec] sm:$0xf]
        %v9399 = vld [vmem:[%s2 + $0x1f0] sm:$0xf]
        %v9400 = vld [vmem:[%s2 + $0x1f4] sm:$0xf]
        %v9401 = vld [vmem:[%s2 + $0x1f8] sm:$0xf]
        %v9402 = vld [vmem:[%s2 + $0x1fc] sm:$0xf]
        %v9403 = vld [vmem:[%s4 + $0x380] sm:$0xff]
        %v9404 = vld [vmem:[%s4 + $0x388] sm:$0xff]
        %v9405 = vld [vmem:[%s4 + $0x390] sm:$0xff]
        %v9406 = vld [vmem:[%s4 + $0x398] sm:$0xff]
        %v9407 = vld [vmem:[%s4 + $0x3a0] sm:$0xff]
        %v9408 = vld [vmem:[%s4 + $0x3a8] sm:$0xff]
        %v9409 = vld [vmem:[%s4 + $0x3b0] sm:$0xff]
        %v9410 = vld [vmem:[%s4 + $0x3b8] sm:$0xff]
        %v9411 = vld [vmem:[%s4 + $0x3c0] sm:$0xff]
        %v9412 = vld [vmem:[%s4 + $0x3c8] sm:$0xff]
        %v9413 = vld [vmem:[%s4 + $0x3d0] sm:$0xff]
        %v9414 = vld [vmem:[%s4 + $0x3d8] sm:$0xff]
        %v9415 = vld [vmem:[%s4 + $0x3e0] sm:$0xff]
        %v9416 = vld [vmem:[%s4 + $0x3e8] sm:$0xff]
        %v9417 = vld [vmem:[%s4 + $0x3f0] sm:$0xff]
        %v9418 = vld [vmem:[%s4 + $0x3f8] sm:$0xff]
        %9420 = vset.pattern.permute.xlu0 0
        %9421 = vperm.xlu0 %9420, %v9403
        %v9422 = vpop.permute.xlu0 %9421
        %9425 = vset.pattern.permute.xlu0 0
        %9426 = vperm.xlu0 %9425, %v9404
        %v9427 = vpop.permute.xlu0 %9426
        %9430 = vset.pattern.permute.xlu0 0
        %9431 = vperm.xlu0 %9430, %v9405
        %v9432 = vpop.permute.xlu0 %9431
        %9435 = vset.pattern.permute.xlu0 0
        %9436 = vperm.xlu0 %9435, %v9406
        %v9437 = vpop.permute.xlu0 %9436
        %9440 = vset.pattern.permute.xlu0 0
        %9441 = vperm.xlu0 %9440, %v9407
        %v9442 = vpop.permute.xlu0 %9441
        %9445 = vset.pattern.permute.xlu0 0
        %9446 = vperm.xlu0 %9445, %v9408
        %v9447 = vpop.permute.xlu0 %9446
        %9450 = vset.pattern.permute.xlu0 0
        %9451 = vperm.xlu0 %9450, %v9409
        %v9452 = vpop.permute.xlu0 %9451
        %9455 = vset.pattern.permute.xlu0 0
        %9456 = vperm.xlu0 %9455, %v9410
        %v9457 = vpop.permute.xlu0 %9456
        %9460 = vset.pattern.permute.xlu0 0
        %9461 = vperm.xlu0 %9460, %v9411
        %v9462 = vpop.permute.xlu0 %9461
        %9465 = vset.pattern.permute.xlu0 0
        %9466 = vperm.xlu0 %9465, %v9412
        %v9467 = vpop.permute.xlu0 %9466
        %9470 = vset.pattern.permute.xlu0 0
        %9471 = vperm.xlu0 %9470, %v9413
        %v9472 = vpop.permute.xlu0 %9471
        %9475 = vset.pattern.permute.xlu0 0
        %9476 = vperm.xlu0 %9475, %v9414
        %v9477 = vpop.permute.xlu0 %9476
        %9480 = vset.pattern.permute.xlu0 0
        %9481 = vperm.xlu0 %9480, %v9415
        %v9482 = vpop.permute.xlu0 %9481
        %9485 = vset.pattern.permute.xlu0 0
        %9486 = vperm.xlu0 %9485, %v9416
        %v9487 = vpop.permute.xlu0 %9486
        %9490 = vset.pattern.permute.xlu0 0
        %9491 = vperm.xlu0 %9490, %v9417
        %v9492 = vpop.permute.xlu0 %9491
        %9495 = vset.pattern.permute.xlu0 0
        %9496 = vperm.xlu0 %9495, %v9418
        %v9497 = vpop.permute.xlu0 %9496
        %v9515 = vunpack.c.l.b16 %v9387
        %v9516 = vunpack.c.l.b16 %v9388
        %v9517 = vunpack.c.l.b16 %v9389
        %v9518 = vunpack.c.l.b16 %v9390
        %v9519 = vunpack.c.l.b16 %v9391
        %v9520 = vunpack.c.l.b16 %v9392
        %v9521 = vunpack.c.l.b16 %v9393
        %v9522 = vunpack.c.l.b16 %v9394
        %v9523 = vunpack.c.l.b16 %v9395
        %v9524 = vunpack.c.l.b16 %v9396
        %v9525 = vunpack.c.l.b16 %v9397
        %v9526 = vunpack.c.l.b16 %v9398
        %v9527 = vunpack.c.l.b16 %v9399
        %v9528 = vunpack.c.l.b16 %v9400
        %v9529 = vunpack.c.l.b16 %v9401
        %v9530 = vunpack.c.l.b16 %v9402
        %v9531 = vpack.c.b16 %v9516, %v9515
        %v9532 = vpack.c.b16 %v9518, %v9517
        %v9533 = vpack.c.b16 %v9520, %v9519
        %v9534 = vpack.c.b16 %v9522, %v9521
        %v9535 = vpack.c.b16 %v9524, %v9523
        %v9536 = vpack.c.b16 %v9526, %v9525
        %v9537 = vpack.c.b16 %v9528, %v9527
        %v9538 = vpack.c.b16 %v9530, %v9529
        %v9540 = vsel %vm575, %v9531, 0
        %v9543 = vsel %vm575, %v9532, 0
        %v9546 = vsel %vm575, %v9533, 0
        %v9549 = vsel %vm575, %v9534, 0
        %v9552 = vsel %vm575, %v9535, 0
        %v9555 = vsel %vm575, %v9536, 0
        %v9558 = vsel %vm575, %v9537, 0
        %v9561 = vsel %vm575, %v9538, 0
        %9563 = vmatprep.subr.bf16.mxu0 0
        %9564 = vmatpush1.bf16.msra.mxu0 0
        %9565 = vmatprep.subr.bf16.mxu0 0
        %9566 = vmatpush1.bf16.msra.mxu0 0
        %9567 = vmatprep.subr.bf16.mxu0 0
        %9568 = vmatpush1.bf16.msra.mxu0 0
        %9569 = vmatprep.subr.bf16.mxu0 0
        %9570 = vmatpush1.bf16.msra.mxu0 0
        %9571 = vmatprep.subr.bf16.mxu0 0
        %9572 = vmatpush1.bf16.msra.mxu0 0
        %9573 = vmatprep.subr.bf16.mxu0 0
        %9574 = vmatpush1.bf16.msra.mxu0 0
        %9575 = vmatprep.subr.bf16.mxu0 0
        %9576 = vmatpush1.bf16.msra.mxu0 %v422
        %9577 = vmatprep.subr.bf16.mxu0 0
        %9578 = vmatpush1.bf16.msra.mxu0 %v421
        %9579 = vmatprep.subr.bf16.mxu0 0
        %9580 = vmatpush2.bf16.msra.mxu0 0
        %9581 = vmatprep.subr.bf16.mxu0 0
        %9582 = vmatpush2.bf16.msra.mxu0 0
        %9583 = vmatprep.subr.bf16.mxu0 0
        %9584 = vmatpush2.bf16.msra.mxu0 0
        %9585 = vmatprep.subr.bf16.mxu0 0
        %9586 = vmatpush2.bf16.msra.mxu0 0
        %9587 = vmatprep.subr.bf16.mxu0 0
        %9588 = vmatpush2.bf16.msra.mxu0 0
        %9589 = vmatprep.subr.bf16.mxu0 0
        %9590 = vmatpush2.bf16.msra.mxu0 0
        %9591 = vmatprep.subr.bf16.mxu0 0
        %9592 = vmatpush2.bf16.msra.mxu0 0
        %9593 = vmatprep.subr.bf16.mxu0 0
        %9594 = vmatpush2.bf16.msra.mxu0 0
        %9595 = vmatprep.mubr.bf16.mxu0 0
        %9596 = vmatmul.mubr.bf16.gmra.mxu0 %v9540
        %v9597 = vpop.f32.mrf.mxu0
        %v9598 = vadd.f32 %v9422, %v9597
        %v9599 = vpop.f32.mrf.mxu0
        %v9600 = vpop.f32.mrf.mxu0
        %v9601 = vadd.f32 %v9427, %v9600
        %v9602 = vpop.f32.mrf.mxu0
        %9603 = vmatprep.mubr.bf16.mxu0 0
        %9604 = vmatmul.mubr.bf16.gmra.mxu0 %v9543
        %v9605 = vpop.f32.mrf.mxu0
        %v9606 = vadd.f32 %v9432, %v9605
        %v9607 = vpop.f32.mrf.mxu0
        %v9608 = vpop.f32.mrf.mxu0
        %v9609 = vadd.f32 %v9437, %v9608
        %v9610 = vpop.f32.mrf.mxu0
        %9611 = vmatprep.mubr.bf16.mxu0 0
        %9612 = vmatmul.mubr.bf16.gmra.mxu0 %v9546
        %v9613 = vpop.f32.mrf.mxu0
        %v9614 = vadd.f32 %v9442, %v9613
        %v9615 = vpop.f32.mrf.mxu0
        %v9616 = vpop.f32.mrf.mxu0
        %v9617 = vadd.f32 %v9447, %v9616
        %v9618 = vpop.f32.mrf.mxu0
        %9619 = vmatprep.mubr.bf16.mxu0 0
        %9620 = vmatmul.mubr.bf16.gmra.mxu0 %v9549
        %v9621 = vpop.f32.mrf.mxu0
        %v9622 = vadd.f32 %v9452, %v9621
        %v9623 = vpop.f32.mrf.mxu0
        %v9624 = vpop.f32.mrf.mxu0
        %v9625 = vadd.f32 %v9457, %v9624
        %v9626 = vpop.f32.mrf.mxu0
        %9627 = vmatprep.mubr.bf16.mxu0 0
        %9628 = vmatmul.mubr.bf16.gmra.mxu0 %v9552
        %v9629 = vpop.f32.mrf.mxu0
        %v9630 = vadd.f32 %v9462, %v9629
        %v9631 = vpop.f32.mrf.mxu0
        %v9632 = vpop.f32.mrf.mxu0
        %v9633 = vadd.f32 %v9467, %v9632
        %v9634 = vpop.f32.mrf.mxu0
        %9635 = vmatprep.mubr.bf16.mxu0 0
        %9636 = vmatmul.mubr.bf16.gmra.mxu0 %v9555
        %v9637 = vpop.f32.mrf.mxu0
        %v9638 = vadd.f32 %v9472, %v9637
        %v9639 = vpop.f32.mrf.mxu0
        %v9640 = vpop.f32.mrf.mxu0
        %v9641 = vadd.f32 %v9477, %v9640
        %v9642 = vpop.f32.mrf.mxu0
        %9643 = vmatprep.mubr.bf16.mxu0 0
        %9644 = vmatmul.mubr.bf16.gmra.mxu0 %v9558
        %v9645 = vpop.f32.mrf.mxu0
        %v9646 = vadd.f32 %v9482, %v9645
        %v9647 = vpop.f32.mrf.mxu0
        %v9648 = vpop.f32.mrf.mxu0
        %v9649 = vadd.f32 %v9487, %v9648
        %v9650 = vpop.f32.mrf.mxu0
        %9651 = vmatprep.mubr.bf16.mxu0 0
        %9652 = vmatmul.mubr.bf16.gmra.mxu0 %v9561
        %v9653 = vpop.f32.mrf.mxu0
        %v9654 = vadd.f32 %v9492, %v9653
        %v9655 = vpop.f32.mrf.mxu0
        %v9656 = vpop.f32.mrf.mxu0
        %v9657 = vadd.f32 %v9497, %v9656
        %v9658 = vpop.f32.mrf.mxu0
        %9659 = vdwg.mxu0
        %9660 = vst.msk [vmem:[%s7636 + $0x380] sm:$0xff] %vm697, %v9598
        %9661 = vst.msk [vmem:[%s7636 + $0x388] sm:$0xff] %vm697, %v9601
        %9662 = vst.msk [vmem:[%s7636 + $0x390] sm:$0xff] %vm697, %v9606
        %9663 = vst.msk [vmem:[%s7636 + $0x398] sm:$0xff] %vm697, %v9609
        %9664 = vst.msk [vmem:[%s7636 + $0x3a0] sm:$0xff] %vm697, %v9614
        %9665 = vst.msk [vmem:[%s7636 + $0x3a8] sm:$0xff] %vm697, %v9617
        %9666 = vst.msk [vmem:[%s7636 + $0x3b0] sm:$0xff] %vm697, %v9622
        %9667 = vst.msk [vmem:[%s7636 + $0x3b8] sm:$0xff] %vm697, %v9625
        %9668 = vst.msk [vmem:[%s7636 + $0x3c0] sm:$0xff] %vm697, %v9630
        %9669 = vst.msk [vmem:[%s7636 + $0x3c8] sm:$0xff] %vm697, %v9633
        %9670 = vst.msk [vmem:[%s7636 + $0x3d0] sm:$0xff] %vm697, %v9638
        %9671 = vst.msk [vmem:[%s7636 + $0x3d8] sm:$0xff] %vm697, %v9641
        %9672 = vst.msk [vmem:[%s7636 + $0x3e0] sm:$0xff] %vm697, %v9646
        %9673 = vst.msk [vmem:[%s7636 + $0x3e8] sm:$0xff] %vm697, %v9649
        %9674 = vst.msk [vmem:[%s7636 + $0x3f0] sm:$0xff] %vm697, %v9654
        %9675 = vst.msk [vmem:[%s7636 + $0x3f8] sm:$0xff] %vm697, %v9657
        %p9676 = scmp.lt.s32.totalorder %s18, 1
        %s9677 = scalar_select %p9676, %s18, 1
        %s9678 = smul.addr %s9677, 512
        %s9679 = smul.addr %s9678, 8
        %s9680 = scalar_lea.vmem %s5, %s9679
        // Predicated region
        $region49: #{extend_forward.1} parent=39 // pred_check
          %p9681 = pneg %p146
        $region50: #{extend_forward.1} parent=39 // pred_check_branch
          %9683 = sbr.rel (%p9681) target = $region52
        $region51: #{extend_forward.1} parent=39 // pred_region
          _
        $region52: #{extend_forward.1} parent=39 // pred_fallthru
          _
      $region40: #{extend_forward.1} parent=5 // pred_fallthru
        _
      %p9684 = scmp.le.s32.totalorder 2, %s13
      // Predicated region
      $region53: #{extend_forward.1} parent=5 // pred_check
        %p9685 = pneg %p9684
      $region54: #{extend_forward.1} parent=5 // pred_check_branch
        %9687 = sbr.rel (%p9685) target = $region56
      $region55: #{extend_forward.1} parent=5 // pred_region
        %s9688 = ssub.s32 %s13, 2
        // Predicated region
        $region57: #{extend_forward.1} parent=55 // pred_check
          %p9689 = pneg %p152
        $region58: #{extend_forward.1} parent=55 // pred_check_branch
          %9691 = sbr.rel (%p9689) target = $region60
        $region59: #{extend_forward.1} parent=55 // pred_region
          %p9692 = scmp.lt.s32.totalorder %s19, 1
          %s9693 = scalar_select %p9692, %s19, 1
          %s9694 = smul.addr %s9693, 512
          %s9695 = smul.addr %s9694, 8
          %s9696 = scalar_lea.vmem %s5, %s9695
        $region60: #{extend_forward.1} parent=55 // pred_fallthru
          _
      $region56: #{extend_forward.1} parent=5 // pred_fallthru
        _
    $region6: #{extend_forward.1} parent=1 // loop_footer
      %s17 = sadd.s32 1, %s13
    $region7: #{extend_forward.1} parent=1 // loop_footer_branch
      %12 = sbr.rel target = $region3
    $region8: #{extend_forward.1} parent=1 // loop_exit
      _
    %9697 = vsyncpa [#allocation3], 1
    %s9698 = scalar_lea.sflag [#allocation3], 1
    %9699 = vsyncpa %s9698, 1
    %9700 = vsyncpa [#allocation5], 1

</llo_original>
